<compile_context>
chip_gen: v7x
topology: tpu7x:2x2x1
jax: 0.10.0
libtpu: 0.0.40
codegen_flags: <defaults>
</compile_context>

<pallas_src>
import jax
import jax.numpy as jnp
from jax import lax
from jax.experimental import pallas as pl
from jax.experimental.pallas import tpu as pltpu

LANES = 128      # vreg lane width: out-channel and K dims are padded to this
SUBLANES = 8     # vreg sublane width: matmul row dim is padded to this


def _round_up(v, m):
    return ((v + m - 1) // m) * m


# ---------------------------------------------------------------------------
# Pallas kernels (hot path)
# ---------------------------------------------------------------------------

def _make_fused_layer_kernel(n_phases, true_rows, *, with_bias, with_bn,
                             relu, sigmoid, with_mul):
    """Kernel: for each phase p, y_p = patches_p @ weights_p (+ bias); optional
    training-mode BatchNorm2d whose per-channel statistics are taken over the union
    of all phases' true rows (== over N*H_out*W_out); ReLU / Sigmoid; optional
    element-wise post-multiply (used to fuse mask * mix into the grow layer).
    Zero-padded rows / K columns / channel lanes contribute exactly 0 to the matmul
    and to the BN sufficient statistics (no-bias layers), so padding is inert."""
    inv_rows = 1.0 / float(true_rows)

    def kernel(*refs):
        a_refs = refs[0:n_phases]
        b_refs = refs[n_phases:2 * n_phases]
        idx = 2 * n_phases
        bias_row = None
        if with_bias:
            bias_row = refs[idx][...]
            idx += 1
        if with_bn:
            gamma_row = refs[idx][...]
            beta_row = refs[idx + 1][...]
            idx += 2
        m_refs = None
        if with_mul:
            m_refs = refs[idx:idx + n_phases]
            idx += n_phases
        o_refs = refs[idx:idx + n_phases]

        ys = []
        for p in range(n_phases):
            y = jnp.dot(a_refs[p][...], b_refs[p][...],
                        preferred_element_type=jnp.float32)
            if with_bias:
                y = y + bias_row
            ys.append(y)

        if with_bn:
            # biased batch statistics (PyTorch BatchNorm2d training mode, eps=1e-5)
            s = ys[0].sum(axis=0, keepdims=True)
            ss = (ys[0] * ys[0]).sum(axis=0, keepdims=True)
            for y in ys[1:]:
                s = s + y.sum(axis=0, keepdims=True)
                ss = ss + (y * y).sum(axis=0, keepdims=True)
            mean = s * inv_rows
            var = jnp.maximum(ss * inv_rows - mean * mean, 0.0)
            scale = gamma_row * lax.rsqrt(var + 1e-5)
            shift = beta_row - mean * scale
            ys = [y * scale + shift for y in ys]

        for p in range(n_phases):
            y = ys[p]
            if relu:
                y = jnp.maximum(y, 0.0)
            if sigmoid:
                y = jax.nn.sigmoid(y)
            if with_mul:
                y = y * m_refs[p][...]
            o_refs[p][...] = y

    return kernel


def _pad_row(v, width):
    v = v.reshape(1, -1).astype(jnp.float32)
    return jnp.pad(v, ((0, 0), (0, width - v.shape[1])))


def _fused_layer_call(patch_list, weight_list, true_rows, *,
                      bias=None, bn=None, relu=False, sigmoid=False, mul_list=None):
    """patch_list[p]: (Mp_pad, Kp_pad) f32; weight_list[p]: (Kp_pad, 128) f32.
    mul_list[p] (optional): (Mp_pad, 128) f32 post-multiplier (fused mask * mix).
    Returns list of (Mp_pad, 128) f32."""
    n = len(patch_list)
    n_out = int(weight_list[0].shape[1])     # padded out-channel width (128)
    kernel = _make_fused_layer_kernel(
        n, true_rows, with_bias=bias is not None, with_bn=bn is not None,
        relu=relu, sigmoid=sigmoid, with_mul=mul_list is not None)

    inputs = list(patch_list) + list(weight_list)
    if bias is not None:
        inputs.append(_pad_row(bias, n_out))
    if bn is not None:
        gamma, beta = bn
        inputs.append(_pad_row(gamma, n_out))   # zero-padded (not one-padded)
        inputs.append(_pad_row(beta, n_out))
    if mul_list is not None:
        inputs.extend(mul_list)

    vmem = pl.BlockSpec(memory_space=pltpu.MemorySpace.VMEM)
    outs = pl.pallas_call(
        kernel,
        out_shape=tuple(jax.ShapeDtypeStruct((int(a.shape[0]), n_out), jnp.float32)
                        for a in patch_list),
        in_specs=[vmem] * len(inputs),
        out_specs=tuple(vmem for _ in range(n)),
    )(*inputs)
    if not isinstance(outs, (list, tuple)):
        outs = (outs,)
    return list(outs)


# ---------------------------------------------------------------------------
# Plain-JAX glue (patch extraction, phase decomposition, layout plumbing)
# ---------------------------------------------------------------------------

def overlap_add_slicq(x):
    """(S, C, F, nb_slices, T) -> (S, C, F, nb_slices*T//2 + T//2), 50% overlap-add
    (single vectorized hop add, no per-slice scatter loop)."""
    S, C, F, nslices, T = x.shape
    hop = T // 2
    firsts = x[..., :hop]                       # (S, C, F, nslices, hop)
    seconds = x[..., hop:]
    mid = firsts[..., 1:, :] + seconds[..., :-1, :]
    out = jnp.concatenate([firsts[..., :1, :], mid, seconds[..., -1:, :]], axis=3)
    return out.reshape(S, C, F, (nslices + 1) * hop)


def _im2col(x, kh, kw, sh, sw):
    """NCHW -> lane-dense patch slab.
    Returns (patches (M_pad, K_pad) f32, (N, Ho, Wo)); K padded to 128, rows to 8."""
    N, C, H, W = x.shape
    Ho = (H - kh) // sh + 1
    Wo = (W - kw) // sw + 1
    cols = []
    for i in range(kh):
        for j in range(kw):
            cols.append(x[:, :,
                          i:i + sh * (Ho - 1) + 1:sh,
                          j:j + sw * (Wo - 1) + 1:sw])
    cols = jnp.stack(cols, axis=-1)               # (N, C, Ho, Wo, kh*kw)
    cols = jnp.transpose(cols, (0, 2, 3, 1, 4))   # (N, Ho, Wo, C, kh*kw)
    K = C * kh * kw
    M = N * Ho * Wo
    patches = cols.reshape(M, K).astype(jnp.float32)
    patches = jnp.pad(patches, ((0, _round_up(M, SUBLANES) - M),
                                (0, _round_up(K, LANES) - K)))
    return patches, (N, Ho, Wo)


def _prep_conv_weight(w_oihw):
    """(O, Ci, kh, kw) -> (round_up(Ci*kh*kw,128), round_up(O,128)) f32, zero-padded."""
    O, Ci, kh, kw = w_oihw.shape
    K = Ci * kh * kw
    b = w_oihw.reshape(O, K).T.astype(jnp.float32)
    return jnp.pad(b, ((0, _round_up(K, LANES) - K), (0, _round_up(O, LANES) - O)))


def conv2d_bn_relu(x, w, stride, gamma, beta):
    """Conv2d (no padding, dilation 1, bias=False) + BatchNorm2d(train) + ReLU,
    fused in one pallas_call. x: NCHW, w: (O, Ci, kh, kw)."""
    O = w.shape[0]
    patches, (N, Ho, Wo) = _im2col(x, w.shape[2], w.shape[3], *stride)
    wmat = _prep_conv_weight(w)
    m_true = N * Ho * Wo
    (rows,) = _fused_layer_call([patches], [wmat], m_true,
                                bn=(gamma, beta), relu=True)
    return rows[:m_true, :O].reshape(N, Ho, Wo, O).transpose(0, 3, 1, 2)


def conv_transpose2d_fused(x, w_iohw, stride, *, bias=None, bn=None,
                           relu=False, sigmoid=False, post_mul=None):
    """PyTorch ConvTranspose2d (no padding/output_padding, dilation 1), stride=(1,sw),
    fused with optional bias / BatchNorm2d(train) / ReLU / Sigmoid / element-wise
    post-multiply (post_mul: NCHW array of width <= W_out, zero-extended).
    Decomposed by output-width phase p = wo % sw: phase p only involves kernel taps
    j == p (mod sw) applied to the un-upsampled input (no zero upsampling)."""
    Ci, Co, kh, kw = w_iohw.shape
    sh, sw = stride
    assert sh == 1
    N, _, H, W = x.shape
    H_out = H + kh - 1
    W_out = (W - 1) * sw + kw

    pm = None
    if post_mul is not None:
        pm = post_mul.astype(jnp.float32)
        if pm.shape[3] < W_out:
            pm = jnp.pad(pm, ((0, 0), (0, 0), (0, 0), (0, W_out - pm.shape[3])))

    patch_list, weight_list, metas = [], [], []
    mul_list = [] if post_mul is not None else None
    for ph in range(sw):
        w_p = w_iohw[:, :, :, ph::sw]                               # (Ci, Co, kh, kw_p)
        kw_p = w_p.shape[3]
        # per-phase "full" convolution == pad + valid correlation with flipped kernel
        w_conv = jnp.flip(w_p, axis=(2, 3)).transpose(1, 0, 2, 3)   # (Co, Ci, kh, kw_p)
        x_pad = jnp.pad(x, ((0, 0), (0, 0), (kh - 1, kh - 1), (kw_p - 1, kw_p - 1)))
        patches, meta = _im2col(x_pad, kh, kw_p, 1, 1)
        patch_list.append(patches)
        weight_list.append(_prep_conv_weight(w_conv))
        metas.append(meta)
        if pm is not None:
            # multiplier for output column wo = sw*q + ph, laid out like this phase's rows
            Np, Hp, Wp = meta
            m = pm[:, :, :, ph::sw][:, :, :, :Wp]                   # (N, Co, Hp, Wp)
            m = m.transpose(0, 2, 3, 1).reshape(Np * Hp * Wp, Co)
            m = jnp.pad(m, ((0, patches.shape[0] - Np * Hp * Wp), (0, LANES - Co)))
            mul_list.append(m)

    true_rows = sum(m0 * m1 * m2 for (m0, m1, m2) in metas)
    outs = _fused_layer_call(patch_list, weight_list, true_rows,
                             bias=bias, bn=bn, relu=relu, sigmoid=sigmoid,
                             mul_list=mul_list)

    # interleave the phases: output column wo = sw*q + p
    W0 = metas[0][2]                                  # phase-0 width (the widest)
    phase_nhwc = []
    for ph in range(sw):
        Np, Hp, Wp = metas[ph]
        o = outs[ph][:Np * Hp * Wp, :Co].reshape(Np, Hp, Wp, Co)
        if Wp < W0:
            o = jnp.pad(o, ((0, 0), (0, 0), (0, W0 - Wp), (0, 0)))
        phase_nhwc.append(o)
    y = jnp.stack(phase_nhwc, axis=3).reshape(N, H_out, W0 * sw, Co)[:, :, :W_out, :]
    return y.transpose(0, 3, 1, 2)                    # NCHW


# ---------------------------------------------------------------------------
# OpenUnmixTimeBucket parameters + forward
# ---------------------------------------------------------------------------

def init_bucket_params(key, sample_shape):
    S, C, F, nslices, T = sample_shape
    channels = [C, 25, 55]
    ff = max(F // 2, 1)            # frequency_filter = max(nb_f_bins // layers, 1)
    k = (ff, 7)
    keys = jax.random.split(key, 14)
    p = {}
    # encoder: Conv2d(C->25, bias=False), BN, ReLU, Conv2d(25->55, bias=False), BN, ReLU
    p["enc0_w"] = 0.1 * jax.random.normal(keys[0], (channels[1], channels[0], *k), jnp.float32)
    p["bn0_g"] = 1.0 + 0.05 * jax.random.normal(keys[1], (channels[1],), jnp.float32)
    p["bn0_b"] = 0.05 * jax.random.normal(keys[2], (channels[1],), jnp.float32)
    p["enc1_w"] = 0.1 * jax.random.normal(keys[3], (channels[2], channels[1], *k), jnp.float32)
    p["bn1_g"] = 1.0 + 0.05 * jax.random.normal(keys[4], (channels[2],), jnp.float32)
    p["bn1_b"] = 0.05 * jax.random.normal(keys[5], (channels[2],), jnp.float32)
    # decoder: ConvT(55->25), BN, ReLU, ConvT(25->C), BN, ReLU  (weights (Cin, Cout, kh, kw))
    p["dec0_w"] = 0.1 * jax.random.normal(keys[6], (channels[2], channels[1], *k), jnp.float32)
    p["bn2_g"] = 1.0 + 0.05 * jax.random.normal(keys[7], (channels[1],), jnp.float32)
    p["bn2_b"] = 0.05 * jax.random.normal(keys[8], (channels[1],), jnp.float32)
    p["dec1_w"] = 0.1 * jax.random.normal(keys[9], (channels[1], channels[0], *k), jnp.float32)
    p["bn3_g"] = 1.0 + 0.05 * jax.random.normal(keys[10], (channels[0],), jnp.float32)
    p["bn3_b"] = 0.05 * jax.random.normal(keys[11], (channels[0],), jnp.float32)
    # grow: ConvTranspose2d(C, C, (1, T), stride=(1, 2), bias=True) + Sigmoid
    p["grow_w"] = 0.1 * jax.random.normal(keys[12], (C, C, 1, T), jnp.float32)
    p["grow_b"] = 0.05 * jax.random.normal(keys[13], (C,), jnp.float32)
    return p


def bucket_forward(p, x):
    """x: (nb_samples, nb_channels, nb_f_bins, nb_slices, nb_t_bins), float32."""
    mix = x                                     # mix = x.detach().clone()
    S, C, F, nslices, T = x.shape
    stride = (1, 3)

    h = overlap_add_slicq(x.astype(jnp.float32))        # (S, C, F, ncoefs) -- PRE-CDAE

    # ---- CDAE encoder (fused Conv2d + BN + ReLU, one pallas_call each) ----
    h = conv2d_bn_relu(h, p["enc0_w"], stride, p["bn0_g"], p["bn0_b"])
    h = conv2d_bn_relu(h, p["enc1_w"], stride, p["bn1_g"], p["bn1_b"])

    # ---- CDAE decoder (phase-decomposed ConvT + BN + ReLU, one pallas_call each) ----
    h = conv_transpose2d_fused(h, p["dec0_w"], stride,
                               bn=(p["bn2_g"], p["bn2_b"]), relu=True)
    h = conv_transpose2d_fused(h, p["dec1_w"], stride,
                               bn=(p["bn3_g"], p["bn3_b"]), relu=True)

    # ---- grow: ConvTranspose2d(+bias) + Sigmoid + mask multiply, all fused.
    # sigmoid(logits) * mix commutes with the crop / reshape that follow, so the
    # multiplier is just mix flattened over (slices, t) and zero-extended; the
    # extra (cropped) columns are discarded below.
    mix_w = mix.astype(jnp.float32).reshape(S, C, F, nslices * T)
    g = conv_transpose2d_fused(h, p["grow_w"], (1, 2),
                               bias=p["grow_b"], sigmoid=True,
                               post_mul=mix_w)          # (S, C, F, W_grow), masked
    g = g[:, :, :, : T * nslices]                        # crop
    return g.reshape(S, C, F, nslices, T)


class OpenUnmix:
    """Jagged per-time-bucket unmix: dict of OpenUnmixTimeBucket parameter sets."""

    def __init__(self, jagged_slicq_sample_input, key=jax.random.PRNGKey(0)):
        self.params = {}
        for i, (time_bucket, c_block) in enumerate(jagged_slicq_sample_input.items()):
            self.params[str(time_bucket)] = init_bucket_params(
                jax.random.fold_in(key, i), c_block.shape)
        self._forward = jax.jit(bucket_forward)   # one trace per bucket shape

    def forward(self, time_bucket: str, x):
        return self._forward(self.params[time_bucket], x)


# ---------------------------------------------------------------------------
if __name__ == "__main__":
    key = jax.random.PRNGKey(0)
    k_s0, k_s1, k_x0, k_x1 = jax.random.split(key, 4)

    # jagged sliCQ sample inputs: (nb_samples, nb_channels, nb_f_bins, nb_slices, nb_t_bins)
    jagged = {
        0: jax.random.normal(k_s0, (2, 2, 8, 6, 16), jnp.float32),
        1: jax.random.normal(k_s1, (2, 2, 12, 4, 32), jnp.float32),
    }
    model = OpenUnmix(jagged)

    x0 = jax.random.normal(k_x0, (2, 2, 8, 6, 16), jnp.float32)
    x1 = jax.random.normal(k_x1, (2, 2, 12, 4, 32), jnp.float32)

    y0 = model.forward("0", x0)
    y1 = model.forward("1", x1)
    jax.block_until_ready((y0, y1))

    assert y0.shape == x0.shape and y0.dtype == jnp.float32
    assert y1.shape == x1.shape and y1.dtype == jnp.float32
    assert bool(jnp.all(jnp.isfinite(y0))) and bool(jnp.all(jnp.isfinite(y1)))
    print("KERNEL_OK")
</pallas_src>

<mosaic_0001>
module attributes {stable_mosaic.version = 11 : i64} {
  func.func @kernel(%arg0: memref<176x128xf32, #tpu.memory_space<vmem>>, %arg1: memref<128x128xf32, #tpu.memory_space<vmem>>, %arg2: memref<1x128xf32, #tpu.memory_space<vmem>>, %arg3: memref<1x128xf32, #tpu.memory_space<vmem>>, %arg4: memref<176x128xf32, #tpu.memory_space<vmem>>) attributes {dimension_semantics = [], scalar_prefetch = 0 : i64, scratch_operands = 0 : i64, tpu.core_type = #tpu.core_type<tc>} {
    %c0 = arith.constant 0 : index
    %c0_0 = arith.constant 0 : index
    %0 = vector.load %arg2[%c0, %c0_0] : memref<1x128xf32, #tpu.memory_space<vmem>>, vector<1x128xf32>
    %c0_1 = arith.constant 0 : index
    %c0_2 = arith.constant 0 : index
    %1 = vector.load %arg3[%c0_1, %c0_2] : memref<1x128xf32, #tpu.memory_space<vmem>>, vector<1x128xf32>
    %c0_3 = arith.constant 0 : index
    %c0_4 = arith.constant 0 : index
    %2 = vector.load %arg0[%c0_3, %c0_4] : memref<176x128xf32, #tpu.memory_space<vmem>>, vector<176x128xf32>
    %c0_5 = arith.constant 0 : index
    %c0_6 = arith.constant 0 : index
    %3 = vector.load %arg1[%c0_5, %c0_6] : memref<128x128xf32, #tpu.memory_space<vmem>>, vector<128x128xf32>
    %cst = arith.constant dense<0.000000e+00> : vector<176x128xf32>
    %4 = tpu.matmul %2, %3, %cst {dimension_numbers = #tpu.dot_dimension_numbers<[1], [0], [0], [1], [0, 0, 1, 1], [], []>} : vector<176x128xf32>, vector<128x128xf32>, vector<176x128xf32> -> vector<176x128xf32>
    %cst_7 = arith.constant dense<0.000000e+00> : vector<128xf32>
    %5 = vector.multi_reduction <add>, %4, %cst_7 [0] : vector<176x128xf32> to vector<128xf32>
    %6 = vector.shape_cast %5 : vector<128xf32> to vector<1x128xf32>
    %7 = arith.mulf %4, %4 : vector<176x128xf32>
    %cst_8 = arith.constant dense<0.000000e+00> : vector<128xf32>
    %8 = vector.multi_reduction <add>, %7, %cst_8 [0] : vector<176x128xf32> to vector<128xf32>
    %9 = vector.shape_cast %8 : vector<128xf32> to vector<1x128xf32>
    %cst_9 = arith.constant 0.00588235306 : f32
    %10 = vector.broadcast %cst_9 : f32 to vector<1x128xf32>
    %11 = arith.mulf %6, %10 : vector<1x128xf32>
    %cst_10 = arith.constant 0.00588235306 : f32
    %12 = vector.broadcast %cst_10 : f32 to vector<1x128xf32>
    %13 = arith.mulf %9, %12 : vector<1x128xf32>
    %14 = arith.mulf %11, %11 : vector<1x128xf32>
    %15 = arith.subf %13, %14 : vector<1x128xf32>
    %cst_11 = arith.constant 0.000000e+00 : f32
    %16 = vector.broadcast %cst_11 : f32 to vector<1x128xf32>
    %17 = arith.maximumf %15, %16 : vector<1x128xf32>
    %cst_12 = arith.constant 9.99999974E-6 : f32
    %18 = vector.broadcast %cst_12 : f32 to vector<1x128xf32>
    %19 = arith.addf %17, %18 : vector<1x128xf32>
    %20 = math.rsqrt %19 : vector<1x128xf32>
    %21 = arith.mulf %0, %20 : vector<1x128xf32>
    %22 = arith.mulf %11, %21 : vector<1x128xf32>
    %23 = arith.subf %1, %22 : vector<1x128xf32>
    %24 = vector.broadcast %21 : vector<1x128xf32> to vector<176x128xf32>
    %25 = arith.mulf %4, %24 : vector<176x128xf32>
    %26 = vector.broadcast %23 : vector<1x128xf32> to vector<176x128xf32>
    %27 = arith.addf %25, %26 : vector<176x128xf32>
    %cst_13 = arith.constant 0.000000e+00 : f32
    %28 = vector.broadcast %cst_13 : f32 to vector<176x128xf32>
    %29 = arith.maximumf %27, %28 : vector<176x128xf32>
    %c0_14 = arith.constant 0 : index
    %c0_15 = arith.constant 0 : index
    %30 = vector.load %arg4[%c0_14, %c0_15] : memref<176x128xf32, #tpu.memory_space<vmem>>, vector<176x128xf32>
    tpu.vector_store %arg4[%c0_14, %c0_15], %29 {strides = array<i32>} : memref<176x128xf32, #tpu.memory_space<vmem>>, vector<176x128xf32>,
    return
  }
}

module attributes {stable_mosaic.version = 11 : i64} {
  func.func @kernel(%arg0: memref<16x768xf32, #tpu.memory_space<vmem>>, %arg1: memref<768x128xf32, #tpu.memory_space<vmem>>, %arg2: memref<1x128xf32, #tpu.memory_space<vmem>>, %arg3: memref<1x128xf32, #tpu.memory_space<vmem>>, %arg4: memref<16x128xf32, #tpu.memory_space<vmem>>) attributes {dimension_semantics = [], scalar_prefetch = 0 : i64, scratch_operands = 0 : i64, tpu.core_type = #tpu.core_type<tc>} {
    %c0 = arith.constant 0 : index
    %c0_0 = arith.constant 0 : index
    %0 = vector.load %arg2[%c0, %c0_0] : memref<1x128xf32, #tpu.memory_space<vmem>>, vector<1x128xf32>
    %c0_1 = arith.constant 0 : index
    %c0_2 = arith.constant 0 : index
    %1 = vector.load %arg3[%c0_1, %c0_2] : memref<1x128xf32, #tpu.memory_space<vmem>>, vector<1x128xf32>
    %c0_3 = arith.constant 0 : index
    %c0_4 = arith.constant 0 : index
    %2 = vector.load %arg0[%c0_3, %c0_4] : memref<16x768xf32, #tpu.memory_space<vmem>>, vector<16x768xf32>
    %c0_5 = arith.constant 0 : index
    %c0_6 = arith.constant 0 : index
    %3 = vector.load %arg1[%c0_5, %c0_6] : memref<768x128xf32, #tpu.memory_space<vmem>>, vector<768x128xf32>
    %cst = arith.constant dense<0.000000e+00> : vector<16x128xf32>
    %4 = tpu.matmul %2, %3, %cst {dimension_numbers = #tpu.dot_dimension_numbers<[1], [0], [0], [1], [0, 0, 1, 1], [], []>} : vector<16x768xf32>, vector<768x128xf32>, vector<16x128xf32> -> vector<16x128xf32>
    %cst_7 = arith.constant dense<0.000000e+00> : vector<128xf32>
    %5 = vector.multi_reduction <add>, %4, %cst_7 [0] : vector<16x128xf32> to vector<128xf32>
    %6 = vector.shape_cast %5 : vector<128xf32> to vector<1x128xf32>
    %7 = arith.mulf %4, %4 : vector<16x128xf32>
    %cst_8 = arith.constant dense<0.000000e+00> : vector<128xf32>
    %8 = vector.multi_reduction <add>, %7, %cst_8 [0] : vector<16x128xf32> to vector<128xf32>
    %9 = vector.shape_cast %8 : vector<128xf32> to vector<1x128xf32>
    %cst_9 = arith.constant 6.250000e-02 : f32
    %10 = vector.broadcast %cst_9 : f32 to vector<1x128xf32>
    %11 = arith.mulf %6, %10 : vector<1x128xf32>
    %cst_10 = arith.constant 6.250000e-02 : f32
    %12 = vector.broadcast %cst_10 : f32 to vector<1x128xf32>
    %13 = arith.mulf %9, %12 : vector<1x128xf32>
    %14 = arith.mulf %11, %11 : vector<1x128xf32>
    %15 = arith.subf %13, %14 : vector<1x128xf32>
    %cst_11 = arith.constant 0.000000e+00 : f32
    %16 = vector.broadcast %cst_11 : f32 to vector<1x128xf32>
    %17 = arith.maximumf %15, %16 : vector<1x128xf32>
    %cst_12 = arith.constant 9.99999974E-6 : f32
    %18 = vector.broadcast %cst_12 : f32 to vector<1x128xf32>
    %19 = arith.addf %17, %18 : vector<1x128xf32>
    %20 = math.rsqrt %19 : vector<1x128xf32>
    %21 = arith.mulf %0, %20 : vector<1x128xf32>
    %22 = arith.mulf %11, %21 : vector<1x128xf32>
    %23 = arith.subf %1, %22 : vector<1x128xf32>
    %24 = vector.broadcast %21 : vector<1x128xf32> to vector<16x128xf32>
    %25 = arith.mulf %4, %24 : vector<16x128xf32>
    %26 = vector.broadcast %23 : vector<1x128xf32> to vector<16x128xf32>
    %27 = arith.addf %25, %26 : vector<16x128xf32>
    %cst_13 = arith.constant 0.000000e+00 : f32
    %28 = vector.broadcast %cst_13 : f32 to vector<16x128xf32>
    %29 = arith.maximumf %27, %28 : vector<16x128xf32>
    %c0_14 = arith.constant 0 : index
    %c0_15 = arith.constant 0 : index
    %30 = vector.load %arg4[%c0_14, %c0_15] : memref<16x128xf32, #tpu.memory_space<vmem>>, vector<16x128xf32>
    tpu.vector_store %arg4[%c0_14, %c0_15], %29 {strides = array<i32>} : memref<16x128xf32, #tpu.memory_space<vmem>>, vector<16x128xf32>,
    return
  }
}

module attributes {stable_mosaic.version = 11 : i64} {
  func.func @kernel(%arg0: memref<64x768xf32, #tpu.memory_space<vmem>>, %arg1: memref<56x512xf32, #tpu.memory_space<vmem>>, %arg2: memref<56x512xf32, #tpu.memory_space<vmem>>, %arg3: memref<768x128xf32, #tpu.memory_space<vmem>>, %arg4: memref<512x128xf32, #tpu.memory_space<vmem>>, %arg5: memref<512x128xf32, #tpu.memory_space<vmem>>, %arg6: memref<1x128xf32, #tpu.memory_space<vmem>>, %arg7: memref<1x128xf32, #tpu.memory_space<vmem>>, %arg8: memref<64x128xf32, #tpu.memory_space<vmem>>, %arg9: memref<56x128xf32, #tpu.memory_space<vmem>>, %arg10: memref<56x128xf32, #tpu.memory_space<vmem>>) attributes {dimension_semantics = [], scalar_prefetch = 0 : i64, scratch_operands = 0 : i64, tpu.core_type = #tpu.core_type<tc>} {
    %c0 = arith.constant 0 : index
    %c0_0 = arith.constant 0 : index
    %0 = vector.load %arg6[%c0, %c0_0] : memref<1x128xf32, #tpu.memory_space<vmem>>, vector<1x128xf32>
    %c0_1 = arith.constant 0 : index
    %c0_2 = arith.constant 0 : index
    %1 = vector.load %arg7[%c0_1, %c0_2] : memref<1x128xf32, #tpu.memory_space<vmem>>, vector<1x128xf32>
    %c0_3 = arith.constant 0 : index
    %c0_4 = arith.constant 0 : index
    %2 = vector.load %arg0[%c0_3, %c0_4] : memref<64x768xf32, #tpu.memory_space<vmem>>, vector<64x768xf32>
    %c0_5 = arith.constant 0 : index
    %c0_6 = arith.constant 0 : index
    %3 = vector.load %arg3[%c0_5, %c0_6] : memref<768x128xf32, #tpu.memory_space<vmem>>, vector<768x128xf32>
    %cst = arith.constant dense<0.000000e+00> : vector<64x128xf32>
    %4 = tpu.matmul %2, %3, %cst {dimension_numbers = #tpu.dot_dimension_numbers<[1], [0], [0], [1], [0, 0, 1, 1], [], []>} : vector<64x768xf32>, vector<768x128xf32>, vector<64x128xf32> -> vector<64x128xf32>
    %c0_7 = arith.constant 0 : index
    %c0_8 = arith.constant 0 : index
    %5 = vector.load %arg1[%c0_7, %c0_8] : memref<56x512xf32, #tpu.memory_space<vmem>>, vector<56x512xf32>
    %c0_9 = arith.constant 0 : index
    %c0_10 = arith.constant 0 : index
    %6 = vector.load %arg4[%c0_9, %c0_10] : memref<512x128xf32, #tpu.memory_space<vmem>>, vector<512x128xf32>
    %cst_11 = arith.constant dense<0.000000e+00> : vector<56x128xf32>
    %7 = tpu.matmul %5, %6, %cst_11 {dimension_numbers = #tpu.dot_dimension_numbers<[1], [0], [0], [1], [0, 0, 1, 1], [], []>} : vector<56x512xf32>, vector<512x128xf32>, vector<56x128xf32> -> vector<56x128xf32>
    %c0_12 = arith.constant 0 : index
    %c0_13 = arith.constant 0 : index
    %8 = vector.load %arg2[%c0_12, %c0_13] : memref<56x512xf32, #tpu.memory_space<vmem>>, vector<56x512xf32>
    %c0_14 = arith.constant 0 : index
    %c0_15 = arith.constant 0 : index
    %9 = vector.load %arg5[%c0_14, %c0_15] : memref<512x128xf32, #tpu.memory_space<vmem>>, vector<512x128xf32>
    %cst_16 = arith.constant dense<0.000000e+00> : vector<56x128xf32>
    %10 = tpu.matmul %8, %9, %cst_16 {dimension_numbers = #tpu.dot_dimension_numbers<[1], [0], [0], [1], [0, 0, 1, 1], [], []>} : vector<56x512xf32>, vector<512x128xf32>, vector<56x128xf32> -> vector<56x128xf32>
    %cst_17 = arith.constant dense<0.000000e+00> : vector<128xf32>
    %11 = vector.multi_reduction <add>, %4, %cst_17 [0] : vector<64x128xf32> to vector<128xf32>
    %12 = vector.shape_cast %11 : vector<128xf32> to vector<1x128xf32>
    %13 = arith.mulf %4, %4 : vector<64x128xf32>
    %cst_18 = arith.constant dense<0.000000e+00> : vector<128xf32>
    %14 = vector.multi_reduction <add>, %13, %cst_18 [0] : vector<64x128xf32> to vector<128xf32>
    %15 = vector.shape_cast %14 : vector<128xf32> to vector<1x128xf32>
    %cst_19 = arith.constant dense<0.000000e+00> : vector<128xf32>
    %16 = vector.multi_reduction <add>, %7, %cst_19 [0] : vector<56x128xf32> to vector<128xf32>
    %17 = vector.shape_cast %16 : vector<128xf32> to vector<1x128xf32>
    %18 = arith.addf %12, %17 : vector<1x128xf32>
    %19 = arith.mulf %7, %7 : vector<56x128xf32>
    %cst_20 = arith.constant dense<0.000000e+00> : vector<128xf32>
    %20 = vector.multi_reduction <add>, %19, %cst_20 [0] : vector<56x128xf32> to vector<128xf32>
    %21 = vector.shape_cast %20 : vector<128xf32> to vector<1x128xf32>
    %22 = arith.addf %15, %21 : vector<1x128xf32>
    %cst_21 = arith.constant dense<0.000000e+00> : vector<128xf32>
    %23 = vector.multi_reduction <add>, %10, %cst_21 [0] : vector<56x128xf32> to vector<128xf32>
    %24 = vector.shape_cast %23 : vector<128xf32> to vector<1x128xf32>
    %25 = arith.addf %18, %24 : vector<1x128xf32>
    %26 = arith.mulf %10, %10 : vector<56x128xf32>
    %cst_22 = arith.constant dense<0.000000e+00> : vector<128xf32>
    %27 = vector.multi_reduction <add>, %26, %cst_22 [0] : vector<56x128xf32> to vector<128xf32>
    %28 = vector.shape_cast %27 : vector<128xf32> to vector<1x128xf32>
    %29 = arith.addf %22, %28 : vector<1x128xf32>
    %cst_23 = arith.constant 6.250000e-03 : f32
    %30 = vector.broadcast %cst_23 : f32 to vector<1x128xf32>
    %31 = arith.mulf %25, %30 : vector<1x128xf32>
    %cst_24 = arith.constant 6.250000e-03 : f32
    %32 = vector.broadcast %cst_24 : f32 to vector<1x128xf32>
    %33 = arith.mulf %29, %32 : vector<1x128xf32>
    %34 = arith.mulf %31, %31 : vector<1x128xf32>
    %35 = arith.subf %33, %34 : vector<1x128xf32>
    %cst_25 = arith.constant 0.000000e+00 : f32
    %36 = vector.broadcast %cst_25 : f32 to vector<1x128xf32>
    %37 = arith.maximumf %35, %36 : vector<1x128xf32>
    %cst_26 = arith.constant 9.99999974E-6 : f32
    %38 = vector.broadcast %cst_26 : f32 to vector<1x128xf32>
    %39 = arith.addf %37, %38 : vector<1x128xf32>
    %40 = math.rsqrt %39 : vector<1x128xf32>
    %41 = arith.mulf %0, %40 : vector<1x128xf32>
    %42 = arith.mulf %31, %41 : vector<1x128xf32>
    %43 = arith.subf %1, %42 : vector<1x128xf32>
    %44 = vector.broadcast %41 : vector<1x128xf32> to vector<64x128xf32>
    %45 = arith.mulf %4, %44 : vector<64x128xf32>
    %46 = vector.broadcast %43 : vector<1x128xf32> to vector<64x128xf32>
    %47 = arith.addf %45, %46 : vector<64x128xf32>
    %48 = vector.broadcast %41 : vector<1x128xf32> to vector<56x128xf32>
    %49 = arith.mulf %7, %48 : vector<56x128xf32>
    %50 = vector.broadcast %43 : vector<1x128xf32> to vector<56x128xf32>
    %51 = arith.addf %49, %50 : vector<56x128xf32>
    %52 = vector.broadcast %41 : vector<1x128xf32> to vector<56x128xf32>
    %53 = arith.mulf %10, %52 : vector<56x128xf32>
    %54 = vector.broadcast %43 : vector<1x128xf32> to vector<56x128xf32>
    %55 = arith.addf %53, %54 : vector<56x128xf32>
    %cst_27 = arith.constant 0.000000e+00 : f32
    %56 = vector.broadcast %cst_27 : f32 to vector<64x128xf32>
    %57 = arith.maximumf %47, %56 : vector<64x128xf32>
    %c0_28 = arith.constant 0 : index
    %c0_29 = arith.constant 0 : index
    %58 = vector.load %arg8[%c0_28, %c0_29] : memref<64x128xf32, #tpu.memory_space<vmem>>, vector<64x128xf32>
    tpu.vector_store %arg8[%c0_28, %c0_29], %57 {strides = array<i32>} : memref<64x128xf32, #tpu.memory_space<vmem>>, vector<64x128xf32>,
    %cst_30 = arith.constant 0.000000e+00 : f32
    %59 = vector.broadcast %cst_30 : f32 to vector<56x128xf32>
    %60 = arith.maximumf %51, %59 : vector<56x128xf32>
    %c0_31 = arith.constant 0 : index
    %c0_32 = arith.constant 0 : index
    %61 = vector.load %arg9[%c0_31, %c0_32] : memref<56x128xf32, #tpu.memory_space<vmem>>, vector<56x128xf32>
    tpu.vector_store %arg9[%c0_31, %c0_32], %60 {strides = array<i32>} : memref<56x128xf32, #tpu.memory_space<vmem>>, vector<56x128xf32>,
    %cst_33 = arith.constant 0.000000e+00 : f32
    %62 = vector.broadcast %cst_33 : f32 to vector<56x128xf32>
    %63 = arith.maximumf %55, %62 : vector<56x128xf32>
    %c0_34 = arith.constant 0 : index
    %c0_35 = arith.constant 0 : index
    %64 = vector.load %arg10[%c0_34, %c0_35] : memref<56x128xf32, #tpu.memory_space<vmem>>, vector<56x128xf32>
    tpu.vector_store %arg10[%c0_34, %c0_35], %63 {strides = array<i32>} : memref<56x128xf32, #tpu.memory_space<vmem>>, vector<56x128xf32>,
    return
  }
}

module attributes {stable_mosaic.version = 11 : i64} {
  func.func @kernel(%arg0: memref<288x384xf32, #tpu.memory_space<vmem>>, %arg1: memref<272x256xf32, #tpu.memory_space<vmem>>, %arg2: memref<272x256xf32, #tpu.memory_space<vmem>>, %arg3: memref<384x128xf32, #tpu.memory_space<vmem>>, %arg4: memref<256x128xf32, #tpu.memory_space<vmem>>, %arg5: memref<256x128xf32, #tpu.memory_space<vmem>>, %arg6: memref<1x128xf32, #tpu.memory_space<vmem>>, %arg7: memref<1x128xf32, #tpu.memory_space<vmem>>, %arg8: memref<288x128xf32, #tpu.memory_space<vmem>>, %arg9: memref<272x128xf32, #tpu.memory_space<vmem>>, %arg10: memref<272x128xf32, #tpu.memory_space<vmem>>) attributes {dimension_semantics = [], scalar_prefetch = 0 : i64, scratch_operands = 0 : i64, tpu.core_type = #tpu.core_type<tc>} {
    %c0 = arith.constant 0 : index
    %c0_0 = arith.constant 0 : index
    %0 = vector.load %arg6[%c0, %c0_0] : memref<1x128xf32, #tpu.memory_space<vmem>>, vector<1x128xf32>
    %c0_1 = arith.constant 0 : index
    %c0_2 = arith.constant 0 : index
    %1 = vector.load %arg7[%c0_1, %c0_2] : memref<1x128xf32, #tpu.memory_space<vmem>>, vector<1x128xf32>
    %c0_3 = arith.constant 0 : index
    %c0_4 = arith.constant 0 : index
    %2 = vector.load %arg0[%c0_3, %c0_4] : memref<288x384xf32, #tpu.memory_space<vmem>>, vector<288x384xf32>
    %c0_5 = arith.constant 0 : index
    %c0_6 = arith.constant 0 : index
    %3 = vector.load %arg3[%c0_5, %c0_6] : memref<384x128xf32, #tpu.memory_space<vmem>>, vector<384x128xf32>
    %cst = arith.constant dense<0.000000e+00> : vector<288x128xf32>
    %4 = tpu.matmul %2, %3, %cst {dimension_numbers = #tpu.dot_dimension_numbers<[1], [0], [0], [1], [0, 0, 1, 1], [], []>} : vector<288x384xf32>, vector<384x128xf32>, vector<288x128xf32> -> vector<288x128xf32>
    %c0_7 = arith.constant 0 : index
    %c0_8 = arith.constant 0 : index
    %5 = vector.load %arg1[%c0_7, %c0_8] : memref<272x256xf32, #tpu.memory_space<vmem>>, vector<272x256xf32>
    %c0_9 = arith.constant 0 : index
    %c0_10 = arith.constant 0 : index
    %6 = vector.load %arg4[%c0_9, %c0_10] : memref<256x128xf32, #tpu.memory_space<vmem>>, vector<256x128xf32>
    %cst_11 = arith.constant dense<0.000000e+00> : vector<272x128xf32>
    %7 = tpu.matmul %5, %6, %cst_11 {dimension_numbers = #tpu.dot_dimension_numbers<[1], [0], [0], [1], [0, 0, 1, 1], [], []>} : vector<272x256xf32>, vector<256x128xf32>, vector<272x128xf32> -> vector<272x128xf32>
    %c0_12 = arith.constant 0 : index
    %c0_13 = arith.constant 0 : index
    %8 = vector.load %arg2[%c0_12, %c0_13] : memref<272x256xf32, #tpu.memory_space<vmem>>, vector<272x256xf32>
    %c0_14 = arith.constant 0 : index
    %c0_15 = arith.constant 0 : index
    %9 = vector.load %arg5[%c0_14, %c0_15] : memref<256x128xf32, #tpu.memory_space<vmem>>, vector<256x128xf32>
    %cst_16 = arith.constant dense<0.000000e+00> : vector<272x128xf32>
    %10 = tpu.matmul %8, %9, %cst_16 {dimension_numbers = #tpu.dot_dimension_numbers<[1], [0], [0], [1], [0, 0, 1, 1], [], []>} : vector<272x256xf32>, vector<256x128xf32>, vector<272x128xf32> -> vector<272x128xf32>
    %cst_17 = arith.constant dense<0.000000e+00> : vector<128xf32>
    %11 = vector.multi_reduction <add>, %4, %cst_17 [0] : vector<288x128xf32> to vector<128xf32>
    %12 = vector.shape_cast %11 : vector<128xf32> to vector<1x128xf32>
    %13 = arith.mulf %4, %4 : vector<288x128xf32>
    %cst_18 = arith.constant dense<0.000000e+00> : vector<128xf32>
    %14 = vector.multi_reduction <add>, %13, %cst_18 [0] : vector<288x128xf32> to vector<128xf32>
    %15 = vector.shape_cast %14 : vector<128xf32> to vector<1x128xf32>
    %cst_19 = arith.constant dense<0.000000e+00> : vector<128xf32>
    %16 = vector.multi_reduction <add>, %7, %cst_19 [0] : vector<272x128xf32> to vector<128xf32>
    %17 = vector.shape_cast %16 : vector<128xf32> to vector<1x128xf32>
    %18 = arith.addf %12, %17 : vector<1x128xf32>
    %19 = arith.mulf %7, %7 : vector<272x128xf32>
    %cst_20 = arith.constant dense<0.000000e+00> : vector<128xf32>
    %20 = vector.multi_reduction <add>, %19, %cst_20 [0] : vector<272x128xf32> to vector<128xf32>
    %21 = vector.shape_cast %20 : vector<128xf32> to vector<1x128xf32>
    %22 = arith.addf %15, %21 : vector<1x128xf32>
    %cst_21 = arith.constant dense<0.000000e+00> : vector<128xf32>
    %23 = vector.multi_reduction <add>, %10, %cst_21 [0] : vector<272x128xf32> to vector<128xf32>
    %24 = vector.shape_cast %23 : vector<128xf32> to vector<1x128xf32>
    %25 = arith.addf %18, %24 : vector<1x128xf32>
    %26 = arith.mulf %10, %10 : vector<272x128xf32>
    %cst_22 = arith.constant dense<0.000000e+00> : vector<128xf32>
    %27 = vector.multi_reduction <add>, %26, %cst_22 [0] : vector<272x128xf32> to vector<128xf32>
    %28 = vector.shape_cast %27 : vector<128xf32> to vector<1x128xf32>
    %29 = arith.addf %22, %28 : vector<1x128xf32>
    %cst_23 = arith.constant 0.00120192312 : f32
    %30 = vector.broadcast %cst_23 : f32 to vector<1x128xf32>
    %31 = arith.mulf %25, %30 : vector<1x128xf32>
    %cst_24 = arith.constant 0.00120192312 : f32
    %32 = vector.broadcast %cst_24 : f32 to vector<1x128xf32>
    %33 = arith.mulf %29, %32 : vector<1x128xf32>
    %34 = arith.mulf %31, %31 : vector<1x128xf32>
    %35 = arith.subf %33, %34 : vector<1x128xf32>
    %cst_25 = arith.constant 0.000000e+00 : f32
    %36 = vector.broadcast %cst_25 : f32 to vector<1x128xf32>
    %37 = arith.maximumf %35, %36 : vector<1x128xf32>
    %cst_26 = arith.constant 9.99999974E-6 : f32
    %38 = vector.broadcast %cst_26 : f32 to vector<1x128xf32>
    %39 = arith.addf %37, %38 : vector<1x128xf32>
    %40 = math.rsqrt %39 : vector<1x128xf32>
    %41 = arith.mulf %0, %40 : vector<1x128xf32>
    %42 = arith.mulf %31, %41 : vector<1x128xf32>
    %43 = arith.subf %1, %42 : vector<1x128xf32>
    %44 = vector.broadcast %41 : vector<1x128xf32> to vector<288x128xf32>
    %45 = arith.mulf %4, %44 : vector<288x128xf32>
    %46 = vector.broadcast %43 : vector<1x128xf32> to vector<288x128xf32>
    %47 = arith.addf %45, %46 : vector<288x128xf32>
    %48 = vector.broadcast %41 : vector<1x128xf32> to vector<272x128xf32>
    %49 = arith.mulf %7, %48 : vector<272x128xf32>
    %50 = vector.broadcast %43 : vector<1x128xf32> to vector<272x128xf32>
    %51 = arith.addf %49, %50 : vector<272x128xf32>
    %52 = vector.broadcast %41 : vector<1x128xf32> to vector<272x128xf32>
    %53 = arith.mulf %10, %52 : vector<272x128xf32>
    %54 = vector.broadcast %43 : vector<1x128xf32> to vector<272x128xf32>
    %55 = arith.addf %53, %54 : vector<272x128xf32>
    %cst_27 = arith.constant 0.000000e+00 : f32
    %56 = vector.broadcast %cst_27 : f32 to vector<288x128xf32>
    %57 = arith.maximumf %47, %56 : vector<288x128xf32>
    %c0_28 = arith.constant 0 : index
    %c0_29 = arith.constant 0 : index
    %58 = vector.load %arg8[%c0_28, %c0_29] : memref<288x128xf32, #tpu.memory_space<vmem>>, vector<288x128xf32>
    tpu.vector_store %arg8[%c0_28, %c0_29], %57 {strides = array<i32>} : memref<288x128xf32, #tpu.memory_space<vmem>>, vector<288x128xf32>,
    %cst_30 = arith.constant 0.000000e+00 : f32
    %59 = vector.broadcast %cst_30 : f32 to vector<272x128xf32>
    %60 = arith.maximumf %51, %59 : vector<272x128xf32>
    %c0_31 = arith.constant 0 : index
    %c0_32 = arith.constant 0 : index
    %61 = vector.load %arg9[%c0_31, %c0_32] : memref<272x128xf32, #tpu.memory_space<vmem>>, vector<272x128xf32>
    tpu.vector_store %arg9[%c0_31, %c0_32], %60 {strides = array<i32>} : memref<272x128xf32, #tpu.memory_space<vmem>>, vector<272x128xf32>,
    %cst_33 = arith.constant 0.000000e+00 : f32
    %62 = vector.broadcast %cst_33 : f32 to vector<272x128xf32>
    %63 = arith.maximumf %55, %62 : vector<272x128xf32>
    %c0_34 = arith.constant 0 : index
    %c0_35 = arith.constant 0 : index
    %64 = vector.load %arg10[%c0_34, %c0_35] : memref<272x128xf32, #tpu.memory_space<vmem>>, vector<272x128xf32>
    tpu.vector_store %arg10[%c0_34, %c0_35], %63 {strides = array<i32>} : memref<272x128xf32, #tpu.memory_space<vmem>>, vector<272x128xf32>,
    return
  }
}

module attributes {stable_mosaic.version = 11 : i64} {
  func.func @kernel(%arg0: memref<944x128xf32, #tpu.memory_space<vmem>>, %arg1: memref<944x128xf32, #tpu.memory_space<vmem>>, %arg2: memref<128x128xf32, #tpu.memory_space<vmem>>, %arg3: memref<128x128xf32, #tpu.memory_space<vmem>>, %arg4: memref<1x128xf32, #tpu.memory_space<vmem>>, %arg5: memref<944x128xf32, #tpu.memory_space<vmem>>, %arg6: memref<944x128xf32, #tpu.memory_space<vmem>>, %arg7: memref<944x128xf32, #tpu.memory_space<vmem>>, %arg8: memref<944x128xf32, #tpu.memory_space<vmem>>) attributes {dimension_semantics = [], scalar_prefetch = 0 : i64, scratch_operands = 0 : i64, tpu.core_type = #tpu.core_type<tc>} {
    %c0 = arith.constant 0 : index
    %c0_0 = arith.constant 0 : index
    %0 = vector.load %arg4[%c0, %c0_0] : memref<1x128xf32, #tpu.memory_space<vmem>>, vector<1x128xf32>
    %c0_1 = arith.constant 0 : index
    %c0_2 = arith.constant 0 : index
    %1 = vector.load %arg0[%c0_1, %c0_2] : memref<944x128xf32, #tpu.memory_space<vmem>>, vector<944x128xf32>
    %c0_3 = arith.constant 0 : index
    %c0_4 = arith.constant 0 : index
    %2 = vector.load %arg2[%c0_3, %c0_4] : memref<128x128xf32, #tpu.memory_space<vmem>>, vector<128x128xf32>
    %cst = arith.constant dense<0.000000e+00> : vector<944x128xf32>
    %3 = tpu.matmul %1, %2, %cst {dimension_numbers = #tpu.dot_dimension_numbers<[1], [0], [0], [1], [0, 0, 1, 1], [], []>} : vector<944x128xf32>, vector<128x128xf32>, vector<944x128xf32> -> vector<944x128xf32>
    %4 = vector.broadcast %0 : vector<1x128xf32> to vector<944x128xf32>
    %5 = arith.addf %3, %4 : vector<944x128xf32>
    %c0_5 = arith.constant 0 : index
    %c0_6 = arith.constant 0 : index
    %6 = vector.load %arg1[%c0_5, %c0_6] : memref<944x128xf32, #tpu.memory_space<vmem>>, vector<944x128xf32>
    %c0_7 = arith.constant 0 : index
    %c0_8 = arith.constant 0 : index
    %7 = vector.load %arg3[%c0_7, %c0_8] : memref<128x128xf32, #tpu.memory_space<vmem>>, vector<128x128xf32>
    %cst_9 = arith.constant dense<0.000000e+00> : vector<944x128xf32>
    %8 = tpu.matmul %6, %7, %cst_9 {dimension_numbers = #tpu.dot_dimension_numbers<[1], [0], [0], [1], [0, 0, 1, 1], [], []>} : vector<944x128xf32>, vector<128x128xf32>, vector<944x128xf32> -> vector<944x128xf32>
    %9 = vector.broadcast %0 : vector<1x128xf32> to vector<944x128xf32>
    %10 = arith.addf %8, %9 : vector<944x128xf32>
    %11 = arith.negf %5 : vector<944x128xf32>
    %12 = math.exp %11 : vector<944x128xf32>
    %cst_10 = arith.constant 1.000000e+00 : f32
    %13 = vector.broadcast %cst_10 : f32 to vector<944x128xf32>
    %14 = arith.addf %13, %12 : vector<944x128xf32>
    %15 = arith.divf %13, %14 : vector<944x128xf32>
    %c0_11 = arith.constant 0 : index
    %c0_12 = arith.constant 0 : index
    %16 = vector.load %arg5[%c0_11, %c0_12] : memref<944x128xf32, #tpu.memory_space<vmem>>, vector<944x128xf32>
    %17 = arith.mulf %15, %16 : vector<944x128xf32>
    %c0_13 = arith.constant 0 : index
    %c0_14 = arith.constant 0 : index
    %18 = vector.load %arg7[%c0_13, %c0_14] : memref<944x128xf32, #tpu.memory_space<vmem>>, vector<944x128xf32>
    tpu.vector_store %arg7[%c0_13, %c0_14], %17 {strides = array<i32>} : memref<944x128xf32, #tpu.memory_space<vmem>>, vector<944x128xf32>,
    %19 = arith.negf %10 : vector<944x128xf32>
    %20 = math.exp %19 : vector<944x128xf32>
    %cst_15 = arith.constant 1.000000e+00 : f32
    %21 = vector.broadcast %cst_15 : f32 to vector<944x128xf32>
    %22 = arith.addf %21, %20 : vector<944x128xf32>
    %23 = arith.divf %21, %22 : vector<944x128xf32>
    %c0_16 = arith.constant 0 : index
    %c0_17 = arith.constant 0 : index
    %24 = vector.load %arg6[%c0_16, %c0_17] : memref<944x128xf32, #tpu.memory_space<vmem>>, vector<944x128xf32>
    %25 = arith.mulf %23, %24 : vector<944x128xf32>
    %c0_18 = arith.constant 0 : index
    %c0_19 = arith.constant 0 : index
    %26 = vector.load %arg8[%c0_18, %c0_19] : memref<944x128xf32, #tpu.memory_space<vmem>>, vector<944x128xf32>
    tpu.vector_store %arg8[%c0_18, %c0_19], %25 {strides = array<i32>} : memref<944x128xf32, #tpu.memory_space<vmem>>, vector<944x128xf32>,
    return
  }
}

</mosaic_0001>

<llo_original>
// kernel: bucket_forward.5
$region0: #{bucket_forward.5}
  #allocation0 [shape = 'u32[]', space=smem, size = 0x4, offset = 0x4, fixed_abs, tag = 'smem constant byte address 0x4 - core index']
  #allocation1 [shape = 'u32[144,128]{1,0:T(1,128)}', space=vmem, size = 0x12000, scoped, tag = 'internal scratch']
  %s0 = inlined_call_operand.vmem [shape: f32[176,128], index: 0, kind: input, shape index: {}]
  %s1 = inlined_call_operand.vmem [shape: f32[128,128], index: 1, kind: input, shape index: {}]
  %s2 = inlined_call_operand.vmem [shape: f32[1,128], index: 2, kind: input, shape index: {}]
  %s3 = inlined_call_operand.vmem [shape: f32[1,128], index: 3, kind: input, shape index: {}]
  %s4 = inlined_call_operand.vmem [shape: f32[176,128], index: 4, kind: output, shape index: {}]
  %s5 = sld [smem:[#allocation0]]
  $region26: #{bucket_forward.5} parent=0
    _
  %s7 = ssub.s32 1, %s5
  %s8 = scalar_select 0, %s7, %s5
  // Predicated region
  $region2: #{bucket_forward.5} parent=0 // pred_check
    _
  $region3: #{bucket_forward.5} parent=0 // pred_check_branch
    %10 = sbr.rel (0) target = $region5
  $region4: #{bucket_forward.5} parent=0 // pred_region
    _
  $region5: #{bucket_forward.5} parent=0 // pred_fallthru
    _
  // Predicated region
  $region6: #{bucket_forward.5} parent=0 // pred_check
    _
  $region7: #{bucket_forward.5} parent=0 // pred_check_branch
    %12 = sbr.rel (0) target = $region9
  $region8: #{bucket_forward.5} parent=0 // pred_region
    _
  $region9: #{bucket_forward.5} parent=0 // pred_fallthru
    _
  // Predicated region
  $region10: #{bucket_forward.5} parent=0 // pred_check
    _
  $region11: #{bucket_forward.5} parent=0 // pred_check_branch
    %14 = sbr.rel (0) target = $region13
  $region12: #{bucket_forward.5} parent=0 // pred_region
    _
  $region13: #{bucket_forward.5} parent=0 // pred_fallthru
    _
  // Predicated region
  $region14: #{bucket_forward.5} parent=0 // pred_check
    _
  $region15: #{bucket_forward.5} parent=0 // pred_check_branch
    %16 = sbr.rel (0) target = $region17
  $region16: #{bucket_forward.5} parent=0 // pred_region
    _
  $region17: #{bucket_forward.5} parent=0 // pred_fallthru
    _
  %v17 = vld [vmem:[%s2] sm:$0x1]
  %v18 = vld [vmem:[%s3] sm:$0x1]
  %v19 = vld [vmem:[%s0] sm:$0xff]
  %v20 = vld [vmem:[%s0 + $0x8] sm:$0xff]
  %v21 = vld [vmem:[%s0 + $0x10] sm:$0xff]
  %v22 = vld [vmem:[%s0 + $0x18] sm:$0xff]
  %v23 = vld [vmem:[%s0 + $0x20] sm:$0xff]
  %v24 = vld [vmem:[%s0 + $0x28] sm:$0xff]
  %v25 = vld [vmem:[%s0 + $0x30] sm:$0xff]
  %v26 = vld [vmem:[%s0 + $0x38] sm:$0xff]
  %v27 = vld [vmem:[%s0 + $0x40] sm:$0xff]
  %v28 = vld [vmem:[%s0 + $0x48] sm:$0xff]
  %v29 = vld [vmem:[%s0 + $0x50] sm:$0xff]
  %v30 = vld [vmem:[%s0 + $0x58] sm:$0xff]
  %v31 = vld [vmem:[%s0 + $0x60] sm:$0xff]
  %v32 = vld [vmem:[%s0 + $0x68] sm:$0xff]
  %v33 = vld [vmem:[%s0 + $0x70] sm:$0xff]
  %v34 = vld [vmem:[%s0 + $0x78] sm:$0xff]
  %v35 = vld [vmem:[%s0 + $0x80] sm:$0xff]
  %v36 = vld [vmem:[%s0 + $0x88] sm:$0xff]
  %v37 = vld [vmem:[%s0 + $0x90] sm:$0xff]
  %v38 = vld [vmem:[%s0 + $0x98] sm:$0xff]
  %v39 = vld [vmem:[%s0 + $0xa0] sm:$0xff]
  %v40 = vld [vmem:[%s0 + $0xa8] sm:$0xff]
  %v41 = vld [vmem:[%s1] sm:$0xff]
  %v42 = vld [vmem:[%s1 + $0x8] sm:$0xff]
  %v43 = vld [vmem:[%s1 + $0x10] sm:$0xff]
  %v44 = vld [vmem:[%s1 + $0x18] sm:$0xff]
  %v45 = vld [vmem:[%s1 + $0x20] sm:$0xff]
  %v46 = vld [vmem:[%s1 + $0x28] sm:$0xff]
  %v47 = vld [vmem:[%s1 + $0x30] sm:$0xff]
  %v48 = vld [vmem:[%s1 + $0x38] sm:$0xff]
  %v49 = vld [vmem:[%s1 + $0x40] sm:$0xff]
  %v50 = vld [vmem:[%s1 + $0x48] sm:$0xff]
  %v51 = vld [vmem:[%s1 + $0x50] sm:$0xff]
  %v52 = vld [vmem:[%s1 + $0x58] sm:$0xff]
  %v53 = vld [vmem:[%s1 + $0x60] sm:$0xff]
  %v54 = vld [vmem:[%s1 + $0x68] sm:$0xff]
  %v55 = vld [vmem:[%s1 + $0x70] sm:$0xff]
  %v56 = vld [vmem:[%s1 + $0x78] sm:$0xff]
  %57 = vmatprep.subr.mxu0 0.0
  %58 = vmatpush1.msra.mxu0 %v41
  %59 = vmatprep.subr.mxu0 0.0
  %60 = vmatpush1.msra.mxu0 %v42
  %61 = vmatprep.subr.mxu0 0.0
  %62 = vmatpush1.msra.mxu0 %v43
  %63 = vmatprep.subr.mxu0 0.0
  %64 = vmatpush1.msra.mxu0 %v44
  %65 = vmatprep.subr.mxu0 0.0
  %66 = vmatpush1.msra.mxu0 %v45
  %67 = vmatprep.subr.mxu0 0.0
  %68 = vmatpush1.msra.mxu0 %v46
  %69 = vmatprep.subr.mxu0 0.0
  %70 = vmatpush1.msra.mxu0 %v47
  %71 = vmatprep.subr.mxu0 0.0
  %72 = vmatpush1.msra.mxu0 %v48
  %73 = vmatprep.subr.mxu0 0.0
  %74 = vmatpush1.msra.mxu0 %v49
  %75 = vmatprep.subr.mxu0 0.0
  %76 = vmatpush1.msra.mxu0 %v50
  %77 = vmatprep.subr.mxu0 0.0
  %78 = vmatpush1.msra.mxu0 %v51
  %79 = vmatprep.subr.mxu0 0.0
  %80 = vmatpush1.msra.mxu0 %v52
  %81 = vmatprep.subr.mxu0 0.0
  %82 = vmatpush1.msra.mxu0 %v53
  %83 = vmatprep.subr.mxu0 0.0
  %84 = vmatpush1.msra.mxu0 %v54
  %85 = vmatprep.subr.mxu0 0.0
  %86 = vmatpush1.msra.mxu0 %v55
  %87 = vmatprep.subr.mxu0 0.0
  %88 = vmatpush1.msra.mxu0 %v56
  %89 = vmatprep.subr.mxu0 0.0
  %90 = vmatpush1.msra.mxu0 0.0
  %91 = vmatprep.subr.mxu0 0.0
  %92 = vmatpush1.msra.mxu0 0.0
  %93 = vmatprep.subr.mxu0 0.0
  %94 = vmatpush1.msra.mxu0 0.0
  %95 = vmatprep.subr.mxu0 0.0
  %96 = vmatpush1.msra.mxu0 0.0
  %97 = vmatprep.subr.mxu0 0.0
  %98 = vmatpush1.msra.mxu0 0.0
  %99 = vmatprep.subr.mxu0 0.0
  %100 = vmatpush1.msra.mxu0 0.0
  %101 = vmatprep.subr.mxu0 0.0
  %102 = vmatpush1.msra.mxu0 0.0
  %103 = vmatprep.subr.mxu0 0.0
  %104 = vmatpush1.msra.mxu0 0.0
  %105 = vmatprep.subr.mxu0 0.0
  %106 = vmatpush1.msra.mxu0 0.0
  %107 = vmatprep.subr.mxu0 0.0
  %108 = vmatpush1.msra.mxu0 0.0
  %109 = vmatprep.subr.mxu0 0.0
  %110 = vmatpush1.msra.mxu0 0.0
  %111 = vmatprep.subr.mxu0 0.0
  %112 = vmatpush1.msra.mxu0 0.0
  %113 = vmatprep.subr.mxu0 0.0
  %114 = vmatpush1.msra.mxu0 0.0
  %115 = vmatprep.subr.mxu0 0.0
  %116 = vmatpush1.msra.mxu0 0.0
  %117 = vmatprep.subr.mxu0 0.0
  %118 = vmatpush1.msra.mxu0 0.0
  %119 = vmatprep.subr.mxu0 0.0
  %120 = vmatpush1.msra.mxu0 0.0
  %121 = vmatprep.mubr.f32.mxu0 0.0
  %122 = vmatmul.mubr.f32.gmra.mrb[0].mxu0 %v19
  %v123 = vpop.f32.mrb[0].mxu0
  %v124 = vadd.f32 0.0, %v123
  %v125 = vpop.f32.mrb[0].mxu0
  %126 = vmatprep.mubr.f32.mxu0 0.0
  %127 = vmatmul.mubr.f32.gmra.mrb[0].mxu0 %v20
  %v128 = vpop.f32.mrb[0].mxu0
  %v129 = vadd.f32 0.0, %v128
  %v130 = vpop.f32.mrb[0].mxu0
  %131 = vmatprep.mubr.f32.mxu0 0.0
  %132 = vmatmul.mubr.f32.gmra.mrb[0].mxu0 %v21
  %v133 = vpop.f32.mrb[0].mxu0
  %v134 = vadd.f32 0.0, %v133
  %v135 = vpop.f32.mrb[0].mxu0
  %136 = vmatprep.mubr.f32.mxu0 0.0
  %137 = vmatmul.mubr.f32.gmra.mrb[0].mxu0 %v22
  %v138 = vpop.f32.mrb[0].mxu0
  %v139 = vadd.f32 0.0, %v138
  %v140 = vpop.f32.mrb[0].mxu0
  %141 = vmatprep.mubr.f32.mxu0 0.0
  %142 = vmatmul.mubr.f32.gmra.mrb[0].mxu0 %v23
  %v143 = vpop.f32.mrb[0].mxu0
  %v144 = vadd.f32 0.0, %v143
  %v145 = vpop.f32.mrb[0].mxu0
  %146 = vmatprep.mubr.f32.mxu0 0.0
  %147 = vmatmul.mubr.f32.gmra.mrb[0].mxu0 %v24
  %v148 = vpop.f32.mrb[0].mxu0
  %v149 = vadd.f32 0.0, %v148
  %v150 = vpop.f32.mrb[0].mxu0
  %151 = vmatprep.mubr.f32.mxu0 0.0
  %152 = vmatmul.mubr.f32.gmra.mrb[0].mxu0 %v25
  %v153 = vpop.f32.mrb[0].mxu0
  %v154 = vadd.f32 0.0, %v153
  %v155 = vpop.f32.mrb[0].mxu0
  %156 = vmatprep.mubr.f32.mxu0 0.0
  %157 = vmatmul.mubr.f32.gmra.mrb[0].mxu0 %v26
  %v158 = vpop.f32.mrb[0].mxu0
  %v159 = vadd.f32 0.0, %v158
  %v160 = vpop.f32.mrb[0].mxu0
  %161 = vmatprep.mubr.f32.mxu0 0.0
  %162 = vmatmul.mubr.f32.gmra.mrb[0].mxu0 %v27
  %v163 = vpop.f32.mrb[0].mxu0
  %v164 = vadd.f32 0.0, %v163
  %v165 = vpop.f32.mrb[0].mxu0
  %166 = vmatprep.mubr.f32.mxu0 0.0
  %167 = vmatmul.mubr.f32.gmra.mrb[0].mxu0 %v28
  %v168 = vpop.f32.mrb[0].mxu0
  %v169 = vadd.f32 0.0, %v168
  %v170 = vpop.f32.mrb[0].mxu0
  %171 = vmatprep.mubr.f32.mxu0 0.0
  %172 = vmatmul.mubr.f32.gmra.mrb[0].mxu0 %v29
  %v173 = vpop.f32.mrb[0].mxu0
  %v174 = vadd.f32 0.0, %v173
  %v175 = vpop.f32.mrb[0].mxu0
  %176 = vmatprep.mubr.f32.mxu0 0.0
  %177 = vmatmul.mubr.f32.gmra.mrb[0].mxu0 %v30
  %v178 = vpop.f32.mrb[0].mxu0
  %v179 = vadd.f32 0.0, %v178
  %v180 = vpop.f32.mrb[0].mxu0
  %181 = vmatprep.mubr.f32.mxu0 0.0
  %182 = vmatmul.mubr.f32.gmra.mrb[0].mxu0 %v31
  %v183 = vpop.f32.mrb[0].mxu0
  %v184 = vadd.f32 0.0, %v183
  %v185 = vpop.f32.mrb[0].mxu0
  %186 = vmatprep.mubr.f32.mxu0 0.0
  %187 = vmatmul.mubr.f32.gmra.mrb[0].mxu0 %v32
  %v188 = vpop.f32.mrb[0].mxu0
  %v189 = vadd.f32 0.0, %v188
  %v190 = vpop.f32.mrb[0].mxu0
  %191 = vmatprep.mubr.f32.mxu0 0.0
  %192 = vmatmul.mubr.f32.gmra.mrb[0].mxu0 %v33
  %v193 = vpop.f32.mrb[0].mxu0
  %v194 = vadd.f32 0.0, %v193
  %v195 = vpop.f32.mrb[0].mxu0
  %196 = vmatprep.mubr.f32.mxu0 0.0
  %197 = vmatmul.mubr.f32.gmra.mrb[0].mxu0 %v34
  %v198 = vpop.f32.mrb[0].mxu0
  %v199 = vadd.f32 0.0, %v198
  %v200 = vpop.f32.mrb[0].mxu0
  %201 = vmatprep.mubr.f32.mxu0 0.0
  %202 = vmatmul.mubr.f32.gmra.mrb[0].mxu0 %v35
  %v203 = vpop.f32.mrb[0].mxu0
  %v204 = vadd.f32 0.0, %v203
  %v205 = vpop.f32.mrb[0].mxu0
  %206 = vmatprep.mubr.f32.mxu0 0.0
  %207 = vmatmul.mubr.f32.gmra.mrb[0].mxu0 %v36
  %v208 = vpop.f32.mrb[0].mxu0
  %v209 = vadd.f32 0.0, %v208
  %v210 = vpop.f32.mrb[0].mxu0
  %211 = vmatprep.mubr.f32.mxu0 0.0
  %212 = vmatmul.mubr.f32.gmra.mrb[0].mxu0 %v37
  %v213 = vpop.f32.mrb[0].mxu0
  %v214 = vadd.f32 0.0, %v213
  %v215 = vpop.f32.mrb[0].mxu0
  %216 = vmatprep.mubr.f32.mxu0 0.0
  %217 = vmatmul.mubr.f32.gmra.mrb[0].mxu0 %v38
  %v218 = vpop.f32.mrb[0].mxu0
  %v219 = vadd.f32 0.0, %v218
  %v220 = vpop.f32.mrb[0].mxu0
  %221 = vmatprep.mubr.f32.mxu0 0.0
  %222 = vmatmul.mubr.f32.gmra.mrb[0].mxu0 %v39
  %v223 = vpop.f32.mrb[0].mxu0
  %v224 = vadd.f32 0.0, %v223
  %v225 = vpop.f32.mrb[0].mxu0
  %226 = vmatprep.mubr.f32.mxu0 0.0
  %227 = vmatmul.mubr.f32.gmra.mrb[0].mxu0 %v40
  %v228 = vpop.f32.mrb[0].mxu0
  %v229 = vadd.f32 0.0, %v228
  %v230 = vpop.f32.mrb[0].mxu0
  %231 = vdwg.mxu0
  %v232 = vadd.f32 %v124, %v129
  %v233 = vadd.f32 %v232, %v134
  %v234 = vadd.f32 %v233, %v139
  %v235 = vadd.f32 %v234, %v144
  %v236 = vadd.f32 %v235, %v149
  %v237 = vadd.f32 %v236, %v154
  %v238 = vadd.f32 %v237, %v159
  %v239 = vadd.f32 %v238, %v164
  %v240 = vadd.f32 %v239, %v169
  %v241 = vadd.f32 %v240, %v174
  %v242 = vadd.f32 %v241, %v179
  %v243 = vadd.f32 %v242, %v184
  %v244 = vadd.f32 %v243, %v189
  %v245 = vadd.f32 %v244, %v194
  %v246 = vadd.f32 %v245, %v199
  %v247 = vadd.f32 %v246, %v204
  %v248 = vadd.f32 %v247, %v209
  %v249 = vadd.f32 %v248, %v214
  %v250 = vadd.f32 %v249, %v219
  %v251 = vadd.f32 %v250, %v224
  %v252 = vadd.f32 %v251, %v229
  %v253 = vrot.slane %v252, 4
  %v254 = vadd.f32 %v252, %v253
  %v255 = vrot.slane %v254, 2
  %v256 = vadd.f32 %v254, %v255
  %v257 = vrot.slane %v256, 1
  %v258 = vadd.f32 %v256, %v257
  %v259 = vmul.f32 %v124, %v124
  %v260 = vmul.f32 %v129, %v129
  %v261 = vmul.f32 %v134, %v134
  %v262 = vmul.f32 %v139, %v139
  %v263 = vmul.f32 %v144, %v144
  %v264 = vmul.f32 %v149, %v149
  %v265 = vmul.f32 %v154, %v154
  %v266 = vmul.f32 %v159, %v159
  %v267 = vmul.f32 %v164, %v164
  %v268 = vmul.f32 %v169, %v169
  %v269 = vmul.f32 %v174, %v174
  %v270 = vmul.f32 %v179, %v179
  %v271 = vmul.f32 %v184, %v184
  %v272 = vmul.f32 %v189, %v189
  %v273 = vmul.f32 %v194, %v194
  %v274 = vmul.f32 %v199, %v199
  %v275 = vmul.f32 %v204, %v204
  %v276 = vmul.f32 %v209, %v209
  %v277 = vmul.f32 %v214, %v214
  %v278 = vmul.f32 %v219, %v219
  %v279 = vmul.f32 %v224, %v224
  %v280 = vmul.f32 %v229, %v229
  %v281 = vadd.f32 %v259, %v260
  %v282 = vadd.f32 %v281, %v261
  %v283 = vadd.f32 %v282, %v262
  %v284 = vadd.f32 %v283, %v263
  %v285 = vadd.f32 %v284, %v264
  %v286 = vadd.f32 %v285, %v265
  %v287 = vadd.f32 %v286, %v266
  %v288 = vadd.f32 %v287, %v267
  %v289 = vadd.f32 %v288, %v268
  %v290 = vadd.f32 %v289, %v269
  %v291 = vadd.f32 %v290, %v270
  %v292 = vadd.f32 %v291, %v271
  %v293 = vadd.f32 %v292, %v272
  %v294 = vadd.f32 %v293, %v273
  %v295 = vadd.f32 %v294, %v274
  %v296 = vadd.f32 %v295, %v275
  %v297 = vadd.f32 %v296, %v276
  %v298 = vadd.f32 %v297, %v277
  %v299 = vadd.f32 %v298, %v278
  %v300 = vadd.f32 %v299, %v279
  %v301 = vadd.f32 %v300, %v280
  %v302 = vrot.slane %v301, 4
  %v303 = vadd.f32 %v301, %v302
  %v304 = vrot.slane %v303, 2
  %v305 = vadd.f32 %v303, %v304
  %v306 = vrot.slane %v305, 1
  %v307 = vadd.f32 %v305, %v306
  %v308 = vmul.f32 %v258, 0.005882353
  %v309 = vmul.f32 %v307, 0.005882353
  %v310 = vmul.f32 %v308, %v308
  %v311 = vsub.f32 %v309, %v310
  %v312 = vmax.f32 %v311, 0.0
  %v313 = vadd.f32 %v312, 1e-05
  %v314 = vrsqrt.pop %v313
  %v315 = vmul.f32 %v17, %v314
  %v316 = vmul.f32 %v308, %v315
  %v317 = vsub.f32 %v18, %v316
  %v319 = vlaneseq
  %v320 = vshrl.u32 %v319, 7
  %v321 = vsub.s32 0, %v320
  %v322 = vrot.slane %v315, %v321
  %v324 = vmul.f32 %v124, %v322
  %v325 = vmul.f32 %v129, %v322
  %v326 = vmul.f32 %v134, %v322
  %v327 = vmul.f32 %v139, %v322
  %v328 = vmul.f32 %v144, %v322
  %v329 = vmul.f32 %v149, %v322
  %v330 = vmul.f32 %v154, %v322
  %v331 = vmul.f32 %v159, %v322
  %v332 = vmul.f32 %v164, %v322
  %v333 = vmul.f32 %v169, %v322
  %v334 = vmul.f32 %v174, %v322
  %v335 = vmul.f32 %v179, %v322
  %v336 = vmul.f32 %v184, %v322
  %v337 = vmul.f32 %v189, %v322
  %v338 = vmul.f32 %v194, %v322
  %v339 = vmul.f32 %v199, %v322
  %v340 = vmul.f32 %v204, %v322
  %v341 = vmul.f32 %v209, %v322
  %v342 = vmul.f32 %v214, %v322
  %v343 = vmul.f32 %v219, %v322
  %v344 = vmul.f32 %v224, %v322
  %v345 = vmul.f32 %v229, %v322
  %v347 = vlaneseq
  %v348 = vshrl.u32 %v347, 7
  %v349 = vsub.s32 0, %v348
  %v350 = vrot.slane %v317, %v349
  %v352 = vadd.f32 %v324, %v350
  %v353 = vadd.f32 %v325, %v350
  %v354 = vadd.f32 %v326, %v350
  %v355 = vadd.f32 %v327, %v350
  %v356 = vadd.f32 %v328, %v350
  %v357 = vadd.f32 %v329, %v350
  %v358 = vadd.f32 %v330, %v350
  %v359 = vadd.f32 %v331, %v350
  %v360 = vadd.f32 %v332, %v350
  %v361 = vadd.f32 %v333, %v350
  %v362 = vadd.f32 %v334, %v350
  %v363 = vadd.f32 %v335, %v350
  %v364 = vadd.f32 %v336, %v350
  %v365 = vadd.f32 %v337, %v350
  %v366 = vadd.f32 %v338, %v350
  %v367 = vadd.f32 %v339, %v350
  %v368 = vadd.f32 %v340, %v350
  %v369 = vadd.f32 %v341, %v350
  %v370 = vadd.f32 %v342, %v350
  %v371 = vadd.f32 %v343, %v350
  %v372 = vadd.f32 %v344, %v350
  %v373 = vadd.f32 %v345, %v350
  %v374 = vmax.f32 %v352, 0.0
  %v375 = vmax.f32 %v353, 0.0
  %v376 = vmax.f32 %v354, 0.0
  %v377 = vmax.f32 %v355, 0.0
  %v378 = vmax.f32 %v356, 0.0
  %v379 = vmax.f32 %v357, 0.0
  %v380 = vmax.f32 %v358, 0.0
  %v381 = vmax.f32 %v359, 0.0
  %v382 = vmax.f32 %v360, 0.0
  %v383 = vmax.f32 %v361, 0.0
  %v384 = vmax.f32 %v362, 0.0
  %v385 = vmax.f32 %v363, 0.0
  %v386 = vmax.f32 %v364, 0.0
  %v387 = vmax.f32 %v365, 0.0
  %v388 = vmax.f32 %v366, 0.0
  %v389 = vmax.f32 %v367, 0.0
  %v390 = vmax.f32 %v368, 0.0
  %v391 = vmax.f32 %v369, 0.0
  %v392 = vmax.f32 %v370, 0.0
  %v393 = vmax.f32 %v371, 0.0
  %v394 = vmax.f32 %v372, 0.0
  %v395 = vmax.f32 %v373, 0.0
  %396 = vst [vmem:[%s4] sm:$0xff] %v374
  %397 = vst [vmem:[%s4 + $0x8] sm:$0xff] %v375
  %398 = vst [vmem:[%s4 + $0x10] sm:$0xff] %v376
  %399 = vst [vmem:[%s4 + $0x18] sm:$0xff] %v377
  %400 = vst [vmem:[%s4 + $0x20] sm:$0xff] %v378
  %401 = vst [vmem:[%s4 + $0x28] sm:$0xff] %v379
  %402 = vst [vmem:[%s4 + $0x30] sm:$0xff] %v380
  %403 = vst [vmem:[%s4 + $0x38] sm:$0xff] %v381
  %404 = vst [vmem:[%s4 + $0x40] sm:$0xff] %v382
  %405 = vst [vmem:[%s4 + $0x48] sm:$0xff] %v383
  %406 = vst [vmem:[%s4 + $0x50] sm:$0xff] %v384
  %407 = vst [vmem:[%s4 + $0x58] sm:$0xff] %v385
  %408 = vst [vmem:[%s4 + $0x60] sm:$0xff] %v386
  %409 = vst [vmem:[%s4 + $0x68] sm:$0xff] %v387
  %410 = vst [vmem:[%s4 + $0x70] sm:$0xff] %v388
  %411 = vst [vmem:[%s4 + $0x78] sm:$0xff] %v389
  %412 = vst [vmem:[%s4 + $0x80] sm:$0xff] %v390
  %413 = vst [vmem:[%s4 + $0x88] sm:$0xff] %v391
  %414 = vst [vmem:[%s4 + $0x90] sm:$0xff] %v392
  %415 = vst [vmem:[%s4 + $0x98] sm:$0xff] %v393
  %416 = vst [vmem:[%s4 + $0xa0] sm:$0xff] %v394
  %417 = vst [vmem:[%s4 + $0xa8] sm:$0xff] %v395
  // Predicated region
  $region18: #{bucket_forward.5} parent=0 // pred_check
    _
  $region19: #{bucket_forward.5} parent=0 // pred_check_branch
    %419 = sbr.rel (0) target = $region21
  $region20: #{bucket_forward.5} parent=0 // pred_region
    _
  $region21: #{bucket_forward.5} parent=0 // pred_fallthru
    _
  // Predicated region
  $region22: #{bucket_forward.5} parent=0 // pred_check
    _
  $region23: #{bucket_forward.5} parent=0 // pred_check_branch
    %421 = sbr.rel (0) target = $region25
  $region24: #{bucket_forward.5} parent=0 // pred_region
    _
  $region25: #{bucket_forward.5} parent=0 // pred_fallthru
    _

// kernel: bucket_forward.6
$region0: #{bucket_forward.6}
  #allocation0 [shape = 'u32[]', space=smem, size = 0x4, offset = 0x4, fixed_abs, tag = 'smem constant byte address 0x4 - core index']
  #allocation1 [shape = 'u32[144,128]{1,0:T(1,128)}', space=vmem, size = 0x12000, scoped, tag = 'internal scratch']
  %s0 = inlined_call_operand.vmem [shape: f32[16,768], index: 0, kind: input, shape index: {}]
  %s1 = inlined_call_operand.vmem [shape: f32[768,128], index: 1, kind: input, shape index: {}]
  %s2 = inlined_call_operand.vmem [shape: f32[1,128], index: 2, kind: input, shape index: {}]
  %s3 = inlined_call_operand.vmem [shape: f32[1,128], index: 3, kind: input, shape index: {}]
  %s4 = inlined_call_operand.vmem [shape: f32[16,128], index: 4, kind: output, shape index: {}]
  %s5 = sld [smem:[#allocation0]]
  $region26: #{bucket_forward.6} parent=0
    _
  %s7 = ssub.s32 1, %s5
  %s8 = scalar_select 0, %s7, %s5
  // Predicated region
  $region2: #{bucket_forward.6} parent=0 // pred_check
    _
  $region3: #{bucket_forward.6} parent=0 // pred_check_branch
    %10 = sbr.rel (0) target = $region5
  $region4: #{bucket_forward.6} parent=0 // pred_region
    _
  $region5: #{bucket_forward.6} parent=0 // pred_fallthru
    _
  // Predicated region
  $region6: #{bucket_forward.6} parent=0 // pred_check
    _
  $region7: #{bucket_forward.6} parent=0 // pred_check_branch
    %12 = sbr.rel (0) target = $region9
  $region8: #{bucket_forward.6} parent=0 // pred_region
    _
  $region9: #{bucket_forward.6} parent=0 // pred_fallthru
    _
  // Predicated region
  $region10: #{bucket_forward.6} parent=0 // pred_check
    _
  $region11: #{bucket_forward.6} parent=0 // pred_check_branch
    %14 = sbr.rel (0) target = $region13
  $region12: #{bucket_forward.6} parent=0 // pred_region
    _
  $region13: #{bucket_forward.6} parent=0 // pred_fallthru
    _
  // Predicated region
  $region14: #{bucket_forward.6} parent=0 // pred_check
    _
  $region15: #{bucket_forward.6} parent=0 // pred_check_branch
    %16 = sbr.rel (0) target = $region17
  $region16: #{bucket_forward.6} parent=0 // pred_region
    _
  $region17: #{bucket_forward.6} parent=0 // pred_fallthru
    _
  %v17 = vld [vmem:[%s2] sm:$0x1]
  %v18 = vld [vmem:[%s3] sm:$0x1]
  %v19 = vld [vmem:[%s0] sm:$0xff]
  %v20 = vld [vmem:[%s0 + $0x8] sm:$0xff]
  %v21 = vld [vmem:[%s0 + $0x10] sm:$0xff]
  %v22 = vld [vmem:[%s0 + $0x18] sm:$0xff]
  %v23 = vld [vmem:[%s0 + $0x20] sm:$0xff]
  %v24 = vld [vmem:[%s0 + $0x28] sm:$0xff]
  %v25 = vld [vmem:[%s0 + $0x30] sm:$0xff]
  %v26 = vld [vmem:[%s0 + $0x38] sm:$0xff]
  %v27 = vld [vmem:[%s0 + $0x40] sm:$0xff]
  %v28 = vld [vmem:[%s0 + $0x48] sm:$0xff]
  %v29 = vld [vmem:[%s0 + $0x50] sm:$0xff]
  %v30 = vld [vmem:[%s0 + $0x58] sm:$0xff]
  %v31 = vld [vmem:[%s1] sm:$0xff]
  %v32 = vld [vmem:[%s1 + $0x8] sm:$0xff]
  %v33 = vld [vmem:[%s1 + $0x10] sm:$0xff]
  %v34 = vld [vmem:[%s1 + $0x18] sm:$0xff]
  %v35 = vld [vmem:[%s1 + $0x20] sm:$0xff]
  %v36 = vld [vmem:[%s1 + $0x28] sm:$0xff]
  %v37 = vld [vmem:[%s1 + $0x30] sm:$0xff]
  %v38 = vld [vmem:[%s1 + $0x38] sm:$0xff]
  %v39 = vld [vmem:[%s1 + $0x40] sm:$0xff]
  %v40 = vld [vmem:[%s1 + $0x48] sm:$0xff]
  %v41 = vld [vmem:[%s1 + $0x50] sm:$0xff]
  %v42 = vld [vmem:[%s1 + $0x58] sm:$0xff]
  %v43 = vld [vmem:[%s1 + $0x60] sm:$0xff]
  %v44 = vld [vmem:[%s1 + $0x68] sm:$0xff]
  %v45 = vld [vmem:[%s1 + $0x70] sm:$0xff]
  %v46 = vld [vmem:[%s1 + $0x78] sm:$0xff]
  %v47 = vld [vmem:[%s1 + $0x80] sm:$0xff]
  %v48 = vld [vmem:[%s1 + $0x88] sm:$0xff]
  %v49 = vld [vmem:[%s1 + $0x90] sm:$0xff]
  %v50 = vld [vmem:[%s1 + $0x98] sm:$0xff]
  %v51 = vld [vmem:[%s1 + $0xa0] sm:$0xff]
  %v52 = vld [vmem:[%s1 + $0xa8] sm:$0xff]
  %v53 = vld [vmem:[%s1 + $0xb0] sm:$0xff]
  %v54 = vld [vmem:[%s1 + $0xb8] sm:$0xff]
  %v55 = vld [vmem:[%s1 + $0xc0] sm:$0xff]
  %v56 = vld [vmem:[%s1 + $0xc8] sm:$0xff]
  %v57 = vld [vmem:[%s1 + $0xd0] sm:$0xff]
  %v58 = vld [vmem:[%s1 + $0xd8] sm:$0xff]
  %v59 = vld [vmem:[%s1 + $0xe0] sm:$0xff]
  %v60 = vld [vmem:[%s1 + $0xe8] sm:$0xff]
  %v61 = vld [vmem:[%s1 + $0xf0] sm:$0xff]
  %v62 = vld [vmem:[%s1 + $0xf8] sm:$0xff]
  %v63 = vld [vmem:[%s1 + $0x100] sm:$0xff]
  %v64 = vld [vmem:[%s1 + $0x108] sm:$0xff]
  %v65 = vld [vmem:[%s1 + $0x110] sm:$0xff]
  %v66 = vld [vmem:[%s1 + $0x118] sm:$0xff]
  %v67 = vld [vmem:[%s1 + $0x120] sm:$0xff]
  %v68 = vld [vmem:[%s1 + $0x128] sm:$0xff]
  %v69 = vld [vmem:[%s1 + $0x130] sm:$0xff]
  %v70 = vld [vmem:[%s1 + $0x138] sm:$0xff]
  %v71 = vld [vmem:[%s1 + $0x140] sm:$0xff]
  %v72 = vld [vmem:[%s1 + $0x148] sm:$0xff]
  %v73 = vld [vmem:[%s1 + $0x150] sm:$0xff]
  %v74 = vld [vmem:[%s1 + $0x158] sm:$0xff]
  %v75 = vld [vmem:[%s1 + $0x160] sm:$0xff]
  %v76 = vld [vmem:[%s1 + $0x168] sm:$0xff]
  %v77 = vld [vmem:[%s1 + $0x170] sm:$0xff]
  %v78 = vld [vmem:[%s1 + $0x178] sm:$0xff]
  %v79 = vld [vmem:[%s1 + $0x180] sm:$0xff]
  %v80 = vld [vmem:[%s1 + $0x188] sm:$0xff]
  %v81 = vld [vmem:[%s1 + $0x190] sm:$0xff]
  %v82 = vld [vmem:[%s1 + $0x198] sm:$0xff]
  %v83 = vld [vmem:[%s1 + $0x1a0] sm:$0xff]
  %v84 = vld [vmem:[%s1 + $0x1a8] sm:$0xff]
  %v85 = vld [vmem:[%s1 + $0x1b0] sm:$0xff]
  %v86 = vld [vmem:[%s1 + $0x1b8] sm:$0xff]
  %v87 = vld [vmem:[%s1 + $0x1c0] sm:$0xff]
  %v88 = vld [vmem:[%s1 + $0x1c8] sm:$0xff]
  %v89 = vld [vmem:[%s1 + $0x1d0] sm:$0xff]
  %v90 = vld [vmem:[%s1 + $0x1d8] sm:$0xff]
  %v91 = vld [vmem:[%s1 + $0x1e0] sm:$0xff]
  %v92 = vld [vmem:[%s1 + $0x1e8] sm:$0xff]
  %v93 = vld [vmem:[%s1 + $0x1f0] sm:$0xff]
  %v94 = vld [vmem:[%s1 + $0x1f8] sm:$0xff]
  %v95 = vld [vmem:[%s1 + $0x200] sm:$0xff]
  %v96 = vld [vmem:[%s1 + $0x208] sm:$0xff]
  %v97 = vld [vmem:[%s1 + $0x210] sm:$0xff]
  %v98 = vld [vmem:[%s1 + $0x218] sm:$0xff]
  %v99 = vld [vmem:[%s1 + $0x220] sm:$0xff]
  %v100 = vld [vmem:[%s1 + $0x228] sm:$0xff]
  %v101 = vld [vmem:[%s1 + $0x230] sm:$0xff]
  %v102 = vld [vmem:[%s1 + $0x238] sm:$0xff]
  %v103 = vld [vmem:[%s1 + $0x240] sm:$0xff]
  %v104 = vld [vmem:[%s1 + $0x248] sm:$0xff]
  %v105 = vld [vmem:[%s1 + $0x250] sm:$0xff]
  %v106 = vld [vmem:[%s1 + $0x258] sm:$0xff]
  %v107 = vld [vmem:[%s1 + $0x260] sm:$0xff]
  %v108 = vld [vmem:[%s1 + $0x268] sm:$0xff]
  %v109 = vld [vmem:[%s1 + $0x270] sm:$0xff]
  %v110 = vld [vmem:[%s1 + $0x278] sm:$0xff]
  %v111 = vld [vmem:[%s1 + $0x280] sm:$0xff]
  %v112 = vld [vmem:[%s1 + $0x288] sm:$0xff]
  %v113 = vld [vmem:[%s1 + $0x290] sm:$0xff]
  %v114 = vld [vmem:[%s1 + $0x298] sm:$0xff]
  %v115 = vld [vmem:[%s1 + $0x2a0] sm:$0xff]
  %v116 = vld [vmem:[%s1 + $0x2a8] sm:$0xff]
  %v117 = vld [vmem:[%s1 + $0x2b0] sm:$0xff]
  %v118 = vld [vmem:[%s1 + $0x2b8] sm:$0xff]
  %v119 = vld [vmem:[%s1 + $0x2c0] sm:$0xff]
  %v120 = vld [vmem:[%s1 + $0x2c8] sm:$0xff]
  %v121 = vld [vmem:[%s1 + $0x2d0] sm:$0xff]
  %v122 = vld [vmem:[%s1 + $0x2d8] sm:$0xff]
  %v123 = vld [vmem:[%s1 + $0x2e0] sm:$0xff]
  %v124 = vld [vmem:[%s1 + $0x2e8] sm:$0xff]
  %v125 = vld [vmem:[%s1 + $0x2f0] sm:$0xff]
  %v126 = vld [vmem:[%s1 + $0x2f8] sm:$0xff]
  %127 = vmatprep.subr.mxu0 0.0
  %128 = vmatpush1.msra.mxu0 %v31
  %129 = vmatprep.subr.mxu0 0.0
  %130 = vmatpush1.msra.mxu0 %v32
  %131 = vmatprep.subr.mxu0 0.0
  %132 = vmatpush1.msra.mxu0 %v33
  %133 = vmatprep.subr.mxu0 0.0
  %134 = vmatpush1.msra.mxu0 %v34
  %135 = vmatprep.subr.mxu0 0.0
  %136 = vmatpush1.msra.mxu0 %v35
  %137 = vmatprep.subr.mxu0 0.0
  %138 = vmatpush1.msra.mxu0 %v36
  %139 = vmatprep.subr.mxu0 0.0
  %140 = vmatpush1.msra.mxu0 %v37
  %141 = vmatprep.subr.mxu0 0.0
  %142 = vmatpush1.msra.mxu0 %v38
  %143 = vmatprep.subr.mxu0 0.0
  %144 = vmatpush1.msra.mxu0 %v39
  %145 = vmatprep.subr.mxu0 0.0
  %146 = vmatpush1.msra.mxu0 %v40
  %147 = vmatprep.subr.mxu0 0.0
  %148 = vmatpush1.msra.mxu0 %v41
  %149 = vmatprep.subr.mxu0 0.0
  %150 = vmatpush1.msra.mxu0 %v42
  %151 = vmatprep.subr.mxu0 0.0
  %152 = vmatpush1.msra.mxu0 %v43
  %153 = vmatprep.subr.mxu0 0.0
  %154 = vmatpush1.msra.mxu0 %v44
  %155 = vmatprep.subr.mxu0 0.0
  %156 = vmatpush1.msra.mxu0 %v45
  %157 = vmatprep.subr.mxu0 0.0
  %158 = vmatpush1.msra.mxu0 %v46
  %159 = vmatprep.subr.mxu0 0.0
  %160 = vmatpush1.msra.mxu0 %v47
  %161 = vmatprep.subr.mxu0 0.0
  %162 = vmatpush1.msra.mxu0 %v48
  %163 = vmatprep.subr.mxu0 0.0
  %164 = vmatpush1.msra.mxu0 %v49
  %165 = vmatprep.subr.mxu0 0.0
  %166 = vmatpush1.msra.mxu0 %v50
  %167 = vmatprep.subr.mxu0 0.0
  %168 = vmatpush1.msra.mxu0 %v51
  %169 = vmatprep.subr.mxu0 0.0
  %170 = vmatpush1.msra.mxu0 %v52
  %171 = vmatprep.subr.mxu0 0.0
  %172 = vmatpush1.msra.mxu0 %v53
  %173 = vmatprep.subr.mxu0 0.0
  %174 = vmatpush1.msra.mxu0 %v54
  %175 = vmatprep.subr.mxu0 0.0
  %176 = vmatpush1.msra.mxu0 %v55
  %177 = vmatprep.subr.mxu0 0.0
  %178 = vmatpush1.msra.mxu0 %v56
  %179 = vmatprep.subr.mxu0 0.0
  %180 = vmatpush1.msra.mxu0 %v57
  %181 = vmatprep.subr.mxu0 0.0
  %182 = vmatpush1.msra.mxu0 %v58
  %183 = vmatprep.subr.mxu0 0.0
  %184 = vmatpush1.msra.mxu0 %v59
  %185 = vmatprep.subr.mxu0 0.0
  %186 = vmatpush1.msra.mxu0 %v60
  %187 = vmatprep.subr.mxu0 0.0
  %188 = vmatpush1.msra.mxu0 %v61
  %189 = vmatprep.subr.mxu0 0.0
  %190 = vmatpush1.msra.mxu0 %v62
  %191 = vmatprep.mubr.f32.mxu0 %v20
  %192 = vmatmul.mubr.f32.gmra.mrb[0].mxu0 %v19
  %v193 = vpop.f32.mrb[0].mxu0
  %v194 = vadd.f32 0.0, %v193
  %v195 = vpop.f32.mrb[0].mxu0
  %196 = vmatprep.mubr.f32.mxu0 %v26
  %197 = vmatmul.mubr.f32.gmra.mrb[0].mxu0 %v25
  %v198 = vpop.f32.mrb[0].mxu0
  %v199 = vadd.f32 0.0, %v198
  %v200 = vpop.f32.mrb[0].mxu0
  %201 = vdwg.mxu0
  %202 = vmatprep.subr.mxu0 0.0
  %203 = vmatpush1.msra.mxu0 %v63
  %204 = vmatprep.subr.mxu0 0.0
  %205 = vmatpush1.msra.mxu0 %v64
  %206 = vmatprep.subr.mxu0 0.0
  %207 = vmatpush1.msra.mxu0 %v65
  %208 = vmatprep.subr.mxu0 0.0
  %209 = vmatpush1.msra.mxu0 %v66
  %210 = vmatprep.subr.mxu0 0.0
  %211 = vmatpush1.msra.mxu0 %v67
  %212 = vmatprep.subr.mxu0 0.0
  %213 = vmatpush1.msra.mxu0 %v68
  %214 = vmatprep.subr.mxu0 0.0
  %215 = vmatpush1.msra.mxu0 %v69
  %216 = vmatprep.subr.mxu0 0.0
  %217 = vmatpush1.msra.mxu0 %v70
  %218 = vmatprep.subr.mxu0 0.0
  %219 = vmatpush1.msra.mxu0 %v71
  %220 = vmatprep.subr.mxu0 0.0
  %221 = vmatpush1.msra.mxu0 %v72
  %222 = vmatprep.subr.mxu0 0.0
  %223 = vmatpush1.msra.mxu0 %v73
  %224 = vmatprep.subr.mxu0 0.0
  %225 = vmatpush1.msra.mxu0 %v74
  %226 = vmatprep.subr.mxu0 0.0
  %227 = vmatpush1.msra.mxu0 %v75
  %228 = vmatprep.subr.mxu0 0.0
  %229 = vmatpush1.msra.mxu0 %v76
  %230 = vmatprep.subr.mxu0 0.0
  %231 = vmatpush1.msra.mxu0 %v77
  %232 = vmatprep.subr.mxu0 0.0
  %233 = vmatpush1.msra.mxu0 %v78
  %234 = vmatprep.subr.mxu0 0.0
  %235 = vmatpush1.msra.mxu0 %v79
  %236 = vmatprep.subr.mxu0 0.0
  %237 = vmatpush1.msra.mxu0 %v80
  %238 = vmatprep.subr.mxu0 0.0
  %239 = vmatpush1.msra.mxu0 %v81
  %240 = vmatprep.subr.mxu0 0.0
  %241 = vmatpush1.msra.mxu0 %v82
  %242 = vmatprep.subr.mxu0 0.0
  %243 = vmatpush1.msra.mxu0 %v83
  %244 = vmatprep.subr.mxu0 0.0
  %245 = vmatpush1.msra.mxu0 %v84
  %246 = vmatprep.subr.mxu0 0.0
  %247 = vmatpush1.msra.mxu0 %v85
  %248 = vmatprep.subr.mxu0 0.0
  %249 = vmatpush1.msra.mxu0 %v86
  %250 = vmatprep.subr.mxu0 0.0
  %251 = vmatpush1.msra.mxu0 %v87
  %252 = vmatprep.subr.mxu0 0.0
  %253 = vmatpush1.msra.mxu0 %v88
  %254 = vmatprep.subr.mxu0 0.0
  %255 = vmatpush1.msra.mxu0 %v89
  %256 = vmatprep.subr.mxu0 0.0
  %257 = vmatpush1.msra.mxu0 %v90
  %258 = vmatprep.subr.mxu0 0.0
  %259 = vmatpush1.msra.mxu0 %v91
  %260 = vmatprep.subr.mxu0 0.0
  %261 = vmatpush1.msra.mxu0 %v92
  %262 = vmatprep.subr.mxu0 0.0
  %263 = vmatpush1.msra.mxu0 %v93
  %264 = vmatprep.subr.mxu0 0.0
  %265 = vmatpush1.msra.mxu0 %v94
  %266 = vmatprep.mubr.f32.mxu0 %v22
  %267 = vmatmul.mubr.f32.gmra.mrb[0].mxu0 %v21
  %v268 = vpop.f32.mrb[0].mxu0
  %v269 = vadd.f32 %v194, %v268
  %v270 = vpop.f32.mrb[0].mxu0
  %271 = vmatprep.mubr.f32.mxu0 %v28
  %272 = vmatmul.mubr.f32.gmra.mrb[0].mxu0 %v27
  %v273 = vpop.f32.mrb[0].mxu0
  %v274 = vadd.f32 %v199, %v273
  %v275 = vpop.f32.mrb[0].mxu0
  %276 = vdwg.mxu0
  %277 = vmatprep.subr.mxu0 0.0
  %278 = vmatpush1.msra.mxu0 %v95
  %279 = vmatprep.subr.mxu0 0.0
  %280 = vmatpush1.msra.mxu0 %v96
  %281 = vmatprep.subr.mxu0 0.0
  %282 = vmatpush1.msra.mxu0 %v97
  %283 = vmatprep.subr.mxu0 0.0
  %284 = vmatpush1.msra.mxu0 %v98
  %285 = vmatprep.subr.mxu0 0.0
  %286 = vmatpush1.msra.mxu0 %v99
  %287 = vmatprep.subr.mxu0 0.0
  %288 = vmatpush1.msra.mxu0 %v100
  %289 = vmatprep.subr.mxu0 0.0
  %290 = vmatpush1.msra.mxu0 %v101
  %291 = vmatprep.subr.mxu0 0.0
  %292 = vmatpush1.msra.mxu0 %v102
  %293 = vmatprep.subr.mxu0 0.0
  %294 = vmatpush1.msra.mxu0 %v103
  %295 = vmatprep.subr.mxu0 0.0
  %296 = vmatpush1.msra.mxu0 %v104
  %297 = vmatprep.subr.mxu0 0.0
  %298 = vmatpush1.msra.mxu0 %v105
  %299 = vmatprep.subr.mxu0 0.0
  %300 = vmatpush1.msra.mxu0 %v106
  %301 = vmatprep.subr.mxu0 0.0
  %302 = vmatpush1.msra.mxu0 %v107
  %303 = vmatprep.subr.mxu0 0.0
  %304 = vmatpush1.msra.mxu0 %v108
  %305 = vmatprep.subr.mxu0 0.0
  %306 = vmatpush1.msra.mxu0 %v109
  %307 = vmatprep.subr.mxu0 0.0
  %308 = vmatpush1.msra.mxu0 %v110
  %309 = vmatprep.subr.mxu0 0.0
  %310 = vmatpush1.msra.mxu0 %v111
  %311 = vmatprep.subr.mxu0 0.0
  %312 = vmatpush1.msra.mxu0 %v112
  %313 = vmatprep.subr.mxu0 0.0
  %314 = vmatpush1.msra.mxu0 %v113
  %315 = vmatprep.subr.mxu0 0.0
  %316 = vmatpush1.msra.mxu0 %v114
  %317 = vmatprep.subr.mxu0 0.0
  %318 = vmatpush1.msra.mxu0 %v115
  %319 = vmatprep.subr.mxu0 0.0
  %320 = vmatpush1.msra.mxu0 %v116
  %321 = vmatprep.subr.mxu0 0.0
  %322 = vmatpush1.msra.mxu0 %v117
  %323 = vmatprep.subr.mxu0 0.0
  %324 = vmatpush1.msra.mxu0 %v118
  %325 = vmatprep.subr.mxu0 0.0
  %326 = vmatpush1.msra.mxu0 %v119
  %327 = vmatprep.subr.mxu0 0.0
  %328 = vmatpush1.msra.mxu0 %v120
  %329 = vmatprep.subr.mxu0 0.0
  %330 = vmatpush1.msra.mxu0 %v121
  %331 = vmatprep.subr.mxu0 0.0
  %332 = vmatpush1.msra.mxu0 %v122
  %333 = vmatprep.subr.mxu0 0.0
  %334 = vmatpush1.msra.mxu0 %v123
  %335 = vmatprep.subr.mxu0 0.0
  %336 = vmatpush1.msra.mxu0 %v124
  %337 = vmatprep.subr.mxu0 0.0
  %338 = vmatpush1.msra.mxu0 %v125
  %339 = vmatprep.subr.mxu0 0.0
  %340 = vmatpush1.msra.mxu0 %v126
  %341 = vmatprep.mubr.f32.mxu0 %v24
  %342 = vmatmul.mubr.f32.gmra.mrb[0].mxu0 %v23
  %v343 = vpop.f32.mrb[0].mxu0
  %v344 = vadd.f32 %v269, %v343
  %v345 = vpop.f32.mrb[0].mxu0
  %346 = vmatprep.mubr.f32.mxu0 %v30
  %347 = vmatmul.mubr.f32.gmra.mrb[0].mxu0 %v29
  %v348 = vpop.f32.mrb[0].mxu0
  %v349 = vadd.f32 %v274, %v348
  %v350 = vpop.f32.mrb[0].mxu0
  %351 = vdwg.mxu0
  %v352 = vadd.f32 %v344, %v349
  %v353 = vrot.slane %v352, 4
  %v354 = vadd.f32 %v352, %v353
  %v355 = vrot.slane %v354, 2
  %v356 = vadd.f32 %v354, %v355
  %v357 = vrot.slane %v356, 1
  %v358 = vadd.f32 %v356, %v357
  %v359 = vmul.f32 %v344, %v344
  %v360 = vmul.f32 %v349, %v349
  %v361 = vadd.f32 %v359, %v360
  %v362 = vrot.slane %v361, 4
  %v363 = vadd.f32 %v361, %v362
  %v364 = vrot.slane %v363, 2
  %v365 = vadd.f32 %v363, %v364
  %v366 = vrot.slane %v365, 1
  %v367 = vadd.f32 %v365, %v366
  %v368 = vmul.f32 %v358, 0.0625
  %v369 = vmul.f32 %v367, 0.0625
  %v370 = vmul.f32 %v368, %v368
  %v371 = vsub.f32 %v369, %v370
  %v372 = vmax.f32 %v371, 0.0
  %v373 = vadd.f32 %v372, 1e-05
  %v374 = vrsqrt.pop %v373
  %v375 = vmul.f32 %v17, %v374
  %v376 = vmul.f32 %v368, %v375
  %v377 = vsub.f32 %v18, %v376
  %v379 = vlaneseq
  %v380 = vshrl.u32 %v379, 7
  %v381 = vsub.s32 0, %v380
  %v382 = vrot.slane %v375, %v381
  %v384 = vmul.f32 %v344, %v382
  %v385 = vmul.f32 %v349, %v382
  %v387 = vlaneseq
  %v388 = vshrl.u32 %v387, 7
  %v389 = vsub.s32 0, %v388
  %v390 = vrot.slane %v377, %v389
  %v392 = vadd.f32 %v384, %v390
  %v393 = vadd.f32 %v385, %v390
  %v394 = vmax.f32 %v392, 0.0
  %v395 = vmax.f32 %v393, 0.0
  %396 = vst [vmem:[%s4] sm:$0xff] %v394
  %397 = vst [vmem:[%s4 + $0x8] sm:$0xff] %v395
  // Predicated region
  $region18: #{bucket_forward.6} parent=0 // pred_check
    _
  $region19: #{bucket_forward.6} parent=0 // pred_check_branch
    %399 = sbr.rel (0) target = $region21
  $region20: #{bucket_forward.6} parent=0 // pred_region
    _
  $region21: #{bucket_forward.6} parent=0 // pred_fallthru
    _
  // Predicated region
  $region22: #{bucket_forward.6} parent=0 // pred_check
    _
  $region23: #{bucket_forward.6} parent=0 // pred_check_branch
    %401 = sbr.rel (0) target = $region25
  $region24: #{bucket_forward.6} parent=0 // pred_region
    _
  $region25: #{bucket_forward.6} parent=0 // pred_fallthru
    _

// kernel: bucket_forward.7
$region0: #{bucket_forward.7}
  #allocation0 [shape = 'u32[]', space=smem, size = 0x4, offset = 0x4, fixed_abs, tag = 'smem constant byte address 0x4 - core index']
  #allocation1 [shape = 'u32[144,128]{1,0:T(1,128)}', space=vmem, size = 0x12000, scoped, tag = 'internal scratch']
  %s0 = inlined_call_operand.vmem [shape: f32[64,768], index: 0, kind: input, shape index: {}]
  %s1 = inlined_call_operand.vmem [shape: f32[56,512], index: 1, kind: input, shape index: {}, may-alias: {1,2}]
  %s2 = inlined_call_operand.vmem [shape: f32[56,512], index: 2, kind: input, shape index: {}, may-alias: {1,2}]
  %s3 = inlined_call_operand.vmem [shape: f32[768,128], index: 3, kind: input, shape index: {}]
  %s4 = inlined_call_operand.vmem [shape: f32[512,128], index: 4, kind: input, shape index: {}]
  %s5 = inlined_call_operand.vmem [shape: f32[512,128], index: 5, kind: input, shape index: {}]
  %s6 = inlined_call_operand.vmem [shape: f32[1,128], index: 6, kind: input, shape index: {}]
  %s7 = inlined_call_operand.vmem [shape: f32[1,128], index: 7, kind: input, shape index: {}]
  %s8 = inlined_call_operand.vmem [shape: f32[64,128], index: 8, kind: output, shape index: {0}]
  %s9 = inlined_call_operand.vmem [shape: f32[56,128], index: 9, kind: output, shape index: {1}]
  %s10 = inlined_call_operand.vmem [shape: f32[56,128], index: 10, kind: output, shape index: {2}]
  %11 = xla_tuple %s8, %s9, %s10
  %s12 = sld [smem:[#allocation0]]
  $region58: #{bucket_forward.7} parent=0
    _
  %s14 = ssub.s32 1, %s12
  %s15 = scalar_select 0, %s14, %s12
  // Predicated region
  $region2: #{bucket_forward.7} parent=0 // pred_check
    _
  $region3: #{bucket_forward.7} parent=0 // pred_check_branch
    %17 = sbr.rel (0) target = $region5
  $region4: #{bucket_forward.7} parent=0 // pred_region
    _
  $region5: #{bucket_forward.7} parent=0 // pred_fallthru
    _
  // Predicated region
  $region6: #{bucket_forward.7} parent=0 // pred_check
    _
  $region7: #{bucket_forward.7} parent=0 // pred_check_branch
    %19 = sbr.rel (0) target = $region9
  $region8: #{bucket_forward.7} parent=0 // pred_region
    _
  $region9: #{bucket_forward.7} parent=0 // pred_fallthru
    _
  // Predicated region
  $region10: #{bucket_forward.7} parent=0 // pred_check
    _
  $region11: #{bucket_forward.7} parent=0 // pred_check_branch
    %21 = sbr.rel (0) target = $region13
  $region12: #{bucket_forward.7} parent=0 // pred_region
    _
  $region13: #{bucket_forward.7} parent=0 // pred_fallthru
    _
  // Predicated region
  $region14: #{bucket_forward.7} parent=0 // pred_check
    _
  $region15: #{bucket_forward.7} parent=0 // pred_check_branch
    %23 = sbr.rel (0) target = $region17
  $region16: #{bucket_forward.7} parent=0 // pred_region
    _
  $region17: #{bucket_forward.7} parent=0 // pred_fallthru
    _
  // Predicated region
  $region18: #{bucket_forward.7} parent=0 // pred_check
    _
  $region19: #{bucket_forward.7} parent=0 // pred_check_branch
    %25 = sbr.rel (0) target = $region21
  $region20: #{bucket_forward.7} parent=0 // pred_region
    _
  $region21: #{bucket_forward.7} parent=0 // pred_fallthru
    _
  // Predicated region
  $region22: #{bucket_forward.7} parent=0 // pred_check
    _
  $region23: #{bucket_forward.7} parent=0 // pred_check_branch
    %27 = sbr.rel (0) target = $region25
  $region24: #{bucket_forward.7} parent=0 // pred_region
    _
  $region25: #{bucket_forward.7} parent=0 // pred_fallthru
    _
  // Predicated region
  $region26: #{bucket_forward.7} parent=0 // pred_check
    _
  $region27: #{bucket_forward.7} parent=0 // pred_check_branch
    %29 = sbr.rel (0) target = $region29
  $region28: #{bucket_forward.7} parent=0 // pred_region
    _
  $region29: #{bucket_forward.7} parent=0 // pred_fallthru
    _
  // Predicated region
  $region30: #{bucket_forward.7} parent=0 // pred_check
    _
  $region31: #{bucket_forward.7} parent=0 // pred_check_branch
    %31 = sbr.rel (0) target = $region33
  $region32: #{bucket_forward.7} parent=0 // pred_region
    _
  $region33: #{bucket_forward.7} parent=0 // pred_fallthru
    _
  %v32 = vld [vmem:[%s6] sm:$0x1]
  %v33 = vld [vmem:[%s7] sm:$0x1]
  %v34 = vld [vmem:[%s0] sm:$0xff]
  %v35 = vld [vmem:[%s0 + $0x8] sm:$0xff]
  %v36 = vld [vmem:[%s0 + $0x10] sm:$0xff]
  %v37 = vld [vmem:[%s0 + $0x18] sm:$0xff]
  %v38 = vld [vmem:[%s0 + $0x20] sm:$0xff]
  %v39 = vld [vmem:[%s0 + $0x28] sm:$0xff]
  %v40 = vld [vmem:[%s0 + $0x30] sm:$0xff]
  %v41 = vld [vmem:[%s0 + $0x38] sm:$0xff]
  %v42 = vld [vmem:[%s0 + $0x40] sm:$0xff]
  %v43 = vld [vmem:[%s0 + $0x48] sm:$0xff]
  %v44 = vld [vmem:[%s0 + $0x50] sm:$0xff]
  %v45 = vld [vmem:[%s0 + $0x58] sm:$0xff]
  %v46 = vld [vmem:[%s0 + $0x60] sm:$0xff]
  %v47 = vld [vmem:[%s0 + $0x68] sm:$0xff]
  %v48 = vld [vmem:[%s0 + $0x70] sm:$0xff]
  %v49 = vld [vmem:[%s0 + $0x78] sm:$0xff]
  %v50 = vld [vmem:[%s0 + $0x80] sm:$0xff]
  %v51 = vld [vmem:[%s0 + $0x88] sm:$0xff]
  %v52 = vld [vmem:[%s0 + $0x90] sm:$0xff]
  %v53 = vld [vmem:[%s0 + $0x98] sm:$0xff]
  %v54 = vld [vmem:[%s0 + $0xa0] sm:$0xff]
  %v55 = vld [vmem:[%s0 + $0xa8] sm:$0xff]
  %v56 = vld [vmem:[%s0 + $0xb0] sm:$0xff]
  %v57 = vld [vmem:[%s0 + $0xb8] sm:$0xff]
  %v58 = vld [vmem:[%s0 + $0xc0] sm:$0xff]
  %v59 = vld [vmem:[%s0 + $0xc8] sm:$0xff]
  %v60 = vld [vmem:[%s0 + $0xd0] sm:$0xff]
  %v61 = vld [vmem:[%s0 + $0xd8] sm:$0xff]
  %v62 = vld [vmem:[%s0 + $0xe0] sm:$0xff]
  %v63 = vld [vmem:[%s0 + $0xe8] sm:$0xff]
  %v64 = vld [vmem:[%s0 + $0xf0] sm:$0xff]
  %v65 = vld [vmem:[%s0 + $0xf8] sm:$0xff]
  %v66 = vld [vmem:[%s0 + $0x100] sm:$0xff]
  %v67 = vld [vmem:[%s0 + $0x108] sm:$0xff]
  %v68 = vld [vmem:[%s0 + $0x110] sm:$0xff]
  %v69 = vld [vmem:[%s0 + $0x118] sm:$0xff]
  %v70 = vld [vmem:[%s0 + $0x120] sm:$0xff]
  %v71 = vld [vmem:[%s0 + $0x128] sm:$0xff]
  %v72 = vld [vmem:[%s0 + $0x130] sm:$0xff]
  %v73 = vld [vmem:[%s0 + $0x138] sm:$0xff]
  %v74 = vld [vmem:[%s0 + $0x140] sm:$0xff]
  %v75 = vld [vmem:[%s0 + $0x148] sm:$0xff]
  %v76 = vld [vmem:[%s0 + $0x150] sm:$0xff]
  %v77 = vld [vmem:[%s0 + $0x158] sm:$0xff]
  %v78 = vld [vmem:[%s0 + $0x160] sm:$0xff]
  %v79 = vld [vmem:[%s0 + $0x168] sm:$0xff]
  %v80 = vld [vmem:[%s0 + $0x170] sm:$0xff]
  %v81 = vld [vmem:[%s0 + $0x178] sm:$0xff]
  %v82 = vld [vmem:[%s3] sm:$0xff]
  %v83 = vld [vmem:[%s3 + $0x8] sm:$0xff]
  %v84 = vld [vmem:[%s3 + $0x10] sm:$0xff]
  %v85 = vld [vmem:[%s3 + $0x18] sm:$0xff]
  %v86 = vld [vmem:[%s3 + $0x20] sm:$0xff]
  %v87 = vld [vmem:[%s3 + $0x28] sm:$0xff]
  %v88 = vld [vmem:[%s3 + $0x30] sm:$0xff]
  %v89 = vld [vmem:[%s3 + $0x38] sm:$0xff]
  %v90 = vld [vmem:[%s3 + $0x40] sm:$0xff]
  %v91 = vld [vmem:[%s3 + $0x48] sm:$0xff]
  %v92 = vld [vmem:[%s3 + $0x50] sm:$0xff]
  %v93 = vld [vmem:[%s3 + $0x58] sm:$0xff]
  %v94 = vld [vmem:[%s3 + $0x60] sm:$0xff]
  %v95 = vld [vmem:[%s3 + $0x68] sm:$0xff]
  %v96 = vld [vmem:[%s3 + $0x70] sm:$0xff]
  %v97 = vld [vmem:[%s3 + $0x78] sm:$0xff]
  %v98 = vld [vmem:[%s3 + $0x80] sm:$0xff]
  %v99 = vld [vmem:[%s3 + $0x88] sm:$0xff]
  %v100 = vld [vmem:[%s3 + $0x90] sm:$0xff]
  %v101 = vld [vmem:[%s3 + $0x98] sm:$0xff]
  %v102 = vld [vmem:[%s3 + $0xa0] sm:$0xff]
  %v103 = vld [vmem:[%s3 + $0xa8] sm:$0xff]
  %v104 = vld [vmem:[%s3 + $0xb0] sm:$0xff]
  %v105 = vld [vmem:[%s3 + $0xb8] sm:$0xff]
  %v106 = vld [vmem:[%s3 + $0xc0] sm:$0xff]
  %v107 = vld [vmem:[%s3 + $0xc8] sm:$0xff]
  %v108 = vld [vmem:[%s3 + $0xd0] sm:$0xff]
  %v109 = vld [vmem:[%s3 + $0xd8] sm:$0xff]
  %v110 = vld [vmem:[%s3 + $0xe0] sm:$0xff]
  %v111 = vld [vmem:[%s3 + $0xe8] sm:$0xff]
  %v112 = vld [vmem:[%s3 + $0xf0] sm:$0xff]
  %v113 = vld [vmem:[%s3 + $0xf8] sm:$0xff]
  %v114 = vld [vmem:[%s3 + $0x100] sm:$0xff]
  %v115 = vld [vmem:[%s3 + $0x108] sm:$0xff]
  %v116 = vld [vmem:[%s3 + $0x110] sm:$0xff]
  %v117 = vld [vmem:[%s3 + $0x118] sm:$0xff]
  %v118 = vld [vmem:[%s3 + $0x120] sm:$0xff]
  %v119 = vld [vmem:[%s3 + $0x128] sm:$0xff]
  %v120 = vld [vmem:[%s3 + $0x130] sm:$0xff]
  %v121 = vld [vmem:[%s3 + $0x138] sm:$0xff]
  %v122 = vld [vmem:[%s3 + $0x140] sm:$0xff]
  %v123 = vld [vmem:[%s3 + $0x148] sm:$0xff]
  %v124 = vld [vmem:[%s3 + $0x150] sm:$0xff]
  %v125 = vld [vmem:[%s3 + $0x158] sm:$0xff]
  %v126 = vld [vmem:[%s3 + $0x160] sm:$0xff]
  %v127 = vld [vmem:[%s3 + $0x168] sm:$0xff]
  %v128 = vld [vmem:[%s3 + $0x170] sm:$0xff]
  %v129 = vld [vmem:[%s3 + $0x178] sm:$0xff]
  %v130 = vld [vmem:[%s3 + $0x180] sm:$0xff]
  %v131 = vld [vmem:[%s3 + $0x188] sm:$0xff]
  %v132 = vld [vmem:[%s3 + $0x190] sm:$0xff]
  %v133 = vld [vmem:[%s3 + $0x198] sm:$0xff]
  %v134 = vld [vmem:[%s3 + $0x1a0] sm:$0xff]
  %v135 = vld [vmem:[%s3 + $0x1a8] sm:$0xff]
  %v136 = vld [vmem:[%s3 + $0x1b0] sm:$0xff]
  %v137 = vld [vmem:[%s3 + $0x1b8] sm:$0xff]
  %v138 = vld [vmem:[%s3 + $0x1c0] sm:$0xff]
  %v139 = vld [vmem:[%s3 + $0x1c8] sm:$0xff]
  %v140 = vld [vmem:[%s3 + $0x1d0] sm:$0xff]
  %v141 = vld [vmem:[%s3 + $0x1d8] sm:$0xff]
  %v142 = vld [vmem:[%s3 + $0x1e0] sm:$0xff]
  %v143 = vld [vmem:[%s3 + $0x1e8] sm:$0xff]
  %v144 = vld [vmem:[%s3 + $0x1f0] sm:$0xff]
  %v145 = vld [vmem:[%s3 + $0x1f8] sm:$0xff]
  %v146 = vld [vmem:[%s3 + $0x200] sm:$0xff]
  %v147 = vld [vmem:[%s3 + $0x208] sm:$0xff]
  %v148 = vld [vmem:[%s3 + $0x210] sm:$0xff]
  %v149 = vld [vmem:[%s3 + $0x218] sm:$0xff]
  %v150 = vld [vmem:[%s3 + $0x220] sm:$0xff]
  %v151 = vld [vmem:[%s3 + $0x228] sm:$0xff]
  %v152 = vld [vmem:[%s3 + $0x230] sm:$0xff]
  %v153 = vld [vmem:[%s3 + $0x238] sm:$0xff]
  %v154 = vld [vmem:[%s3 + $0x240] sm:$0xff]
  %v155 = vld [vmem:[%s3 + $0x248] sm:$0xff]
  %v156 = vld [vmem:[%s3 + $0x250] sm:$0xff]
  %v157 = vld [vmem:[%s3 + $0x258] sm:$0xff]
  %v158 = vld [vmem:[%s3 + $0x260] sm:$0xff]
  %v159 = vld [vmem:[%s3 + $0x268] sm:$0xff]
  %v160 = vld [vmem:[%s3 + $0x270] sm:$0xff]
  %v161 = vld [vmem:[%s3 + $0x278] sm:$0xff]
  %v162 = vld [vmem:[%s3 + $0x280] sm:$0xff]
  %v163 = vld [vmem:[%s3 + $0x288] sm:$0xff]
  %v164 = vld [vmem:[%s3 + $0x290] sm:$0xff]
  %v165 = vld [vmem:[%s3 + $0x298] sm:$0xff]
  %v166 = vld [vmem:[%s3 + $0x2a0] sm:$0xff]
  %v167 = vld [vmem:[%s3 + $0x2a8] sm:$0xff]
  %v168 = vld [vmem:[%s3 + $0x2b0] sm:$0xff]
  %v169 = vld [vmem:[%s3 + $0x2b8] sm:$0xff]
  %v170 = vld [vmem:[%s3 + $0x2c0] sm:$0xff]
  %v171 = vld [vmem:[%s3 + $0x2c8] sm:$0xff]
  %v172 = vld [vmem:[%s3 + $0x2d0] sm:$0xff]
  %v173 = vld [vmem:[%s3 + $0x2d8] sm:$0xff]
  %v174 = vld [vmem:[%s3 + $0x2e0] sm:$0xff]
  %v175 = vld [vmem:[%s3 + $0x2e8] sm:$0xff]
  %v176 = vld [vmem:[%s3 + $0x2f0] sm:$0xff]
  %v177 = vld [vmem:[%s3 + $0x2f8] sm:$0xff]
  %178 = vmatprep.subr.mxu0 0.0
  %179 = vmatpush1.msra.mxu0 %v82
  %180 = vmatprep.subr.mxu0 0.0
  %181 = vmatpush1.msra.mxu0 %v83
  %182 = vmatprep.subr.mxu0 0.0
  %183 = vmatpush1.msra.mxu0 %v84
  %184 = vmatprep.subr.mxu0 0.0
  %185 = vmatpush1.msra.mxu0 %v85
  %186 = vmatprep.subr.mxu0 0.0
  %187 = vmatpush1.msra.mxu0 %v86
  %188 = vmatprep.subr.mxu0 0.0
  %189 = vmatpush1.msra.mxu0 %v87
  %190 = vmatprep.subr.mxu0 0.0
  %191 = vmatpush1.msra.mxu0 %v88
  %192 = vmatprep.subr.mxu0 0.0
  %193 = vmatpush1.msra.mxu0 %v89
  %194 = vmatprep.subr.mxu0 0.0
  %195 = vmatpush1.msra.mxu0 %v90
  %196 = vmatprep.subr.mxu0 0.0
  %197 = vmatpush1.msra.mxu0 %v91
  %198 = vmatprep.subr.mxu0 0.0
  %199 = vmatpush1.msra.mxu0 %v92
  %200 = vmatprep.subr.mxu0 0.0
  %201 = vmatpush1.msra.mxu0 %v93
  %202 = vmatprep.subr.mxu0 0.0
  %203 = vmatpush1.msra.mxu0 %v94
  %204 = vmatprep.subr.mxu0 0.0
  %205 = vmatpush1.msra.mxu0 %v95
  %206 = vmatprep.subr.mxu0 0.0
  %207 = vmatpush1.msra.mxu0 %v96
  %208 = vmatprep.subr.mxu0 0.0
  %209 = vmatpush1.msra.mxu0 %v97
  %210 = vmatprep.subr.mxu0 0.0
  %211 = vmatpush1.msra.mxu0 %v98
  %212 = vmatprep.subr.mxu0 0.0
  %213 = vmatpush1.msra.mxu0 %v99
  %214 = vmatprep.subr.mxu0 0.0
  %215 = vmatpush1.msra.mxu0 %v100
  %216 = vmatprep.subr.mxu0 0.0
  %217 = vmatpush1.msra.mxu0 %v101
  %218 = vmatprep.subr.mxu0 0.0
  %219 = vmatpush1.msra.mxu0 %v102
  %220 = vmatprep.subr.mxu0 0.0
  %221 = vmatpush1.msra.mxu0 %v103
  %222 = vmatprep.subr.mxu0 0.0
  %223 = vmatpush1.msra.mxu0 %v104
  %224 = vmatprep.subr.mxu0 0.0
  %225 = vmatpush1.msra.mxu0 %v105
  %226 = vmatprep.subr.mxu0 0.0
  %227 = vmatpush1.msra.mxu0 %v106
  %228 = vmatprep.subr.mxu0 0.0
  %229 = vmatpush1.msra.mxu0 %v107
  %230 = vmatprep.subr.mxu0 0.0
  %231 = vmatpush1.msra.mxu0 %v108
  %232 = vmatprep.subr.mxu0 0.0
  %233 = vmatpush1.msra.mxu0 %v109
  %234 = vmatprep.subr.mxu0 0.0
  %235 = vmatpush1.msra.mxu0 %v110
  %236 = vmatprep.subr.mxu0 0.0
  %237 = vmatpush1.msra.mxu0 %v111
  %238 = vmatprep.subr.mxu0 0.0
  %239 = vmatpush1.msra.mxu0 %v112
  %240 = vmatprep.subr.mxu0 0.0
  %241 = vmatpush1.msra.mxu0 %v113
  %242 = vmatprep.mubr.f32.mxu0 %v35
  %243 = vmatmul.mubr.f32.gmra.mrb[0].mxu0 %v34
  %v244 = vpop.f32.mrb[0].mxu0
  %v245 = vadd.f32 0.0, %v244
  %v246 = vpop.f32.mrb[0].mxu0
  %247 = vmatprep.mubr.f32.mxu0 %v41
  %248 = vmatmul.mubr.f32.gmra.mrb[0].mxu0 %v40
  %v249 = vpop.f32.mrb[0].mxu0
  %v250 = vadd.f32 0.0, %v249
  %v251 = vpop.f32.mrb[0].mxu0
  %252 = vmatprep.mubr.f32.mxu0 %v47
  %253 = vmatmul.mubr.f32.gmra.mrb[0].mxu0 %v46
  %v254 = vpop.f32.mrb[0].mxu0
  %v255 = vadd.f32 0.0, %v254
  %v256 = vpop.f32.mrb[0].mxu0
  %257 = vmatprep.mubr.f32.mxu0 %v53
  %258 = vmatmul.mubr.f32.gmra.mrb[0].mxu0 %v52
  %v259 = vpop.f32.mrb[0].mxu0
  %v260 = vadd.f32 0.0, %v259
  %v261 = vpop.f32.mrb[0].mxu0
  %262 = vmatprep.mubr.f32.mxu0 %v59
  %263 = vmatmul.mubr.f32.gmra.mrb[0].mxu0 %v58
  %v264 = vpop.f32.mrb[0].mxu0
  %v265 = vadd.f32 0.0, %v264
  %v266 = vpop.f32.mrb[0].mxu0
  %267 = vmatprep.mubr.f32.mxu0 %v65
  %268 = vmatmul.mubr.f32.gmra.mrb[0].mxu0 %v64
  %v269 = vpop.f32.mrb[0].mxu0
  %v270 = vadd.f32 0.0, %v269
  %v271 = vpop.f32.mrb[0].mxu0
  %272 = vmatprep.mubr.f32.mxu0 %v71
  %273 = vmatmul.mubr.f32.gmra.mrb[0].mxu0 %v70
  %v274 = vpop.f32.mrb[0].mxu0
  %v275 = vadd.f32 0.0, %v274
  %v276 = vpop.f32.mrb[0].mxu0
  %277 = vmatprep.mubr.f32.mxu0 %v77
  %278 = vmatmul.mubr.f32.gmra.mrb[0].mxu0 %v76
  %v279 = vpop.f32.mrb[0].mxu0
  %v280 = vadd.f32 0.0, %v279
  %v281 = vpop.f32.mrb[0].mxu0
  %282 = vdwg.mxu0
  %283 = vmatprep.subr.mxu0 0.0
  %284 = vmatpush1.msra.mxu0 %v114
  %285 = vmatprep.subr.mxu0 0.0
  %286 = vmatpush1.msra.mxu0 %v115
  %287 = vmatprep.subr.mxu0 0.0
  %288 = vmatpush1.msra.mxu0 %v116
  %289 = vmatprep.subr.mxu0 0.0
  %290 = vmatpush1.msra.mxu0 %v117
  %291 = vmatprep.subr.mxu0 0.0
  %292 = vmatpush1.msra.mxu0 %v118
  %293 = vmatprep.subr.mxu0 0.0
  %294 = vmatpush1.msra.mxu0 %v119
  %295 = vmatprep.subr.mxu0 0.0
  %296 = vmatpush1.msra.mxu0 %v120
  %297 = vmatprep.subr.mxu0 0.0
  %298 = vmatpush1.msra.mxu0 %v121
  %299 = vmatprep.subr.mxu0 0.0
  %300 = vmatpush1.msra.mxu0 %v122
  %301 = vmatprep.subr.mxu0 0.0
  %302 = vmatpush1.msra.mxu0 %v123
  %303 = vmatprep.subr.mxu0 0.0
  %304 = vmatpush1.msra.mxu0 %v124
  %305 = vmatprep.subr.mxu0 0.0
  %306 = vmatpush1.msra.mxu0 %v125
  %307 = vmatprep.subr.mxu0 0.0
  %308 = vmatpush1.msra.mxu0 %v126
  %309 = vmatprep.subr.mxu0 0.0
  %310 = vmatpush1.msra.mxu0 %v127
  %311 = vmatprep.subr.mxu0 0.0
  %312 = vmatpush1.msra.mxu0 %v128
  %313 = vmatprep.subr.mxu0 0.0
  %314 = vmatpush1.msra.mxu0 %v129
  %315 = vmatprep.subr.mxu0 0.0
  %316 = vmatpush1.msra.mxu0 %v130
  %317 = vmatprep.subr.mxu0 0.0
  %318 = vmatpush1.msra.mxu0 %v131
  %319 = vmatprep.subr.mxu0 0.0
  %320 = vmatpush1.msra.mxu0 %v132
  %321 = vmatprep.subr.mxu0 0.0
  %322 = vmatpush1.msra.mxu0 %v133
  %323 = vmatprep.subr.mxu0 0.0
  %324 = vmatpush1.msra.mxu0 %v134
  %325 = vmatprep.subr.mxu0 0.0
  %326 = vmatpush1.msra.mxu0 %v135
  %327 = vmatprep.subr.mxu0 0.0
  %328 = vmatpush1.msra.mxu0 %v136
  %329 = vmatprep.subr.mxu0 0.0
  %330 = vmatpush1.msra.mxu0 %v137
  %331 = vmatprep.subr.mxu0 0.0
  %332 = vmatpush1.msra.mxu0 %v138
  %333 = vmatprep.subr.mxu0 0.0
  %334 = vmatpush1.msra.mxu0 %v139
  %335 = vmatprep.subr.mxu0 0.0
  %336 = vmatpush1.msra.mxu0 %v140
  %337 = vmatprep.subr.mxu0 0.0
  %338 = vmatpush1.msra.mxu0 %v141
  %339 = vmatprep.subr.mxu0 0.0
  %340 = vmatpush1.msra.mxu0 %v142
  %341 = vmatprep.subr.mxu0 0.0
  %342 = vmatpush1.msra.mxu0 %v143
  %343 = vmatprep.subr.mxu0 0.0
  %344 = vmatpush1.msra.mxu0 %v144
  %345 = vmatprep.subr.mxu0 0.0
  %346 = vmatpush1.msra.mxu0 %v145
  %347 = vmatprep.mubr.f32.mxu0 %v37
  %348 = vmatmul.mubr.f32.gmra.mrb[0].mxu0 %v36
  %v349 = vpop.f32.mrb[0].mxu0
  %v350 = vadd.f32 %v245, %v349
  %v351 = vpop.f32.mrb[0].mxu0
  %352 = vmatprep.mubr.f32.mxu0 %v43
  %353 = vmatmul.mubr.f32.gmra.mrb[0].mxu0 %v42
  %v354 = vpop.f32.mrb[0].mxu0
  %v355 = vadd.f32 %v250, %v354
  %v356 = vpop.f32.mrb[0].mxu0
  %357 = vmatprep.mubr.f32.mxu0 %v49
  %358 = vmatmul.mubr.f32.gmra.mrb[0].mxu0 %v48
  %v359 = vpop.f32.mrb[0].mxu0
  %v360 = vadd.f32 %v255, %v359
  %v361 = vpop.f32.mrb[0].mxu0
  %362 = vmatprep.mubr.f32.mxu0 %v55
  %363 = vmatmul.mubr.f32.gmra.mrb[0].mxu0 %v54
  %v364 = vpop.f32.mrb[0].mxu0
  %v365 = vadd.f32 %v260, %v364
  %v366 = vpop.f32.mrb[0].mxu0
  %367 = vmatprep.mubr.f32.mxu0 %v61
  %368 = vmatmul.mubr.f32.gmra.mrb[0].mxu0 %v60
  %v369 = vpop.f32.mrb[0].mxu0
  %v370 = vadd.f32 %v265, %v369
  %v371 = vpop.f32.mrb[0].mxu0
  %372 = vmatprep.mubr.f32.mxu0 %v67
  %373 = vmatmul.mubr.f32.gmra.mrb[0].mxu0 %v66
  %v374 = vpop.f32.mrb[0].mxu0
  %v375 = vadd.f32 %v270, %v374
  %v376 = vpop.f32.mrb[0].mxu0
  %377 = vmatprep.mubr.f32.mxu0 %v73
  %378 = vmatmul.mubr.f32.gmra.mrb[0].mxu0 %v72
  %v379 = vpop.f32.mrb[0].mxu0
  %v380 = vadd.f32 %v275, %v379
  %v381 = vpop.f32.mrb[0].mxu0
  %382 = vmatprep.mubr.f32.mxu0 %v79
  %383 = vmatmul.mubr.f32.gmra.mrb[0].mxu0 %v78
  %v384 = vpop.f32.mrb[0].mxu0
  %v385 = vadd.f32 %v280, %v384
  %v386 = vpop.f32.mrb[0].mxu0
  %387 = vdwg.mxu0
  %388 = vmatprep.subr.mxu0 0.0
  %389 = vmatpush1.msra.mxu0 %v146
  %390 = vmatprep.subr.mxu0 0.0
  %391 = vmatpush1.msra.mxu0 %v147
  %392 = vmatprep.subr.mxu0 0.0
  %393 = vmatpush1.msra.mxu0 %v148
  %394 = vmatprep.subr.mxu0 0.0
  %395 = vmatpush1.msra.mxu0 %v149
  %396 = vmatprep.subr.mxu0 0.0
  %397 = vmatpush1.msra.mxu0 %v150
  %398 = vmatprep.subr.mxu0 0.0
  %399 = vmatpush1.msra.mxu0 %v151
  %400 = vmatprep.subr.mxu0 0.0
  %401 = vmatpush1.msra.mxu0 %v152
  %402 = vmatprep.subr.mxu0 0.0
  %403 = vmatpush1.msra.mxu0 %v153
  %404 = vmatprep.subr.mxu0 0.0
  %405 = vmatpush1.msra.mxu0 %v154
  %406 = vmatprep.subr.mxu0 0.0
  %407 = vmatpush1.msra.mxu0 %v155
  %408 = vmatprep.subr.mxu0 0.0
  %409 = vmatpush1.msra.mxu0 %v156
  %410 = vmatprep.subr.mxu0 0.0
  %411 = vmatpush1.msra.mxu0 %v157
  %412 = vmatprep.subr.mxu0 0.0
  %413 = vmatpush1.msra.mxu0 %v158
  %414 = vmatprep.subr.mxu0 0.0
  %415 = vmatpush1.msra.mxu0 %v159
  %416 = vmatprep.subr.mxu0 0.0
  %417 = vmatpush1.msra.mxu0 %v160
  %418 = vmatprep.subr.mxu0 0.0
  %419 = vmatpush1.msra.mxu0 %v161
  %420 = vmatprep.subr.mxu0 0.0
  %421 = vmatpush1.msra.mxu0 %v162
  %422 = vmatprep.subr.mxu0 0.0
  %423 = vmatpush1.msra.mxu0 %v163
  %424 = vmatprep.subr.mxu0 0.0
  %425 = vmatpush1.msra.mxu0 %v164
  %426 = vmatprep.subr.mxu0 0.0
  %427 = vmatpush1.msra.mxu0 %v165
  %428 = vmatprep.subr.mxu0 0.0
  %429 = vmatpush1.msra.mxu0 %v166
  %430 = vmatprep.subr.mxu0 0.0
  %431 = vmatpush1.msra.mxu0 %v167
  %432 = vmatprep.subr.mxu0 0.0
  %433 = vmatpush1.msra.mxu0 %v168
  %434 = vmatprep.subr.mxu0 0.0
  %435 = vmatpush1.msra.mxu0 %v169
  %436 = vmatprep.subr.mxu0 0.0
  %437 = vmatpush1.msra.mxu0 %v170
  %438 = vmatprep.subr.mxu0 0.0
  %439 = vmatpush1.msra.mxu0 %v171
  %440 = vmatprep.subr.mxu0 0.0
  %441 = vmatpush1.msra.mxu0 %v172
  %442 = vmatprep.subr.mxu0 0.0
  %443 = vmatpush1.msra.mxu0 %v173
  %444 = vmatprep.subr.mxu0 0.0
  %445 = vmatpush1.msra.mxu0 %v174
  %446 = vmatprep.subr.mxu0 0.0
  %447 = vmatpush1.msra.mxu0 %v175
  %448 = vmatprep.subr.mxu0 0.0
  %449 = vmatpush1.msra.mxu0 %v176
  %450 = vmatprep.subr.mxu0 0.0
  %451 = vmatpush1.msra.mxu0 %v177
  %452 = vmatprep.mubr.f32.mxu0 %v39
  %453 = vmatmul.mubr.f32.gmra.mrb[0].mxu0 %v38
  %v454 = vpop.f32.mrb[0].mxu0
  %v455 = vadd.f32 %v350, %v454
  %v456 = vpop.f32.mrb[0].mxu0
  %457 = vmatprep.mubr.f32.mxu0 %v45
  %458 = vmatmul.mubr.f32.gmra.mrb[0].mxu0 %v44
  %v459 = vpop.f32.mrb[0].mxu0
  %v460 = vadd.f32 %v355, %v459
  %v461 = vpop.f32.mrb[0].mxu0
  %462 = vmatprep.mubr.f32.mxu0 %v51
  %463 = vmatmul.mubr.f32.gmra.mrb[0].mxu0 %v50
  %v464 = vpop.f32.mrb[0].mxu0
  %v465 = vadd.f32 %v360, %v464
  %v466 = vpop.f32.mrb[0].mxu0
  %467 = vmatprep.mubr.f32.mxu0 %v57
  %468 = vmatmul.mubr.f32.gmra.mrb[0].mxu0 %v56
  %v469 = vpop.f32.mrb[0].mxu0
  %v470 = vadd.f32 %v365, %v469
  %v471 = vpop.f32.mrb[0].mxu0
  %472 = vmatprep.mubr.f32.mxu0 %v63
  %473 = vmatmul.mubr.f32.gmra.mrb[0].mxu0 %v62
  %v474 = vpop.f32.mrb[0].mxu0
  %v475 = vadd.f32 %v370, %v474
  %v476 = vpop.f32.mrb[0].mxu0
  %477 = vmatprep.mubr.f32.mxu0 %v69
  %478 = vmatmul.mubr.f32.gmra.mrb[0].mxu0 %v68
  %v479 = vpop.f32.mrb[0].mxu0
  %v480 = vadd.f32 %v375, %v479
  %v481 = vpop.f32.mrb[0].mxu0
  %482 = vmatprep.mubr.f32.mxu0 %v75
  %483 = vmatmul.mubr.f32.gmra.mrb[0].mxu0 %v74
  %v484 = vpop.f32.mrb[0].mxu0
  %v485 = vadd.f32 %v380, %v484
  %v486 = vpop.f32.mrb[0].mxu0
  %487 = vmatprep.mubr.f32.mxu0 %v81
  %488 = vmatmul.mubr.f32.gmra.mrb[0].mxu0 %v80
  %v489 = vpop.f32.mrb[0].mxu0
  %v490 = vadd.f32 %v385, %v489
  %v491 = vpop.f32.mrb[0].mxu0
  %492 = vdwg.mxu0
  %v493 = vld [vmem:[%s1] sm:$0xff]
  %v494 = vld [vmem:[%s1 + $0x8] sm:$0xff]
  %v495 = vld [vmem:[%s1 + $0x10] sm:$0xff]
  %v496 = vld [vmem:[%s1 + $0x18] sm:$0xff]
  %v497 = vld [vmem:[%s1 + $0x20] sm:$0xff]
  %v498 = vld [vmem:[%s1 + $0x28] sm:$0xff]
  %v499 = vld [vmem:[%s1 + $0x30] sm:$0xff]
  %v500 = vld [vmem:[%s1 + $0x38] sm:$0xff]
  %v501 = vld [vmem:[%s1 + $0x40] sm:$0xff]
  %v502 = vld [vmem:[%s1 + $0x48] sm:$0xff]
  %v503 = vld [vmem:[%s1 + $0x50] sm:$0xff]
  %v504 = vld [vmem:[%s1 + $0x58] sm:$0xff]
  %v505 = vld [vmem:[%s1 + $0x60] sm:$0xff]
  %v506 = vld [vmem:[%s1 + $0x68] sm:$0xff]
  %v507 = vld [vmem:[%s1 + $0x70] sm:$0xff]
  %v508 = vld [vmem:[%s1 + $0x78] sm:$0xff]
  %v509 = vld [vmem:[%s1 + $0x80] sm:$0xff]
  %v510 = vld [vmem:[%s1 + $0x88] sm:$0xff]
  %v511 = vld [vmem:[%s1 + $0x90] sm:$0xff]
  %v512 = vld [vmem:[%s1 + $0x98] sm:$0xff]
  %v513 = vld [vmem:[%s1 + $0xa0] sm:$0xff]
  %v514 = vld [vmem:[%s1 + $0xa8] sm:$0xff]
  %v515 = vld [vmem:[%s1 + $0xb0] sm:$0xff]
  %v516 = vld [vmem:[%s1 + $0xb8] sm:$0xff]
  %v517 = vld [vmem:[%s1 + $0xc0] sm:$0xff]
  %v518 = vld [vmem:[%s1 + $0xc8] sm:$0xff]
  %v519 = vld [vmem:[%s1 + $0xd0] sm:$0xff]
  %v520 = vld [vmem:[%s1 + $0xd8] sm:$0xff]
  %v521 = vld [vmem:[%s4] sm:$0xff]
  %v522 = vld [vmem:[%s4 + $0x8] sm:$0xff]
  %v523 = vld [vmem:[%s4 + $0x10] sm:$0xff]
  %v524 = vld [vmem:[%s4 + $0x18] sm:$0xff]
  %v525 = vld [vmem:[%s4 + $0x20] sm:$0xff]
  %v526 = vld [vmem:[%s4 + $0x28] sm:$0xff]
  %v527 = vld [vmem:[%s4 + $0x30] sm:$0xff]
  %v528 = vld [vmem:[%s4 + $0x38] sm:$0xff]
  %v529 = vld [vmem:[%s4 + $0x40] sm:$0xff]
  %v530 = vld [vmem:[%s4 + $0x48] sm:$0xff]
  %v531 = vld [vmem:[%s4 + $0x50] sm:$0xff]
  %v532 = vld [vmem:[%s4 + $0x58] sm:$0xff]
  %v533 = vld [vmem:[%s4 + $0x60] sm:$0xff]
  %v534 = vld [vmem:[%s4 + $0x68] sm:$0xff]
  %v535 = vld [vmem:[%s4 + $0x70] sm:$0xff]
  %v536 = vld [vmem:[%s4 + $0x78] sm:$0xff]
  %v537 = vld [vmem:[%s4 + $0x80] sm:$0xff]
  %v538 = vld [vmem:[%s4 + $0x88] sm:$0xff]
  %v539 = vld [vmem:[%s4 + $0x90] sm:$0xff]
  %v540 = vld [vmem:[%s4 + $0x98] sm:$0xff]
  %v541 = vld [vmem:[%s4 + $0xa0] sm:$0xff]
  %v542 = vld [vmem:[%s4 + $0xa8] sm:$0xff]
  %v543 = vld [vmem:[%s4 + $0xb0] sm:$0xff]
  %v544 = vld [vmem:[%s4 + $0xb8] sm:$0xff]
  %v545 = vld [vmem:[%s4 + $0xc0] sm:$0xff]
  %v546 = vld [vmem:[%s4 + $0xc8] sm:$0xff]
  %v547 = vld [vmem:[%s4 + $0xd0] sm:$0xff]
  %v548 = vld [vmem:[%s4 + $0xd8] sm:$0xff]
  %v549 = vld [vmem:[%s4 + $0xe0] sm:$0xff]
  %v550 = vld [vmem:[%s4 + $0xe8] sm:$0xff]
  %v551 = vld [vmem:[%s4 + $0xf0] sm:$0xff]
  %v552 = vld [vmem:[%s4 + $0xf8] sm:$0xff]
  %v553 = vld [vmem:[%s4 + $0x100] sm:$0xff]
  %v554 = vld [vmem:[%s4 + $0x108] sm:$0xff]
  %v555 = vld [vmem:[%s4 + $0x110] sm:$0xff]
  %v556 = vld [vmem:[%s4 + $0x118] sm:$0xff]
  %v557 = vld [vmem:[%s4 + $0x120] sm:$0xff]
  %v558 = vld [vmem:[%s4 + $0x128] sm:$0xff]
  %v559 = vld [vmem:[%s4 + $0x130] sm:$0xff]
  %v560 = vld [vmem:[%s4 + $0x138] sm:$0xff]
  %v561 = vld [vmem:[%s4 + $0x140] sm:$0xff]
  %v562 = vld [vmem:[%s4 + $0x148] sm:$0xff]
  %v563 = vld [vmem:[%s4 + $0x150] sm:$0xff]
  %v564 = vld [vmem:[%s4 + $0x158] sm:$0xff]
  %v565 = vld [vmem:[%s4 + $0x160] sm:$0xff]
  %v566 = vld [vmem:[%s4 + $0x168] sm:$0xff]
  %v567 = vld [vmem:[%s4 + $0x170] sm:$0xff]
  %v568 = vld [vmem:[%s4 + $0x178] sm:$0xff]
  %v569 = vld [vmem:[%s4 + $0x180] sm:$0xff]
  %v570 = vld [vmem:[%s4 + $0x188] sm:$0xff]
  %v571 = vld [vmem:[%s4 + $0x190] sm:$0xff]
  %v572 = vld [vmem:[%s4 + $0x198] sm:$0xff]
  %v573 = vld [vmem:[%s4 + $0x1a0] sm:$0xff]
  %v574 = vld [vmem:[%s4 + $0x1a8] sm:$0xff]
  %v575 = vld [vmem:[%s4 + $0x1b0] sm:$0xff]
  %v576 = vld [vmem:[%s4 + $0x1b8] sm:$0xff]
  %v577 = vld [vmem:[%s4 + $0x1c0] sm:$0xff]
  %v578 = vld [vmem:[%s4 + $0x1c8] sm:$0xff]
  %v579 = vld [vmem:[%s4 + $0x1d0] sm:$0xff]
  %v580 = vld [vmem:[%s4 + $0x1d8] sm:$0xff]
  %v581 = vld [vmem:[%s4 + $0x1e0] sm:$0xff]
  %v582 = vld [vmem:[%s4 + $0x1e8] sm:$0xff]
  %v583 = vld [vmem:[%s4 + $0x1f0] sm:$0xff]
  %v584 = vld [vmem:[%s4 + $0x1f8] sm:$0xff]
  %585 = vmatprep.subr.mxu0 0.0
  %586 = vmatpush1.msra.mxu0 %v521
  %587 = vmatprep.subr.mxu0 0.0
  %588 = vmatpush1.msra.mxu0 %v522
  %589 = vmatprep.subr.mxu0 0.0
  %590 = vmatpush1.msra.mxu0 %v523
  %591 = vmatprep.subr.mxu0 0.0
  %592 = vmatpush1.msra.mxu0 %v524
  %593 = vmatprep.subr.mxu0 0.0
  %594 = vmatpush1.msra.mxu0 %v525
  %595 = vmatprep.subr.mxu0 0.0
  %596 = vmatpush1.msra.mxu0 %v526
  %597 = vmatprep.subr.mxu0 0.0
  %598 = vmatpush1.msra.mxu0 %v527
  %599 = vmatprep.subr.mxu0 0.0
  %600 = vmatpush1.msra.mxu0 %v528
  %601 = vmatprep.subr.mxu0 0.0
  %602 = vmatpush1.msra.mxu0 %v529
  %603 = vmatprep.subr.mxu0 0.0
  %604 = vmatpush1.msra.mxu0 %v530
  %605 = vmatprep.subr.mxu0 0.0
  %606 = vmatpush1.msra.mxu0 %v531
  %607 = vmatprep.subr.mxu0 0.0
  %608 = vmatpush1.msra.mxu0 %v532
  %609 = vmatprep.subr.mxu0 0.0
  %610 = vmatpush1.msra.mxu0 %v533
  %611 = vmatprep.subr.mxu0 0.0
  %612 = vmatpush1.msra.mxu0 %v534
  %613 = vmatprep.subr.mxu0 0.0
  %614 = vmatpush1.msra.mxu0 %v535
  %615 = vmatprep.subr.mxu0 0.0
  %616 = vmatpush1.msra.mxu0 %v536
  %617 = vmatprep.subr.mxu0 0.0
  %618 = vmatpush1.msra.mxu0 %v537
  %619 = vmatprep.subr.mxu0 0.0
  %620 = vmatpush1.msra.mxu0 %v538
  %621 = vmatprep.subr.mxu0 0.0
  %622 = vmatpush1.msra.mxu0 %v539
  %623 = vmatprep.subr.mxu0 0.0
  %624 = vmatpush1.msra.mxu0 %v540
  %625 = vmatprep.subr.mxu0 0.0
  %626 = vmatpush1.msra.mxu0 %v541
  %627 = vmatprep.subr.mxu0 0.0
  %628 = vmatpush1.msra.mxu0 %v542
  %629 = vmatprep.subr.mxu0 0.0
  %630 = vmatpush1.msra.mxu0 %v543
  %631 = vmatprep.subr.mxu0 0.0
  %632 = vmatpush1.msra.mxu0 %v544
  %633 = vmatprep.subr.mxu0 0.0
  %634 = vmatpush1.msra.mxu0 %v545
  %635 = vmatprep.subr.mxu0 0.0
  %636 = vmatpush1.msra.mxu0 %v546
  %637 = vmatprep.subr.mxu0 0.0
  %638 = vmatpush1.msra.mxu0 %v547
  %639 = vmatprep.subr.mxu0 0.0
  %640 = vmatpush1.msra.mxu0 %v548
  %641 = vmatprep.subr.mxu0 0.0
  %642 = vmatpush1.msra.mxu0 %v549
  %643 = vmatprep.subr.mxu0 0.0
  %644 = vmatpush1.msra.mxu0 %v550
  %645 = vmatprep.subr.mxu0 0.0
  %646 = vmatpush1.msra.mxu0 %v551
  %647 = vmatprep.subr.mxu0 0.0
  %648 = vmatpush1.msra.mxu0 %v552
  %649 = vmatprep.mubr.f32.mxu0 %v494
  %650 = vmatmul.mubr.f32.gmra.mrb[0].mxu0 %v493
  %v651 = vpop.f32.mrb[0].mxu0
  %v652 = vadd.f32 0.0, %v651
  %v653 = vpop.f32.mrb[0].mxu0
  %654 = vmatprep.mubr.f32.mxu0 %v498
  %655 = vmatmul.mubr.f32.gmra.mrb[0].mxu0 %v497
  %v656 = vpop.f32.mrb[0].mxu0
  %v657 = vadd.f32 0.0, %v656
  %v658 = vpop.f32.mrb[0].mxu0
  %659 = vmatprep.mubr.f32.mxu0 %v502
  %660 = vmatmul.mubr.f32.gmra.mrb[0].mxu0 %v501
  %v661 = vpop.f32.mrb[0].mxu0
  %v662 = vadd.f32 0.0, %v661
  %v663 = vpop.f32.mrb[0].mxu0
  %664 = vmatprep.mubr.f32.mxu0 %v506
  %665 = vmatmul.mubr.f32.gmra.mrb[0].mxu0 %v505
  %v666 = vpop.f32.mrb[0].mxu0
  %v667 = vadd.f32 0.0, %v666
  %v668 = vpop.f32.mrb[0].mxu0
  %669 = vmatprep.mubr.f32.mxu0 %v510
  %670 = vmatmul.mubr.f32.gmra.mrb[0].mxu0 %v509
  %v671 = vpop.f32.mrb[0].mxu0
  %v672 = vadd.f32 0.0, %v671
  %v673 = vpop.f32.mrb[0].mxu0
  %674 = vmatprep.mubr.f32.mxu0 %v514
  %675 = vmatmul.mubr.f32.gmra.mrb[0].mxu0 %v513
  %v676 = vpop.f32.mrb[0].mxu0
  %v677 = vadd.f32 0.0, %v676
  %v678 = vpop.f32.mrb[0].mxu0
  %679 = vmatprep.mubr.f32.mxu0 %v518
  %680 = vmatmul.mubr.f32.gmra.mrb[0].mxu0 %v517
  %v681 = vpop.f32.mrb[0].mxu0
  %v682 = vadd.f32 0.0, %v681
  %v683 = vpop.f32.mrb[0].mxu0
  %684 = vdwg.mxu0
  %685 = vmatprep.subr.mxu0 0.0
  %686 = vmatpush1.msra.mxu0 %v553
  %687 = vmatprep.subr.mxu0 0.0
  %688 = vmatpush1.msra.mxu0 %v554
  %689 = vmatprep.subr.mxu0 0.0
  %690 = vmatpush1.msra.mxu0 %v555
  %691 = vmatprep.subr.mxu0 0.0
  %692 = vmatpush1.msra.mxu0 %v556
  %693 = vmatprep.subr.mxu0 0.0
  %694 = vmatpush1.msra.mxu0 %v557
  %695 = vmatprep.subr.mxu0 0.0
  %696 = vmatpush1.msra.mxu0 %v558
  %697 = vmatprep.subr.mxu0 0.0
  %698 = vmatpush1.msra.mxu0 %v559
  %699 = vmatprep.subr.mxu0 0.0
  %700 = vmatpush1.msra.mxu0 %v560
  %701 = vmatprep.subr.mxu0 0.0
  %702 = vmatpush1.msra.mxu0 %v561
  %703 = vmatprep.subr.mxu0 0.0
  %704 = vmatpush1.msra.mxu0 %v562
  %705 = vmatprep.subr.mxu0 0.0
  %706 = vmatpush1.msra.mxu0 %v563
  %707 = vmatprep.subr.mxu0 0.0
  %708 = vmatpush1.msra.mxu0 %v564
  %709 = vmatprep.subr.mxu0 0.0
  %710 = vmatpush1.msra.mxu0 %v565
  %711 = vmatprep.subr.mxu0 0.0
  %712 = vmatpush1.msra.mxu0 %v566
  %713 = vmatprep.subr.mxu0 0.0
  %714 = vmatpush1.msra.mxu0 %v567
  %715 = vmatprep.subr.mxu0 0.0
  %716 = vmatpush1.msra.mxu0 %v568
  %717 = vmatprep.subr.mxu0 0.0
  %718 = vmatpush1.msra.mxu0 %v569
  %719 = vmatprep.subr.mxu0 0.0
  %720 = vmatpush1.msra.mxu0 %v570
  %721 = vmatprep.subr.mxu0 0.0
  %722 = vmatpush1.msra.mxu0 %v571
  %723 = vmatprep.subr.mxu0 0.0
  %724 = vmatpush1.msra.mxu0 %v572
  %725 = vmatprep.subr.mxu0 0.0
  %726 = vmatpush1.msra.mxu0 %v573
  %727 = vmatprep.subr.mxu0 0.0
  %728 = vmatpush1.msra.mxu0 %v574
  %729 = vmatprep.subr.mxu0 0.0
  %730 = vmatpush1.msra.mxu0 %v575
  %731 = vmatprep.subr.mxu0 0.0
  %732 = vmatpush1.msra.mxu0 %v576
  %733 = vmatprep.subr.mxu0 0.0
  %734 = vmatpush1.msra.mxu0 %v577
  %735 = vmatprep.subr.mxu0 0.0
  %736 = vmatpush1.msra.mxu0 %v578
  %737 = vmatprep.subr.mxu0 0.0
  %738 = vmatpush1.msra.mxu0 %v579
  %739 = vmatprep.subr.mxu0 0.0
  %740 = vmatpush1.msra.mxu0 %v580
  %741 = vmatprep.subr.mxu0 0.0
  %742 = vmatpush1.msra.mxu0 %v581
  %743 = vmatprep.subr.mxu0 0.0
  %744 = vmatpush1.msra.mxu0 %v582
  %745 = vmatprep.subr.mxu0 0.0
  %746 = vmatpush1.msra.mxu0 %v583
  %747 = vmatprep.subr.mxu0 0.0
  %748 = vmatpush1.msra.mxu0 %v584
  %749 = vmatprep.mubr.f32.mxu0 %v496
  %750 = vmatmul.mubr.f32.gmra.mrb[0].mxu0 %v495
  %v751 = vpop.f32.mrb[0].mxu0
  %v752 = vadd.f32 %v652, %v751
  %v753 = vpop.f32.mrb[0].mxu0
  %754 = vmatprep.mubr.f32.mxu0 %v500
  %755 = vmatmul.mubr.f32.gmra.mrb[0].mxu0 %v499
  %v756 = vpop.f32.mrb[0].mxu0
  %v757 = vadd.f32 %v657, %v756
  %v758 = vpop.f32.mrb[0].mxu0
  %759 = vmatprep.mubr.f32.mxu0 %v504
  %760 = vmatmul.mubr.f32.gmra.mrb[0].mxu0 %v503
  %v761 = vpop.f32.mrb[0].mxu0
  %v762 = vadd.f32 %v662, %v761
  %v763 = vpop.f32.mrb[0].mxu0
  %764 = vmatprep.mubr.f32.mxu0 %v508
  %765 = vmatmul.mubr.f32.gmra.mrb[0].mxu0 %v507
  %v766 = vpop.f32.mrb[0].mxu0
  %v767 = vadd.f32 %v667, %v766
  %v768 = vpop.f32.mrb[0].mxu0
  %769 = vmatprep.mubr.f32.mxu0 %v512
  %770 = vmatmul.mubr.f32.gmra.mrb[0].mxu0 %v511
  %v771 = vpop.f32.mrb[0].mxu0
  %v772 = vadd.f32 %v672, %v771
  %v773 = vpop.f32.mrb[0].mxu0
  %774 = vmatprep.mubr.f32.mxu0 %v516
  %775 = vmatmul.mubr.f32.gmra.mrb[0].mxu0 %v515
  %v776 = vpop.f32.mrb[0].mxu0
  %v777 = vadd.f32 %v677, %v776
  %v778 = vpop.f32.mrb[0].mxu0
  %779 = vmatprep.mubr.f32.mxu0 %v520
  %780 = vmatmul.mubr.f32.gmra.mrb[0].mxu0 %v519
  %v781 = vpop.f32.mrb[0].mxu0
  %v782 = vadd.f32 %v682, %v781
  %v783 = vpop.f32.mrb[0].mxu0
  %784 = vdwg.mxu0
  %v785 = vld [vmem:[%s2] sm:$0xff]
  %v786 = vld [vmem:[%s2 + $0x8] sm:$0xff]
  %v787 = vld [vmem:[%s2 + $0x10] sm:$0xff]
  %v788 = vld [vmem:[%s2 + $0x18] sm:$0xff]
  %v789 = vld [vmem:[%s2 + $0x20] sm:$0xff]
  %v790 = vld [vmem:[%s2 + $0x28] sm:$0xff]
  %v791 = vld [vmem:[%s2 + $0x30] sm:$0xff]
  %v792 = vld [vmem:[%s2 + $0x38] sm:$0xff]
  %v793 = vld [vmem:[%s2 + $0x40] sm:$0xff]
  %v794 = vld [vmem:[%s2 + $0x48] sm:$0xff]
  %v795 = vld [vmem:[%s2 + $0x50] sm:$0xff]
  %v796 = vld [vmem:[%s2 + $0x58] sm:$0xff]
  %v797 = vld [vmem:[%s2 + $0x60] sm:$0xff]
  %v798 = vld [vmem:[%s2 + $0x68] sm:$0xff]
  %v799 = vld [vmem:[%s2 + $0x70] sm:$0xff]
  %v800 = vld [vmem:[%s2 + $0x78] sm:$0xff]
  %v801 = vld [vmem:[%s2 + $0x80] sm:$0xff]
  %v802 = vld [vmem:[%s2 + $0x88] sm:$0xff]
  %v803 = vld [vmem:[%s2 + $0x90] sm:$0xff]
  %v804 = vld [vmem:[%s2 + $0x98] sm:$0xff]
  %v805 = vld [vmem:[%s2 + $0xa0] sm:$0xff]
  %v806 = vld [vmem:[%s2 + $0xa8] sm:$0xff]
  %v807 = vld [vmem:[%s2 + $0xb0] sm:$0xff]
  %v808 = vld [vmem:[%s2 + $0xb8] sm:$0xff]
  %v809 = vld [vmem:[%s2 + $0xc0] sm:$0xff]
  %v810 = vld [vmem:[%s2 + $0xc8] sm:$0xff]
  %v811 = vld [vmem:[%s2 + $0xd0] sm:$0xff]
  %v812 = vld [vmem:[%s2 + $0xd8] sm:$0xff]
  %v813 = vld [vmem:[%s5] sm:$0xff]
  %v814 = vld [vmem:[%s5 + $0x8] sm:$0xff]
  %v815 = vld [vmem:[%s5 + $0x10] sm:$0xff]
  %v816 = vld [vmem:[%s5 + $0x18] sm:$0xff]
  %v817 = vld [vmem:[%s5 + $0x20] sm:$0xff]
  %v818 = vld [vmem:[%s5 + $0x28] sm:$0xff]
  %v819 = vld [vmem:[%s5 + $0x30] sm:$0xff]
  %v820 = vld [vmem:[%s5 + $0x38] sm:$0xff]
  %v821 = vld [vmem:[%s5 + $0x40] sm:$0xff]
  %v822 = vld [vmem:[%s5 + $0x48] sm:$0xff]
  %v823 = vld [vmem:[%s5 + $0x50] sm:$0xff]
  %v824 = vld [vmem:[%s5 + $0x58] sm:$0xff]
  %v825 = vld [vmem:[%s5 + $0x60] sm:$0xff]
  %v826 = vld [vmem:[%s5 + $0x68] sm:$0xff]
  %v827 = vld [vmem:[%s5 + $0x70] sm:$0xff]
  %v828 = vld [vmem:[%s5 + $0x78] sm:$0xff]
  %v829 = vld [vmem:[%s5 + $0x80] sm:$0xff]
  %v830 = vld [vmem:[%s5 + $0x88] sm:$0xff]
  %v831 = vld [vmem:[%s5 + $0x90] sm:$0xff]
  %v832 = vld [vmem:[%s5 + $0x98] sm:$0xff]
  %v833 = vld [vmem:[%s5 + $0xa0] sm:$0xff]
  %v834 = vld [vmem:[%s5 + $0xa8] sm:$0xff]
  %v835 = vld [vmem:[%s5 + $0xb0] sm:$0xff]
  %v836 = vld [vmem:[%s5 + $0xb8] sm:$0xff]
  %v837 = vld [vmem:[%s5 + $0xc0] sm:$0xff]
  %v838 = vld [vmem:[%s5 + $0xc8] sm:$0xff]
  %v839 = vld [vmem:[%s5 + $0xd0] sm:$0xff]
  %v840 = vld [vmem:[%s5 + $0xd8] sm:$0xff]
  %v841 = vld [vmem:[%s5 + $0xe0] sm:$0xff]
  %v842 = vld [vmem:[%s5 + $0xe8] sm:$0xff]
  %v843 = vld [vmem:[%s5 + $0xf0] sm:$0xff]
  %v844 = vld [vmem:[%s5 + $0xf8] sm:$0xff]
  %v845 = vld [vmem:[%s5 + $0x100] sm:$0xff]
  %v846 = vld [vmem:[%s5 + $0x108] sm:$0xff]
  %v847 = vld [vmem:[%s5 + $0x110] sm:$0xff]
  %v848 = vld [vmem:[%s5 + $0x118] sm:$0xff]
  %v849 = vld [vmem:[%s5 + $0x120] sm:$0xff]
  %v850 = vld [vmem:[%s5 + $0x128] sm:$0xff]
  %v851 = vld [vmem:[%s5 + $0x130] sm:$0xff]
  %v852 = vld [vmem:[%s5 + $0x138] sm:$0xff]
  %v853 = vld [vmem:[%s5 + $0x140] sm:$0xff]
  %v854 = vld [vmem:[%s5 + $0x148] sm:$0xff]
  %v855 = vld [vmem:[%s5 + $0x150] sm:$0xff]
  %v856 = vld [vmem:[%s5 + $0x158] sm:$0xff]
  %v857 = vld [vmem:[%s5 + $0x160] sm:$0xff]
  %v858 = vld [vmem:[%s5 + $0x168] sm:$0xff]
  %v859 = vld [vmem:[%s5 + $0x170] sm:$0xff]
  %v860 = vld [vmem:[%s5 + $0x178] sm:$0xff]
  %v861 = vld [vmem:[%s5 + $0x180] sm:$0xff]
  %v862 = vld [vmem:[%s5 + $0x188] sm:$0xff]
  %v863 = vld [vmem:[%s5 + $0x190] sm:$0xff]
  %v864 = vld [vmem:[%s5 + $0x198] sm:$0xff]
  %v865 = vld [vmem:[%s5 + $0x1a0] sm:$0xff]
  %v866 = vld [vmem:[%s5 + $0x1a8] sm:$0xff]
  %v867 = vld [vmem:[%s5 + $0x1b0] sm:$0xff]
  %v868 = vld [vmem:[%s5 + $0x1b8] sm:$0xff]
  %v869 = vld [vmem:[%s5 + $0x1c0] sm:$0xff]
  %v870 = vld [vmem:[%s5 + $0x1c8] sm:$0xff]
  %v871 = vld [vmem:[%s5 + $0x1d0] sm:$0xff]
  %v872 = vld [vmem:[%s5 + $0x1d8] sm:$0xff]
  %v873 = vld [vmem:[%s5 + $0x1e0] sm:$0xff]
  %v874 = vld [vmem:[%s5 + $0x1e8] sm:$0xff]
  %v875 = vld [vmem:[%s5 + $0x1f0] sm:$0xff]
  %v876 = vld [vmem:[%s5 + $0x1f8] sm:$0xff]
  %877 = vmatprep.subr.mxu0 0.0
  %878 = vmatpush1.msra.mxu0 %v813
  %879 = vmatprep.subr.mxu0 0.0
  %880 = vmatpush1.msra.mxu0 %v814
  %881 = vmatprep.subr.mxu0 0.0
  %882 = vmatpush1.msra.mxu0 %v815
  %883 = vmatprep.subr.mxu0 0.0
  %884 = vmatpush1.msra.mxu0 %v816
  %885 = vmatprep.subr.mxu0 0.0
  %886 = vmatpush1.msra.mxu0 %v817
  %887 = vmatprep.subr.mxu0 0.0
  %888 = vmatpush1.msra.mxu0 %v818
  %889 = vmatprep.subr.mxu0 0.0
  %890 = vmatpush1.msra.mxu0 %v819
  %891 = vmatprep.subr.mxu0 0.0
  %892 = vmatpush1.msra.mxu0 %v820
  %893 = vmatprep.subr.mxu0 0.0
  %894 = vmatpush1.msra.mxu0 %v821
  %895 = vmatprep.subr.mxu0 0.0
  %896 = vmatpush1.msra.mxu0 %v822
  %897 = vmatprep.subr.mxu0 0.0
  %898 = vmatpush1.msra.mxu0 %v823
  %899 = vmatprep.subr.mxu0 0.0
  %900 = vmatpush1.msra.mxu0 %v824
  %901 = vmatprep.subr.mxu0 0.0
  %902 = vmatpush1.msra.mxu0 %v825
  %903 = vmatprep.subr.mxu0 0.0
  %904 = vmatpush1.msra.mxu0 %v826
  %905 = vmatprep.subr.mxu0 0.0
  %906 = vmatpush1.msra.mxu0 %v827
  %907 = vmatprep.subr.mxu0 0.0
  %908 = vmatpush1.msra.mxu0 %v828
  %909 = vmatprep.subr.mxu0 0.0
  %910 = vmatpush1.msra.mxu0 %v829
  %911 = vmatprep.subr.mxu0 0.0
  %912 = vmatpush1.msra.mxu0 %v830
  %913 = vmatprep.subr.mxu0 0.0
  %914 = vmatpush1.msra.mxu0 %v831
  %915 = vmatprep.subr.mxu0 0.0
  %916 = vmatpush1.msra.mxu0 %v832
  %917 = vmatprep.subr.mxu0 0.0
  %918 = vmatpush1.msra.mxu0 %v833
  %919 = vmatprep.subr.mxu0 0.0
  %920 = vmatpush1.msra.mxu0 %v834
  %921 = vmatprep.subr.mxu0 0.0
  %922 = vmatpush1.msra.mxu0 %v835
  %923 = vmatprep.subr.mxu0 0.0
  %924 = vmatpush1.msra.mxu0 %v836
  %925 = vmatprep.subr.mxu0 0.0
  %926 = vmatpush1.msra.mxu0 %v837
  %927 = vmatprep.subr.mxu0 0.0
  %928 = vmatpush1.msra.mxu0 %v838
  %929 = vmatprep.subr.mxu0 0.0
  %930 = vmatpush1.msra.mxu0 %v839
  %931 = vmatprep.subr.mxu0 0.0
  %932 = vmatpush1.msra.mxu0 %v840
  %933 = vmatprep.subr.mxu0 0.0
  %934 = vmatpush1.msra.mxu0 %v841
  %935 = vmatprep.subr.mxu0 0.0
  %936 = vmatpush1.msra.mxu0 %v842
  %937 = vmatprep.subr.mxu0 0.0
  %938 = vmatpush1.msra.mxu0 %v843
  %939 = vmatprep.subr.mxu0 0.0
  %940 = vmatpush1.msra.mxu0 %v844
  %941 = vmatprep.mubr.f32.mxu0 %v786
  %942 = vmatmul.mubr.f32.gmra.mrb[0].mxu0 %v785
  %v943 = vpop.f32.mrb[0].mxu0
  %v944 = vadd.f32 0.0, %v943
  %v945 = vpop.f32.mrb[0].mxu0
  %946 = vmatprep.mubr.f32.mxu0 %v790
  %947 = vmatmul.mubr.f32.gmra.mrb[0].mxu0 %v789
  %v948 = vpop.f32.mrb[0].mxu0
  %v949 = vadd.f32 0.0, %v948
  %v950 = vpop.f32.mrb[0].mxu0
  %951 = vmatprep.mubr.f32.mxu0 %v794
  %952 = vmatmul.mubr.f32.gmra.mrb[0].mxu0 %v793
  %v953 = vpop.f32.mrb[0].mxu0
  %v954 = vadd.f32 0.0, %v953
  %v955 = vpop.f32.mrb[0].mxu0
  %956 = vmatprep.mubr.f32.mxu0 %v798
  %957 = vmatmul.mubr.f32.gmra.mrb[0].mxu0 %v797
  %v958 = vpop.f32.mrb[0].mxu0
  %v959 = vadd.f32 0.0, %v958
  %v960 = vpop.f32.mrb[0].mxu0
  %961 = vmatprep.mubr.f32.mxu0 %v802
  %962 = vmatmul.mubr.f32.gmra.mrb[0].mxu0 %v801
  %v963 = vpop.f32.mrb[0].mxu0
  %v964 = vadd.f32 0.0, %v963
  %v965 = vpop.f32.mrb[0].mxu0
  %966 = vmatprep.mubr.f32.mxu0 %v806
  %967 = vmatmul.mubr.f32.gmra.mrb[0].mxu0 %v805
  %v968 = vpop.f32.mrb[0].mxu0
  %v969 = vadd.f32 0.0, %v968
  %v970 = vpop.f32.mrb[0].mxu0
  %971 = vmatprep.mubr.f32.mxu0 %v810
  %972 = vmatmul.mubr.f32.gmra.mrb[0].mxu0 %v809
  %v973 = vpop.f32.mrb[0].mxu0
  %v974 = vadd.f32 0.0, %v973
  %v975 = vpop.f32.mrb[0].mxu0
  %976 = vdwg.mxu0
  %977 = vmatprep.subr.mxu0 0.0
  %978 = vmatpush1.msra.mxu0 %v845
  %979 = vmatprep.subr.mxu0 0.0
  %980 = vmatpush1.msra.mxu0 %v846
  %981 = vmatprep.subr.mxu0 0.0
  %982 = vmatpush1.msra.mxu0 %v847
  %983 = vmatprep.subr.mxu0 0.0
  %984 = vmatpush1.msra.mxu0 %v848
  %985 = vmatprep.subr.mxu0 0.0
  %986 = vmatpush1.msra.mxu0 %v849
  %987 = vmatprep.subr.mxu0 0.0
  %988 = vmatpush1.msra.mxu0 %v850
  %989 = vmatprep.subr.mxu0 0.0
  %990 = vmatpush1.msra.mxu0 %v851
  %991 = vmatprep.subr.mxu0 0.0
  %992 = vmatpush1.msra.mxu0 %v852
  %993 = vmatprep.subr.mxu0 0.0
  %994 = vmatpush1.msra.mxu0 %v853
  %995 = vmatprep.subr.mxu0 0.0
  %996 = vmatpush1.msra.mxu0 %v854
  %997 = vmatprep.subr.mxu0 0.0
  %998 = vmatpush1.msra.mxu0 %v855
  %999 = vmatprep.subr.mxu0 0.0
  %1000 = vmatpush1.msra.mxu0 %v856
  %1001 = vmatprep.subr.mxu0 0.0
  %1002 = vmatpush1.msra.mxu0 %v857
  %1003 = vmatprep.subr.mxu0 0.0
  %1004 = vmatpush1.msra.mxu0 %v858
  %1005 = vmatprep.subr.mxu0 0.0
  %1006 = vmatpush1.msra.mxu0 %v859
  %1007 = vmatprep.subr.mxu0 0.0
  %1008 = vmatpush1.msra.mxu0 %v860
  %1009 = vmatprep.subr.mxu0 0.0
  %1010 = vmatpush1.msra.mxu0 %v861
  %1011 = vmatprep.subr.mxu0 0.0
  %1012 = vmatpush1.msra.mxu0 %v862
  %1013 = vmatprep.subr.mxu0 0.0
  %1014 = vmatpush1.msra.mxu0 %v863
  %1015 = vmatprep.subr.mxu0 0.0
  %1016 = vmatpush1.msra.mxu0 %v864
  %1017 = vmatprep.subr.mxu0 0.0
  %1018 = vmatpush1.msra.mxu0 %v865
  %1019 = vmatprep.subr.mxu0 0.0
  %1020 = vmatpush1.msra.mxu0 %v866
  %1021 = vmatprep.subr.mxu0 0.0
  %1022 = vmatpush1.msra.mxu0 %v867
  %1023 = vmatprep.subr.mxu0 0.0
  %1024 = vmatpush1.msra.mxu0 %v868
  %1025 = vmatprep.subr.mxu0 0.0
  %1026 = vmatpush1.msra.mxu0 %v869
  %1027 = vmatprep.subr.mxu0 0.0
  %1028 = vmatpush1.msra.mxu0 %v870
  %1029 = vmatprep.subr.mxu0 0.0
  %1030 = vmatpush1.msra.mxu0 %v871
  %1031 = vmatprep.subr.mxu0 0.0
  %1032 = vmatpush1.msra.mxu0 %v872
  %1033 = vmatprep.subr.mxu0 0.0
  %1034 = vmatpush1.msra.mxu0 %v873
  %1035 = vmatprep.subr.mxu0 0.0
  %1036 = vmatpush1.msra.mxu0 %v874
  %1037 = vmatprep.subr.mxu0 0.0
  %1038 = vmatpush1.msra.mxu0 %v875
  %1039 = vmatprep.subr.mxu0 0.0
  %1040 = vmatpush1.msra.mxu0 %v876
  %1041 = vmatprep.mubr.f32.mxu0 %v788
  %1042 = vmatmul.mubr.f32.gmra.mrb[0].mxu0 %v787
  %v1043 = vpop.f32.mrb[0].mxu0
  %v1044 = vadd.f32 %v944, %v1043
  %v1045 = vpop.f32.mrb[0].mxu0
  %1046 = vmatprep.mubr.f32.mxu0 %v792
  %1047 = vmatmul.mubr.f32.gmra.mrb[0].mxu0 %v791
  %v1048 = vpop.f32.mrb[0].mxu0
  %v1049 = vadd.f32 %v949, %v1048
  %v1050 = vpop.f32.mrb[0].mxu0
  %1051 = vmatprep.mubr.f32.mxu0 %v796
  %1052 = vmatmul.mubr.f32.gmra.mrb[0].mxu0 %v795
  %v1053 = vpop.f32.mrb[0].mxu0
  %v1054 = vadd.f32 %v954, %v1053
  %v1055 = vpop.f32.mrb[0].mxu0
  %1056 = vmatprep.mubr.f32.mxu0 %v800
  %1057 = vmatmul.mubr.f32.gmra.mrb[0].mxu0 %v799
  %v1058 = vpop.f32.mrb[0].mxu0
  %v1059 = vadd.f32 %v959, %v1058
  %v1060 = vpop.f32.mrb[0].mxu0
  %1061 = vmatprep.mubr.f32.mxu0 %v804
  %1062 = vmatmul.mubr.f32.gmra.mrb[0].mxu0 %v803
  %v1063 = vpop.f32.mrb[0].mxu0
  %v1064 = vadd.f32 %v964, %v1063
  %v1065 = vpop.f32.mrb[0].mxu0
  %1066 = vmatprep.mubr.f32.mxu0 %v808
  %1067 = vmatmul.mubr.f32.gmra.mrb[0].mxu0 %v807
  %v1068 = vpop.f32.mrb[0].mxu0
  %v1069 = vadd.f32 %v969, %v1068
  %v1070 = vpop.f32.mrb[0].mxu0
  %1071 = vmatprep.mubr.f32.mxu0 %v812
  %1072 = vmatmul.mubr.f32.gmra.mrb[0].mxu0 %v811
  %v1073 = vpop.f32.mrb[0].mxu0
  %v1074 = vadd.f32 %v974, %v1073
  %v1075 = vpop.f32.mrb[0].mxu0
  %1076 = vdwg.mxu0
  %v1077 = vadd.f32 %v455, %v460
  %v1078 = vadd.f32 %v1077, %v465
  %v1079 = vadd.f32 %v1078, %v470
  %v1080 = vadd.f32 %v1079, %v475
  %v1081 = vadd.f32 %v1080, %v480
  %v1082 = vadd.f32 %v1081, %v485
  %v1083 = vadd.f32 %v1082, %v490
  %v1084 = vrot.slane %v1083, 4
  %v1085 = vadd.f32 %v1083, %v1084
  %v1086 = vrot.slane %v1085, 2
  %v1087 = vadd.f32 %v1085, %v1086
  %v1088 = vrot.slane %v1087, 1
  %v1089 = vadd.f32 %v1087, %v1088
  %v1090 = vmul.f32 %v455, %v455
  %v1091 = vmul.f32 %v460, %v460
  %v1092 = vmul.f32 %v465, %v465
  %v1093 = vmul.f32 %v470, %v470
  %v1094 = vmul.f32 %v475, %v475
  %v1095 = vmul.f32 %v480, %v480
  %v1096 = vmul.f32 %v485, %v485
  %v1097 = vmul.f32 %v490, %v490
  %v1098 = vadd.f32 %v1090, %v1091
  %v1099 = vadd.f32 %v1098, %v1092
  %v1100 = vadd.f32 %v1099, %v1093
  %v1101 = vadd.f32 %v1100, %v1094
  %v1102 = vadd.f32 %v1101, %v1095
  %v1103 = vadd.f32 %v1102, %v1096
  %v1104 = vadd.f32 %v1103, %v1097
  %v1105 = vrot.slane %v1104, 4
  %v1106 = vadd.f32 %v1104, %v1105
  %v1107 = vrot.slane %v1106, 2
  %v1108 = vadd.f32 %v1106, %v1107
  %v1109 = vrot.slane %v1108, 1
  %v1110 = vadd.f32 %v1108, %v1109
  %v1111 = vadd.f32 %v752, %v757
  %v1112 = vadd.f32 %v1111, %v762
  %v1113 = vadd.f32 %v1112, %v767
  %v1114 = vadd.f32 %v1113, %v772
  %v1115 = vadd.f32 %v1114, %v777
  %v1116 = vadd.f32 %v1115, %v782
  %v1117 = vrot.slane %v1116, 4
  %v1118 = vadd.f32 %v1116, %v1117
  %v1119 = vrot.slane %v1118, 2
  %v1120 = vadd.f32 %v1118, %v1119
  %v1121 = vrot.slane %v1120, 1
  %v1122 = vadd.f32 %v1120, %v1121
  %v1123 = vadd.f32 %v1089, %v1122
  %v1124 = vmul.f32 %v752, %v752
  %v1125 = vmul.f32 %v757, %v757
  %v1126 = vmul.f32 %v762, %v762
  %v1127 = vmul.f32 %v767, %v767
  %v1128 = vmul.f32 %v772, %v772
  %v1129 = vmul.f32 %v777, %v777
  %v1130 = vmul.f32 %v782, %v782
  %v1131 = vadd.f32 %v1124, %v1125
  %v1132 = vadd.f32 %v1131, %v1126
  %v1133 = vadd.f32 %v1132, %v1127
  %v1134 = vadd.f32 %v1133, %v1128
  %v1135 = vadd.f32 %v1134, %v1129
  %v1136 = vadd.f32 %v1135, %v1130
  %v1137 = vrot.slane %v1136, 4
  %v1138 = vadd.f32 %v1136, %v1137
  %v1139 = vrot.slane %v1138, 2
  %v1140 = vadd.f32 %v1138, %v1139
  %v1141 = vrot.slane %v1140, 1
  %v1142 = vadd.f32 %v1140, %v1141
  %v1143 = vadd.f32 %v1110, %v1142
  %v1144 = vadd.f32 %v1044, %v1049
  %v1145 = vadd.f32 %v1144, %v1054
  %v1146 = vadd.f32 %v1145, %v1059
  %v1147 = vadd.f32 %v1146, %v1064
  %v1148 = vadd.f32 %v1147, %v1069
  %v1149 = vadd.f32 %v1148, %v1074
  %v1150 = vrot.slane %v1149, 4
  %v1151 = vadd.f32 %v1149, %v1150
  %v1152 = vrot.slane %v1151, 2
  %v1153 = vadd.f32 %v1151, %v1152
  %v1154 = vrot.slane %v1153, 1
  %v1155 = vadd.f32 %v1153, %v1154
  %v1156 = vadd.f32 %v1123, %v1155
  %v1157 = vmul.f32 %v1044, %v1044
  %v1158 = vmul.f32 %v1049, %v1049
  %v1159 = vmul.f32 %v1054, %v1054
  %v1160 = vmul.f32 %v1059, %v1059
  %v1161 = vmul.f32 %v1064, %v1064
  %v1162 = vmul.f32 %v1069, %v1069
  %v1163 = vmul.f32 %v1074, %v1074
  %v1164 = vadd.f32 %v1157, %v1158
  %v1165 = vadd.f32 %v1164, %v1159
  %v1166 = vadd.f32 %v1165, %v1160
  %v1167 = vadd.f32 %v1166, %v1161
  %v1168 = vadd.f32 %v1167, %v1162
  %v1169 = vadd.f32 %v1168, %v1163
  %v1170 = vrot.slane %v1169, 4
  %v1171 = vadd.f32 %v1169, %v1170
  %v1172 = vrot.slane %v1171, 2
  %v1173 = vadd.f32 %v1171, %v1172
  %v1174 = vrot.slane %v1173, 1
  %v1175 = vadd.f32 %v1173, %v1174
  %v1176 = vadd.f32 %v1143, %v1175
  %v1177 = vmul.f32 %v1156, 0.00625
  %v1178 = vmul.f32 %v1176, 0.00625
  %v1179 = vmul.f32 %v1177, %v1177
  %v1180 = vsub.f32 %v1178, %v1179
  %v1181 = vmax.f32 %v1180, 0.0
  %v1182 = vadd.f32 %v1181, 1e-05
  %v1183 = vrsqrt.pop %v1182
  %v1184 = vmul.f32 %v32, %v1183
  %v1185 = vmul.f32 %v1177, %v1184
  %v1186 = vsub.f32 %v33, %v1185
  %v1188 = vlaneseq
  %v1189 = vshrl.u32 %v1188, 7
  %v1190 = vsub.s32 0, %v1189
  %v1191 = vrot.slane %v1184, %v1190
  %v1193 = vmul.f32 %v455, %v1191
  %v1194 = vmul.f32 %v460, %v1191
  %v1195 = vmul.f32 %v465, %v1191
  %v1196 = vmul.f32 %v470, %v1191
  %v1197 = vmul.f32 %v475, %v1191
  %v1198 = vmul.f32 %v480, %v1191
  %v1199 = vmul.f32 %v485, %v1191
  %v1200 = vmul.f32 %v490, %v1191
  %v1202 = vlaneseq
  %v1203 = vshrl.u32 %v1202, 7
  %v1204 = vsub.s32 0, %v1203
  %v1205 = vrot.slane %v1186, %v1204
  %v1207 = vadd.f32 %v1193, %v1205
  %v1208 = vadd.f32 %v1194, %v1205
  %v1209 = vadd.f32 %v1195, %v1205
  %v1210 = vadd.f32 %v1196, %v1205
  %v1211 = vadd.f32 %v1197, %v1205
  %v1212 = vadd.f32 %v1198, %v1205
  %v1213 = vadd.f32 %v1199, %v1205
  %v1214 = vadd.f32 %v1200, %v1205
  %v1215 = vmul.f32 %v752, %v1191
  %v1216 = vmul.f32 %v757, %v1191
  %v1217 = vmul.f32 %v762, %v1191
  %v1218 = vmul.f32 %v767, %v1191
  %v1219 = vmul.f32 %v772, %v1191
  %v1220 = vmul.f32 %v777, %v1191
  %v1221 = vmul.f32 %v782, %v1191
  %v1222 = vadd.f32 %v1215, %v1205
  %v1223 = vadd.f32 %v1216, %v1205
  %v1224 = vadd.f32 %v1217, %v1205
  %v1225 = vadd.f32 %v1218, %v1205
  %v1226 = vadd.f32 %v1219, %v1205
  %v1227 = vadd.f32 %v1220, %v1205
  %v1228 = vadd.f32 %v1221, %v1205
  %v1229 = vmul.f32 %v1044, %v1191
  %v1230 = vmul.f32 %v1049, %v1191
  %v1231 = vmul.f32 %v1054, %v1191
  %v1232 = vmul.f32 %v1059, %v1191
  %v1233 = vmul.f32 %v1064, %v1191
  %v1234 = vmul.f32 %v1069, %v1191
  %v1235 = vmul.f32 %v1074, %v1191
  %v1236 = vadd.f32 %v1229, %v1205
  %v1237 = vadd.f32 %v1230, %v1205
  %v1238 = vadd.f32 %v1231, %v1205
  %v1239 = vadd.f32 %v1232, %v1205
  %v1240 = vadd.f32 %v1233, %v1205
  %v1241 = vadd.f32 %v1234, %v1205
  %v1242 = vadd.f32 %v1235, %v1205
  %v1243 = vmax.f32 %v1207, 0.0
  %v1244 = vmax.f32 %v1208, 0.0
  %v1245 = vmax.f32 %v1209, 0.0
  %v1246 = vmax.f32 %v1210, 0.0
  %v1247 = vmax.f32 %v1211, 0.0
  %v1248 = vmax.f32 %v1212, 0.0
  %v1249 = vmax.f32 %v1213, 0.0
  %v1250 = vmax.f32 %v1214, 0.0
  %1251 = vst [vmem:[%s8] sm:$0xff] %v1243
  %1252 = vst [vmem:[%s8 + $0x8] sm:$0xff] %v1244
  %1253 = vst [vmem:[%s8 + $0x10] sm:$0xff] %v1245
  %1254 = vst [vmem:[%s8 + $0x18] sm:$0xff] %v1246
  %1255 = vst [vmem:[%s8 + $0x20] sm:$0xff] %v1247
  %1256 = vst [vmem:[%s8 + $0x28] sm:$0xff] %v1248
  %1257 = vst [vmem:[%s8 + $0x30] sm:$0xff] %v1249
  %1258 = vst [vmem:[%s8 + $0x38] sm:$0xff] %v1250
  %v1259 = vmax.f32 %v1222, 0.0
  %v1260 = vmax.f32 %v1223, 0.0
  %v1261 = vmax.f32 %v1224, 0.0
  %v1262 = vmax.f32 %v1225, 0.0
  %v1263 = vmax.f32 %v1226, 0.0
  %v1264 = vmax.f32 %v1227, 0.0
  %v1265 = vmax.f32 %v1228, 0.0
  %1266 = vst [vmem:[%s9] sm:$0xff] %v1259
  %1267 = vst [vmem:[%s9 + $0x8] sm:$0xff] %v1260
  %1268 = vst [vmem:[%s9 + $0x10] sm:$0xff] %v1261
  %1269 = vst [vmem:[%s9 + $0x18] sm:$0xff] %v1262
  %1270 = vst [vmem:[%s9 + $0x20] sm:$0xff] %v1263
  %1271 = vst [vmem:[%s9 + $0x28] sm:$0xff] %v1264
  %1272 = vst [vmem:[%s9 + $0x30] sm:$0xff] %v1265
  %v1273 = vmax.f32 %v1236, 0.0
  %v1274 = vmax.f32 %v1237, 0.0
  %v1275 = vmax.f32 %v1238, 0.0
  %v1276 = vmax.f32 %v1239, 0.0
  %v1277 = vmax.f32 %v1240, 0.0
  %v1278 = vmax.f32 %v1241, 0.0
  %v1279 = vmax.f32 %v1242, 0.0
  %1280 = vst [vmem:[%s10] sm:$0xff] %v1273
  %1281 = vst [vmem:[%s10 + $0x8] sm:$0xff] %v1274
  %1282 = vst [vmem:[%s10 + $0x10] sm:$0xff] %v1275
  %1283 = vst [vmem:[%s10 + $0x18] sm:$0xff] %v1276
  %1284 = vst [vmem:[%s10 + $0x20] sm:$0xff] %v1277
  %1285 = vst [vmem:[%s10 + $0x28] sm:$0xff] %v1278
  %1286 = vst [vmem:[%s10 + $0x30] sm:$0xff] %v1279
  // Predicated region
  $region34: #{bucket_forward.7} parent=0 // pred_check
    _
  $region35: #{bucket_forward.7} parent=0 // pred_check_branch
    %1288 = sbr.rel (0) target = $region37
  $region36: #{bucket_forward.7} parent=0 // pred_region
    _
  $region37: #{bucket_forward.7} parent=0 // pred_fallthru
    _
  // Predicated region
  $region38: #{bucket_forward.7} parent=0 // pred_check
    _
  $region39: #{bucket_forward.7} parent=0 // pred_check_branch
    %1290 = sbr.rel (0) target = $region41
  $region40: #{bucket_forward.7} parent=0 // pred_region
    _
  $region41: #{bucket_forward.7} parent=0 // pred_fallthru
    _
  // Predicated region
  $region42: #{bucket_forward.7} parent=0 // pred_check
    _
  $region43: #{bucket_forward.7} parent=0 // pred_check_branch
    %1292 = sbr.rel (0) target = $region45
  $region44: #{bucket_forward.7} parent=0 // pred_region
    _
  $region45: #{bucket_forward.7} parent=0 // pred_fallthru
    _
  // Predicated region
  $region46: #{bucket_forward.7} parent=0 // pred_check
    _
  $region47: #{bucket_forward.7} parent=0 // pred_check_branch
    %1294 = sbr.rel (0) target = $region49
  $region48: #{bucket_forward.7} parent=0 // pred_region
    _
  $region49: #{bucket_forward.7} parent=0 // pred_fallthru
    _
  // Predicated region
  $region50: #{bucket_forward.7} parent=0 // pred_check
    _
  $region51: #{bucket_forward.7} parent=0 // pred_check_branch
    %1296 = sbr.rel (0) target = $region53
  $region52: #{bucket_forward.7} parent=0 // pred_region
    _
  $region53: #{bucket_forward.7} parent=0 // pred_fallthru
    _
  // Predicated region
  $region54: #{bucket_forward.7} parent=0 // pred_check
    _
  $region55: #{bucket_forward.7} parent=0 // pred_check_branch
    %1298 = sbr.rel (0) target = $region57
  $region56: #{bucket_forward.7} parent=0 // pred_region
    _
  $region57: #{bucket_forward.7} parent=0 // pred_fallthru
    _

// kernel: bucket_forward.8
$region0: #{bucket_forward.8}
  #allocation0 [shape = 'u32[]', space=smem, size = 0x4, offset = 0x4, fixed_abs, tag = 'smem constant byte address 0x4 - core index']
  #allocation1 [shape = 'u32[144,128]{1,0:T(1,128)}', space=vmem, size = 0x12000, scoped, tag = 'internal scratch']
  %s0 = inlined_call_operand.vmem [shape: f32[288,384], index: 0, kind: input, shape index: {}]
  %s1 = inlined_call_operand.vmem [shape: f32[272,256], index: 1, kind: input, shape index: {}, may-alias: {1,2}]
  %s2 = inlined_call_operand.vmem [shape: f32[272,256], index: 2, kind: input, shape index: {}, may-alias: {1,2}]
  %s3 = inlined_call_operand.vmem [shape: f32[384,128], index: 3, kind: input, shape index: {}]
  %s4 = inlined_call_operand.vmem [shape: f32[256,128], index: 4, kind: input, shape index: {}]
  %s5 = inlined_call_operand.vmem [shape: f32[256,128], index: 5, kind: input, shape index: {}]
  %s6 = inlined_call_operand.vmem [shape: f32[1,128], index: 6, kind: input, shape index: {}]
  %s7 = inlined_call_operand.vmem [shape: f32[1,128], index: 7, kind: input, shape index: {}]
  %s8 = inlined_call_operand.vmem [shape: f32[288,128], index: 8, kind: output, shape index: {0}]
  %s9 = inlined_call_operand.vmem [shape: f32[272,128], index: 9, kind: output, shape index: {1}]
  %s10 = inlined_call_operand.vmem [shape: f32[272,128], index: 10, kind: output, shape index: {2}]
  %11 = xla_tuple %s8, %s9, %s10
  %s12 = sld [smem:[#allocation0]]
  $region58: #{bucket_forward.8} parent=0
    _
  %s14 = ssub.s32 1, %s12
  %s15 = scalar_select 0, %s14, %s12
  // Predicated region
  $region2: #{bucket_forward.8} parent=0 // pred_check
    _
  $region3: #{bucket_forward.8} parent=0 // pred_check_branch
    %17 = sbr.rel (0) target = $region5
  $region4: #{bucket_forward.8} parent=0 // pred_region
    _
  $region5: #{bucket_forward.8} parent=0 // pred_fallthru
    _
  // Predicated region
  $region6: #{bucket_forward.8} parent=0 // pred_check
    _
  $region7: #{bucket_forward.8} parent=0 // pred_check_branch
    %19 = sbr.rel (0) target = $region9
  $region8: #{bucket_forward.8} parent=0 // pred_region
    _
  $region9: #{bucket_forward.8} parent=0 // pred_fallthru
    _
  // Predicated region
  $region10: #{bucket_forward.8} parent=0 // pred_check
    _
  $region11: #{bucket_forward.8} parent=0 // pred_check_branch
    %21 = sbr.rel (0) target = $region13
  $region12: #{bucket_forward.8} parent=0 // pred_region
    _
  $region13: #{bucket_forward.8} parent=0 // pred_fallthru
    _
  // Predicated region
  $region14: #{bucket_forward.8} parent=0 // pred_check
    _
  $region15: #{bucket_forward.8} parent=0 // pred_check_branch
    %23 = sbr.rel (0) target = $region17
  $region16: #{bucket_forward.8} parent=0 // pred_region
    _
  $region17: #{bucket_forward.8} parent=0 // pred_fallthru
    _
  // Predicated region
  $region18: #{bucket_forward.8} parent=0 // pred_check
    _
  $region19: #{bucket_forward.8} parent=0 // pred_check_branch
    %25 = sbr.rel (0) target = $region21
  $region20: #{bucket_forward.8} parent=0 // pred_region
    _
  $region21: #{bucket_forward.8} parent=0 // pred_fallthru
    _
  // Predicated region
  $region22: #{bucket_forward.8} parent=0 // pred_check
    _
  $region23: #{bucket_forward.8} parent=0 // pred_check_branch
    %27 = sbr.rel (0) target = $region25
  $region24: #{bucket_forward.8} parent=0 // pred_region
    _
  $region25: #{bucket_forward.8} parent=0 // pred_fallthru
    _
  // Predicated region
  $region26: #{bucket_forward.8} parent=0 // pred_check
    _
  $region27: #{bucket_forward.8} parent=0 // pred_check_branch
    %29 = sbr.rel (0) target = $region29
  $region28: #{bucket_forward.8} parent=0 // pred_region
    _
  $region29: #{bucket_forward.8} parent=0 // pred_fallthru
    _
  // Predicated region
  $region30: #{bucket_forward.8} parent=0 // pred_check
    _
  $region31: #{bucket_forward.8} parent=0 // pred_check_branch
    %31 = sbr.rel (0) target = $region33
  $region32: #{bucket_forward.8} parent=0 // pred_region
    _
  $region33: #{bucket_forward.8} parent=0 // pred_fallthru
    _
  %v32 = vld [vmem:[%s6] sm:$0x1]
  %v33 = vld [vmem:[%s7] sm:$0x1]
  %v34 = vld [vmem:[%s0] sm:$0xff]
  %v35 = vld [vmem:[%s0 + $0x8] sm:$0xff]
  %v36 = vld [vmem:[%s0 + $0x10] sm:$0xff]
  %v37 = vld [vmem:[%s0 + $0x18] sm:$0xff]
  %v38 = vld [vmem:[%s0 + $0x20] sm:$0xff]
  %v39 = vld [vmem:[%s0 + $0x28] sm:$0xff]
  %v40 = vld [vmem:[%s0 + $0x30] sm:$0xff]
  %v41 = vld [vmem:[%s0 + $0x38] sm:$0xff]
  %v42 = vld [vmem:[%s0 + $0x40] sm:$0xff]
  %v43 = vld [vmem:[%s0 + $0x48] sm:$0xff]
  %v44 = vld [vmem:[%s0 + $0x50] sm:$0xff]
  %v45 = vld [vmem:[%s0 + $0x58] sm:$0xff]
  %v46 = vld [vmem:[%s0 + $0x60] sm:$0xff]
  %v47 = vld [vmem:[%s0 + $0x68] sm:$0xff]
  %v48 = vld [vmem:[%s0 + $0x70] sm:$0xff]
  %v49 = vld [vmem:[%s0 + $0x78] sm:$0xff]
  %v50 = vld [vmem:[%s0 + $0x80] sm:$0xff]
  %v51 = vld [vmem:[%s0 + $0x88] sm:$0xff]
  %v52 = vld [vmem:[%s0 + $0x90] sm:$0xff]
  %v53 = vld [vmem:[%s0 + $0x98] sm:$0xff]
  %v54 = vld [vmem:[%s0 + $0xa0] sm:$0xff]
  %v55 = vld [vmem:[%s0 + $0xa8] sm:$0xff]
  %v56 = vld [vmem:[%s0 + $0xb0] sm:$0xff]
  %v57 = vld [vmem:[%s0 + $0xb8] sm:$0xff]
  %v58 = vld [vmem:[%s0 + $0xc0] sm:$0xff]
  %v59 = vld [vmem:[%s0 + $0xc8] sm:$0xff]
  %v60 = vld [vmem:[%s0 + $0xd0] sm:$0xff]
  %v61 = vld [vmem:[%s0 + $0xd8] sm:$0xff]
  %v62 = vld [vmem:[%s0 + $0xe0] sm:$0xff]
  %v63 = vld [vmem:[%s0 + $0xe8] sm:$0xff]
  %v64 = vld [vmem:[%s0 + $0xf0] sm:$0xff]
  %v65 = vld [vmem:[%s0 + $0xf8] sm:$0xff]
  %v66 = vld [vmem:[%s0 + $0x100] sm:$0xff]
  %v67 = vld [vmem:[%s0 + $0x108] sm:$0xff]
  %v68 = vld [vmem:[%s0 + $0x110] sm:$0xff]
  %v69 = vld [vmem:[%s0 + $0x118] sm:$0xff]
  %v70 = vld [vmem:[%s0 + $0x120] sm:$0xff]
  %v71 = vld [vmem:[%s0 + $0x128] sm:$0xff]
  %v72 = vld [vmem:[%s0 + $0x130] sm:$0xff]
  %v73 = vld [vmem:[%s0 + $0x138] sm:$0xff]
  %v74 = vld [vmem:[%s0 + $0x140] sm:$0xff]
  %v75 = vld [vmem:[%s0 + $0x148] sm:$0xff]
  %v76 = vld [vmem:[%s0 + $0x150] sm:$0xff]
  %v77 = vld [vmem:[%s0 + $0x158] sm:$0xff]
  %v78 = vld [vmem:[%s0 + $0x160] sm:$0xff]
  %v79 = vld [vmem:[%s0 + $0x168] sm:$0xff]
  %v80 = vld [vmem:[%s0 + $0x170] sm:$0xff]
  %v81 = vld [vmem:[%s0 + $0x178] sm:$0xff]
  %v82 = vld [vmem:[%s0 + $0x180] sm:$0xff]
  %v83 = vld [vmem:[%s0 + $0x188] sm:$0xff]
  %v84 = vld [vmem:[%s0 + $0x190] sm:$0xff]
  %v85 = vld [vmem:[%s0 + $0x198] sm:$0xff]
  %v86 = vld [vmem:[%s0 + $0x1a0] sm:$0xff]
  %v87 = vld [vmem:[%s0 + $0x1a8] sm:$0xff]
  %v88 = vld [vmem:[%s0 + $0x1b0] sm:$0xff]
  %v89 = vld [vmem:[%s0 + $0x1b8] sm:$0xff]
  %v90 = vld [vmem:[%s0 + $0x1c0] sm:$0xff]
  %v91 = vld [vmem:[%s0 + $0x1c8] sm:$0xff]
  %v92 = vld [vmem:[%s0 + $0x1d0] sm:$0xff]
  %v93 = vld [vmem:[%s0 + $0x1d8] sm:$0xff]
  %v94 = vld [vmem:[%s0 + $0x1e0] sm:$0xff]
  %v95 = vld [vmem:[%s0 + $0x1e8] sm:$0xff]
  %v96 = vld [vmem:[%s0 + $0x1f0] sm:$0xff]
  %v97 = vld [vmem:[%s0 + $0x1f8] sm:$0xff]
  %v98 = vld [vmem:[%s0 + $0x200] sm:$0xff]
  %v99 = vld [vmem:[%s0 + $0x208] sm:$0xff]
  %v100 = vld [vmem:[%s0 + $0x210] sm:$0xff]
  %v101 = vld [vmem:[%s0 + $0x218] sm:$0xff]
  %v102 = vld [vmem:[%s0 + $0x220] sm:$0xff]
  %v103 = vld [vmem:[%s0 + $0x228] sm:$0xff]
  %v104 = vld [vmem:[%s0 + $0x230] sm:$0xff]
  %v105 = vld [vmem:[%s0 + $0x238] sm:$0xff]
  %v106 = vld [vmem:[%s0 + $0x240] sm:$0xff]
  %v107 = vld [vmem:[%s0 + $0x248] sm:$0xff]
  %v108 = vld [vmem:[%s0 + $0x250] sm:$0xff]
  %v109 = vld [vmem:[%s0 + $0x258] sm:$0xff]
  %v110 = vld [vmem:[%s0 + $0x260] sm:$0xff]
  %v111 = vld [vmem:[%s0 + $0x268] sm:$0xff]
  %v112 = vld [vmem:[%s0 + $0x270] sm:$0xff]
  %v113 = vld [vmem:[%s0 + $0x278] sm:$0xff]
  %v114 = vld [vmem:[%s0 + $0x280] sm:$0xff]
  %v115 = vld [vmem:[%s0 + $0x288] sm:$0xff]
  %v116 = vld [vmem:[%s0 + $0x290] sm:$0xff]
  %v117 = vld [vmem:[%s0 + $0x298] sm:$0xff]
  %v118 = vld [vmem:[%s0 + $0x2a0] sm:$0xff]
  %v119 = vld [vmem:[%s0 + $0x2a8] sm:$0xff]
  %v120 = vld [vmem:[%s0 + $0x2b0] sm:$0xff]
  %v121 = vld [vmem:[%s0 + $0x2b8] sm:$0xff]
  %v122 = vld [vmem:[%s0 + $0x2c0] sm:$0xff]
  %v123 = vld [vmem:[%s0 + $0x2c8] sm:$0xff]
  %v124 = vld [vmem:[%s0 + $0x2d0] sm:$0xff]
  %v125 = vld [vmem:[%s0 + $0x2d8] sm:$0xff]
  %v126 = vld [vmem:[%s0 + $0x2e0] sm:$0xff]
  %v127 = vld [vmem:[%s0 + $0x2e8] sm:$0xff]
  %v128 = vld [vmem:[%s0 + $0x2f0] sm:$0xff]
  %v129 = vld [vmem:[%s0 + $0x2f8] sm:$0xff]
  %v130 = vld [vmem:[%s0 + $0x300] sm:$0xff]
  %v131 = vld [vmem:[%s0 + $0x308] sm:$0xff]
  %v132 = vld [vmem:[%s0 + $0x310] sm:$0xff]
  %v133 = vld [vmem:[%s0 + $0x318] sm:$0xff]
  %v134 = vld [vmem:[%s0 + $0x320] sm:$0xff]
  %v135 = vld [vmem:[%s0 + $0x328] sm:$0xff]
  %v136 = vld [vmem:[%s0 + $0x330] sm:$0xff]
  %v137 = vld [vmem:[%s0 + $0x338] sm:$0xff]
  %v138 = vld [vmem:[%s0 + $0x340] sm:$0xff]
  %v139 = vld [vmem:[%s0 + $0x348] sm:$0xff]
  %v140 = vld [vmem:[%s0 + $0x350] sm:$0xff]
  %v141 = vld [vmem:[%s0 + $0x358] sm:$0xff]
  %v142 = vld [vmem:[%s3] sm:$0xff]
  %v143 = vld [vmem:[%s3 + $0x8] sm:$0xff]
  %v144 = vld [vmem:[%s3 + $0x10] sm:$0xff]
  %v145 = vld [vmem:[%s3 + $0x18] sm:$0xff]
  %v146 = vld [vmem:[%s3 + $0x20] sm:$0xff]
  %v147 = vld [vmem:[%s3 + $0x28] sm:$0xff]
  %v148 = vld [vmem:[%s3 + $0x30] sm:$0xff]
  %v149 = vld [vmem:[%s3 + $0x38] sm:$0xff]
  %v150 = vld [vmem:[%s3 + $0x40] sm:$0xff]
  %v151 = vld [vmem:[%s3 + $0x48] sm:$0xff]
  %v152 = vld [vmem:[%s3 + $0x50] sm:$0xff]
  %v153 = vld [vmem:[%s3 + $0x58] sm:$0xff]
  %v154 = vld [vmem:[%s3 + $0x60] sm:$0xff]
  %v155 = vld [vmem:[%s3 + $0x68] sm:$0xff]
  %v156 = vld [vmem:[%s3 + $0x70] sm:$0xff]
  %v157 = vld [vmem:[%s3 + $0x78] sm:$0xff]
  %v158 = vld [vmem:[%s3 + $0x80] sm:$0xff]
  %v159 = vld [vmem:[%s3 + $0x88] sm:$0xff]
  %v160 = vld [vmem:[%s3 + $0x90] sm:$0xff]
  %v161 = vld [vmem:[%s3 + $0x98] sm:$0xff]
  %v162 = vld [vmem:[%s3 + $0xa0] sm:$0xff]
  %v163 = vld [vmem:[%s3 + $0xa8] sm:$0xff]
  %v164 = vld [vmem:[%s3 + $0xb0] sm:$0xff]
  %v165 = vld [vmem:[%s3 + $0xb8] sm:$0xff]
  %v166 = vld [vmem:[%s3 + $0xc0] sm:$0xff]
  %v167 = vld [vmem:[%s3 + $0xc8] sm:$0xff]
  %v168 = vld [vmem:[%s3 + $0xd0] sm:$0xff]
  %v169 = vld [vmem:[%s3 + $0xd8] sm:$0xff]
  %v170 = vld [vmem:[%s3 + $0xe0] sm:$0xff]
  %v171 = vld [vmem:[%s3 + $0xe8] sm:$0xff]
  %v172 = vld [vmem:[%s3 + $0xf0] sm:$0xff]
  %v173 = vld [vmem:[%s3 + $0xf8] sm:$0xff]
  %v174 = vld [vmem:[%s3 + $0x100] sm:$0xff]
  %v175 = vld [vmem:[%s3 + $0x108] sm:$0xff]
  %v176 = vld [vmem:[%s3 + $0x110] sm:$0xff]
  %v177 = vld [vmem:[%s3 + $0x118] sm:$0xff]
  %v178 = vld [vmem:[%s3 + $0x120] sm:$0xff]
  %v179 = vld [vmem:[%s3 + $0x128] sm:$0xff]
  %v180 = vld [vmem:[%s3 + $0x130] sm:$0xff]
  %v181 = vld [vmem:[%s3 + $0x138] sm:$0xff]
  %v182 = vld [vmem:[%s3 + $0x140] sm:$0xff]
  %v183 = vld [vmem:[%s3 + $0x148] sm:$0xff]
  %v184 = vld [vmem:[%s3 + $0x150] sm:$0xff]
  %v185 = vld [vmem:[%s3 + $0x158] sm:$0xff]
  %v186 = vld [vmem:[%s3 + $0x160] sm:$0xff]
  %v187 = vld [vmem:[%s3 + $0x168] sm:$0xff]
  %v188 = vld [vmem:[%s3 + $0x170] sm:$0xff]
  %v189 = vld [vmem:[%s3 + $0x178] sm:$0xff]
  %190 = vmatprep.subr.mxu0 0.0
  %191 = vmatpush1.msra.mxu0 %v142
  %192 = vmatprep.subr.mxu0 0.0
  %193 = vmatpush1.msra.mxu0 %v143
  %194 = vmatprep.subr.mxu0 0.0
  %195 = vmatpush1.msra.mxu0 %v144
  %196 = vmatprep.subr.mxu0 0.0
  %197 = vmatpush1.msra.mxu0 %v145
  %198 = vmatprep.subr.mxu0 0.0
  %199 = vmatpush1.msra.mxu0 %v146
  %200 = vmatprep.subr.mxu0 0.0
  %201 = vmatpush1.msra.mxu0 %v147
  %202 = vmatprep.subr.mxu0 0.0
  %203 = vmatpush1.msra.mxu0 %v148
  %204 = vmatprep.subr.mxu0 0.0
  %205 = vmatpush1.msra.mxu0 %v149
  %206 = vmatprep.subr.mxu0 0.0
  %207 = vmatpush1.msra.mxu0 %v150
  %208 = vmatprep.subr.mxu0 0.0
  %209 = vmatpush1.msra.mxu0 %v151
  %210 = vmatprep.subr.mxu0 0.0
  %211 = vmatpush1.msra.mxu0 %v152
  %212 = vmatprep.subr.mxu0 0.0
  %213 = vmatpush1.msra.mxu0 %v153
  %214 = vmatprep.subr.mxu0 0.0
  %215 = vmatpush1.msra.mxu0 %v154
  %216 = vmatprep.subr.mxu0 0.0
  %217 = vmatpush1.msra.mxu0 %v155
  %218 = vmatprep.subr.mxu0 0.0
  %219 = vmatpush1.msra.mxu0 %v156
  %220 = vmatprep.subr.mxu0 0.0
  %221 = vmatpush1.msra.mxu0 %v157
  %222 = vmatprep.subr.mxu0 0.0
  %223 = vmatpush1.msra.mxu0 %v158
  %224 = vmatprep.subr.mxu0 0.0
  %225 = vmatpush1.msra.mxu0 %v159
  %226 = vmatprep.subr.mxu0 0.0
  %227 = vmatpush1.msra.mxu0 %v160
  %228 = vmatprep.subr.mxu0 0.0
  %229 = vmatpush1.msra.mxu0 %v161
  %230 = vmatprep.subr.mxu0 0.0
  %231 = vmatpush1.msra.mxu0 %v162
  %232 = vmatprep.subr.mxu0 0.0
  %233 = vmatpush1.msra.mxu0 %v163
  %234 = vmatprep.subr.mxu0 0.0
  %235 = vmatpush1.msra.mxu0 %v164
  %236 = vmatprep.subr.mxu0 0.0
  %237 = vmatpush1.msra.mxu0 %v165
  %238 = vmatprep.subr.mxu0 0.0
  %239 = vmatpush1.msra.mxu0 %v166
  %240 = vmatprep.subr.mxu0 0.0
  %241 = vmatpush1.msra.mxu0 %v167
  %242 = vmatprep.subr.mxu0 0.0
  %243 = vmatpush1.msra.mxu0 %v168
  %244 = vmatprep.subr.mxu0 0.0
  %245 = vmatpush1.msra.mxu0 %v169
  %246 = vmatprep.subr.mxu0 0.0
  %247 = vmatpush1.msra.mxu0 %v170
  %248 = vmatprep.subr.mxu0 0.0
  %249 = vmatpush1.msra.mxu0 %v171
  %250 = vmatprep.subr.mxu0 0.0
  %251 = vmatpush1.msra.mxu0 %v172
  %252 = vmatprep.subr.mxu0 0.0
  %253 = vmatpush1.msra.mxu0 %v173
  %254 = vmatprep.mubr.f32.mxu0 %v35
  %255 = vmatmul.mubr.f32.gmra.mrb[0].mxu0 %v34
  %v256 = vpop.f32.mrb[0].mxu0
  %v257 = vadd.f32 0.0, %v256
  %v258 = vpop.f32.mrb[0].mxu0
  %259 = vmatprep.mubr.f32.mxu0 %v38
  %260 = vmatmul.mubr.f32.gmra.mrb[0].mxu0 %v37
  %v261 = vpop.f32.mrb[0].mxu0
  %v262 = vadd.f32 0.0, %v261
  %v263 = vpop.f32.mrb[0].mxu0
  %264 = vmatprep.mubr.f32.mxu0 %v41
  %265 = vmatmul.mubr.f32.gmra.mrb[0].mxu0 %v40
  %v266 = vpop.f32.mrb[0].mxu0
  %v267 = vadd.f32 0.0, %v266
  %v268 = vpop.f32.mrb[0].mxu0
  %269 = vmatprep.mubr.f32.mxu0 %v44
  %270 = vmatmul.mubr.f32.gmra.mrb[0].mxu0 %v43
  %v271 = vpop.f32.mrb[0].mxu0
  %v272 = vadd.f32 0.0, %v271
  %v273 = vpop.f32.mrb[0].mxu0
  %274 = vmatprep.mubr.f32.mxu0 %v47
  %275 = vmatmul.mubr.f32.gmra.mrb[0].mxu0 %v46
  %v276 = vpop.f32.mrb[0].mxu0
  %v277 = vadd.f32 0.0, %v276
  %v278 = vpop.f32.mrb[0].mxu0
  %279 = vmatprep.mubr.f32.mxu0 %v50
  %280 = vmatmul.mubr.f32.gmra.mrb[0].mxu0 %v49
  %v281 = vpop.f32.mrb[0].mxu0
  %v282 = vadd.f32 0.0, %v281
  %v283 = vpop.f32.mrb[0].mxu0
  %284 = vmatprep.mubr.f32.mxu0 %v53
  %285 = vmatmul.mubr.f32.gmra.mrb[0].mxu0 %v52
  %v286 = vpop.f32.mrb[0].mxu0
  %v287 = vadd.f32 0.0, %v286
  %v288 = vpop.f32.mrb[0].mxu0
  %289 = vmatprep.mubr.f32.mxu0 %v56
  %290 = vmatmul.mubr.f32.gmra.mrb[0].mxu0 %v55
  %v291 = vpop.f32.mrb[0].mxu0
  %v292 = vadd.f32 0.0, %v291
  %v293 = vpop.f32.mrb[0].mxu0
  %294 = vmatprep.mubr.f32.mxu0 %v59
  %295 = vmatmul.mubr.f32.gmra.mrb[0].mxu0 %v58
  %v296 = vpop.f32.mrb[0].mxu0
  %v297 = vadd.f32 0.0, %v296
  %v298 = vpop.f32.mrb[0].mxu0
  %299 = vmatprep.mubr.f32.mxu0 %v62
  %300 = vmatmul.mubr.f32.gmra.mrb[0].mxu0 %v61
  %v301 = vpop.f32.mrb[0].mxu0
  %v302 = vadd.f32 0.0, %v301
  %v303 = vpop.f32.mrb[0].mxu0
  %304 = vmatprep.mubr.f32.mxu0 %v65
  %305 = vmatmul.mubr.f32.gmra.mrb[0].mxu0 %v64
  %v306 = vpop.f32.mrb[0].mxu0
  %v307 = vadd.f32 0.0, %v306
  %v308 = vpop.f32.mrb[0].mxu0
  %309 = vmatprep.mubr.f32.mxu0 %v68
  %310 = vmatmul.mubr.f32.gmra.mrb[0].mxu0 %v67
  %v311 = vpop.f32.mrb[0].mxu0
  %v312 = vadd.f32 0.0, %v311
  %v313 = vpop.f32.mrb[0].mxu0
  %314 = vmatprep.mubr.f32.mxu0 %v71
  %315 = vmatmul.mubr.f32.gmra.mrb[0].mxu0 %v70
  %v316 = vpop.f32.mrb[0].mxu0
  %v317 = vadd.f32 0.0, %v316
  %v318 = vpop.f32.mrb[0].mxu0
  %319 = vmatprep.mubr.f32.mxu0 %v74
  %320 = vmatmul.mubr.f32.gmra.mrb[0].mxu0 %v73
  %v321 = vpop.f32.mrb[0].mxu0
  %v322 = vadd.f32 0.0, %v321
  %v323 = vpop.f32.mrb[0].mxu0
  %324 = vmatprep.mubr.f32.mxu0 %v77
  %325 = vmatmul.mubr.f32.gmra.mrb[0].mxu0 %v76
  %v326 = vpop.f32.mrb[0].mxu0
  %v327 = vadd.f32 0.0, %v326
  %v328 = vpop.f32.mrb[0].mxu0
  %329 = vmatprep.mubr.f32.mxu0 %v80
  %330 = vmatmul.mubr.f32.gmra.mrb[0].mxu0 %v79
  %v331 = vpop.f32.mrb[0].mxu0
  %v332 = vadd.f32 0.0, %v331
  %v333 = vpop.f32.mrb[0].mxu0
  %334 = vmatprep.mubr.f32.mxu0 %v83
  %335 = vmatmul.mubr.f32.gmra.mrb[0].mxu0 %v82
  %v336 = vpop.f32.mrb[0].mxu0
  %v337 = vadd.f32 0.0, %v336
  %v338 = vpop.f32.mrb[0].mxu0
  %339 = vmatprep.mubr.f32.mxu0 %v86
  %340 = vmatmul.mubr.f32.gmra.mrb[0].mxu0 %v85
  %v341 = vpop.f32.mrb[0].mxu0
  %v342 = vadd.f32 0.0, %v341
  %v343 = vpop.f32.mrb[0].mxu0
  %344 = vmatprep.mubr.f32.mxu0 %v89
  %345 = vmatmul.mubr.f32.gmra.mrb[0].mxu0 %v88
  %v346 = vpop.f32.mrb[0].mxu0
  %v347 = vadd.f32 0.0, %v346
  %v348 = vpop.f32.mrb[0].mxu0
  %349 = vmatprep.mubr.f32.mxu0 %v92
  %350 = vmatmul.mubr.f32.gmra.mrb[0].mxu0 %v91
  %v351 = vpop.f32.mrb[0].mxu0
  %v352 = vadd.f32 0.0, %v351
  %v353 = vpop.f32.mrb[0].mxu0
  %354 = vmatprep.mubr.f32.mxu0 %v95
  %355 = vmatmul.mubr.f32.gmra.mrb[0].mxu0 %v94
  %v356 = vpop.f32.mrb[0].mxu0
  %v357 = vadd.f32 0.0, %v356
  %v358 = vpop.f32.mrb[0].mxu0
  %359 = vmatprep.mubr.f32.mxu0 %v98
  %360 = vmatmul.mubr.f32.gmra.mrb[0].mxu0 %v97
  %v361 = vpop.f32.mrb[0].mxu0
  %v362 = vadd.f32 0.0, %v361
  %v363 = vpop.f32.mrb[0].mxu0
  %364 = vmatprep.mubr.f32.mxu0 %v101
  %365 = vmatmul.mubr.f32.gmra.mrb[0].mxu0 %v100
  %v366 = vpop.f32.mrb[0].mxu0
  %v367 = vadd.f32 0.0, %v366
  %v368 = vpop.f32.mrb[0].mxu0
  %369 = vmatprep.mubr.f32.mxu0 %v104
  %370 = vmatmul.mubr.f32.gmra.mrb[0].mxu0 %v103
  %v371 = vpop.f32.mrb[0].mxu0
  %v372 = vadd.f32 0.0, %v371
  %v373 = vpop.f32.mrb[0].mxu0
  %374 = vmatprep.mubr.f32.mxu0 %v107
  %375 = vmatmul.mubr.f32.gmra.mrb[0].mxu0 %v106
  %v376 = vpop.f32.mrb[0].mxu0
  %v377 = vadd.f32 0.0, %v376
  %v378 = vpop.f32.mrb[0].mxu0
  %379 = vmatprep.mubr.f32.mxu0 %v110
  %380 = vmatmul.mubr.f32.gmra.mrb[0].mxu0 %v109
  %v381 = vpop.f32.mrb[0].mxu0
  %v382 = vadd.f32 0.0, %v381
  %v383 = vpop.f32.mrb[0].mxu0
  %384 = vmatprep.mubr.f32.mxu0 %v113
  %385 = vmatmul.mubr.f32.gmra.mrb[0].mxu0 %v112
  %v386 = vpop.f32.mrb[0].mxu0
  %v387 = vadd.f32 0.0, %v386
  %v388 = vpop.f32.mrb[0].mxu0
  %389 = vmatprep.mubr.f32.mxu0 %v116
  %390 = vmatmul.mubr.f32.gmra.mrb[0].mxu0 %v115
  %v391 = vpop.f32.mrb[0].mxu0
  %v392 = vadd.f32 0.0, %v391
  %v393 = vpop.f32.mrb[0].mxu0
  %394 = vmatprep.mubr.f32.mxu0 %v119
  %395 = vmatmul.mubr.f32.gmra.mrb[0].mxu0 %v118
  %v396 = vpop.f32.mrb[0].mxu0
  %v397 = vadd.f32 0.0, %v396
  %v398 = vpop.f32.mrb[0].mxu0
  %399 = vmatprep.mubr.f32.mxu0 %v122
  %400 = vmatmul.mubr.f32.gmra.mrb[0].mxu0 %v121
  %v401 = vpop.f32.mrb[0].mxu0
  %v402 = vadd.f32 0.0, %v401
  %v403 = vpop.f32.mrb[0].mxu0
  %404 = vmatprep.mubr.f32.mxu0 %v125
  %405 = vmatmul.mubr.f32.gmra.mrb[0].mxu0 %v124
  %v406 = vpop.f32.mrb[0].mxu0
  %v407 = vadd.f32 0.0, %v406
  %v408 = vpop.f32.mrb[0].mxu0
  %409 = vmatprep.mubr.f32.mxu0 %v128
  %410 = vmatmul.mubr.f32.gmra.mrb[0].mxu0 %v127
  %v411 = vpop.f32.mrb[0].mxu0
  %v412 = vadd.f32 0.0, %v411
  %v413 = vpop.f32.mrb[0].mxu0
  %414 = vmatprep.mubr.f32.mxu0 %v131
  %415 = vmatmul.mubr.f32.gmra.mrb[0].mxu0 %v130
  %v416 = vpop.f32.mrb[0].mxu0
  %v417 = vadd.f32 0.0, %v416
  %v418 = vpop.f32.mrb[0].mxu0
  %419 = vmatprep.mubr.f32.mxu0 %v134
  %420 = vmatmul.mubr.f32.gmra.mrb[0].mxu0 %v133
  %v421 = vpop.f32.mrb[0].mxu0
  %v422 = vadd.f32 0.0, %v421
  %v423 = vpop.f32.mrb[0].mxu0
  %424 = vmatprep.mubr.f32.mxu0 %v137
  %425 = vmatmul.mubr.f32.gmra.mrb[0].mxu0 %v136
  %v426 = vpop.f32.mrb[0].mxu0
  %v427 = vadd.f32 0.0, %v426
  %v428 = vpop.f32.mrb[0].mxu0
  %429 = vmatprep.mubr.f32.mxu0 %v140
  %430 = vmatmul.mubr.f32.gmra.mrb[0].mxu0 %v139
  %v431 = vpop.f32.mrb[0].mxu0
  %v432 = vadd.f32 0.0, %v431
  %v433 = vpop.f32.mrb[0].mxu0
  %434 = vdwg.mxu0
  %435 = vmatprep.subr.mxu0 0.0
  %436 = vmatpush1.msra.mxu0 %v174
  %437 = vmatprep.subr.mxu0 0.0
  %438 = vmatpush1.msra.mxu0 %v175
  %439 = vmatprep.subr.mxu0 0.0
  %440 = vmatpush1.msra.mxu0 %v176
  %441 = vmatprep.subr.mxu0 0.0
  %442 = vmatpush1.msra.mxu0 %v177
  %443 = vmatprep.subr.mxu0 0.0
  %444 = vmatpush1.msra.mxu0 %v178
  %445 = vmatprep.subr.mxu0 0.0
  %446 = vmatpush1.msra.mxu0 %v179
  %447 = vmatprep.subr.mxu0 0.0
  %448 = vmatpush1.msra.mxu0 %v180
  %449 = vmatprep.subr.mxu0 0.0
  %450 = vmatpush1.msra.mxu0 %v181
  %451 = vmatprep.subr.mxu0 0.0
  %452 = vmatpush1.msra.mxu0 %v182
  %453 = vmatprep.subr.mxu0 0.0
  %454 = vmatpush1.msra.mxu0 %v183
  %455 = vmatprep.subr.mxu0 0.0
  %456 = vmatpush1.msra.mxu0 %v184
  %457 = vmatprep.subr.mxu0 0.0
  %458 = vmatpush1.msra.mxu0 %v185
  %459 = vmatprep.subr.mxu0 0.0
  %460 = vmatpush1.msra.mxu0 %v186
  %461 = vmatprep.subr.mxu0 0.0
  %462 = vmatpush1.msra.mxu0 %v187
  %463 = vmatprep.subr.mxu0 0.0
  %464 = vmatpush1.msra.mxu0 %v188
  %465 = vmatprep.subr.mxu0 0.0
  %466 = vmatpush1.msra.mxu0 %v189
  %467 = vmatprep.subr.mxu0 0.0
  %468 = vmatpush1.msra.mxu0 0.0
  %469 = vmatprep.subr.mxu0 0.0
  %470 = vmatpush1.msra.mxu0 0.0
  %471 = vmatprep.subr.mxu0 0.0
  %472 = vmatpush1.msra.mxu0 0.0
  %473 = vmatprep.subr.mxu0 0.0
  %474 = vmatpush1.msra.mxu0 0.0
  %475 = vmatprep.subr.mxu0 0.0
  %476 = vmatpush1.msra.mxu0 0.0
  %477 = vmatprep.subr.mxu0 0.0
  %478 = vmatpush1.msra.mxu0 0.0
  %479 = vmatprep.subr.mxu0 0.0
  %480 = vmatpush1.msra.mxu0 0.0
  %481 = vmatprep.subr.mxu0 0.0
  %482 = vmatpush1.msra.mxu0 0.0
  %483 = vmatprep.subr.mxu0 0.0
  %484 = vmatpush1.msra.mxu0 0.0
  %485 = vmatprep.subr.mxu0 0.0
  %486 = vmatpush1.msra.mxu0 0.0
  %487 = vmatprep.subr.mxu0 0.0
  %488 = vmatpush1.msra.mxu0 0.0
  %489 = vmatprep.subr.mxu0 0.0
  %490 = vmatpush1.msra.mxu0 0.0
  %491 = vmatprep.subr.mxu0 0.0
  %492 = vmatpush1.msra.mxu0 0.0
  %493 = vmatprep.subr.mxu0 0.0
  %494 = vmatpush1.msra.mxu0 0.0
  %495 = vmatprep.subr.mxu0 0.0
  %496 = vmatpush1.msra.mxu0 0.0
  %497 = vmatprep.subr.mxu0 0.0
  %498 = vmatpush1.msra.mxu0 0.0
  %499 = vmatprep.mubr.f32.mxu0 0.0
  %500 = vmatmul.mubr.f32.gmra.mrb[0].mxu0 %v36
  %v501 = vpop.f32.mrb[0].mxu0
  %v502 = vadd.f32 %v257, %v501
  %v503 = vpop.f32.mrb[0].mxu0
  %504 = vmatprep.mubr.f32.mxu0 0.0
  %505 = vmatmul.mubr.f32.gmra.mrb[0].mxu0 %v39
  %v506 = vpop.f32.mrb[0].mxu0
  %v507 = vadd.f32 %v262, %v506
  %v508 = vpop.f32.mrb[0].mxu0
  %509 = vmatprep.mubr.f32.mxu0 0.0
  %510 = vmatmul.mubr.f32.gmra.mrb[0].mxu0 %v42
  %v511 = vpop.f32.mrb[0].mxu0
  %v512 = vadd.f32 %v267, %v511
  %v513 = vpop.f32.mrb[0].mxu0
  %514 = vmatprep.mubr.f32.mxu0 0.0
  %515 = vmatmul.mubr.f32.gmra.mrb[0].mxu0 %v45
  %v516 = vpop.f32.mrb[0].mxu0
  %v517 = vadd.f32 %v272, %v516
  %v518 = vpop.f32.mrb[0].mxu0
  %519 = vmatprep.mubr.f32.mxu0 0.0
  %520 = vmatmul.mubr.f32.gmra.mrb[0].mxu0 %v48
  %v521 = vpop.f32.mrb[0].mxu0
  %v522 = vadd.f32 %v277, %v521
  %v523 = vpop.f32.mrb[0].mxu0
  %524 = vmatprep.mubr.f32.mxu0 0.0
  %525 = vmatmul.mubr.f32.gmra.mrb[0].mxu0 %v51
  %v526 = vpop.f32.mrb[0].mxu0
  %v527 = vadd.f32 %v282, %v526
  %v528 = vpop.f32.mrb[0].mxu0
  %529 = vmatprep.mubr.f32.mxu0 0.0
  %530 = vmatmul.mubr.f32.gmra.mrb[0].mxu0 %v54
  %v531 = vpop.f32.mrb[0].mxu0
  %v532 = vadd.f32 %v287, %v531
  %v533 = vpop.f32.mrb[0].mxu0
  %534 = vmatprep.mubr.f32.mxu0 0.0
  %535 = vmatmul.mubr.f32.gmra.mrb[0].mxu0 %v57
  %v536 = vpop.f32.mrb[0].mxu0
  %v537 = vadd.f32 %v292, %v536
  %v538 = vpop.f32.mrb[0].mxu0
  %539 = vmatprep.mubr.f32.mxu0 0.0
  %540 = vmatmul.mubr.f32.gmra.mrb[0].mxu0 %v60
  %v541 = vpop.f32.mrb[0].mxu0
  %v542 = vadd.f32 %v297, %v541
  %v543 = vpop.f32.mrb[0].mxu0
  %544 = vmatprep.mubr.f32.mxu0 0.0
  %545 = vmatmul.mubr.f32.gmra.mrb[0].mxu0 %v63
  %v546 = vpop.f32.mrb[0].mxu0
  %v547 = vadd.f32 %v302, %v546
  %v548 = vpop.f32.mrb[0].mxu0
  %549 = vmatprep.mubr.f32.mxu0 0.0
  %550 = vmatmul.mubr.f32.gmra.mrb[0].mxu0 %v66
  %v551 = vpop.f32.mrb[0].mxu0
  %v552 = vadd.f32 %v307, %v551
  %v553 = vpop.f32.mrb[0].mxu0
  %554 = vmatprep.mubr.f32.mxu0 0.0
  %555 = vmatmul.mubr.f32.gmra.mrb[0].mxu0 %v69
  %v556 = vpop.f32.mrb[0].mxu0
  %v557 = vadd.f32 %v312, %v556
  %v558 = vpop.f32.mrb[0].mxu0
  %559 = vmatprep.mubr.f32.mxu0 0.0
  %560 = vmatmul.mubr.f32.gmra.mrb[0].mxu0 %v72
  %v561 = vpop.f32.mrb[0].mxu0
  %v562 = vadd.f32 %v317, %v561
  %v563 = vpop.f32.mrb[0].mxu0
  %564 = vmatprep.mubr.f32.mxu0 0.0
  %565 = vmatmul.mubr.f32.gmra.mrb[0].mxu0 %v75
  %v566 = vpop.f32.mrb[0].mxu0
  %v567 = vadd.f32 %v322, %v566
  %v568 = vpop.f32.mrb[0].mxu0
  %569 = vmatprep.mubr.f32.mxu0 0.0
  %570 = vmatmul.mubr.f32.gmra.mrb[0].mxu0 %v78
  %v571 = vpop.f32.mrb[0].mxu0
  %v572 = vadd.f32 %v327, %v571
  %v573 = vpop.f32.mrb[0].mxu0
  %574 = vmatprep.mubr.f32.mxu0 0.0
  %575 = vmatmul.mubr.f32.gmra.mrb[0].mxu0 %v81
  %v576 = vpop.f32.mrb[0].mxu0
  %v577 = vadd.f32 %v332, %v576
  %v578 = vpop.f32.mrb[0].mxu0
  %579 = vmatprep.mubr.f32.mxu0 0.0
  %580 = vmatmul.mubr.f32.gmra.mrb[0].mxu0 %v84
  %v581 = vpop.f32.mrb[0].mxu0
  %v582 = vadd.f32 %v337, %v581
  %v583 = vpop.f32.mrb[0].mxu0
  %584 = vmatprep.mubr.f32.mxu0 0.0
  %585 = vmatmul.mubr.f32.gmra.mrb[0].mxu0 %v87
  %v586 = vpop.f32.mrb[0].mxu0
  %v587 = vadd.f32 %v342, %v586
  %v588 = vpop.f32.mrb[0].mxu0
  %589 = vmatprep.mubr.f32.mxu0 0.0
  %590 = vmatmul.mubr.f32.gmra.mrb[0].mxu0 %v90
  %v591 = vpop.f32.mrb[0].mxu0
  %v592 = vadd.f32 %v347, %v591
  %v593 = vpop.f32.mrb[0].mxu0
  %594 = vmatprep.mubr.f32.mxu0 0.0
  %595 = vmatmul.mubr.f32.gmra.mrb[0].mxu0 %v93
  %v596 = vpop.f32.mrb[0].mxu0
  %v597 = vadd.f32 %v352, %v596
  %v598 = vpop.f32.mrb[0].mxu0
  %599 = vmatprep.mubr.f32.mxu0 0.0
  %600 = vmatmul.mubr.f32.gmra.mrb[0].mxu0 %v96
  %v601 = vpop.f32.mrb[0].mxu0
  %v602 = vadd.f32 %v357, %v601
  %v603 = vpop.f32.mrb[0].mxu0
  %604 = vmatprep.mubr.f32.mxu0 0.0
  %605 = vmatmul.mubr.f32.gmra.mrb[0].mxu0 %v99
  %v606 = vpop.f32.mrb[0].mxu0
  %v607 = vadd.f32 %v362, %v606
  %v608 = vpop.f32.mrb[0].mxu0
  %609 = vmatprep.mubr.f32.mxu0 0.0
  %610 = vmatmul.mubr.f32.gmra.mrb[0].mxu0 %v102
  %v611 = vpop.f32.mrb[0].mxu0
  %v612 = vadd.f32 %v367, %v611
  %v613 = vpop.f32.mrb[0].mxu0
  %614 = vmatprep.mubr.f32.mxu0 0.0
  %615 = vmatmul.mubr.f32.gmra.mrb[0].mxu0 %v105
  %v616 = vpop.f32.mrb[0].mxu0
  %v617 = vadd.f32 %v372, %v616
  %v618 = vpop.f32.mrb[0].mxu0
  %619 = vmatprep.mubr.f32.mxu0 0.0
  %620 = vmatmul.mubr.f32.gmra.mrb[0].mxu0 %v108
  %v621 = vpop.f32.mrb[0].mxu0
  %v622 = vadd.f32 %v377, %v621
  %v623 = vpop.f32.mrb[0].mxu0
  %624 = vmatprep.mubr.f32.mxu0 0.0
  %625 = vmatmul.mubr.f32.gmra.mrb[0].mxu0 %v111
  %v626 = vpop.f32.mrb[0].mxu0
  %v627 = vadd.f32 %v382, %v626
  %v628 = vpop.f32.mrb[0].mxu0
  %629 = vmatprep.mubr.f32.mxu0 0.0
  %630 = vmatmul.mubr.f32.gmra.mrb[0].mxu0 %v114
  %v631 = vpop.f32.mrb[0].mxu0
  %v632 = vadd.f32 %v387, %v631
  %v633 = vpop.f32.mrb[0].mxu0
  %634 = vmatprep.mubr.f32.mxu0 0.0
  %635 = vmatmul.mubr.f32.gmra.mrb[0].mxu0 %v117
  %v636 = vpop.f32.mrb[0].mxu0
  %v637 = vadd.f32 %v392, %v636
  %v638 = vpop.f32.mrb[0].mxu0
  %639 = vmatprep.mubr.f32.mxu0 0.0
  %640 = vmatmul.mubr.f32.gmra.mrb[0].mxu0 %v120
  %v641 = vpop.f32.mrb[0].mxu0
  %v642 = vadd.f32 %v397, %v641
  %v643 = vpop.f32.mrb[0].mxu0
  %644 = vmatprep.mubr.f32.mxu0 0.0
  %645 = vmatmul.mubr.f32.gmra.mrb[0].mxu0 %v123
  %v646 = vpop.f32.mrb[0].mxu0
  %v647 = vadd.f32 %v402, %v646
  %v648 = vpop.f32.mrb[0].mxu0
  %649 = vmatprep.mubr.f32.mxu0 0.0
  %650 = vmatmul.mubr.f32.gmra.mrb[0].mxu0 %v126
  %v651 = vpop.f32.mrb[0].mxu0
  %v652 = vadd.f32 %v407, %v651
  %v653 = vpop.f32.mrb[0].mxu0
  %654 = vmatprep.mubr.f32.mxu0 0.0
  %655 = vmatmul.mubr.f32.gmra.mrb[0].mxu0 %v129
  %v656 = vpop.f32.mrb[0].mxu0
  %v657 = vadd.f32 %v412, %v656
  %v658 = vpop.f32.mrb[0].mxu0
  %659 = vmatprep.mubr.f32.mxu0 0.0
  %660 = vmatmul.mubr.f32.gmra.mrb[0].mxu0 %v132
  %v661 = vpop.f32.mrb[0].mxu0
  %v662 = vadd.f32 %v417, %v661
  %v663 = vpop.f32.mrb[0].mxu0
  %664 = vmatprep.mubr.f32.mxu0 0.0
  %665 = vmatmul.mubr.f32.gmra.mrb[0].mxu0 %v135
  %v666 = vpop.f32.mrb[0].mxu0
  %v667 = vadd.f32 %v422, %v666
  %v668 = vpop.f32.mrb[0].mxu0
  %669 = vmatprep.mubr.f32.mxu0 0.0
  %670 = vmatmul.mubr.f32.gmra.mrb[0].mxu0 %v138
  %v671 = vpop.f32.mrb[0].mxu0
  %v672 = vadd.f32 %v427, %v671
  %v673 = vpop.f32.mrb[0].mxu0
  %674 = vmatprep.mubr.f32.mxu0 0.0
  %675 = vmatmul.mubr.f32.gmra.mrb[0].mxu0 %v141
  %v676 = vpop.f32.mrb[0].mxu0
  %v677 = vadd.f32 %v432, %v676
  %v678 = vpop.f32.mrb[0].mxu0
  %679 = vdwg.mxu0
  %v680 = vld [vmem:[%s1] sm:$0xff]
  %v681 = vld [vmem:[%s1 + $0x8] sm:$0xff]
  %v682 = vld [vmem:[%s1 + $0x10] sm:$0xff]
  %v683 = vld [vmem:[%s1 + $0x18] sm:$0xff]
  %v684 = vld [vmem:[%s1 + $0x20] sm:$0xff]
  %v685 = vld [vmem:[%s1 + $0x28] sm:$0xff]
  %v686 = vld [vmem:[%s1 + $0x30] sm:$0xff]
  %v687 = vld [vmem:[%s1 + $0x38] sm:$0xff]
  %v688 = vld [vmem:[%s1 + $0x40] sm:$0xff]
  %v689 = vld [vmem:[%s1 + $0x48] sm:$0xff]
  %v690 = vld [vmem:[%s1 + $0x50] sm:$0xff]
  %v691 = vld [vmem:[%s1 + $0x58] sm:$0xff]
  %v692 = vld [vmem:[%s1 + $0x60] sm:$0xff]
  %v693 = vld [vmem:[%s1 + $0x68] sm:$0xff]
  %v694 = vld [vmem:[%s1 + $0x70] sm:$0xff]
  %v695 = vld [vmem:[%s1 + $0x78] sm:$0xff]
  %v696 = vld [vmem:[%s1 + $0x80] sm:$0xff]
  %v697 = vld [vmem:[%s1 + $0x88] sm:$0xff]
  %v698 = vld [vmem:[%s1 + $0x90] sm:$0xff]
  %v699 = vld [vmem:[%s1 + $0x98] sm:$0xff]
  %v700 = vld [vmem:[%s1 + $0xa0] sm:$0xff]
  %v701 = vld [vmem:[%s1 + $0xa8] sm:$0xff]
  %v702 = vld [vmem:[%s1 + $0xb0] sm:$0xff]
  %v703 = vld [vmem:[%s1 + $0xb8] sm:$0xff]
  %v704 = vld [vmem:[%s1 + $0xc0] sm:$0xff]
  %v705 = vld [vmem:[%s1 + $0xc8] sm:$0xff]
  %v706 = vld [vmem:[%s1 + $0xd0] sm:$0xff]
  %v707 = vld [vmem:[%s1 + $0xd8] sm:$0xff]
  %v708 = vld [vmem:[%s1 + $0xe0] sm:$0xff]
  %v709 = vld [vmem:[%s1 + $0xe8] sm:$0xff]
  %v710 = vld [vmem:[%s1 + $0xf0] sm:$0xff]
  %v711 = vld [vmem:[%s1 + $0xf8] sm:$0xff]
  %v712 = vld [vmem:[%s1 + $0x100] sm:$0xff]
  %v713 = vld [vmem:[%s1 + $0x108] sm:$0xff]
  %v714 = vld [vmem:[%s1 + $0x110] sm:$0xff]
  %v715 = vld [vmem:[%s1 + $0x118] sm:$0xff]
  %v716 = vld [vmem:[%s1 + $0x120] sm:$0xff]
  %v717 = vld [vmem:[%s1 + $0x128] sm:$0xff]
  %v718 = vld [vmem:[%s1 + $0x130] sm:$0xff]
  %v719 = vld [vmem:[%s1 + $0x138] sm:$0xff]
  %v720 = vld [vmem:[%s1 + $0x140] sm:$0xff]
  %v721 = vld [vmem:[%s1 + $0x148] sm:$0xff]
  %v722 = vld [vmem:[%s1 + $0x150] sm:$0xff]
  %v723 = vld [vmem:[%s1 + $0x158] sm:$0xff]
  %v724 = vld [vmem:[%s1 + $0x160] sm:$0xff]
  %v725 = vld [vmem:[%s1 + $0x168] sm:$0xff]
  %v726 = vld [vmem:[%s1 + $0x170] sm:$0xff]
  %v727 = vld [vmem:[%s1 + $0x178] sm:$0xff]
  %v728 = vld [vmem:[%s1 + $0x180] sm:$0xff]
  %v729 = vld [vmem:[%s1 + $0x188] sm:$0xff]
  %v730 = vld [vmem:[%s1 + $0x190] sm:$0xff]
  %v731 = vld [vmem:[%s1 + $0x198] sm:$0xff]
  %v732 = vld [vmem:[%s1 + $0x1a0] sm:$0xff]
  %v733 = vld [vmem:[%s1 + $0x1a8] sm:$0xff]
  %v734 = vld [vmem:[%s1 + $0x1b0] sm:$0xff]
  %v735 = vld [vmem:[%s1 + $0x1b8] sm:$0xff]
  %v736 = vld [vmem:[%s1 + $0x1c0] sm:$0xff]
  %v737 = vld [vmem:[%s1 + $0x1c8] sm:$0xff]
  %v738 = vld [vmem:[%s1 + $0x1d0] sm:$0xff]
  %v739 = vld [vmem:[%s1 + $0x1d8] sm:$0xff]
  %v740 = vld [vmem:[%s1 + $0x1e0] sm:$0xff]
  %v741 = vld [vmem:[%s1 + $0x1e8] sm:$0xff]
  %v742 = vld [vmem:[%s1 + $0x1f0] sm:$0xff]
  %v743 = vld [vmem:[%s1 + $0x1f8] sm:$0xff]
  %v744 = vld [vmem:[%s1 + $0x200] sm:$0xff]
  %v745 = vld [vmem:[%s1 + $0x208] sm:$0xff]
  %v746 = vld [vmem:[%s1 + $0x210] sm:$0xff]
  %v747 = vld [vmem:[%s1 + $0x218] sm:$0xff]
  %v748 = vld [vmem:[%s4] sm:$0xff]
  %v749 = vld [vmem:[%s4 + $0x8] sm:$0xff]
  %v750 = vld [vmem:[%s4 + $0x10] sm:$0xff]
  %v751 = vld [vmem:[%s4 + $0x18] sm:$0xff]
  %v752 = vld [vmem:[%s4 + $0x20] sm:$0xff]
  %v753 = vld [vmem:[%s4 + $0x28] sm:$0xff]
  %v754 = vld [vmem:[%s4 + $0x30] sm:$0xff]
  %v755 = vld [vmem:[%s4 + $0x38] sm:$0xff]
  %v756 = vld [vmem:[%s4 + $0x40] sm:$0xff]
  %v757 = vld [vmem:[%s4 + $0x48] sm:$0xff]
  %v758 = vld [vmem:[%s4 + $0x50] sm:$0xff]
  %v759 = vld [vmem:[%s4 + $0x58] sm:$0xff]
  %v760 = vld [vmem:[%s4 + $0x60] sm:$0xff]
  %v761 = vld [vmem:[%s4 + $0x68] sm:$0xff]
  %v762 = vld [vmem:[%s4 + $0x70] sm:$0xff]
  %v763 = vld [vmem:[%s4 + $0x78] sm:$0xff]
  %v764 = vld [vmem:[%s4 + $0x80] sm:$0xff]
  %v765 = vld [vmem:[%s4 + $0x88] sm:$0xff]
  %v766 = vld [vmem:[%s4 + $0x90] sm:$0xff]
  %v767 = vld [vmem:[%s4 + $0x98] sm:$0xff]
  %v768 = vld [vmem:[%s4 + $0xa0] sm:$0xff]
  %v769 = vld [vmem:[%s4 + $0xa8] sm:$0xff]
  %v770 = vld [vmem:[%s4 + $0xb0] sm:$0xff]
  %v771 = vld [vmem:[%s4 + $0xb8] sm:$0xff]
  %v772 = vld [vmem:[%s4 + $0xc0] sm:$0xff]
  %v773 = vld [vmem:[%s4 + $0xc8] sm:$0xff]
  %v774 = vld [vmem:[%s4 + $0xd0] sm:$0xff]
  %v775 = vld [vmem:[%s4 + $0xd8] sm:$0xff]
  %v776 = vld [vmem:[%s4 + $0xe0] sm:$0xff]
  %v777 = vld [vmem:[%s4 + $0xe8] sm:$0xff]
  %v778 = vld [vmem:[%s4 + $0xf0] sm:$0xff]
  %v779 = vld [vmem:[%s4 + $0xf8] sm:$0xff]
  %780 = vmatprep.subr.mxu0 0.0
  %781 = vmatpush1.msra.mxu0 %v748
  %782 = vmatprep.subr.mxu0 0.0
  %783 = vmatpush1.msra.mxu0 %v749
  %784 = vmatprep.subr.mxu0 0.0
  %785 = vmatpush1.msra.mxu0 %v750
  %786 = vmatprep.subr.mxu0 0.0
  %787 = vmatpush1.msra.mxu0 %v751
  %788 = vmatprep.subr.mxu0 0.0
  %789 = vmatpush1.msra.mxu0 %v752
  %790 = vmatprep.subr.mxu0 0.0
  %791 = vmatpush1.msra.mxu0 %v753
  %792 = vmatprep.subr.mxu0 0.0
  %793 = vmatpush1.msra.mxu0 %v754
  %794 = vmatprep.subr.mxu0 0.0
  %795 = vmatpush1.msra.mxu0 %v755
  %796 = vmatprep.subr.mxu0 0.0
  %797 = vmatpush1.msra.mxu0 %v756
  %798 = vmatprep.subr.mxu0 0.0
  %799 = vmatpush1.msra.mxu0 %v757
  %800 = vmatprep.subr.mxu0 0.0
  %801 = vmatpush1.msra.mxu0 %v758
  %802 = vmatprep.subr.mxu0 0.0
  %803 = vmatpush1.msra.mxu0 %v759
  %804 = vmatprep.subr.mxu0 0.0
  %805 = vmatpush1.msra.mxu0 %v760
  %806 = vmatprep.subr.mxu0 0.0
  %807 = vmatpush1.msra.mxu0 %v761
  %808 = vmatprep.subr.mxu0 0.0
  %809 = vmatpush1.msra.mxu0 %v762
  %810 = vmatprep.subr.mxu0 0.0
  %811 = vmatpush1.msra.mxu0 %v763
  %812 = vmatprep.subr.mxu0 0.0
  %813 = vmatpush1.msra.mxu0 %v764
  %814 = vmatprep.subr.mxu0 0.0
  %815 = vmatpush1.msra.mxu0 %v765
  %816 = vmatprep.subr.mxu0 0.0
  %817 = vmatpush1.msra.mxu0 %v766
  %818 = vmatprep.subr.mxu0 0.0
  %819 = vmatpush1.msra.mxu0 %v767
  %820 = vmatprep.subr.mxu0 0.0
  %821 = vmatpush1.msra.mxu0 %v768
  %822 = vmatprep.subr.mxu0 0.0
  %823 = vmatpush1.msra.mxu0 %v769
  %824 = vmatprep.subr.mxu0 0.0
  %825 = vmatpush1.msra.mxu0 %v770
  %826 = vmatprep.subr.mxu0 0.0
  %827 = vmatpush1.msra.mxu0 %v771
  %828 = vmatprep.subr.mxu0 0.0
  %829 = vmatpush1.msra.mxu0 %v772
  %830 = vmatprep.subr.mxu0 0.0
  %831 = vmatpush1.msra.mxu0 %v773
  %832 = vmatprep.subr.mxu0 0.0
  %833 = vmatpush1.msra.mxu0 %v774
  %834 = vmatprep.subr.mxu0 0.0
  %835 = vmatpush1.msra.mxu0 %v775
  %836 = vmatprep.subr.mxu0 0.0
  %837 = vmatpush1.msra.mxu0 %v776
  %838 = vmatprep.subr.mxu0 0.0
  %839 = vmatpush1.msra.mxu0 %v777
  %840 = vmatprep.subr.mxu0 0.0
  %841 = vmatpush1.msra.mxu0 %v778
  %842 = vmatprep.subr.mxu0 0.0
  %843 = vmatpush1.msra.mxu0 %v779
  %844 = vmatprep.mubr.f32.mxu0 %v681
  %845 = vmatmul.mubr.f32.gmra.mrb[0].mxu0 %v680
  %v846 = vpop.f32.mrb[0].mxu0
  %v847 = vadd.f32 0.0, %v846
  %v848 = vpop.f32.mrb[0].mxu0
  %849 = vmatprep.mubr.f32.mxu0 %v683
  %850 = vmatmul.mubr.f32.gmra.mrb[0].mxu0 %v682
  %v851 = vpop.f32.mrb[0].mxu0
  %v852 = vadd.f32 0.0, %v851
  %v853 = vpop.f32.mrb[0].mxu0
  %854 = vmatprep.mubr.f32.mxu0 %v685
  %855 = vmatmul.mubr.f32.gmra.mrb[0].mxu0 %v684
  %v856 = vpop.f32.mrb[0].mxu0
  %v857 = vadd.f32 0.0, %v856
  %v858 = vpop.f32.mrb[0].mxu0
  %859 = vmatprep.mubr.f32.mxu0 %v687
  %860 = vmatmul.mubr.f32.gmra.mrb[0].mxu0 %v686
  %v861 = vpop.f32.mrb[0].mxu0
  %v862 = vadd.f32 0.0, %v861
  %v863 = vpop.f32.mrb[0].mxu0
  %864 = vmatprep.mubr.f32.mxu0 %v689
  %865 = vmatmul.mubr.f32.gmra.mrb[0].mxu0 %v688
  %v866 = vpop.f32.mrb[0].mxu0
  %v867 = vadd.f32 0.0, %v866
  %v868 = vpop.f32.mrb[0].mxu0
  %869 = vmatprep.mubr.f32.mxu0 %v691
  %870 = vmatmul.mubr.f32.gmra.mrb[0].mxu0 %v690
  %v871 = vpop.f32.mrb[0].mxu0
  %v872 = vadd.f32 0.0, %v871
  %v873 = vpop.f32.mrb[0].mxu0
  %874 = vmatprep.mubr.f32.mxu0 %v693
  %875 = vmatmul.mubr.f32.gmra.mrb[0].mxu0 %v692
  %v876 = vpop.f32.mrb[0].mxu0
  %v877 = vadd.f32 0.0, %v876
  %v878 = vpop.f32.mrb[0].mxu0
  %879 = vmatprep.mubr.f32.mxu0 %v695
  %880 = vmatmul.mubr.f32.gmra.mrb[0].mxu0 %v694
  %v881 = vpop.f32.mrb[0].mxu0
  %v882 = vadd.f32 0.0, %v881
  %v883 = vpop.f32.mrb[0].mxu0
  %884 = vmatprep.mubr.f32.mxu0 %v697
  %885 = vmatmul.mubr.f32.gmra.mrb[0].mxu0 %v696
  %v886 = vpop.f32.mrb[0].mxu0
  %v887 = vadd.f32 0.0, %v886
  %v888 = vpop.f32.mrb[0].mxu0
  %889 = vmatprep.mubr.f32.mxu0 %v699
  %890 = vmatmul.mubr.f32.gmra.mrb[0].mxu0 %v698
  %v891 = vpop.f32.mrb[0].mxu0
  %v892 = vadd.f32 0.0, %v891
  %v893 = vpop.f32.mrb[0].mxu0
  %894 = vmatprep.mubr.f32.mxu0 %v701
  %895 = vmatmul.mubr.f32.gmra.mrb[0].mxu0 %v700
  %v896 = vpop.f32.mrb[0].mxu0
  %v897 = vadd.f32 0.0, %v896
  %v898 = vpop.f32.mrb[0].mxu0
  %899 = vmatprep.mubr.f32.mxu0 %v703
  %900 = vmatmul.mubr.f32.gmra.mrb[0].mxu0 %v702
  %v901 = vpop.f32.mrb[0].mxu0
  %v902 = vadd.f32 0.0, %v901
  %v903 = vpop.f32.mrb[0].mxu0
  %904 = vmatprep.mubr.f32.mxu0 %v705
  %905 = vmatmul.mubr.f32.gmra.mrb[0].mxu0 %v704
  %v906 = vpop.f32.mrb[0].mxu0
  %v907 = vadd.f32 0.0, %v906
  %v908 = vpop.f32.mrb[0].mxu0
  %909 = vmatprep.mubr.f32.mxu0 %v707
  %910 = vmatmul.mubr.f32.gmra.mrb[0].mxu0 %v706
  %v911 = vpop.f32.mrb[0].mxu0
  %v912 = vadd.f32 0.0, %v911
  %v913 = vpop.f32.mrb[0].mxu0
  %914 = vmatprep.mubr.f32.mxu0 %v709
  %915 = vmatmul.mubr.f32.gmra.mrb[0].mxu0 %v708
  %v916 = vpop.f32.mrb[0].mxu0
  %v917 = vadd.f32 0.0, %v916
  %v918 = vpop.f32.mrb[0].mxu0
  %919 = vmatprep.mubr.f32.mxu0 %v711
  %920 = vmatmul.mubr.f32.gmra.mrb[0].mxu0 %v710
  %v921 = vpop.f32.mrb[0].mxu0
  %v922 = vadd.f32 0.0, %v921
  %v923 = vpop.f32.mrb[0].mxu0
  %924 = vmatprep.mubr.f32.mxu0 %v713
  %925 = vmatmul.mubr.f32.gmra.mrb[0].mxu0 %v712
  %v926 = vpop.f32.mrb[0].mxu0
  %v927 = vadd.f32 0.0, %v926
  %v928 = vpop.f32.mrb[0].mxu0
  %929 = vmatprep.mubr.f32.mxu0 %v715
  %930 = vmatmul.mubr.f32.gmra.mrb[0].mxu0 %v714
  %v931 = vpop.f32.mrb[0].mxu0
  %v932 = vadd.f32 0.0, %v931
  %v933 = vpop.f32.mrb[0].mxu0
  %934 = vmatprep.mubr.f32.mxu0 %v717
  %935 = vmatmul.mubr.f32.gmra.mrb[0].mxu0 %v716
  %v936 = vpop.f32.mrb[0].mxu0
  %v937 = vadd.f32 0.0, %v936
  %v938 = vpop.f32.mrb[0].mxu0
  %939 = vmatprep.mubr.f32.mxu0 %v719
  %940 = vmatmul.mubr.f32.gmra.mrb[0].mxu0 %v718
  %v941 = vpop.f32.mrb[0].mxu0
  %v942 = vadd.f32 0.0, %v941
  %v943 = vpop.f32.mrb[0].mxu0
  %944 = vmatprep.mubr.f32.mxu0 %v721
  %945 = vmatmul.mubr.f32.gmra.mrb[0].mxu0 %v720
  %v946 = vpop.f32.mrb[0].mxu0
  %v947 = vadd.f32 0.0, %v946
  %v948 = vpop.f32.mrb[0].mxu0
  %949 = vmatprep.mubr.f32.mxu0 %v723
  %950 = vmatmul.mubr.f32.gmra.mrb[0].mxu0 %v722
  %v951 = vpop.f32.mrb[0].mxu0
  %v952 = vadd.f32 0.0, %v951
  %v953 = vpop.f32.mrb[0].mxu0
  %954 = vmatprep.mubr.f32.mxu0 %v725
  %955 = vmatmul.mubr.f32.gmra.mrb[0].mxu0 %v724
  %v956 = vpop.f32.mrb[0].mxu0
  %v957 = vadd.f32 0.0, %v956
  %v958 = vpop.f32.mrb[0].mxu0
  %959 = vmatprep.mubr.f32.mxu0 %v727
  %960 = vmatmul.mubr.f32.gmra.mrb[0].mxu0 %v726
  %v961 = vpop.f32.mrb[0].mxu0
  %v962 = vadd.f32 0.0, %v961
  %v963 = vpop.f32.mrb[0].mxu0
  %964 = vmatprep.mubr.f32.mxu0 %v729
  %965 = vmatmul.mubr.f32.gmra.mrb[0].mxu0 %v728
  %v966 = vpop.f32.mrb[0].mxu0
  %v967 = vadd.f32 0.0, %v966
  %v968 = vpop.f32.mrb[0].mxu0
  %969 = vmatprep.mubr.f32.mxu0 %v731
  %970 = vmatmul.mubr.f32.gmra.mrb[0].mxu0 %v730
  %v971 = vpop.f32.mrb[0].mxu0
  %v972 = vadd.f32 0.0, %v971
  %v973 = vpop.f32.mrb[0].mxu0
  %974 = vmatprep.mubr.f32.mxu0 %v733
  %975 = vmatmul.mubr.f32.gmra.mrb[0].mxu0 %v732
  %v976 = vpop.f32.mrb[0].mxu0
  %v977 = vadd.f32 0.0, %v976
  %v978 = vpop.f32.mrb[0].mxu0
  %979 = vmatprep.mubr.f32.mxu0 %v735
  %980 = vmatmul.mubr.f32.gmra.mrb[0].mxu0 %v734
  %v981 = vpop.f32.mrb[0].mxu0
  %v982 = vadd.f32 0.0, %v981
  %v983 = vpop.f32.mrb[0].mxu0
  %984 = vmatprep.mubr.f32.mxu0 %v737
  %985 = vmatmul.mubr.f32.gmra.mrb[0].mxu0 %v736
  %v986 = vpop.f32.mrb[0].mxu0
  %v987 = vadd.f32 0.0, %v986
  %v988 = vpop.f32.mrb[0].mxu0
  %989 = vmatprep.mubr.f32.mxu0 %v739
  %990 = vmatmul.mubr.f32.gmra.mrb[0].mxu0 %v738
  %v991 = vpop.f32.mrb[0].mxu0
  %v992 = vadd.f32 0.0, %v991
  %v993 = vpop.f32.mrb[0].mxu0
  %994 = vmatprep.mubr.f32.mxu0 %v741
  %995 = vmatmul.mubr.f32.gmra.mrb[0].mxu0 %v740
  %v996 = vpop.f32.mrb[0].mxu0
  %v997 = vadd.f32 0.0, %v996
  %v998 = vpop.f32.mrb[0].mxu0
  %999 = vmatprep.mubr.f32.mxu0 %v743
  %1000 = vmatmul.mubr.f32.gmra.mrb[0].mxu0 %v742
  %v1001 = vpop.f32.mrb[0].mxu0
  %v1002 = vadd.f32 0.0, %v1001
  %v1003 = vpop.f32.mrb[0].mxu0
  %1004 = vmatprep.mubr.f32.mxu0 %v745
  %1005 = vmatmul.mubr.f32.gmra.mrb[0].mxu0 %v744
  %v1006 = vpop.f32.mrb[0].mxu0
  %v1007 = vadd.f32 0.0, %v1006
  %v1008 = vpop.f32.mrb[0].mxu0
  %1009 = vmatprep.mubr.f32.mxu0 %v747
  %1010 = vmatmul.mubr.f32.gmra.mrb[0].mxu0 %v746
  %v1011 = vpop.f32.mrb[0].mxu0
  %v1012 = vadd.f32 0.0, %v1011
  %v1013 = vpop.f32.mrb[0].mxu0
  %1014 = vdwg.mxu0
  %v1015 = vld [vmem:[%s2] sm:$0xff]
  %v1016 = vld [vmem:[%s2 + $0x8] sm:$0xff]
  %v1017 = vld [vmem:[%s2 + $0x10] sm:$0xff]
  %v1018 = vld [vmem:[%s2 + $0x18] sm:$0xff]
  %v1019 = vld [vmem:[%s2 + $0x20] sm:$0xff]
  %v1020 = vld [vmem:[%s2 + $0x28] sm:$0xff]
  %v1021 = vld [vmem:[%s2 + $0x30] sm:$0xff]
  %v1022 = vld [vmem:[%s2 + $0x38] sm:$0xff]
  %v1023 = vld [vmem:[%s2 + $0x40] sm:$0xff]
  %v1024 = vld [vmem:[%s2 + $0x48] sm:$0xff]
  %v1025 = vld [vmem:[%s2 + $0x50] sm:$0xff]
  %v1026 = vld [vmem:[%s2 + $0x58] sm:$0xff]
  %v1027 = vld [vmem:[%s2 + $0x60] sm:$0xff]
  %v1028 = vld [vmem:[%s2 + $0x68] sm:$0xff]
  %v1029 = vld [vmem:[%s2 + $0x70] sm:$0xff]
  %v1030 = vld [vmem:[%s2 + $0x78] sm:$0xff]
  %v1031 = vld [vmem:[%s2 + $0x80] sm:$0xff]
  %v1032 = vld [vmem:[%s2 + $0x88] sm:$0xff]
  %v1033 = vld [vmem:[%s2 + $0x90] sm:$0xff]
  %v1034 = vld [vmem:[%s2 + $0x98] sm:$0xff]
  %v1035 = vld [vmem:[%s2 + $0xa0] sm:$0xff]
  %v1036 = vld [vmem:[%s2 + $0xa8] sm:$0xff]
  %v1037 = vld [vmem:[%s2 + $0xb0] sm:$0xff]
  %v1038 = vld [vmem:[%s2 + $0xb8] sm:$0xff]
  %v1039 = vld [vmem:[%s2 + $0xc0] sm:$0xff]
  %v1040 = vld [vmem:[%s2 + $0xc8] sm:$0xff]
  %v1041 = vld [vmem:[%s2 + $0xd0] sm:$0xff]
  %v1042 = vld [vmem:[%s2 + $0xd8] sm:$0xff]
  %v1043 = vld [vmem:[%s2 + $0xe0] sm:$0xff]
  %v1044 = vld [vmem:[%s2 + $0xe8] sm:$0xff]
  %v1045 = vld [vmem:[%s2 + $0xf0] sm:$0xff]
  %v1046 = vld [vmem:[%s2 + $0xf8] sm:$0xff]
  %v1047 = vld [vmem:[%s2 + $0x100] sm:$0xff]
  %v1048 = vld [vmem:[%s2 + $0x108] sm:$0xff]
  %v1049 = vld [vmem:[%s2 + $0x110] sm:$0xff]
  %v1050 = vld [vmem:[%s2 + $0x118] sm:$0xff]
  %v1051 = vld [vmem:[%s2 + $0x120] sm:$0xff]
  %v1052 = vld [vmem:[%s2 + $0x128] sm:$0xff]
  %v1053 = vld [vmem:[%s2 + $0x130] sm:$0xff]
  %v1054 = vld [vmem:[%s2 + $0x138] sm:$0xff]
  %v1055 = vld [vmem:[%s2 + $0x140] sm:$0xff]
  %v1056 = vld [vmem:[%s2 + $0x148] sm:$0xff]
  %v1057 = vld [vmem:[%s2 + $0x150] sm:$0xff]
  %v1058 = vld [vmem:[%s2 + $0x158] sm:$0xff]
  %v1059 = vld [vmem:[%s2 + $0x160] sm:$0xff]
  %v1060 = vld [vmem:[%s2 + $0x168] sm:$0xff]
  %v1061 = vld [vmem:[%s2 + $0x170] sm:$0xff]
  %v1062 = vld [vmem:[%s2 + $0x178] sm:$0xff]
  %v1063 = vld [vmem:[%s2 + $0x180] sm:$0xff]
  %v1064 = vld [vmem:[%s2 + $0x188] sm:$0xff]
  %v1065 = vld [vmem:[%s2 + $0x190] sm:$0xff]
  %v1066 = vld [vmem:[%s2 + $0x198] sm:$0xff]
  %v1067 = vld [vmem:[%s2 + $0x1a0] sm:$0xff]
  %v1068 = vld [vmem:[%s2 + $0x1a8] sm:$0xff]
  %v1069 = vld [vmem:[%s2 + $0x1b0] sm:$0xff]
  %v1070 = vld [vmem:[%s2 + $0x1b8] sm:$0xff]
  %v1071 = vld [vmem:[%s2 + $0x1c0] sm:$0xff]
  %v1072 = vld [vmem:[%s2 + $0x1c8] sm:$0xff]
  %v1073 = vld [vmem:[%s2 + $0x1d0] sm:$0xff]
  %v1074 = vld [vmem:[%s2 + $0x1d8] sm:$0xff]
  %v1075 = vld [vmem:[%s2 + $0x1e0] sm:$0xff]
  %v1076 = vld [vmem:[%s2 + $0x1e8] sm:$0xff]
  %v1077 = vld [vmem:[%s2 + $0x1f0] sm:$0xff]
  %v1078 = vld [vmem:[%s2 + $0x1f8] sm:$0xff]
  %v1079 = vld [vmem:[%s2 + $0x200] sm:$0xff]
  %v1080 = vld [vmem:[%s2 + $0x208] sm:$0xff]
  %v1081 = vld [vmem:[%s2 + $0x210] sm:$0xff]
  %v1082 = vld [vmem:[%s2 + $0x218] sm:$0xff]
  %v1083 = vld [vmem:[%s5] sm:$0xff]
  %v1084 = vld [vmem:[%s5 + $0x8] sm:$0xff]
  %v1085 = vld [vmem:[%s5 + $0x10] sm:$0xff]
  %v1086 = vld [vmem:[%s5 + $0x18] sm:$0xff]
  %v1087 = vld [vmem:[%s5 + $0x20] sm:$0xff]
  %v1088 = vld [vmem:[%s5 + $0x28] sm:$0xff]
  %v1089 = vld [vmem:[%s5 + $0x30] sm:$0xff]
  %v1090 = vld [vmem:[%s5 + $0x38] sm:$0xff]
  %v1091 = vld [vmem:[%s5 + $0x40] sm:$0xff]
  %v1092 = vld [vmem:[%s5 + $0x48] sm:$0xff]
  %v1093 = vld [vmem:[%s5 + $0x50] sm:$0xff]
  %v1094 = vld [vmem:[%s5 + $0x58] sm:$0xff]
  %v1095 = vld [vmem:[%s5 + $0x60] sm:$0xff]
  %v1096 = vld [vmem:[%s5 + $0x68] sm:$0xff]
  %v1097 = vld [vmem:[%s5 + $0x70] sm:$0xff]
  %v1098 = vld [vmem:[%s5 + $0x78] sm:$0xff]
  %v1099 = vld [vmem:[%s5 + $0x80] sm:$0xff]
  %v1100 = vld [vmem:[%s5 + $0x88] sm:$0xff]
  %v1101 = vld [vmem:[%s5 + $0x90] sm:$0xff]
  %v1102 = vld [vmem:[%s5 + $0x98] sm:$0xff]
  %v1103 = vld [vmem:[%s5 + $0xa0] sm:$0xff]
  %v1104 = vld [vmem:[%s5 + $0xa8] sm:$0xff]
  %v1105 = vld [vmem:[%s5 + $0xb0] sm:$0xff]
  %v1106 = vld [vmem:[%s5 + $0xb8] sm:$0xff]
  %v1107 = vld [vmem:[%s5 + $0xc0] sm:$0xff]
  %v1108 = vld [vmem:[%s5 + $0xc8] sm:$0xff]
  %v1109 = vld [vmem:[%s5 + $0xd0] sm:$0xff]
  %v1110 = vld [vmem:[%s5 + $0xd8] sm:$0xff]
  %v1111 = vld [vmem:[%s5 + $0xe0] sm:$0xff]
  %v1112 = vld [vmem:[%s5 + $0xe8] sm:$0xff]
  %v1113 = vld [vmem:[%s5 + $0xf0] sm:$0xff]
  %v1114 = vld [vmem:[%s5 + $0xf8] sm:$0xff]
  %1115 = vmatprep.subr.mxu0 0.0
  %1116 = vmatpush1.msra.mxu0 %v1083
  %1117 = vmatprep.subr.mxu0 0.0
  %1118 = vmatpush1.msra.mxu0 %v1084
  %1119 = vmatprep.subr.mxu0 0.0
  %1120 = vmatpush1.msra.mxu0 %v1085
  %1121 = vmatprep.subr.mxu0 0.0
  %1122 = vmatpush1.msra.mxu0 %v1086
  %1123 = vmatprep.subr.mxu0 0.0
  %1124 = vmatpush1.msra.mxu0 %v1087
  %1125 = vmatprep.subr.mxu0 0.0
  %1126 = vmatpush1.msra.mxu0 %v1088
  %1127 = vmatprep.subr.mxu0 0.0
  %1128 = vmatpush1.msra.mxu0 %v1089
  %1129 = vmatprep.subr.mxu0 0.0
  %1130 = vmatpush1.msra.mxu0 %v1090
  %1131 = vmatprep.subr.mxu0 0.0
  %1132 = vmatpush1.msra.mxu0 %v1091
  %1133 = vmatprep.subr.mxu0 0.0
  %1134 = vmatpush1.msra.mxu0 %v1092
  %1135 = vmatprep.subr.mxu0 0.0
  %1136 = vmatpush1.msra.mxu0 %v1093
  %1137 = vmatprep.subr.mxu0 0.0
  %1138 = vmatpush1.msra.mxu0 %v1094
  %1139 = vmatprep.subr.mxu0 0.0
  %1140 = vmatpush1.msra.mxu0 %v1095
  %1141 = vmatprep.subr.mxu0 0.0
  %1142 = vmatpush1.msra.mxu0 %v1096
  %1143 = vmatprep.subr.mxu0 0.0
  %1144 = vmatpush1.msra.mxu0 %v1097
  %1145 = vmatprep.subr.mxu0 0.0
  %1146 = vmatpush1.msra.mxu0 %v1098
  %1147 = vmatprep.subr.mxu0 0.0
  %1148 = vmatpush1.msra.mxu0 %v1099
  %1149 = vmatprep.subr.mxu0 0.0
  %1150 = vmatpush1.msra.mxu0 %v1100
  %1151 = vmatprep.subr.mxu0 0.0
  %1152 = vmatpush1.msra.mxu0 %v1101
  %1153 = vmatprep.subr.mxu0 0.0
  %1154 = vmatpush1.msra.mxu0 %v1102
  %1155 = vmatprep.subr.mxu0 0.0
  %1156 = vmatpush1.msra.mxu0 %v1103
  %1157 = vmatprep.subr.mxu0 0.0
  %1158 = vmatpush1.msra.mxu0 %v1104
  %1159 = vmatprep.subr.mxu0 0.0
  %1160 = vmatpush1.msra.mxu0 %v1105
  %1161 = vmatprep.subr.mxu0 0.0
  %1162 = vmatpush1.msra.mxu0 %v1106
  %1163 = vmatprep.subr.mxu0 0.0
  %1164 = vmatpush1.msra.mxu0 %v1107
  %1165 = vmatprep.subr.mxu0 0.0
  %1166 = vmatpush1.msra.mxu0 %v1108
  %1167 = vmatprep.subr.mxu0 0.0
  %1168 = vmatpush1.msra.mxu0 %v1109
  %1169 = vmatprep.subr.mxu0 0.0
  %1170 = vmatpush1.msra.mxu0 %v1110
  %1171 = vmatprep.subr.mxu0 0.0
  %1172 = vmatpush1.msra.mxu0 %v1111
  %1173 = vmatprep.subr.mxu0 0.0
  %1174 = vmatpush1.msra.mxu0 %v1112
  %1175 = vmatprep.subr.mxu0 0.0
  %1176 = vmatpush1.msra.mxu0 %v1113
  %1177 = vmatprep.subr.mxu0 0.0
  %1178 = vmatpush1.msra.mxu0 %v1114
  %1179 = vmatprep.mubr.f32.mxu0 %v1016
  %1180 = vmatmul.mubr.f32.gmra.mrb[0].mxu0 %v1015
  %v1181 = vpop.f32.mrb[0].mxu0
  %v1182 = vadd.f32 0.0, %v1181
  %v1183 = vpop.f32.mrb[0].mxu0
  %1184 = vmatprep.mubr.f32.mxu0 %v1018
  %1185 = vmatmul.mubr.f32.gmra.mrb[0].mxu0 %v1017
  %v1186 = vpop.f32.mrb[0].mxu0
  %v1187 = vadd.f32 0.0, %v1186
  %v1188 = vpop.f32.mrb[0].mxu0
  %1189 = vmatprep.mubr.f32.mxu0 %v1020
  %1190 = vmatmul.mubr.f32.gmra.mrb[0].mxu0 %v1019
  %v1191 = vpop.f32.mrb[0].mxu0
  %v1192 = vadd.f32 0.0, %v1191
  %v1193 = vpop.f32.mrb[0].mxu0
  %1194 = vmatprep.mubr.f32.mxu0 %v1022
  %1195 = vmatmul.mubr.f32.gmra.mrb[0].mxu0 %v1021
  %v1196 = vpop.f32.mrb[0].mxu0
  %v1197 = vadd.f32 0.0, %v1196
  %v1198 = vpop.f32.mrb[0].mxu0
  %1199 = vmatprep.mubr.f32.mxu0 %v1024
  %1200 = vmatmul.mubr.f32.gmra.mrb[0].mxu0 %v1023
  %v1201 = vpop.f32.mrb[0].mxu0
  %v1202 = vadd.f32 0.0, %v1201
  %v1203 = vpop.f32.mrb[0].mxu0
  %1204 = vmatprep.mubr.f32.mxu0 %v1026
  %1205 = vmatmul.mubr.f32.gmra.mrb[0].mxu0 %v1025
  %v1206 = vpop.f32.mrb[0].mxu0
  %v1207 = vadd.f32 0.0, %v1206
  %v1208 = vpop.f32.mrb[0].mxu0
  %1209 = vmatprep.mubr.f32.mxu0 %v1028
  %1210 = vmatmul.mubr.f32.gmra.mrb[0].mxu0 %v1027
  %v1211 = vpop.f32.mrb[0].mxu0
  %v1212 = vadd.f32 0.0, %v1211
  %v1213 = vpop.f32.mrb[0].mxu0
  %1214 = vmatprep.mubr.f32.mxu0 %v1030
  %1215 = vmatmul.mubr.f32.gmra.mrb[0].mxu0 %v1029
  %v1216 = vpop.f32.mrb[0].mxu0
  %v1217 = vadd.f32 0.0, %v1216
  %v1218 = vpop.f32.mrb[0].mxu0
  %1219 = vmatprep.mubr.f32.mxu0 %v1032
  %1220 = vmatmul.mubr.f32.gmra.mrb[0].mxu0 %v1031
  %v1221 = vpop.f32.mrb[0].mxu0
  %v1222 = vadd.f32 0.0, %v1221
  %v1223 = vpop.f32.mrb[0].mxu0
  %1224 = vmatprep.mubr.f32.mxu0 %v1034
  %1225 = vmatmul.mubr.f32.gmra.mrb[0].mxu0 %v1033
  %v1226 = vpop.f32.mrb[0].mxu0
  %v1227 = vadd.f32 0.0, %v1226
  %v1228 = vpop.f32.mrb[0].mxu0
  %1229 = vmatprep.mubr.f32.mxu0 %v1036
  %1230 = vmatmul.mubr.f32.gmra.mrb[0].mxu0 %v1035
  %v1231 = vpop.f32.mrb[0].mxu0
  %v1232 = vadd.f32 0.0, %v1231
  %v1233 = vpop.f32.mrb[0].mxu0
  %1234 = vmatprep.mubr.f32.mxu0 %v1038
  %1235 = vmatmul.mubr.f32.gmra.mrb[0].mxu0 %v1037
  %v1236 = vpop.f32.mrb[0].mxu0
  %v1237 = vadd.f32 0.0, %v1236
  %v1238 = vpop.f32.mrb[0].mxu0
  %1239 = vmatprep.mubr.f32.mxu0 %v1040
  %1240 = vmatmul.mubr.f32.gmra.mrb[0].mxu0 %v1039
  %v1241 = vpop.f32.mrb[0].mxu0
  %v1242 = vadd.f32 0.0, %v1241
  %v1243 = vpop.f32.mrb[0].mxu0
  %1244 = vmatprep.mubr.f32.mxu0 %v1042
  %1245 = vmatmul.mubr.f32.gmra.mrb[0].mxu0 %v1041
  %v1246 = vpop.f32.mrb[0].mxu0
  %v1247 = vadd.f32 0.0, %v1246
  %v1248 = vpop.f32.mrb[0].mxu0
  %1249 = vmatprep.mubr.f32.mxu0 %v1044
  %1250 = vmatmul.mubr.f32.gmra.mrb[0].mxu0 %v1043
  %v1251 = vpop.f32.mrb[0].mxu0
  %v1252 = vadd.f32 0.0, %v1251
  %v1253 = vpop.f32.mrb[0].mxu0
  %1254 = vmatprep.mubr.f32.mxu0 %v1046
  %1255 = vmatmul.mubr.f32.gmra.mrb[0].mxu0 %v1045
  %v1256 = vpop.f32.mrb[0].mxu0
  %v1257 = vadd.f32 0.0, %v1256
  %v1258 = vpop.f32.mrb[0].mxu0
  %1259 = vmatprep.mubr.f32.mxu0 %v1048
  %1260 = vmatmul.mubr.f32.gmra.mrb[0].mxu0 %v1047
  %v1261 = vpop.f32.mrb[0].mxu0
  %v1262 = vadd.f32 0.0, %v1261
  %v1263 = vpop.f32.mrb[0].mxu0
  %1264 = vmatprep.mubr.f32.mxu0 %v1050
  %1265 = vmatmul.mubr.f32.gmra.mrb[0].mxu0 %v1049
  %v1266 = vpop.f32.mrb[0].mxu0
  %v1267 = vadd.f32 0.0, %v1266
  %v1268 = vpop.f32.mrb[0].mxu0
  %1269 = vmatprep.mubr.f32.mxu0 %v1052
  %1270 = vmatmul.mubr.f32.gmra.mrb[0].mxu0 %v1051
  %v1271 = vpop.f32.mrb[0].mxu0
  %v1272 = vadd.f32 0.0, %v1271
  %v1273 = vpop.f32.mrb[0].mxu0
  %1274 = vmatprep.mubr.f32.mxu0 %v1054
  %1275 = vmatmul.mubr.f32.gmra.mrb[0].mxu0 %v1053
  %v1276 = vpop.f32.mrb[0].mxu0
  %v1277 = vadd.f32 0.0, %v1276
  %v1278 = vpop.f32.mrb[0].mxu0
  %1279 = vmatprep.mubr.f32.mxu0 %v1056
  %1280 = vmatmul.mubr.f32.gmra.mrb[0].mxu0 %v1055
  %v1281 = vpop.f32.mrb[0].mxu0
  %v1282 = vadd.f32 0.0, %v1281
  %v1283 = vpop.f32.mrb[0].mxu0
  %1284 = vmatprep.mubr.f32.mxu0 %v1058
  %1285 = vmatmul.mubr.f32.gmra.mrb[0].mxu0 %v1057
  %v1286 = vpop.f32.mrb[0].mxu0
  %v1287 = vadd.f32 0.0, %v1286
  %v1288 = vpop.f32.mrb[0].mxu0
  %1289 = vmatprep.mubr.f32.mxu0 %v1060
  %1290 = vmatmul.mubr.f32.gmra.mrb[0].mxu0 %v1059
  %v1291 = vpop.f32.mrb[0].mxu0
  %v1292 = vadd.f32 0.0, %v1291
  %v1293 = vpop.f32.mrb[0].mxu0
  %1294 = vmatprep.mubr.f32.mxu0 %v1062
  %1295 = vmatmul.mubr.f32.gmra.mrb[0].mxu0 %v1061
  %v1296 = vpop.f32.mrb[0].mxu0
  %v1297 = vadd.f32 0.0, %v1296
  %v1298 = vpop.f32.mrb[0].mxu0
  %1299 = vmatprep.mubr.f32.mxu0 %v1064
  %1300 = vmatmul.mubr.f32.gmra.mrb[0].mxu0 %v1063
  %v1301 = vpop.f32.mrb[0].mxu0
  %v1302 = vadd.f32 0.0, %v1301
  %v1303 = vpop.f32.mrb[0].mxu0
  %1304 = vmatprep.mubr.f32.mxu0 %v1066
  %1305 = vmatmul.mubr.f32.gmra.mrb[0].mxu0 %v1065
  %v1306 = vpop.f32.mrb[0].mxu0
  %v1307 = vadd.f32 0.0, %v1306
  %v1308 = vpop.f32.mrb[0].mxu0
  %1309 = vmatprep.mubr.f32.mxu0 %v1068
  %1310 = vmatmul.mubr.f32.gmra.mrb[0].mxu0 %v1067
  %v1311 = vpop.f32.mrb[0].mxu0
  %v1312 = vadd.f32 0.0, %v1311
  %v1313 = vpop.f32.mrb[0].mxu0
  %1314 = vmatprep.mubr.f32.mxu0 %v1070
  %1315 = vmatmul.mubr.f32.gmra.mrb[0].mxu0 %v1069
  %v1316 = vpop.f32.mrb[0].mxu0
  %v1317 = vadd.f32 0.0, %v1316
  %v1318 = vpop.f32.mrb[0].mxu0
  %1319 = vmatprep.mubr.f32.mxu0 %v1072
  %1320 = vmatmul.mubr.f32.gmra.mrb[0].mxu0 %v1071
  %v1321 = vpop.f32.mrb[0].mxu0
  %v1322 = vadd.f32 0.0, %v1321
  %v1323 = vpop.f32.mrb[0].mxu0
  %1324 = vmatprep.mubr.f32.mxu0 %v1074
  %1325 = vmatmul.mubr.f32.gmra.mrb[0].mxu0 %v1073
  %v1326 = vpop.f32.mrb[0].mxu0
  %v1327 = vadd.f32 0.0, %v1326
  %v1328 = vpop.f32.mrb[0].mxu0
  %1329 = vmatprep.mubr.f32.mxu0 %v1076
  %1330 = vmatmul.mubr.f32.gmra.mrb[0].mxu0 %v1075
  %v1331 = vpop.f32.mrb[0].mxu0
  %v1332 = vadd.f32 0.0, %v1331
  %v1333 = vpop.f32.mrb[0].mxu0
  %1334 = vmatprep.mubr.f32.mxu0 %v1078
  %1335 = vmatmul.mubr.f32.gmra.mrb[0].mxu0 %v1077
  %v1336 = vpop.f32.mrb[0].mxu0
  %v1337 = vadd.f32 0.0, %v1336
  %v1338 = vpop.f32.mrb[0].mxu0
  %1339 = vmatprep.mubr.f32.mxu0 %v1080
  %1340 = vmatmul.mubr.f32.gmra.mrb[0].mxu0 %v1079
  %v1341 = vpop.f32.mrb[0].mxu0
  %v1342 = vadd.f32 0.0, %v1341
  %v1343 = vpop.f32.mrb[0].mxu0
  %1344 = vmatprep.mubr.f32.mxu0 %v1082
  %1345 = vmatmul.mubr.f32.gmra.mrb[0].mxu0 %v1081
  %v1346 = vpop.f32.mrb[0].mxu0
  %v1347 = vadd.f32 0.0, %v1346
  %v1348 = vpop.f32.mrb[0].mxu0
  %1349 = vdwg.mxu0
  %v1350 = vadd.f32 %v502, %v507
  %v1351 = vadd.f32 %v1350, %v512
  %v1352 = vadd.f32 %v1351, %v517
  %v1353 = vadd.f32 %v1352, %v522
  %v1354 = vadd.f32 %v1353, %v527
  %v1355 = vadd.f32 %v1354, %v532
  %v1356 = vadd.f32 %v1355, %v537
  %v1357 = vadd.f32 %v1356, %v542
  %v1358 = vadd.f32 %v1357, %v547
  %v1359 = vadd.f32 %v1358, %v552
  %v1360 = vadd.f32 %v1359, %v557
  %v1361 = vadd.f32 %v1360, %v562
  %v1362 = vadd.f32 %v1361, %v567
  %v1363 = vadd.f32 %v1362, %v572
  %v1364 = vadd.f32 %v1363, %v577
  %v1365 = vadd.f32 %v1364, %v582
  %v1366 = vadd.f32 %v1365, %v587
  %v1367 = vadd.f32 %v1366, %v592
  %v1368 = vadd.f32 %v1367, %v597
  %v1369 = vadd.f32 %v1368, %v602
  %v1370 = vadd.f32 %v1369, %v607
  %v1371 = vadd.f32 %v1370, %v612
  %v1372 = vadd.f32 %v1371, %v617
  %v1373 = vadd.f32 %v1372, %v622
  %v1374 = vadd.f32 %v1373, %v627
  %v1375 = vadd.f32 %v1374, %v632
  %v1376 = vadd.f32 %v1375, %v637
  %v1377 = vadd.f32 %v1376, %v642
  %v1378 = vadd.f32 %v1377, %v647
  %v1379 = vadd.f32 %v1378, %v652
  %v1380 = vadd.f32 %v1379, %v657
  %v1381 = vadd.f32 %v1380, %v662
  %v1382 = vadd.f32 %v1381, %v667
  %v1383 = vadd.f32 %v1382, %v672
  %v1384 = vadd.f32 %v1383, %v677
  %v1385 = vrot.slane %v1384, 4
  %v1386 = vadd.f32 %v1384, %v1385
  %v1387 = vrot.slane %v1386, 2
  %v1388 = vadd.f32 %v1386, %v1387
  %v1389 = vrot.slane %v1388, 1
  %v1390 = vadd.f32 %v1388, %v1389
  %v1391 = vmul.f32 %v502, %v502
  %v1392 = vmul.f32 %v507, %v507
  %v1393 = vmul.f32 %v512, %v512
  %v1394 = vmul.f32 %v517, %v517
  %v1395 = vmul.f32 %v522, %v522
  %v1396 = vmul.f32 %v527, %v527
  %v1397 = vmul.f32 %v532, %v532
  %v1398 = vmul.f32 %v537, %v537
  %v1399 = vmul.f32 %v542, %v542
  %v1400 = vmul.f32 %v547, %v547
  %v1401 = vmul.f32 %v552, %v552
  %v1402 = vmul.f32 %v557, %v557
  %v1403 = vmul.f32 %v562, %v562
  %v1404 = vmul.f32 %v567, %v567
  %v1405 = vmul.f32 %v572, %v572
  %v1406 = vmul.f32 %v577, %v577
  %v1407 = vmul.f32 %v582, %v582
  %v1408 = vmul.f32 %v587, %v587
  %v1409 = vmul.f32 %v592, %v592
  %v1410 = vmul.f32 %v597, %v597
  %v1411 = vmul.f32 %v602, %v602
  %v1412 = vmul.f32 %v607, %v607
  %v1413 = vmul.f32 %v612, %v612
  %v1414 = vmul.f32 %v617, %v617
  %v1415 = vmul.f32 %v622, %v622
  %v1416 = vmul.f32 %v627, %v627
  %v1417 = vmul.f32 %v632, %v632
  %v1418 = vmul.f32 %v637, %v637
  %v1419 = vmul.f32 %v642, %v642
  %v1420 = vmul.f32 %v647, %v647
  %v1421 = vmul.f32 %v652, %v652
  %v1422 = vmul.f32 %v657, %v657
  %v1423 = vmul.f32 %v662, %v662
  %v1424 = vmul.f32 %v667, %v667
  %v1425 = vmul.f32 %v672, %v672
  %v1426 = vmul.f32 %v677, %v677
  %v1427 = vadd.f32 %v1391, %v1392
  %v1428 = vadd.f32 %v1427, %v1393
  %v1429 = vadd.f32 %v1428, %v1394
  %v1430 = vadd.f32 %v1429, %v1395
  %v1431 = vadd.f32 %v1430, %v1396
  %v1432 = vadd.f32 %v1431, %v1397
  %v1433 = vadd.f32 %v1432, %v1398
  %v1434 = vadd.f32 %v1433, %v1399
  %v1435 = vadd.f32 %v1434, %v1400
  %v1436 = vadd.f32 %v1435, %v1401
  %v1437 = vadd.f32 %v1436, %v1402
  %v1438 = vadd.f32 %v1437, %v1403
  %v1439 = vadd.f32 %v1438, %v1404
  %v1440 = vadd.f32 %v1439, %v1405
  %v1441 = vadd.f32 %v1440, %v1406
  %v1442 = vadd.f32 %v1441, %v1407
  %v1443 = vadd.f32 %v1442, %v1408
  %v1444 = vadd.f32 %v1443, %v1409
  %v1445 = vadd.f32 %v1444, %v1410
  %v1446 = vadd.f32 %v1445, %v1411
  %v1447 = vadd.f32 %v1446, %v1412
  %v1448 = vadd.f32 %v1447, %v1413
  %v1449 = vadd.f32 %v1448, %v1414
  %v1450 = vadd.f32 %v1449, %v1415
  %v1451 = vadd.f32 %v1450, %v1416
  %v1452 = vadd.f32 %v1451, %v1417
  %v1453 = vadd.f32 %v1452, %v1418
  %v1454 = vadd.f32 %v1453, %v1419
  %v1455 = vadd.f32 %v1454, %v1420
  %v1456 = vadd.f32 %v1455, %v1421
  %v1457 = vadd.f32 %v1456, %v1422
  %v1458 = vadd.f32 %v1457, %v1423
  %v1459 = vadd.f32 %v1458, %v1424
  %v1460 = vadd.f32 %v1459, %v1425
  %v1461 = vadd.f32 %v1460, %v1426
  %v1462 = vrot.slane %v1461, 4
  %v1463 = vadd.f32 %v1461, %v1462
  %v1464 = vrot.slane %v1463, 2
  %v1465 = vadd.f32 %v1463, %v1464
  %v1466 = vrot.slane %v1465, 1
  %v1467 = vadd.f32 %v1465, %v1466
  %v1468 = vadd.f32 %v847, %v852
  %v1469 = vadd.f32 %v1468, %v857
  %v1470 = vadd.f32 %v1469, %v862
  %v1471 = vadd.f32 %v1470, %v867
  %v1472 = vadd.f32 %v1471, %v872
  %v1473 = vadd.f32 %v1472, %v877
  %v1474 = vadd.f32 %v1473, %v882
  %v1475 = vadd.f32 %v1474, %v887
  %v1476 = vadd.f32 %v1475, %v892
  %v1477 = vadd.f32 %v1476, %v897
  %v1478 = vadd.f32 %v1477, %v902
  %v1479 = vadd.f32 %v1478, %v907
  %v1480 = vadd.f32 %v1479, %v912
  %v1481 = vadd.f32 %v1480, %v917
  %v1482 = vadd.f32 %v1481, %v922
  %v1483 = vadd.f32 %v1482, %v927
  %v1484 = vadd.f32 %v1483, %v932
  %v1485 = vadd.f32 %v1484, %v937
  %v1486 = vadd.f32 %v1485, %v942
  %v1487 = vadd.f32 %v1486, %v947
  %v1488 = vadd.f32 %v1487, %v952
  %v1489 = vadd.f32 %v1488, %v957
  %v1490 = vadd.f32 %v1489, %v962
  %v1491 = vadd.f32 %v1490, %v967
  %v1492 = vadd.f32 %v1491, %v972
  %v1493 = vadd.f32 %v1492, %v977
  %v1494 = vadd.f32 %v1493, %v982
  %v1495 = vadd.f32 %v1494, %v987
  %v1496 = vadd.f32 %v1495, %v992
  %v1497 = vadd.f32 %v1496, %v997
  %v1498 = vadd.f32 %v1497, %v1002
  %v1499 = vadd.f32 %v1498, %v1007
  %v1500 = vadd.f32 %v1499, %v1012
  %v1501 = vrot.slane %v1500, 4
  %v1502 = vadd.f32 %v1500, %v1501
  %v1503 = vrot.slane %v1502, 2
  %v1504 = vadd.f32 %v1502, %v1503
  %v1505 = vrot.slane %v1504, 1
  %v1506 = vadd.f32 %v1504, %v1505
  %v1507 = vadd.f32 %v1390, %v1506
  %v1508 = vmul.f32 %v847, %v847
  %v1509 = vmul.f32 %v852, %v852
  %v1510 = vmul.f32 %v857, %v857
  %v1511 = vmul.f32 %v862, %v862
  %v1512 = vmul.f32 %v867, %v867
  %v1513 = vmul.f32 %v872, %v872
  %v1514 = vmul.f32 %v877, %v877
  %v1515 = vmul.f32 %v882, %v882
  %v1516 = vmul.f32 %v887, %v887
  %v1517 = vmul.f32 %v892, %v892
  %v1518 = vmul.f32 %v897, %v897
  %v1519 = vmul.f32 %v902, %v902
  %v1520 = vmul.f32 %v907, %v907
  %v1521 = vmul.f32 %v912, %v912
  %v1522 = vmul.f32 %v917, %v917
  %v1523 = vmul.f32 %v922, %v922
  %v1524 = vmul.f32 %v927, %v927
  %v1525 = vmul.f32 %v932, %v932
  %v1526 = vmul.f32 %v937, %v937
  %v1527 = vmul.f32 %v942, %v942
  %v1528 = vmul.f32 %v947, %v947
  %v1529 = vmul.f32 %v952, %v952
  %v1530 = vmul.f32 %v957, %v957
  %v1531 = vmul.f32 %v962, %v962
  %v1532 = vmul.f32 %v967, %v967
  %v1533 = vmul.f32 %v972, %v972
  %v1534 = vmul.f32 %v977, %v977
  %v1535 = vmul.f32 %v982, %v982
  %v1536 = vmul.f32 %v987, %v987
  %v1537 = vmul.f32 %v992, %v992
  %v1538 = vmul.f32 %v997, %v997
  %v1539 = vmul.f32 %v1002, %v1002
  %v1540 = vmul.f32 %v1007, %v1007
  %v1541 = vmul.f32 %v1012, %v1012
  %v1542 = vadd.f32 %v1508, %v1509
  %v1543 = vadd.f32 %v1542, %v1510
  %v1544 = vadd.f32 %v1543, %v1511
  %v1545 = vadd.f32 %v1544, %v1512
  %v1546 = vadd.f32 %v1545, %v1513
  %v1547 = vadd.f32 %v1546, %v1514
  %v1548 = vadd.f32 %v1547, %v1515
  %v1549 = vadd.f32 %v1548, %v1516
  %v1550 = vadd.f32 %v1549, %v1517
  %v1551 = vadd.f32 %v1550, %v1518
  %v1552 = vadd.f32 %v1551, %v1519
  %v1553 = vadd.f32 %v1552, %v1520
  %v1554 = vadd.f32 %v1553, %v1521
  %v1555 = vadd.f32 %v1554, %v1522
  %v1556 = vadd.f32 %v1555, %v1523
  %v1557 = vadd.f32 %v1556, %v1524
  %v1558 = vadd.f32 %v1557, %v1525
  %v1559 = vadd.f32 %v1558, %v1526
  %v1560 = vadd.f32 %v1559, %v1527
  %v1561 = vadd.f32 %v1560, %v1528
  %v1562 = vadd.f32 %v1561, %v1529
  %v1563 = vadd.f32 %v1562, %v1530
  %v1564 = vadd.f32 %v1563, %v1531
  %v1565 = vadd.f32 %v1564, %v1532
  %v1566 = vadd.f32 %v1565, %v1533
  %v1567 = vadd.f32 %v1566, %v1534
  %v1568 = vadd.f32 %v1567, %v1535
  %v1569 = vadd.f32 %v1568, %v1536
  %v1570 = vadd.f32 %v1569, %v1537
  %v1571 = vadd.f32 %v1570, %v1538
  %v1572 = vadd.f32 %v1571, %v1539
  %v1573 = vadd.f32 %v1572, %v1540
  %v1574 = vadd.f32 %v1573, %v1541
  %v1575 = vrot.slane %v1574, 4
  %v1576 = vadd.f32 %v1574, %v1575
  %v1577 = vrot.slane %v1576, 2
  %v1578 = vadd.f32 %v1576, %v1577
  %v1579 = vrot.slane %v1578, 1
  %v1580 = vadd.f32 %v1578, %v1579
  %v1581 = vadd.f32 %v1467, %v1580
  %v1582 = vadd.f32 %v1182, %v1187
  %v1583 = vadd.f32 %v1582, %v1192
  %v1584 = vadd.f32 %v1583, %v1197
  %v1585 = vadd.f32 %v1584, %v1202
  %v1586 = vadd.f32 %v1585, %v1207
  %v1587 = vadd.f32 %v1586, %v1212
  %v1588 = vadd.f32 %v1587, %v1217
  %v1589 = vadd.f32 %v1588, %v1222
  %v1590 = vadd.f32 %v1589, %v1227
  %v1591 = vadd.f32 %v1590, %v1232
  %v1592 = vadd.f32 %v1591, %v1237
  %v1593 = vadd.f32 %v1592, %v1242
  %v1594 = vadd.f32 %v1593, %v1247
  %v1595 = vadd.f32 %v1594, %v1252
  %v1596 = vadd.f32 %v1595, %v1257
  %v1597 = vadd.f32 %v1596, %v1262
  %v1598 = vadd.f32 %v1597, %v1267
  %v1599 = vadd.f32 %v1598, %v1272
  %v1600 = vadd.f32 %v1599, %v1277
  %v1601 = vadd.f32 %v1600, %v1282
  %v1602 = vadd.f32 %v1601, %v1287
  %v1603 = vadd.f32 %v1602, %v1292
  %v1604 = vadd.f32 %v1603, %v1297
  %v1605 = vadd.f32 %v1604, %v1302
  %v1606 = vadd.f32 %v1605, %v1307
  %v1607 = vadd.f32 %v1606, %v1312
  %v1608 = vadd.f32 %v1607, %v1317
  %v1609 = vadd.f32 %v1608, %v1322
  %v1610 = vadd.f32 %v1609, %v1327
  %v1611 = vadd.f32 %v1610, %v1332
  %v1612 = vadd.f32 %v1611, %v1337
  %v1613 = vadd.f32 %v1612, %v1342
  %v1614 = vadd.f32 %v1613, %v1347
  %v1615 = vrot.slane %v1614, 4
  %v1616 = vadd.f32 %v1614, %v1615
  %v1617 = vrot.slane %v1616, 2
  %v1618 = vadd.f32 %v1616, %v1617
  %v1619 = vrot.slane %v1618, 1
  %v1620 = vadd.f32 %v1618, %v1619
  %v1621 = vadd.f32 %v1507, %v1620
  %v1622 = vmul.f32 %v1182, %v1182
  %v1623 = vmul.f32 %v1187, %v1187
  %v1624 = vmul.f32 %v1192, %v1192
  %v1625 = vmul.f32 %v1197, %v1197
  %v1626 = vmul.f32 %v1202, %v1202
  %v1627 = vmul.f32 %v1207, %v1207
  %v1628 = vmul.f32 %v1212, %v1212
  %v1629 = vmul.f32 %v1217, %v1217
  %v1630 = vmul.f32 %v1222, %v1222
  %v1631 = vmul.f32 %v1227, %v1227
  %v1632 = vmul.f32 %v1232, %v1232
  %v1633 = vmul.f32 %v1237, %v1237
  %v1634 = vmul.f32 %v1242, %v1242
  %v1635 = vmul.f32 %v1247, %v1247
  %v1636 = vmul.f32 %v1252, %v1252
  %v1637 = vmul.f32 %v1257, %v1257
  %v1638 = vmul.f32 %v1262, %v1262
  %v1639 = vmul.f32 %v1267, %v1267
  %v1640 = vmul.f32 %v1272, %v1272
  %v1641 = vmul.f32 %v1277, %v1277
  %v1642 = vmul.f32 %v1282, %v1282
  %v1643 = vmul.f32 %v1287, %v1287
  %v1644 = vmul.f32 %v1292, %v1292
  %v1645 = vmul.f32 %v1297, %v1297
  %v1646 = vmul.f32 %v1302, %v1302
  %v1647 = vmul.f32 %v1307, %v1307
  %v1648 = vmul.f32 %v1312, %v1312
  %v1649 = vmul.f32 %v1317, %v1317
  %v1650 = vmul.f32 %v1322, %v1322
  %v1651 = vmul.f32 %v1327, %v1327
  %v1652 = vmul.f32 %v1332, %v1332
  %v1653 = vmul.f32 %v1337, %v1337
  %v1654 = vmul.f32 %v1342, %v1342
  %v1655 = vmul.f32 %v1347, %v1347
  %v1656 = vadd.f32 %v1622, %v1623
  %v1657 = vadd.f32 %v1656, %v1624
  %v1658 = vadd.f32 %v1657, %v1625
  %v1659 = vadd.f32 %v1658, %v1626
  %v1660 = vadd.f32 %v1659, %v1627
  %v1661 = vadd.f32 %v1660, %v1628
  %v1662 = vadd.f32 %v1661, %v1629
  %v1663 = vadd.f32 %v1662, %v1630
  %v1664 = vadd.f32 %v1663, %v1631
  %v1665 = vadd.f32 %v1664, %v1632
  %v1666 = vadd.f32 %v1665, %v1633
  %v1667 = vadd.f32 %v1666, %v1634
  %v1668 = vadd.f32 %v1667, %v1635
  %v1669 = vadd.f32 %v1668, %v1636
  %v1670 = vadd.f32 %v1669, %v1637
  %v1671 = vadd.f32 %v1670, %v1638
  %v1672 = vadd.f32 %v1671, %v1639
  %v1673 = vadd.f32 %v1672, %v1640
  %v1674 = vadd.f32 %v1673, %v1641
  %v1675 = vadd.f32 %v1674, %v1642
  %v1676 = vadd.f32 %v1675, %v1643
  %v1677 = vadd.f32 %v1676, %v1644
  %v1678 = vadd.f32 %v1677, %v1645
  %v1679 = vadd.f32 %v1678, %v1646
  %v1680 = vadd.f32 %v1679, %v1647
  %v1681 = vadd.f32 %v1680, %v1648
  %v1682 = vadd.f32 %v1681, %v1649
  %v1683 = vadd.f32 %v1682, %v1650
  %v1684 = vadd.f32 %v1683, %v1651
  %v1685 = vadd.f32 %v1684, %v1652
  %v1686 = vadd.f32 %v1685, %v1653
  %v1687 = vadd.f32 %v1686, %v1654
  %v1688 = vadd.f32 %v1687, %v1655
  %v1689 = vrot.slane %v1688, 4
  %v1690 = vadd.f32 %v1688, %v1689
  %v1691 = vrot.slane %v1690, 2
  %v1692 = vadd.f32 %v1690, %v1691
  %v1693 = vrot.slane %v1692, 1
  %v1694 = vadd.f32 %v1692, %v1693
  %v1695 = vadd.f32 %v1581, %v1694
  %v1696 = vmul.f32 %v1621, 0.0012019231
  %v1697 = vmul.f32 %v1695, 0.0012019231
  %v1698 = vmul.f32 %v1696, %v1696
  %v1699 = vsub.f32 %v1697, %v1698
  %v1700 = vmax.f32 %v1699, 0.0
  %v1701 = vadd.f32 %v1700, 1e-05
  %v1702 = vrsqrt.pop %v1701
  %v1703 = vmul.f32 %v32, %v1702
  %v1704 = vmul.f32 %v1696, %v1703
  %v1705 = vsub.f32 %v33, %v1704
  %v1707 = vlaneseq
  %v1708 = vshrl.u32 %v1707, 7
  %v1709 = vsub.s32 0, %v1708
  %v1710 = vrot.slane %v1703, %v1709
  %v1712 = vmul.f32 %v502, %v1710
  %v1713 = vmul.f32 %v507, %v1710
  %v1714 = vmul.f32 %v512, %v1710
  %v1715 = vmul.f32 %v517, %v1710
  %v1716 = vmul.f32 %v522, %v1710
  %v1717 = vmul.f32 %v527, %v1710
  %v1718 = vmul.f32 %v532, %v1710
  %v1719 = vmul.f32 %v537, %v1710
  %v1720 = vmul.f32 %v542, %v1710
  %v1721 = vmul.f32 %v547, %v1710
  %v1722 = vmul.f32 %v552, %v1710
  %v1723 = vmul.f32 %v557, %v1710
  %v1724 = vmul.f32 %v562, %v1710
  %v1725 = vmul.f32 %v567, %v1710
  %v1726 = vmul.f32 %v572, %v1710
  %v1727 = vmul.f32 %v577, %v1710
  %v1728 = vmul.f32 %v582, %v1710
  %v1729 = vmul.f32 %v587, %v1710
  %v1730 = vmul.f32 %v592, %v1710
  %v1731 = vmul.f32 %v597, %v1710
  %v1732 = vmul.f32 %v602, %v1710
  %v1733 = vmul.f32 %v607, %v1710
  %v1734 = vmul.f32 %v612, %v1710
  %v1735 = vmul.f32 %v617, %v1710
  %v1736 = vmul.f32 %v622, %v1710
  %v1737 = vmul.f32 %v627, %v1710
  %v1738 = vmul.f32 %v632, %v1710
  %v1739 = vmul.f32 %v637, %v1710
  %v1740 = vmul.f32 %v642, %v1710
  %v1741 = vmul.f32 %v647, %v1710
  %v1742 = vmul.f32 %v652, %v1710
  %v1743 = vmul.f32 %v657, %v1710
  %v1744 = vmul.f32 %v662, %v1710
  %v1745 = vmul.f32 %v667, %v1710
  %v1746 = vmul.f32 %v672, %v1710
  %v1747 = vmul.f32 %v677, %v1710
  %v1749 = vlaneseq
  %v1750 = vshrl.u32 %v1749, 7
  %v1751 = vsub.s32 0, %v1750
  %v1752 = vrot.slane %v1705, %v1751
  %v1754 = vadd.f32 %v1712, %v1752
  %v1755 = vadd.f32 %v1713, %v1752
  %v1756 = vadd.f32 %v1714, %v1752
  %v1757 = vadd.f32 %v1715, %v1752
  %v1758 = vadd.f32 %v1716, %v1752
  %v1759 = vadd.f32 %v1717, %v1752
  %v1760 = vadd.f32 %v1718, %v1752
  %v1761 = vadd.f32 %v1719, %v1752
  %v1762 = vadd.f32 %v1720, %v1752
  %v1763 = vadd.f32 %v1721, %v1752
  %v1764 = vadd.f32 %v1722, %v1752
  %v1765 = vadd.f32 %v1723, %v1752
  %v1766 = vadd.f32 %v1724, %v1752
  %v1767 = vadd.f32 %v1725, %v1752
  %v1768 = vadd.f32 %v1726, %v1752
  %v1769 = vadd.f32 %v1727, %v1752
  %v1770 = vadd.f32 %v1728, %v1752
  %v1771 = vadd.f32 %v1729, %v1752
  %v1772 = vadd.f32 %v1730, %v1752
  %v1773 = vadd.f32 %v1731, %v1752
  %v1774 = vadd.f32 %v1732, %v1752
  %v1775 = vadd.f32 %v1733, %v1752
  %v1776 = vadd.f32 %v1734, %v1752
  %v1777 = vadd.f32 %v1735, %v1752
  %v1778 = vadd.f32 %v1736, %v1752
  %v1779 = vadd.f32 %v1737, %v1752
  %v1780 = vadd.f32 %v1738, %v1752
  %v1781 = vadd.f32 %v1739, %v1752
  %v1782 = vadd.f32 %v1740, %v1752
  %v1783 = vadd.f32 %v1741, %v1752
  %v1784 = vadd.f32 %v1742, %v1752
  %v1785 = vadd.f32 %v1743, %v1752
  %v1786 = vadd.f32 %v1744, %v1752
  %v1787 = vadd.f32 %v1745, %v1752
  %v1788 = vadd.f32 %v1746, %v1752
  %v1789 = vadd.f32 %v1747, %v1752
  %v1790 = vmul.f32 %v847, %v1710
  %v1791 = vmul.f32 %v852, %v1710
  %v1792 = vmul.f32 %v857, %v1710
  %v1793 = vmul.f32 %v862, %v1710
  %v1794 = vmul.f32 %v867, %v1710
  %v1795 = vmul.f32 %v872, %v1710
  %v1796 = vmul.f32 %v877, %v1710
  %v1797 = vmul.f32 %v882, %v1710
  %v1798 = vmul.f32 %v887, %v1710
  %v1799 = vmul.f32 %v892, %v1710
  %v1800 = vmul.f32 %v897, %v1710
  %v1801 = vmul.f32 %v902, %v1710
  %v1802 = vmul.f32 %v907, %v1710
  %v1803 = vmul.f32 %v912, %v1710
  %v1804 = vmul.f32 %v917, %v1710
  %v1805 = vmul.f32 %v922, %v1710
  %v1806 = vmul.f32 %v927, %v1710
  %v1807 = vmul.f32 %v932, %v1710
  %v1808 = vmul.f32 %v937, %v1710
  %v1809 = vmul.f32 %v942, %v1710
  %v1810 = vmul.f32 %v947, %v1710
  %v1811 = vmul.f32 %v952, %v1710
  %v1812 = vmul.f32 %v957, %v1710
  %v1813 = vmul.f32 %v962, %v1710
  %v1814 = vmul.f32 %v967, %v1710
  %v1815 = vmul.f32 %v972, %v1710
  %v1816 = vmul.f32 %v977, %v1710
  %v1817 = vmul.f32 %v982, %v1710
  %v1818 = vmul.f32 %v987, %v1710
  %v1819 = vmul.f32 %v992, %v1710
  %v1820 = vmul.f32 %v997, %v1710
  %v1821 = vmul.f32 %v1002, %v1710
  %v1822 = vmul.f32 %v1007, %v1710
  %v1823 = vmul.f32 %v1012, %v1710
  %v1824 = vadd.f32 %v1790, %v1752
  %v1825 = vadd.f32 %v1791, %v1752
  %v1826 = vadd.f32 %v1792, %v1752
  %v1827 = vadd.f32 %v1793, %v1752
  %v1828 = vadd.f32 %v1794, %v1752
  %v1829 = vadd.f32 %v1795, %v1752
  %v1830 = vadd.f32 %v1796, %v1752
  %v1831 = vadd.f32 %v1797, %v1752
  %v1832 = vadd.f32 %v1798, %v1752
  %v1833 = vadd.f32 %v1799, %v1752
  %v1834 = vadd.f32 %v1800, %v1752
  %v1835 = vadd.f32 %v1801, %v1752
  %v1836 = vadd.f32 %v1802, %v1752
  %v1837 = vadd.f32 %v1803, %v1752
  %v1838 = vadd.f32 %v1804, %v1752
  %v1839 = vadd.f32 %v1805, %v1752
  %v1840 = vadd.f32 %v1806, %v1752
  %v1841 = vadd.f32 %v1807, %v1752
  %v1842 = vadd.f32 %v1808, %v1752
  %v1843 = vadd.f32 %v1809, %v1752
  %v1844 = vadd.f32 %v1810, %v1752
  %v1845 = vadd.f32 %v1811, %v1752
  %v1846 = vadd.f32 %v1812, %v1752
  %v1847 = vadd.f32 %v1813, %v1752
  %v1848 = vadd.f32 %v1814, %v1752
  %v1849 = vadd.f32 %v1815, %v1752
  %v1850 = vadd.f32 %v1816, %v1752
  %v1851 = vadd.f32 %v1817, %v1752
  %v1852 = vadd.f32 %v1818, %v1752
  %v1853 = vadd.f32 %v1819, %v1752
  %v1854 = vadd.f32 %v1820, %v1752
  %v1855 = vadd.f32 %v1821, %v1752
  %v1856 = vadd.f32 %v1822, %v1752
  %v1857 = vadd.f32 %v1823, %v1752
  %v1858 = vmul.f32 %v1182, %v1710
  %v1859 = vmul.f32 %v1187, %v1710
  %v1860 = vmul.f32 %v1192, %v1710
  %v1861 = vmul.f32 %v1197, %v1710
  %v1862 = vmul.f32 %v1202, %v1710
  %v1863 = vmul.f32 %v1207, %v1710
  %v1864 = vmul.f32 %v1212, %v1710
  %v1865 = vmul.f32 %v1217, %v1710
  %v1866 = vmul.f32 %v1222, %v1710
  %v1867 = vmul.f32 %v1227, %v1710
  %v1868 = vmul.f32 %v1232, %v1710
  %v1869 = vmul.f32 %v1237, %v1710
  %v1870 = vmul.f32 %v1242, %v1710
  %v1871 = vmul.f32 %v1247, %v1710
  %v1872 = vmul.f32 %v1252, %v1710
  %v1873 = vmul.f32 %v1257, %v1710
  %v1874 = vmul.f32 %v1262, %v1710
  %v1875 = vmul.f32 %v1267, %v1710
  %v1876 = vmul.f32 %v1272, %v1710
  %v1877 = vmul.f32 %v1277, %v1710
  %v1878 = vmul.f32 %v1282, %v1710
  %v1879 = vmul.f32 %v1287, %v1710
  %v1880 = vmul.f32 %v1292, %v1710
  %v1881 = vmul.f32 %v1297, %v1710
  %v1882 = vmul.f32 %v1302, %v1710
  %v1883 = vmul.f32 %v1307, %v1710
  %v1884 = vmul.f32 %v1312, %v1710
  %v1885 = vmul.f32 %v1317, %v1710
  %v1886 = vmul.f32 %v1322, %v1710
  %v1887 = vmul.f32 %v1327, %v1710
  %v1888 = vmul.f32 %v1332, %v1710
  %v1889 = vmul.f32 %v1337, %v1710
  %v1890 = vmul.f32 %v1342, %v1710
  %v1891 = vmul.f32 %v1347, %v1710
  %v1892 = vadd.f32 %v1858, %v1752
  %v1893 = vadd.f32 %v1859, %v1752
  %v1894 = vadd.f32 %v1860, %v1752
  %v1895 = vadd.f32 %v1861, %v1752
  %v1896 = vadd.f32 %v1862, %v1752
  %v1897 = vadd.f32 %v1863, %v1752
  %v1898 = vadd.f32 %v1864, %v1752
  %v1899 = vadd.f32 %v1865, %v1752
  %v1900 = vadd.f32 %v1866, %v1752
  %v1901 = vadd.f32 %v1867, %v1752
  %v1902 = vadd.f32 %v1868, %v1752
  %v1903 = vadd.f32 %v1869, %v1752
  %v1904 = vadd.f32 %v1870, %v1752
  %v1905 = vadd.f32 %v1871, %v1752
  %v1906 = vadd.f32 %v1872, %v1752
  %v1907 = vadd.f32 %v1873, %v1752
  %v1908 = vadd.f32 %v1874, %v1752
  %v1909 = vadd.f32 %v1875, %v1752
  %v1910 = vadd.f32 %v1876, %v1752
  %v1911 = vadd.f32 %v1877, %v1752
  %v1912 = vadd.f32 %v1878, %v1752
  %v1913 = vadd.f32 %v1879, %v1752
  %v1914 = vadd.f32 %v1880, %v1752
  %v1915 = vadd.f32 %v1881, %v1752
  %v1916 = vadd.f32 %v1882, %v1752
  %v1917 = vadd.f32 %v1883, %v1752
  %v1918 = vadd.f32 %v1884, %v1752
  %v1919 = vadd.f32 %v1885, %v1752
  %v1920 = vadd.f32 %v1886, %v1752
  %v1921 = vadd.f32 %v1887, %v1752
  %v1922 = vadd.f32 %v1888, %v1752
  %v1923 = vadd.f32 %v1889, %v1752
  %v1924 = vadd.f32 %v1890, %v1752
  %v1925 = vadd.f32 %v1891, %v1752
  %v1926 = vmax.f32 %v1754, 0.0
  %v1927 = vmax.f32 %v1755, 0.0
  %v1928 = vmax.f32 %v1756, 0.0
  %v1929 = vmax.f32 %v1757, 0.0
  %v1930 = vmax.f32 %v1758, 0.0
  %v1931 = vmax.f32 %v1759, 0.0
  %v1932 = vmax.f32 %v1760, 0.0
  %v1933 = vmax.f32 %v1761, 0.0
  %v1934 = vmax.f32 %v1762, 0.0
  %v1935 = vmax.f32 %v1763, 0.0
  %v1936 = vmax.f32 %v1764, 0.0
  %v1937 = vmax.f32 %v1765, 0.0
  %v1938 = vmax.f32 %v1766, 0.0
  %v1939 = vmax.f32 %v1767, 0.0
  %v1940 = vmax.f32 %v1768, 0.0
  %v1941 = vmax.f32 %v1769, 0.0
  %v1942 = vmax.f32 %v1770, 0.0
  %v1943 = vmax.f32 %v1771, 0.0
  %v1944 = vmax.f32 %v1772, 0.0
  %v1945 = vmax.f32 %v1773, 0.0
  %v1946 = vmax.f32 %v1774, 0.0
  %v1947 = vmax.f32 %v1775, 0.0
  %v1948 = vmax.f32 %v1776, 0.0
  %v1949 = vmax.f32 %v1777, 0.0
  %v1950 = vmax.f32 %v1778, 0.0
  %v1951 = vmax.f32 %v1779, 0.0
  %v1952 = vmax.f32 %v1780, 0.0
  %v1953 = vmax.f32 %v1781, 0.0
  %v1954 = vmax.f32 %v1782, 0.0
  %v1955 = vmax.f32 %v1783, 0.0
  %v1956 = vmax.f32 %v1784, 0.0
  %v1957 = vmax.f32 %v1785, 0.0
  %v1958 = vmax.f32 %v1786, 0.0
  %v1959 = vmax.f32 %v1787, 0.0
  %v1960 = vmax.f32 %v1788, 0.0
  %v1961 = vmax.f32 %v1789, 0.0
  %1962 = vst [vmem:[%s8] sm:$0xff] %v1926
  %1963 = vst [vmem:[%s8 + $0x8] sm:$0xff] %v1927
  %1964 = vst [vmem:[%s8 + $0x10] sm:$0xff] %v1928
  %1965 = vst [vmem:[%s8 + $0x18] sm:$0xff] %v1929
  %1966 = vst [vmem:[%s8 + $0x20] sm:$0xff] %v1930
  %1967 = vst [vmem:[%s8 + $0x28] sm:$0xff] %v1931
  %1968 = vst [vmem:[%s8 + $0x30] sm:$0xff] %v1932
  %1969 = vst [vmem:[%s8 + $0x38] sm:$0xff] %v1933
  %1970 = vst [vmem:[%s8 + $0x40] sm:$0xff] %v1934
  %1971 = vst [vmem:[%s8 + $0x48] sm:$0xff] %v1935
  %1972 = vst [vmem:[%s8 + $0x50] sm:$0xff] %v1936
  %1973 = vst [vmem:[%s8 + $0x58] sm:$0xff] %v1937
  %1974 = vst [vmem:[%s8 + $0x60] sm:$0xff] %v1938
  %1975 = vst [vmem:[%s8 + $0x68] sm:$0xff] %v1939
  %1976 = vst [vmem:[%s8 + $0x70] sm:$0xff] %v1940
  %1977 = vst [vmem:[%s8 + $0x78] sm:$0xff] %v1941
  %1978 = vst [vmem:[%s8 + $0x80] sm:$0xff] %v1942
  %1979 = vst [vmem:[%s8 + $0x88] sm:$0xff] %v1943
  %1980 = vst [vmem:[%s8 + $0x90] sm:$0xff] %v1944
  %1981 = vst [vmem:[%s8 + $0x98] sm:$0xff] %v1945
  %1982 = vst [vmem:[%s8 + $0xa0] sm:$0xff] %v1946
  %1983 = vst [vmem:[%s8 + $0xa8] sm:$0xff] %v1947
  %1984 = vst [vmem:[%s8 + $0xb0] sm:$0xff] %v1948
  %1985 = vst [vmem:[%s8 + $0xb8] sm:$0xff] %v1949
  %1986 = vst [vmem:[%s8 + $0xc0] sm:$0xff] %v1950
  %1987 = vst [vmem:[%s8 + $0xc8] sm:$0xff] %v1951
  %1988 = vst [vmem:[%s8 + $0xd0] sm:$0xff] %v1952
  %1989 = vst [vmem:[%s8 + $0xd8] sm:$0xff] %v1953
  %1990 = vst [vmem:[%s8 + $0xe0] sm:$0xff] %v1954
  %1991 = vst [vmem:[%s8 + $0xe8] sm:$0xff] %v1955
  %1992 = vst [vmem:[%s8 + $0xf0] sm:$0xff] %v1956
  %1993 = vst [vmem:[%s8 + $0xf8] sm:$0xff] %v1957
  %1994 = vst [vmem:[%s8 + $0x100] sm:$0xff] %v1958
  %1995 = vst [vmem:[%s8 + $0x108] sm:$0xff] %v1959
  %1996 = vst [vmem:[%s8 + $0x110] sm:$0xff] %v1960
  %1997 = vst [vmem:[%s8 + $0x118] sm:$0xff] %v1961
  %v1998 = vmax.f32 %v1824, 0.0
  %v1999 = vmax.f32 %v1825, 0.0
  %v2000 = vmax.f32 %v1826, 0.0
  %v2001 = vmax.f32 %v1827, 0.0
  %v2002 = vmax.f32 %v1828, 0.0
  %v2003 = vmax.f32 %v1829, 0.0
  %v2004 = vmax.f32 %v1830, 0.0
  %v2005 = vmax.f32 %v1831, 0.0
  %v2006 = vmax.f32 %v1832, 0.0
  %v2007 = vmax.f32 %v1833, 0.0
  %v2008 = vmax.f32 %v1834, 0.0
  %v2009 = vmax.f32 %v1835, 0.0
  %v2010 = vmax.f32 %v1836, 0.0
  %v2011 = vmax.f32 %v1837, 0.0
  %v2012 = vmax.f32 %v1838, 0.0
  %v2013 = vmax.f32 %v1839, 0.0
  %v2014 = vmax.f32 %v1840, 0.0
  %v2015 = vmax.f32 %v1841, 0.0
  %v2016 = vmax.f32 %v1842, 0.0
  %v2017 = vmax.f32 %v1843, 0.0
  %v2018 = vmax.f32 %v1844, 0.0
  %v2019 = vmax.f32 %v1845, 0.0
  %v2020 = vmax.f32 %v1846, 0.0
  %v2021 = vmax.f32 %v1847, 0.0
  %v2022 = vmax.f32 %v1848, 0.0
  %v2023 = vmax.f32 %v1849, 0.0
  %v2024 = vmax.f32 %v1850, 0.0
  %v2025 = vmax.f32 %v1851, 0.0
  %v2026 = vmax.f32 %v1852, 0.0
  %v2027 = vmax.f32 %v1853, 0.0
  %v2028 = vmax.f32 %v1854, 0.0
  %v2029 = vmax.f32 %v1855, 0.0
  %v2030 = vmax.f32 %v1856, 0.0
  %v2031 = vmax.f32 %v1857, 0.0
  %2032 = vst [vmem:[%s9] sm:$0xff] %v1998
  %2033 = vst [vmem:[%s9 + $0x8] sm:$0xff] %v1999
  %2034 = vst [vmem:[%s9 + $0x10] sm:$0xff] %v2000
  %2035 = vst [vmem:[%s9 + $0x18] sm:$0xff] %v2001
  %2036 = vst [vmem:[%s9 + $0x20] sm:$0xff] %v2002
  %2037 = vst [vmem:[%s9 + $0x28] sm:$0xff] %v2003
  %2038 = vst [vmem:[%s9 + $0x30] sm:$0xff] %v2004
  %2039 = vst [vmem:[%s9 + $0x38] sm:$0xff] %v2005
  %2040 = vst [vmem:[%s9 + $0x40] sm:$0xff] %v2006
  %2041 = vst [vmem:[%s9 + $0x48] sm:$0xff] %v2007
  %2042 = vst [vmem:[%s9 + $0x50] sm:$0xff] %v2008
  %2043 = vst [vmem:[%s9 + $0x58] sm:$0xff] %v2009
  %2044 = vst [vmem:[%s9 + $0x60] sm:$0xff] %v2010
  %2045 = vst [vmem:[%s9 + $0x68] sm:$0xff] %v2011
  %2046 = vst [vmem:[%s9 + $0x70] sm:$0xff] %v2012
  %2047 = vst [vmem:[%s9 + $0x78] sm:$0xff] %v2013
  %2048 = vst [vmem:[%s9 + $0x80] sm:$0xff] %v2014
  %2049 = vst [vmem:[%s9 + $0x88] sm:$0xff] %v2015
  %2050 = vst [vmem:[%s9 + $0x90] sm:$0xff] %v2016
  %2051 = vst [vmem:[%s9 + $0x98] sm:$0xff] %v2017
  %2052 = vst [vmem:[%s9 + $0xa0] sm:$0xff] %v2018
  %2053 = vst [vmem:[%s9 + $0xa8] sm:$0xff] %v2019
  %2054 = vst [vmem:[%s9 + $0xb0] sm:$0xff] %v2020
  %2055 = vst [vmem:[%s9 + $0xb8] sm:$0xff] %v2021
  %2056 = vst [vmem:[%s9 + $0xc0] sm:$0xff] %v2022
  %2057 = vst [vmem:[%s9 + $0xc8] sm:$0xff] %v2023
  %2058 = vst [vmem:[%s9 + $0xd0] sm:$0xff] %v2024
  %2059 = vst [vmem:[%s9 + $0xd8] sm:$0xff] %v2025
  %2060 = vst [vmem:[%s9 + $0xe0] sm:$0xff] %v2026
  %2061 = vst [vmem:[%s9 + $0xe8] sm:$0xff] %v2027
  %2062 = vst [vmem:[%s9 + $0xf0] sm:$0xff] %v2028
  %2063 = vst [vmem:[%s9 + $0xf8] sm:$0xff] %v2029
  %2064 = vst [vmem:[%s9 + $0x100] sm:$0xff] %v2030
  %2065 = vst [vmem:[%s9 + $0x108] sm:$0xff] %v2031
  %v2066 = vmax.f32 %v1892, 0.0
  %v2067 = vmax.f32 %v1893, 0.0
  %v2068 = vmax.f32 %v1894, 0.0
  %v2069 = vmax.f32 %v1895, 0.0
  %v2070 = vmax.f32 %v1896, 0.0
  %v2071 = vmax.f32 %v1897, 0.0
  %v2072 = vmax.f32 %v1898, 0.0
  %v2073 = vmax.f32 %v1899, 0.0
  %v2074 = vmax.f32 %v1900, 0.0
  %v2075 = vmax.f32 %v1901, 0.0
  %v2076 = vmax.f32 %v1902, 0.0
  %v2077 = vmax.f32 %v1903, 0.0
  %v2078 = vmax.f32 %v1904, 0.0
  %v2079 = vmax.f32 %v1905, 0.0
  %v2080 = vmax.f32 %v1906, 0.0
  %v2081 = vmax.f32 %v1907, 0.0
  %v2082 = vmax.f32 %v1908, 0.0
  %v2083 = vmax.f32 %v1909, 0.0
  %v2084 = vmax.f32 %v1910, 0.0
  %v2085 = vmax.f32 %v1911, 0.0
  %v2086 = vmax.f32 %v1912, 0.0
  %v2087 = vmax.f32 %v1913, 0.0
  %v2088 = vmax.f32 %v1914, 0.0
  %v2089 = vmax.f32 %v1915, 0.0
  %v2090 = vmax.f32 %v1916, 0.0
  %v2091 = vmax.f32 %v1917, 0.0
  %v2092 = vmax.f32 %v1918, 0.0
  %v2093 = vmax.f32 %v1919, 0.0
  %v2094 = vmax.f32 %v1920, 0.0
  %v2095 = vmax.f32 %v1921, 0.0
  %v2096 = vmax.f32 %v1922, 0.0
  %v2097 = vmax.f32 %v1923, 0.0
  %v2098 = vmax.f32 %v1924, 0.0
  %v2099 = vmax.f32 %v1925, 0.0
  %2100 = vst [vmem:[%s10] sm:$0xff] %v2066
  %2101 = vst [vmem:[%s10 + $0x8] sm:$0xff] %v2067
  %2102 = vst [vmem:[%s10 + $0x10] sm:$0xff] %v2068
  %2103 = vst [vmem:[%s10 + $0x18] sm:$0xff] %v2069
  %2104 = vst [vmem:[%s10 + $0x20] sm:$0xff] %v2070
  %2105 = vst [vmem:[%s10 + $0x28] sm:$0xff] %v2071
  %2106 = vst [vmem:[%s10 + $0x30] sm:$0xff] %v2072
  %2107 = vst [vmem:[%s10 + $0x38] sm:$0xff] %v2073
  %2108 = vst [vmem:[%s10 + $0x40] sm:$0xff] %v2074
  %2109 = vst [vmem:[%s10 + $0x48] sm:$0xff] %v2075
  %2110 = vst [vmem:[%s10 + $0x50] sm:$0xff] %v2076
  %2111 = vst [vmem:[%s10 + $0x58] sm:$0xff] %v2077
  %2112 = vst [vmem:[%s10 + $0x60] sm:$0xff] %v2078
  %2113 = vst [vmem:[%s10 + $0x68] sm:$0xff] %v2079
  %2114 = vst [vmem:[%s10 + $0x70] sm:$0xff] %v2080
  %2115 = vst [vmem:[%s10 + $0x78] sm:$0xff] %v2081
  %2116 = vst [vmem:[%s10 + $0x80] sm:$0xff] %v2082
  %2117 = vst [vmem:[%s10 + $0x88] sm:$0xff] %v2083
  %2118 = vst [vmem:[%s10 + $0x90] sm:$0xff] %v2084
  %2119 = vst [vmem:[%s10 + $0x98] sm:$0xff] %v2085
  %2120 = vst [vmem:[%s10 + $0xa0] sm:$0xff] %v2086
  %2121 = vst [vmem:[%s10 + $0xa8] sm:$0xff] %v2087
  %2122 = vst [vmem:[%s10 + $0xb0] sm:$0xff] %v2088
  %2123 = vst [vmem:[%s10 + $0xb8] sm:$0xff] %v2089
  %2124 = vst [vmem:[%s10 + $0xc0] sm:$0xff] %v2090
  %2125 = vst [vmem:[%s10 + $0xc8] sm:$0xff] %v2091
  %2126 = vst [vmem:[%s10 + $0xd0] sm:$0xff] %v2092
  %2127 = vst [vmem:[%s10 + $0xd8] sm:$0xff] %v2093
  %2128 = vst [vmem:[%s10 + $0xe0] sm:$0xff] %v2094
  %2129 = vst [vmem:[%s10 + $0xe8] sm:$0xff] %v2095
  %2130 = vst [vmem:[%s10 + $0xf0] sm:$0xff] %v2096
  %2131 = vst [vmem:[%s10 + $0xf8] sm:$0xff] %v2097
  %2132 = vst [vmem:[%s10 + $0x100] sm:$0xff] %v2098
  %2133 = vst [vmem:[%s10 + $0x108] sm:$0xff] %v2099
  // Predicated region
  $region34: #{bucket_forward.8} parent=0 // pred_check
    _
  $region35: #{bucket_forward.8} parent=0 // pred_check_branch
    %2135 = sbr.rel (0) target = $region37
  $region36: #{bucket_forward.8} parent=0 // pred_region
    _
  $region37: #{bucket_forward.8} parent=0 // pred_fallthru
    _
  // Predicated region
  $region38: #{bucket_forward.8} parent=0 // pred_check
    _
  $region39: #{bucket_forward.8} parent=0 // pred_check_branch
    %2137 = sbr.rel (0) target = $region41
  $region40: #{bucket_forward.8} parent=0 // pred_region
    _
  $region41: #{bucket_forward.8} parent=0 // pred_fallthru
    _
  // Predicated region
  $region42: #{bucket_forward.8} parent=0 // pred_check
    _
  $region43: #{bucket_forward.8} parent=0 // pred_check_branch
    %2139 = sbr.rel (0) target = $region45
  $region44: #{bucket_forward.8} parent=0 // pred_region
    _
  $region45: #{bucket_forward.8} parent=0 // pred_fallthru
    _
  // Predicated region
  $region46: #{bucket_forward.8} parent=0 // pred_check
    _
  $region47: #{bucket_forward.8} parent=0 // pred_check_branch
    %2141 = sbr.rel (0) target = $region49
  $region48: #{bucket_forward.8} parent=0 // pred_region
    _
  $region49: #{bucket_forward.8} parent=0 // pred_fallthru
    _
  // Predicated region
  $region50: #{bucket_forward.8} parent=0 // pred_check
    _
  $region51: #{bucket_forward.8} parent=0 // pred_check_branch
    %2143 = sbr.rel (0) target = $region53
  $region52: #{bucket_forward.8} parent=0 // pred_region
    _
  $region53: #{bucket_forward.8} parent=0 // pred_fallthru
    _
  // Predicated region
  $region54: #{bucket_forward.8} parent=0 // pred_check
    _
  $region55: #{bucket_forward.8} parent=0 // pred_check_branch
    %2145 = sbr.rel (0) target = $region57
  $region56: #{bucket_forward.8} parent=0 // pred_region
    _
  $region57: #{bucket_forward.8} parent=0 // pred_fallthru
    _

// kernel: bucket_forward.9
$region0: #{bucket_forward.9}
  #allocation0 [shape = 'u32[]', space=smem, size = 0x4, offset = 0x4, fixed_abs, tag = 'smem constant byte address 0x4 - core index']
  #allocation1 [shape = 'u32[144,128]{1,0:T(1,128)}', space=vmem, size = 0x12000, scoped, tag = 'internal scratch']
  %s0 = inlined_call_operand.vmem [shape: f32[944,128], index: 0, kind: input, shape index: {}, may-alias: {0,1}]
  %s1 = inlined_call_operand.vmem [shape: f32[944,128], index: 1, kind: input, shape index: {}, may-alias: {0,1}]
  %s2 = inlined_call_operand.vmem [shape: f32[128,128], index: 2, kind: input, shape index: {}]
  %s3 = inlined_call_operand.vmem [shape: f32[128,128], index: 3, kind: input, shape index: {}]
  %s4 = inlined_call_operand.vmem [shape: f32[1,128], index: 4, kind: input, shape index: {}]
  %s5 = inlined_call_operand.vmem [shape: f32[944,128], index: 5, kind: input, shape index: {}]
  %s6 = inlined_call_operand.vmem [shape: f32[944,128], index: 6, kind: input, shape index: {}]
  %s7 = inlined_call_operand.vmem [shape: f32[944,128], index: 7, kind: output, shape index: {0}]
  %s8 = inlined_call_operand.vmem [shape: f32[944,128], index: 8, kind: output, shape index: {1}]
  %9 = xla_tuple %s7, %s8
  %s10 = sld [smem:[#allocation0]]
  $region46: #{bucket_forward.9} parent=0
    _
  %s12 = ssub.s32 1, %s10
  %s13 = scalar_select 0, %s12, %s10
  // Predicated region
  $region2: #{bucket_forward.9} parent=0 // pred_check
    _
  $region3: #{bucket_forward.9} parent=0 // pred_check_branch
    %15 = sbr.rel (0) target = $region5
  $region4: #{bucket_forward.9} parent=0 // pred_region
    _
  $region5: #{bucket_forward.9} parent=0 // pred_fallthru
    _
  // Predicated region
  $region6: #{bucket_forward.9} parent=0 // pred_check
    _
  $region7: #{bucket_forward.9} parent=0 // pred_check_branch
    %17 = sbr.rel (0) target = $region9
  $region8: #{bucket_forward.9} parent=0 // pred_region
    _
  $region9: #{bucket_forward.9} parent=0 // pred_fallthru
    _
  // Predicated region
  $region10: #{bucket_forward.9} parent=0 // pred_check
    _
  $region11: #{bucket_forward.9} parent=0 // pred_check_branch
    %19 = sbr.rel (0) target = $region13
  $region12: #{bucket_forward.9} parent=0 // pred_region
    _
  $region13: #{bucket_forward.9} parent=0 // pred_fallthru
    _
  // Predicated region
  $region14: #{bucket_forward.9} parent=0 // pred_check
    _
  $region15: #{bucket_forward.9} parent=0 // pred_check_branch
    %21 = sbr.rel (0) target = $region17
  $region16: #{bucket_forward.9} parent=0 // pred_region
    _
  $region17: #{bucket_forward.9} parent=0 // pred_fallthru
    _
  // Predicated region
  $region18: #{bucket_forward.9} parent=0 // pred_check
    _
  $region19: #{bucket_forward.9} parent=0 // pred_check_branch
    %23 = sbr.rel (0) target = $region21
  $region20: #{bucket_forward.9} parent=0 // pred_region
    _
  $region21: #{bucket_forward.9} parent=0 // pred_fallthru
    _
  // Predicated region
  $region22: #{bucket_forward.9} parent=0 // pred_check
    _
  $region23: #{bucket_forward.9} parent=0 // pred_check_branch
    %25 = sbr.rel (0) target = $region25
  $region24: #{bucket_forward.9} parent=0 // pred_region
    _
  $region25: #{bucket_forward.9} parent=0 // pred_fallthru
    _
  // Predicated region
  $region26: #{bucket_forward.9} parent=0 // pred_check
    _
  $region27: #{bucket_forward.9} parent=0 // pred_check_branch
    %27 = sbr.rel (0) target = $region29
  $region28: #{bucket_forward.9} parent=0 // pred_region
    _
  $region29: #{bucket_forward.9} parent=0 // pred_fallthru
    _
  %v28 = vld [vmem:[%s4] sm:$0x1]
  %v29 = vld [vmem:[%s0] sm:$0xff]
  %v30 = vld [vmem:[%s0 + $0x8] sm:$0xff]
  %v31 = vld [vmem:[%s0 + $0x10] sm:$0xff]
  %v32 = vld [vmem:[%s0 + $0x18] sm:$0xff]
  %v33 = vld [vmem:[%s0 + $0x20] sm:$0xff]
  %v34 = vld [vmem:[%s0 + $0x28] sm:$0xff]
  %v35 = vld [vmem:[%s0 + $0x30] sm:$0xff]
  %v36 = vld [vmem:[%s0 + $0x38] sm:$0xff]
  %v37 = vld [vmem:[%s0 + $0x40] sm:$0xff]
  %v38 = vld [vmem:[%s0 + $0x48] sm:$0xff]
  %v39 = vld [vmem:[%s0 + $0x50] sm:$0xff]
  %v40 = vld [vmem:[%s0 + $0x58] sm:$0xff]
  %v41 = vld [vmem:[%s0 + $0x60] sm:$0xff]
  %v42 = vld [vmem:[%s0 + $0x68] sm:$0xff]
  %v43 = vld [vmem:[%s0 + $0x70] sm:$0xff]
  %v44 = vld [vmem:[%s0 + $0x78] sm:$0xff]
  %v45 = vld [vmem:[%s0 + $0x80] sm:$0xff]
  %v46 = vld [vmem:[%s0 + $0x88] sm:$0xff]
  %v47 = vld [vmem:[%s0 + $0x90] sm:$0xff]
  %v48 = vld [vmem:[%s0 + $0x98] sm:$0xff]
  %v49 = vld [vmem:[%s0 + $0xa0] sm:$0xff]
  %v50 = vld [vmem:[%s0 + $0xa8] sm:$0xff]
  %v51 = vld [vmem:[%s0 + $0xb0] sm:$0xff]
  %v52 = vld [vmem:[%s0 + $0xb8] sm:$0xff]
  %v53 = vld [vmem:[%s0 + $0xc0] sm:$0xff]
  %v54 = vld [vmem:[%s0 + $0xc8] sm:$0xff]
  %v55 = vld [vmem:[%s0 + $0xd0] sm:$0xff]
  %v56 = vld [vmem:[%s0 + $0xd8] sm:$0xff]
  %v57 = vld [vmem:[%s0 + $0xe0] sm:$0xff]
  %v58 = vld [vmem:[%s0 + $0xe8] sm:$0xff]
  %v59 = vld [vmem:[%s0 + $0xf0] sm:$0xff]
  %v60 = vld [vmem:[%s0 + $0xf8] sm:$0xff]
  %v61 = vld [vmem:[%s0 + $0x100] sm:$0xff]
  %v62 = vld [vmem:[%s0 + $0x108] sm:$0xff]
  %v63 = vld [vmem:[%s0 + $0x110] sm:$0xff]
  %v64 = vld [vmem:[%s0 + $0x118] sm:$0xff]
  %v65 = vld [vmem:[%s0 + $0x120] sm:$0xff]
  %v66 = vld [vmem:[%s0 + $0x128] sm:$0xff]
  %v67 = vld [vmem:[%s0 + $0x130] sm:$0xff]
  %v68 = vld [vmem:[%s0 + $0x138] sm:$0xff]
  %v69 = vld [vmem:[%s0 + $0x140] sm:$0xff]
  %v70 = vld [vmem:[%s0 + $0x148] sm:$0xff]
  %v71 = vld [vmem:[%s0 + $0x150] sm:$0xff]
  %v72 = vld [vmem:[%s0 + $0x158] sm:$0xff]
  %v73 = vld [vmem:[%s0 + $0x160] sm:$0xff]
  %v74 = vld [vmem:[%s0 + $0x168] sm:$0xff]
  %v75 = vld [vmem:[%s0 + $0x170] sm:$0xff]
  %v76 = vld [vmem:[%s0 + $0x178] sm:$0xff]
  %v77 = vld [vmem:[%s0 + $0x180] sm:$0xff]
  %v78 = vld [vmem:[%s0 + $0x188] sm:$0xff]
  %v79 = vld [vmem:[%s0 + $0x190] sm:$0xff]
  %v80 = vld [vmem:[%s0 + $0x198] sm:$0xff]
  %v81 = vld [vmem:[%s0 + $0x1a0] sm:$0xff]
  %v82 = vld [vmem:[%s0 + $0x1a8] sm:$0xff]
  %v83 = vld [vmem:[%s0 + $0x1b0] sm:$0xff]
  %v84 = vld [vmem:[%s0 + $0x1b8] sm:$0xff]
  %v85 = vld [vmem:[%s0 + $0x1c0] sm:$0xff]
  %v86 = vld [vmem:[%s0 + $0x1c8] sm:$0xff]
  %v87 = vld [vmem:[%s0 + $0x1d0] sm:$0xff]
  %v88 = vld [vmem:[%s0 + $0x1d8] sm:$0xff]
  %v89 = vld [vmem:[%s0 + $0x1e0] sm:$0xff]
  %v90 = vld [vmem:[%s0 + $0x1e8] sm:$0xff]
  %v91 = vld [vmem:[%s0 + $0x1f0] sm:$0xff]
  %v92 = vld [vmem:[%s0 + $0x1f8] sm:$0xff]
  %v93 = vld [vmem:[%s0 + $0x200] sm:$0xff]
  %v94 = vld [vmem:[%s0 + $0x208] sm:$0xff]
  %v95 = vld [vmem:[%s0 + $0x210] sm:$0xff]
  %v96 = vld [vmem:[%s0 + $0x218] sm:$0xff]
  %v97 = vld [vmem:[%s0 + $0x220] sm:$0xff]
  %v98 = vld [vmem:[%s0 + $0x228] sm:$0xff]
  %v99 = vld [vmem:[%s0 + $0x230] sm:$0xff]
  %v100 = vld [vmem:[%s0 + $0x238] sm:$0xff]
  %v101 = vld [vmem:[%s0 + $0x240] sm:$0xff]
  %v102 = vld [vmem:[%s0 + $0x248] sm:$0xff]
  %v103 = vld [vmem:[%s0 + $0x250] sm:$0xff]
  %v104 = vld [vmem:[%s0 + $0x258] sm:$0xff]
  %v105 = vld [vmem:[%s0 + $0x260] sm:$0xff]
  %v106 = vld [vmem:[%s0 + $0x268] sm:$0xff]
  %v107 = vld [vmem:[%s0 + $0x270] sm:$0xff]
  %v108 = vld [vmem:[%s0 + $0x278] sm:$0xff]
  %v109 = vld [vmem:[%s0 + $0x280] sm:$0xff]
  %v110 = vld [vmem:[%s0 + $0x288] sm:$0xff]
  %v111 = vld [vmem:[%s0 + $0x290] sm:$0xff]
  %v112 = vld [vmem:[%s0 + $0x298] sm:$0xff]
  %v113 = vld [vmem:[%s0 + $0x2a0] sm:$0xff]
  %v114 = vld [vmem:[%s0 + $0x2a8] sm:$0xff]
  %v115 = vld [vmem:[%s0 + $0x2b0] sm:$0xff]
  %v116 = vld [vmem:[%s0 + $0x2b8] sm:$0xff]
  %v117 = vld [vmem:[%s0 + $0x2c0] sm:$0xff]
  %v118 = vld [vmem:[%s0 + $0x2c8] sm:$0xff]
  %v119 = vld [vmem:[%s0 + $0x2d0] sm:$0xff]
  %v120 = vld [vmem:[%s0 + $0x2d8] sm:$0xff]
  %v121 = vld [vmem:[%s0 + $0x2e0] sm:$0xff]
  %v122 = vld [vmem:[%s0 + $0x2e8] sm:$0xff]
  %v123 = vld [vmem:[%s0 + $0x2f0] sm:$0xff]
  %v124 = vld [vmem:[%s0 + $0x2f8] sm:$0xff]
  %v125 = vld [vmem:[%s0 + $0x300] sm:$0xff]
  %v126 = vld [vmem:[%s0 + $0x308] sm:$0xff]
  %v127 = vld [vmem:[%s0 + $0x310] sm:$0xff]
  %v128 = vld [vmem:[%s0 + $0x318] sm:$0xff]
  %v129 = vld [vmem:[%s0 + $0x320] sm:$0xff]
  %v130 = vld [vmem:[%s0 + $0x328] sm:$0xff]
  %v131 = vld [vmem:[%s0 + $0x330] sm:$0xff]
  %v132 = vld [vmem:[%s0 + $0x338] sm:$0xff]
  %v133 = vld [vmem:[%s0 + $0x340] sm:$0xff]
  %v134 = vld [vmem:[%s0 + $0x348] sm:$0xff]
  %v135 = vld [vmem:[%s0 + $0x350] sm:$0xff]
  %v136 = vld [vmem:[%s0 + $0x358] sm:$0xff]
  %v137 = vld [vmem:[%s0 + $0x360] sm:$0xff]
  %v138 = vld [vmem:[%s0 + $0x368] sm:$0xff]
  %v139 = vld [vmem:[%s0 + $0x370] sm:$0xff]
  %v140 = vld [vmem:[%s0 + $0x378] sm:$0xff]
  %v141 = vld [vmem:[%s0 + $0x380] sm:$0xff]
  %v142 = vld [vmem:[%s0 + $0x388] sm:$0xff]
  %v143 = vld [vmem:[%s0 + $0x390] sm:$0xff]
  %v144 = vld [vmem:[%s0 + $0x398] sm:$0xff]
  %v145 = vld [vmem:[%s0 + $0x3a0] sm:$0xff]
  %v146 = vld [vmem:[%s0 + $0x3a8] sm:$0xff]
  %v147 = vld [vmem:[%s2] sm:$0xff]
  %v148 = vld [vmem:[%s2 + $0x8] sm:$0xff]
  %v149 = vld [vmem:[%s2 + $0x10] sm:$0xff]
  %v150 = vld [vmem:[%s2 + $0x18] sm:$0xff]
  %v151 = vld [vmem:[%s2 + $0x20] sm:$0xff]
  %v152 = vld [vmem:[%s2 + $0x28] sm:$0xff]
  %v153 = vld [vmem:[%s2 + $0x30] sm:$0xff]
  %v154 = vld [vmem:[%s2 + $0x38] sm:$0xff]
  %v155 = vld [vmem:[%s2 + $0x40] sm:$0xff]
  %v156 = vld [vmem:[%s2 + $0x48] sm:$0xff]
  %v157 = vld [vmem:[%s2 + $0x50] sm:$0xff]
  %v158 = vld [vmem:[%s2 + $0x58] sm:$0xff]
  %v159 = vld [vmem:[%s2 + $0x60] sm:$0xff]
  %v160 = vld [vmem:[%s2 + $0x68] sm:$0xff]
  %v161 = vld [vmem:[%s2 + $0x70] sm:$0xff]
  %v162 = vld [vmem:[%s2 + $0x78] sm:$0xff]
  %v164 = vlaneseq
  %v165 = vshrl.u32 %v164, 7
  %v166 = vsub.s32 0, %v165
  %v167 = vrot.slane %v28, %v166
  %169 = vmatprep.subr.mxu0 0.0
  %170 = vmatpush1.msra.mxu0 %v147
  %171 = vmatprep.subr.mxu0 0.0
  %172 = vmatpush1.msra.mxu0 %v148
  %173 = vmatprep.subr.mxu0 0.0
  %174 = vmatpush1.msra.mxu0 %v149
  %175 = vmatprep.subr.mxu0 0.0
  %176 = vmatpush1.msra.mxu0 %v150
  %177 = vmatprep.subr.mxu0 0.0
  %178 = vmatpush1.msra.mxu0 %v151
  %179 = vmatprep.subr.mxu0 0.0
  %180 = vmatpush1.msra.mxu0 %v152
  %181 = vmatprep.subr.mxu0 0.0
  %182 = vmatpush1.msra.mxu0 %v153
  %183 = vmatprep.subr.mxu0 0.0
  %184 = vmatpush1.msra.mxu0 %v154
  %185 = vmatprep.subr.mxu0 0.0
  %186 = vmatpush1.msra.mxu0 %v155
  %187 = vmatprep.subr.mxu0 0.0
  %188 = vmatpush1.msra.mxu0 %v156
  %189 = vmatprep.subr.mxu0 0.0
  %190 = vmatpush1.msra.mxu0 %v157
  %191 = vmatprep.subr.mxu0 0.0
  %192 = vmatpush1.msra.mxu0 %v158
  %193 = vmatprep.subr.mxu0 0.0
  %194 = vmatpush1.msra.mxu0 %v159
  %195 = vmatprep.subr.mxu0 0.0
  %196 = vmatpush1.msra.mxu0 %v160
  %197 = vmatprep.subr.mxu0 0.0
  %198 = vmatpush1.msra.mxu0 %v161
  %199 = vmatprep.subr.mxu0 0.0
  %200 = vmatpush1.msra.mxu0 %v162
  %201 = vmatprep.subr.mxu0 0.0
  %202 = vmatpush1.msra.mxu0 0.0
  %203 = vmatprep.subr.mxu0 0.0
  %204 = vmatpush1.msra.mxu0 0.0
  %205 = vmatprep.subr.mxu0 0.0
  %206 = vmatpush1.msra.mxu0 0.0
  %207 = vmatprep.subr.mxu0 0.0
  %208 = vmatpush1.msra.mxu0 0.0
  %209 = vmatprep.subr.mxu0 0.0
  %210 = vmatpush1.msra.mxu0 0.0
  %211 = vmatprep.subr.mxu0 0.0
  %212 = vmatpush1.msra.mxu0 0.0
  %213 = vmatprep.subr.mxu0 0.0
  %214 = vmatpush1.msra.mxu0 0.0
  %215 = vmatprep.subr.mxu0 0.0
  %216 = vmatpush1.msra.mxu0 0.0
  %217 = vmatprep.subr.mxu0 0.0
  %218 = vmatpush1.msra.mxu0 0.0
  %219 = vmatprep.subr.mxu0 0.0
  %220 = vmatpush1.msra.mxu0 0.0
  %221 = vmatprep.subr.mxu0 0.0
  %222 = vmatpush1.msra.mxu0 0.0
  %223 = vmatprep.subr.mxu0 0.0
  %224 = vmatpush1.msra.mxu0 0.0
  %225 = vmatprep.subr.mxu0 0.0
  %226 = vmatpush1.msra.mxu0 0.0
  %227 = vmatprep.subr.mxu0 0.0
  %228 = vmatpush1.msra.mxu0 0.0
  %229 = vmatprep.subr.mxu0 0.0
  %230 = vmatpush1.msra.mxu0 0.0
  %231 = vmatprep.subr.mxu0 0.0
  %232 = vmatpush1.msra.mxu0 0.0
  %233 = vmatprep.mubr.f32.mxu0 0.0
  %234 = vmatmul.mubr.f32.gmra.mrb[0].mxu0 %v29
  %v235 = vpop.f32.mrb[0].mxu0
  %v236 = vadd.f32 %v167, %v235
  %v237 = vpop.f32.mrb[0].mxu0
  %238 = vmatprep.mubr.f32.mxu0 0.0
  %239 = vmatmul.mubr.f32.gmra.mrb[0].mxu0 %v30
  %v240 = vpop.f32.mrb[0].mxu0
  %v241 = vadd.f32 %v167, %v240
  %v242 = vpop.f32.mrb[0].mxu0
  %243 = vmatprep.mubr.f32.mxu0 0.0
  %244 = vmatmul.mubr.f32.gmra.mrb[0].mxu0 %v31
  %v245 = vpop.f32.mrb[0].mxu0
  %v246 = vadd.f32 %v167, %v245
  %v247 = vpop.f32.mrb[0].mxu0
  %248 = vmatprep.mubr.f32.mxu0 0.0
  %249 = vmatmul.mubr.f32.gmra.mrb[0].mxu0 %v32
  %v250 = vpop.f32.mrb[0].mxu0
  %v251 = vadd.f32 %v167, %v250
  %v252 = vpop.f32.mrb[0].mxu0
  %253 = vmatprep.mubr.f32.mxu0 0.0
  %254 = vmatmul.mubr.f32.gmra.mrb[0].mxu0 %v33
  %v255 = vpop.f32.mrb[0].mxu0
  %v256 = vadd.f32 %v167, %v255
  %v257 = vpop.f32.mrb[0].mxu0
  %258 = vmatprep.mubr.f32.mxu0 0.0
  %259 = vmatmul.mubr.f32.gmra.mrb[0].mxu0 %v34
  %v260 = vpop.f32.mrb[0].mxu0
  %v261 = vadd.f32 %v167, %v260
  %v262 = vpop.f32.mrb[0].mxu0
  %263 = vmatprep.mubr.f32.mxu0 0.0
  %264 = vmatmul.mubr.f32.gmra.mrb[0].mxu0 %v35
  %v265 = vpop.f32.mrb[0].mxu0
  %v266 = vadd.f32 %v167, %v265
  %v267 = vpop.f32.mrb[0].mxu0
  %268 = vmatprep.mubr.f32.mxu0 0.0
  %269 = vmatmul.mubr.f32.gmra.mrb[0].mxu0 %v36
  %v270 = vpop.f32.mrb[0].mxu0
  %v271 = vadd.f32 %v167, %v270
  %v272 = vpop.f32.mrb[0].mxu0
  %273 = vmatprep.mubr.f32.mxu0 0.0
  %274 = vmatmul.mubr.f32.gmra.mrb[0].mxu0 %v37
  %v275 = vpop.f32.mrb[0].mxu0
  %v276 = vadd.f32 %v167, %v275
  %v277 = vpop.f32.mrb[0].mxu0
  %278 = vmatprep.mubr.f32.mxu0 0.0
  %279 = vmatmul.mubr.f32.gmra.mrb[0].mxu0 %v38
  %v280 = vpop.f32.mrb[0].mxu0
  %v281 = vadd.f32 %v167, %v280
  %v282 = vpop.f32.mrb[0].mxu0
  %283 = vmatprep.mubr.f32.mxu0 0.0
  %284 = vmatmul.mubr.f32.gmra.mrb[0].mxu0 %v39
  %v285 = vpop.f32.mrb[0].mxu0
  %v286 = vadd.f32 %v167, %v285
  %v287 = vpop.f32.mrb[0].mxu0
  %288 = vmatprep.mubr.f32.mxu0 0.0
  %289 = vmatmul.mubr.f32.gmra.mrb[0].mxu0 %v40
  %v290 = vpop.f32.mrb[0].mxu0
  %v291 = vadd.f32 %v167, %v290
  %v292 = vpop.f32.mrb[0].mxu0
  %293 = vmatprep.mubr.f32.mxu0 0.0
  %294 = vmatmul.mubr.f32.gmra.mrb[0].mxu0 %v41
  %v295 = vpop.f32.mrb[0].mxu0
  %v296 = vadd.f32 %v167, %v295
  %v297 = vpop.f32.mrb[0].mxu0
  %298 = vmatprep.mubr.f32.mxu0 0.0
  %299 = vmatmul.mubr.f32.gmra.mrb[0].mxu0 %v42
  %v300 = vpop.f32.mrb[0].mxu0
  %v301 = vadd.f32 %v167, %v300
  %v302 = vpop.f32.mrb[0].mxu0
  %303 = vmatprep.mubr.f32.mxu0 0.0
  %304 = vmatmul.mubr.f32.gmra.mrb[0].mxu0 %v43
  %v305 = vpop.f32.mrb[0].mxu0
  %v306 = vadd.f32 %v167, %v305
  %v307 = vpop.f32.mrb[0].mxu0
  %308 = vmatprep.mubr.f32.mxu0 0.0
  %309 = vmatmul.mubr.f32.gmra.mrb[0].mxu0 %v44
  %v310 = vpop.f32.mrb[0].mxu0
  %v311 = vadd.f32 %v167, %v310
  %v312 = vpop.f32.mrb[0].mxu0
  %313 = vmatprep.mubr.f32.mxu0 0.0
  %314 = vmatmul.mubr.f32.gmra.mrb[0].mxu0 %v45
  %v315 = vpop.f32.mrb[0].mxu0
  %v316 = vadd.f32 %v167, %v315
  %v317 = vpop.f32.mrb[0].mxu0
  %318 = vmatprep.mubr.f32.mxu0 0.0
  %319 = vmatmul.mubr.f32.gmra.mrb[0].mxu0 %v46
  %v320 = vpop.f32.mrb[0].mxu0
  %v321 = vadd.f32 %v167, %v320
  %v322 = vpop.f32.mrb[0].mxu0
  %323 = vmatprep.mubr.f32.mxu0 0.0
  %324 = vmatmul.mubr.f32.gmra.mrb[0].mxu0 %v47
  %v325 = vpop.f32.mrb[0].mxu0
  %v326 = vadd.f32 %v167, %v325
  %v327 = vpop.f32.mrb[0].mxu0
  %328 = vmatprep.mubr.f32.mxu0 0.0
  %329 = vmatmul.mubr.f32.gmra.mrb[0].mxu0 %v48
  %v330 = vpop.f32.mrb[0].mxu0
  %v331 = vadd.f32 %v167, %v330
  %v332 = vpop.f32.mrb[0].mxu0
  %333 = vmatprep.mubr.f32.mxu0 0.0
  %334 = vmatmul.mubr.f32.gmra.mrb[0].mxu0 %v49
  %v335 = vpop.f32.mrb[0].mxu0
  %v336 = vadd.f32 %v167, %v335
  %v337 = vpop.f32.mrb[0].mxu0
  %338 = vmatprep.mubr.f32.mxu0 0.0
  %339 = vmatmul.mubr.f32.gmra.mrb[0].mxu0 %v50
  %v340 = vpop.f32.mrb[0].mxu0
  %v341 = vadd.f32 %v167, %v340
  %v342 = vpop.f32.mrb[0].mxu0
  %343 = vmatprep.mubr.f32.mxu0 0.0
  %344 = vmatmul.mubr.f32.gmra.mrb[0].mxu0 %v51
  %v345 = vpop.f32.mrb[0].mxu0
  %v346 = vadd.f32 %v167, %v345
  %v347 = vpop.f32.mrb[0].mxu0
  %348 = vmatprep.mubr.f32.mxu0 0.0
  %349 = vmatmul.mubr.f32.gmra.mrb[0].mxu0 %v52
  %v350 = vpop.f32.mrb[0].mxu0
  %v351 = vadd.f32 %v167, %v350
  %v352 = vpop.f32.mrb[0].mxu0
  %353 = vmatprep.mubr.f32.mxu0 0.0
  %354 = vmatmul.mubr.f32.gmra.mrb[0].mxu0 %v53
  %v355 = vpop.f32.mrb[0].mxu0
  %v356 = vadd.f32 %v167, %v355
  %v357 = vpop.f32.mrb[0].mxu0
  %358 = vmatprep.mubr.f32.mxu0 0.0
  %359 = vmatmul.mubr.f32.gmra.mrb[0].mxu0 %v54
  %v360 = vpop.f32.mrb[0].mxu0
  %v361 = vadd.f32 %v167, %v360
  %v362 = vpop.f32.mrb[0].mxu0
  %363 = vmatprep.mubr.f32.mxu0 0.0
  %364 = vmatmul.mubr.f32.gmra.mrb[0].mxu0 %v55
  %v365 = vpop.f32.mrb[0].mxu0
  %v366 = vadd.f32 %v167, %v365
  %v367 = vpop.f32.mrb[0].mxu0
  %368 = vmatprep.mubr.f32.mxu0 0.0
  %369 = vmatmul.mubr.f32.gmra.mrb[0].mxu0 %v56
  %v370 = vpop.f32.mrb[0].mxu0
  %v371 = vadd.f32 %v167, %v370
  %v372 = vpop.f32.mrb[0].mxu0
  %373 = vmatprep.mubr.f32.mxu0 0.0
  %374 = vmatmul.mubr.f32.gmra.mrb[0].mxu0 %v57
  %v375 = vpop.f32.mrb[0].mxu0
  %v376 = vadd.f32 %v167, %v375
  %v377 = vpop.f32.mrb[0].mxu0
  %378 = vmatprep.mubr.f32.mxu0 0.0
  %379 = vmatmul.mubr.f32.gmra.mrb[0].mxu0 %v58
  %v380 = vpop.f32.mrb[0].mxu0
  %v381 = vadd.f32 %v167, %v380
  %v382 = vpop.f32.mrb[0].mxu0
  %383 = vmatprep.mubr.f32.mxu0 0.0
  %384 = vmatmul.mubr.f32.gmra.mrb[0].mxu0 %v59
  %v385 = vpop.f32.mrb[0].mxu0
  %v386 = vadd.f32 %v167, %v385
  %v387 = vpop.f32.mrb[0].mxu0
  %388 = vmatprep.mubr.f32.mxu0 0.0
  %389 = vmatmul.mubr.f32.gmra.mrb[0].mxu0 %v60
  %v390 = vpop.f32.mrb[0].mxu0
  %v391 = vadd.f32 %v167, %v390
  %v392 = vpop.f32.mrb[0].mxu0
  %393 = vmatprep.mubr.f32.mxu0 0.0
  %394 = vmatmul.mubr.f32.gmra.mrb[0].mxu0 %v61
  %v395 = vpop.f32.mrb[0].mxu0
  %v396 = vadd.f32 %v167, %v395
  %v397 = vpop.f32.mrb[0].mxu0
  %398 = vmatprep.mubr.f32.mxu0 0.0
  %399 = vmatmul.mubr.f32.gmra.mrb[0].mxu0 %v62
  %v400 = vpop.f32.mrb[0].mxu0
  %v401 = vadd.f32 %v167, %v400
  %v402 = vpop.f32.mrb[0].mxu0
  %403 = vmatprep.mubr.f32.mxu0 0.0
  %404 = vmatmul.mubr.f32.gmra.mrb[0].mxu0 %v63
  %v405 = vpop.f32.mrb[0].mxu0
  %v406 = vadd.f32 %v167, %v405
  %v407 = vpop.f32.mrb[0].mxu0
  %408 = vmatprep.mubr.f32.mxu0 0.0
  %409 = vmatmul.mubr.f32.gmra.mrb[0].mxu0 %v64
  %v410 = vpop.f32.mrb[0].mxu0
  %v411 = vadd.f32 %v167, %v410
  %v412 = vpop.f32.mrb[0].mxu0
  %413 = vmatprep.mubr.f32.mxu0 0.0
  %414 = vmatmul.mubr.f32.gmra.mrb[0].mxu0 %v65
  %v415 = vpop.f32.mrb[0].mxu0
  %v416 = vadd.f32 %v167, %v415
  %v417 = vpop.f32.mrb[0].mxu0
  %418 = vmatprep.mubr.f32.mxu0 0.0
  %419 = vmatmul.mubr.f32.gmra.mrb[0].mxu0 %v66
  %v420 = vpop.f32.mrb[0].mxu0
  %v421 = vadd.f32 %v167, %v420
  %v422 = vpop.f32.mrb[0].mxu0
  %423 = vmatprep.mubr.f32.mxu0 0.0
  %424 = vmatmul.mubr.f32.gmra.mrb[0].mxu0 %v67
  %v425 = vpop.f32.mrb[0].mxu0
  %v426 = vadd.f32 %v167, %v425
  %v427 = vpop.f32.mrb[0].mxu0
  %428 = vmatprep.mubr.f32.mxu0 0.0
  %429 = vmatmul.mubr.f32.gmra.mrb[0].mxu0 %v68
  %v430 = vpop.f32.mrb[0].mxu0
  %v431 = vadd.f32 %v167, %v430
  %v432 = vpop.f32.mrb[0].mxu0
  %433 = vmatprep.mubr.f32.mxu0 0.0
  %434 = vmatmul.mubr.f32.gmra.mrb[0].mxu0 %v69
  %v435 = vpop.f32.mrb[0].mxu0
  %v436 = vadd.f32 %v167, %v435
  %v437 = vpop.f32.mrb[0].mxu0
  %438 = vmatprep.mubr.f32.mxu0 0.0
  %439 = vmatmul.mubr.f32.gmra.mrb[0].mxu0 %v70
  %v440 = vpop.f32.mrb[0].mxu0
  %v441 = vadd.f32 %v167, %v440
  %v442 = vpop.f32.mrb[0].mxu0
  %443 = vmatprep.mubr.f32.mxu0 0.0
  %444 = vmatmul.mubr.f32.gmra.mrb[0].mxu0 %v71
  %v445 = vpop.f32.mrb[0].mxu0
  %v446 = vadd.f32 %v167, %v445
  %v447 = vpop.f32.mrb[0].mxu0
  %448 = vmatprep.mubr.f32.mxu0 0.0
  %449 = vmatmul.mubr.f32.gmra.mrb[0].mxu0 %v72
  %v450 = vpop.f32.mrb[0].mxu0
  %v451 = vadd.f32 %v167, %v450
  %v452 = vpop.f32.mrb[0].mxu0
  %453 = vmatprep.mubr.f32.mxu0 0.0
  %454 = vmatmul.mubr.f32.gmra.mrb[0].mxu0 %v73
  %v455 = vpop.f32.mrb[0].mxu0
  %v456 = vadd.f32 %v167, %v455
  %v457 = vpop.f32.mrb[0].mxu0
  %458 = vmatprep.mubr.f32.mxu0 0.0
  %459 = vmatmul.mubr.f32.gmra.mrb[0].mxu0 %v74
  %v460 = vpop.f32.mrb[0].mxu0
  %v461 = vadd.f32 %v167, %v460
  %v462 = vpop.f32.mrb[0].mxu0
  %463 = vmatprep.mubr.f32.mxu0 0.0
  %464 = vmatmul.mubr.f32.gmra.mrb[0].mxu0 %v75
  %v465 = vpop.f32.mrb[0].mxu0
  %v466 = vadd.f32 %v167, %v465
  %v467 = vpop.f32.mrb[0].mxu0
  %468 = vmatprep.mubr.f32.mxu0 0.0
  %469 = vmatmul.mubr.f32.gmra.mrb[0].mxu0 %v76
  %v470 = vpop.f32.mrb[0].mxu0
  %v471 = vadd.f32 %v167, %v470
  %v472 = vpop.f32.mrb[0].mxu0
  %473 = vmatprep.mubr.f32.mxu0 0.0
  %474 = vmatmul.mubr.f32.gmra.mrb[0].mxu0 %v77
  %v475 = vpop.f32.mrb[0].mxu0
  %v476 = vadd.f32 %v167, %v475
  %v477 = vpop.f32.mrb[0].mxu0
  %478 = vmatprep.mubr.f32.mxu0 0.0
  %479 = vmatmul.mubr.f32.gmra.mrb[0].mxu0 %v78
  %v480 = vpop.f32.mrb[0].mxu0
  %v481 = vadd.f32 %v167, %v480
  %v482 = vpop.f32.mrb[0].mxu0
  %483 = vmatprep.mubr.f32.mxu0 0.0
  %484 = vmatmul.mubr.f32.gmra.mrb[0].mxu0 %v79
  %v485 = vpop.f32.mrb[0].mxu0
  %v486 = vadd.f32 %v167, %v485
  %v487 = vpop.f32.mrb[0].mxu0
  %488 = vmatprep.mubr.f32.mxu0 0.0
  %489 = vmatmul.mubr.f32.gmra.mrb[0].mxu0 %v80
  %v490 = vpop.f32.mrb[0].mxu0
  %v491 = vadd.f32 %v167, %v490
  %v492 = vpop.f32.mrb[0].mxu0
  %493 = vmatprep.mubr.f32.mxu0 0.0
  %494 = vmatmul.mubr.f32.gmra.mrb[0].mxu0 %v81
  %v495 = vpop.f32.mrb[0].mxu0
  %v496 = vadd.f32 %v167, %v495
  %v497 = vpop.f32.mrb[0].mxu0
  %498 = vmatprep.mubr.f32.mxu0 0.0
  %499 = vmatmul.mubr.f32.gmra.mrb[0].mxu0 %v82
  %v500 = vpop.f32.mrb[0].mxu0
  %v501 = vadd.f32 %v167, %v500
  %v502 = vpop.f32.mrb[0].mxu0
  %503 = vmatprep.mubr.f32.mxu0 0.0
  %504 = vmatmul.mubr.f32.gmra.mrb[0].mxu0 %v83
  %v505 = vpop.f32.mrb[0].mxu0
  %v506 = vadd.f32 %v167, %v505
  %v507 = vpop.f32.mrb[0].mxu0
  %508 = vmatprep.mubr.f32.mxu0 0.0
  %509 = vmatmul.mubr.f32.gmra.mrb[0].mxu0 %v84
  %v510 = vpop.f32.mrb[0].mxu0
  %v511 = vadd.f32 %v167, %v510
  %v512 = vpop.f32.mrb[0].mxu0
  %513 = vmatprep.mubr.f32.mxu0 0.0
  %514 = vmatmul.mubr.f32.gmra.mrb[0].mxu0 %v85
  %v515 = vpop.f32.mrb[0].mxu0
  %v516 = vadd.f32 %v167, %v515
  %v517 = vpop.f32.mrb[0].mxu0
  %518 = vmatprep.mubr.f32.mxu0 0.0
  %519 = vmatmul.mubr.f32.gmra.mrb[0].mxu0 %v86
  %v520 = vpop.f32.mrb[0].mxu0
  %v521 = vadd.f32 %v167, %v520
  %v522 = vpop.f32.mrb[0].mxu0
  %523 = vmatprep.mubr.f32.mxu0 0.0
  %524 = vmatmul.mubr.f32.gmra.mrb[0].mxu0 %v87
  %v525 = vpop.f32.mrb[0].mxu0
  %v526 = vadd.f32 %v167, %v525
  %v527 = vpop.f32.mrb[0].mxu0
  %528 = vmatprep.mubr.f32.mxu0 0.0
  %529 = vmatmul.mubr.f32.gmra.mrb[0].mxu0 %v88
  %v530 = vpop.f32.mrb[0].mxu0
  %v531 = vadd.f32 %v167, %v530
  %v532 = vpop.f32.mrb[0].mxu0
  %533 = vmatprep.mubr.f32.mxu0 0.0
  %534 = vmatmul.mubr.f32.gmra.mrb[0].mxu0 %v89
  %v535 = vpop.f32.mrb[0].mxu0
  %v536 = vadd.f32 %v167, %v535
  %v537 = vpop.f32.mrb[0].mxu0
  %538 = vmatprep.mubr.f32.mxu0 0.0
  %539 = vmatmul.mubr.f32.gmra.mrb[0].mxu0 %v90
  %v540 = vpop.f32.mrb[0].mxu0
  %v541 = vadd.f32 %v167, %v540
  %v542 = vpop.f32.mrb[0].mxu0
  %543 = vmatprep.mubr.f32.mxu0 0.0
  %544 = vmatmul.mubr.f32.gmra.mrb[0].mxu0 %v91
  %v545 = vpop.f32.mrb[0].mxu0
  %v546 = vadd.f32 %v167, %v545
  %v547 = vpop.f32.mrb[0].mxu0
  %548 = vmatprep.mubr.f32.mxu0 0.0
  %549 = vmatmul.mubr.f32.gmra.mrb[0].mxu0 %v92
  %v550 = vpop.f32.mrb[0].mxu0
  %v551 = vadd.f32 %v167, %v550
  %v552 = vpop.f32.mrb[0].mxu0
  %553 = vmatprep.mubr.f32.mxu0 0.0
  %554 = vmatmul.mubr.f32.gmra.mrb[0].mxu0 %v93
  %v555 = vpop.f32.mrb[0].mxu0
  %v556 = vadd.f32 %v167, %v555
  %v557 = vpop.f32.mrb[0].mxu0
  %558 = vmatprep.mubr.f32.mxu0 0.0
  %559 = vmatmul.mubr.f32.gmra.mrb[0].mxu0 %v94
  %v560 = vpop.f32.mrb[0].mxu0
  %v561 = vadd.f32 %v167, %v560
  %v562 = vpop.f32.mrb[0].mxu0
  %563 = vmatprep.mubr.f32.mxu0 0.0
  %564 = vmatmul.mubr.f32.gmra.mrb[0].mxu0 %v95
  %v565 = vpop.f32.mrb[0].mxu0
  %v566 = vadd.f32 %v167, %v565
  %v567 = vpop.f32.mrb[0].mxu0
  %568 = vmatprep.mubr.f32.mxu0 0.0
  %569 = vmatmul.mubr.f32.gmra.mrb[0].mxu0 %v96
  %v570 = vpop.f32.mrb[0].mxu0
  %v571 = vadd.f32 %v167, %v570
  %v572 = vpop.f32.mrb[0].mxu0
  %573 = vmatprep.mubr.f32.mxu0 0.0
  %574 = vmatmul.mubr.f32.gmra.mrb[0].mxu0 %v97
  %v575 = vpop.f32.mrb[0].mxu0
  %v576 = vadd.f32 %v167, %v575
  %v577 = vpop.f32.mrb[0].mxu0
  %578 = vmatprep.mubr.f32.mxu0 0.0
  %579 = vmatmul.mubr.f32.gmra.mrb[0].mxu0 %v98
  %v580 = vpop.f32.mrb[0].mxu0
  %v581 = vadd.f32 %v167, %v580
  %v582 = vpop.f32.mrb[0].mxu0
  %583 = vmatprep.mubr.f32.mxu0 0.0
  %584 = vmatmul.mubr.f32.gmra.mrb[0].mxu0 %v99
  %v585 = vpop.f32.mrb[0].mxu0
  %v586 = vadd.f32 %v167, %v585
  %v587 = vpop.f32.mrb[0].mxu0
  %588 = vmatprep.mubr.f32.mxu0 0.0
  %589 = vmatmul.mubr.f32.gmra.mrb[0].mxu0 %v100
  %v590 = vpop.f32.mrb[0].mxu0
  %v591 = vadd.f32 %v167, %v590
  %v592 = vpop.f32.mrb[0].mxu0
  %593 = vmatprep.mubr.f32.mxu0 0.0
  %594 = vmatmul.mubr.f32.gmra.mrb[0].mxu0 %v101
  %v595 = vpop.f32.mrb[0].mxu0
  %v596 = vadd.f32 %v167, %v595
  %v597 = vpop.f32.mrb[0].mxu0
  %598 = vmatprep.mubr.f32.mxu0 0.0
  %599 = vmatmul.mubr.f32.gmra.mrb[0].mxu0 %v102
  %v600 = vpop.f32.mrb[0].mxu0
  %v601 = vadd.f32 %v167, %v600
  %v602 = vpop.f32.mrb[0].mxu0
  %603 = vmatprep.mubr.f32.mxu0 0.0
  %604 = vmatmul.mubr.f32.gmra.mrb[0].mxu0 %v103
  %v605 = vpop.f32.mrb[0].mxu0
  %v606 = vadd.f32 %v167, %v605
  %v607 = vpop.f32.mrb[0].mxu0
  %608 = vmatprep.mubr.f32.mxu0 0.0
  %609 = vmatmul.mubr.f32.gmra.mrb[0].mxu0 %v104
  %v610 = vpop.f32.mrb[0].mxu0
  %v611 = vadd.f32 %v167, %v610
  %v612 = vpop.f32.mrb[0].mxu0
  %613 = vmatprep.mubr.f32.mxu0 0.0
  %614 = vmatmul.mubr.f32.gmra.mrb[0].mxu0 %v105
  %v615 = vpop.f32.mrb[0].mxu0
  %v616 = vadd.f32 %v167, %v615
  %v617 = vpop.f32.mrb[0].mxu0
  %618 = vmatprep.mubr.f32.mxu0 0.0
  %619 = vmatmul.mubr.f32.gmra.mrb[0].mxu0 %v106
  %v620 = vpop.f32.mrb[0].mxu0
  %v621 = vadd.f32 %v167, %v620
  %v622 = vpop.f32.mrb[0].mxu0
  %623 = vmatprep.mubr.f32.mxu0 0.0
  %624 = vmatmul.mubr.f32.gmra.mrb[0].mxu0 %v107
  %v625 = vpop.f32.mrb[0].mxu0
  %v626 = vadd.f32 %v167, %v625
  %v627 = vpop.f32.mrb[0].mxu0
  %628 = vmatprep.mubr.f32.mxu0 0.0
  %629 = vmatmul.mubr.f32.gmra.mrb[0].mxu0 %v108
  %v630 = vpop.f32.mrb[0].mxu0
  %v631 = vadd.f32 %v167, %v630
  %v632 = vpop.f32.mrb[0].mxu0
  %633 = vmatprep.mubr.f32.mxu0 0.0
  %634 = vmatmul.mubr.f32.gmra.mrb[0].mxu0 %v109
  %v635 = vpop.f32.mrb[0].mxu0
  %v636 = vadd.f32 %v167, %v635
  %v637 = vpop.f32.mrb[0].mxu0
  %638 = vmatprep.mubr.f32.mxu0 0.0
  %639 = vmatmul.mubr.f32.gmra.mrb[0].mxu0 %v110
  %v640 = vpop.f32.mrb[0].mxu0
  %v641 = vadd.f32 %v167, %v640
  %v642 = vpop.f32.mrb[0].mxu0
  %643 = vmatprep.mubr.f32.mxu0 0.0
  %644 = vmatmul.mubr.f32.gmra.mrb[0].mxu0 %v111
  %v645 = vpop.f32.mrb[0].mxu0
  %v646 = vadd.f32 %v167, %v645
  %v647 = vpop.f32.mrb[0].mxu0
  %648 = vmatprep.mubr.f32.mxu0 0.0
  %649 = vmatmul.mubr.f32.gmra.mrb[0].mxu0 %v112
  %v650 = vpop.f32.mrb[0].mxu0
  %v651 = vadd.f32 %v167, %v650
  %v652 = vpop.f32.mrb[0].mxu0
  %653 = vmatprep.mubr.f32.mxu0 0.0
  %654 = vmatmul.mubr.f32.gmra.mrb[0].mxu0 %v113
  %v655 = vpop.f32.mrb[0].mxu0
  %v656 = vadd.f32 %v167, %v655
  %v657 = vpop.f32.mrb[0].mxu0
  %658 = vmatprep.mubr.f32.mxu0 0.0
  %659 = vmatmul.mubr.f32.gmra.mrb[0].mxu0 %v114
  %v660 = vpop.f32.mrb[0].mxu0
  %v661 = vadd.f32 %v167, %v660
  %v662 = vpop.f32.mrb[0].mxu0
  %663 = vmatprep.mubr.f32.mxu0 0.0
  %664 = vmatmul.mubr.f32.gmra.mrb[0].mxu0 %v115
  %v665 = vpop.f32.mrb[0].mxu0
  %v666 = vadd.f32 %v167, %v665
  %v667 = vpop.f32.mrb[0].mxu0
  %668 = vmatprep.mubr.f32.mxu0 0.0
  %669 = vmatmul.mubr.f32.gmra.mrb[0].mxu0 %v116
  %v670 = vpop.f32.mrb[0].mxu0
  %v671 = vadd.f32 %v167, %v670
  %v672 = vpop.f32.mrb[0].mxu0
  %673 = vmatprep.mubr.f32.mxu0 0.0
  %674 = vmatmul.mubr.f32.gmra.mrb[0].mxu0 %v117
  %v675 = vpop.f32.mrb[0].mxu0
  %v676 = vadd.f32 %v167, %v675
  %v677 = vpop.f32.mrb[0].mxu0
  %678 = vmatprep.mubr.f32.mxu0 0.0
  %679 = vmatmul.mubr.f32.gmra.mrb[0].mxu0 %v118
  %v680 = vpop.f32.mrb[0].mxu0
  %v681 = vadd.f32 %v167, %v680
  %v682 = vpop.f32.mrb[0].mxu0
  %683 = vmatprep.mubr.f32.mxu0 0.0
  %684 = vmatmul.mubr.f32.gmra.mrb[0].mxu0 %v119
  %v685 = vpop.f32.mrb[0].mxu0
  %v686 = vadd.f32 %v167, %v685
  %v687 = vpop.f32.mrb[0].mxu0
  %688 = vmatprep.mubr.f32.mxu0 0.0
  %689 = vmatmul.mubr.f32.gmra.mrb[0].mxu0 %v120
  %v690 = vpop.f32.mrb[0].mxu0
  %v691 = vadd.f32 %v167, %v690
  %v692 = vpop.f32.mrb[0].mxu0
  %693 = vmatprep.mubr.f32.mxu0 0.0
  %694 = vmatmul.mubr.f32.gmra.mrb[0].mxu0 %v121
  %v695 = vpop.f32.mrb[0].mxu0
  %v696 = vadd.f32 %v167, %v695
  %v697 = vpop.f32.mrb[0].mxu0
  %698 = vmatprep.mubr.f32.mxu0 0.0
  %699 = vmatmul.mubr.f32.gmra.mrb[0].mxu0 %v122
  %v700 = vpop.f32.mrb[0].mxu0
  %v701 = vadd.f32 %v167, %v700
  %v702 = vpop.f32.mrb[0].mxu0
  %703 = vmatprep.mubr.f32.mxu0 0.0
  %704 = vmatmul.mubr.f32.gmra.mrb[0].mxu0 %v123
  %v705 = vpop.f32.mrb[0].mxu0
  %v706 = vadd.f32 %v167, %v705
  %v707 = vpop.f32.mrb[0].mxu0
  %708 = vmatprep.mubr.f32.mxu0 0.0
  %709 = vmatmul.mubr.f32.gmra.mrb[0].mxu0 %v124
  %v710 = vpop.f32.mrb[0].mxu0
  %v711 = vadd.f32 %v167, %v710
  %v712 = vpop.f32.mrb[0].mxu0
  %713 = vmatprep.mubr.f32.mxu0 0.0
  %714 = vmatmul.mubr.f32.gmra.mrb[0].mxu0 %v125
  %v715 = vpop.f32.mrb[0].mxu0
  %v716 = vadd.f32 %v167, %v715
  %v717 = vpop.f32.mrb[0].mxu0
  %718 = vmatprep.mubr.f32.mxu0 0.0
  %719 = vmatmul.mubr.f32.gmra.mrb[0].mxu0 %v126
  %v720 = vpop.f32.mrb[0].mxu0
  %v721 = vadd.f32 %v167, %v720
  %v722 = vpop.f32.mrb[0].mxu0
  %723 = vmatprep.mubr.f32.mxu0 0.0
  %724 = vmatmul.mubr.f32.gmra.mrb[0].mxu0 %v127
  %v725 = vpop.f32.mrb[0].mxu0
  %v726 = vadd.f32 %v167, %v725
  %v727 = vpop.f32.mrb[0].mxu0
  %728 = vmatprep.mubr.f32.mxu0 0.0
  %729 = vmatmul.mubr.f32.gmra.mrb[0].mxu0 %v128
  %v730 = vpop.f32.mrb[0].mxu0
  %v731 = vadd.f32 %v167, %v730
  %v732 = vpop.f32.mrb[0].mxu0
  %733 = vmatprep.mubr.f32.mxu0 0.0
  %734 = vmatmul.mubr.f32.gmra.mrb[0].mxu0 %v129
  %v735 = vpop.f32.mrb[0].mxu0
  %v736 = vadd.f32 %v167, %v735
  %v737 = vpop.f32.mrb[0].mxu0
  %738 = vmatprep.mubr.f32.mxu0 0.0
  %739 = vmatmul.mubr.f32.gmra.mrb[0].mxu0 %v130
  %v740 = vpop.f32.mrb[0].mxu0
  %v741 = vadd.f32 %v167, %v740
  %v742 = vpop.f32.mrb[0].mxu0
  %743 = vmatprep.mubr.f32.mxu0 0.0
  %744 = vmatmul.mubr.f32.gmra.mrb[0].mxu0 %v131
  %v745 = vpop.f32.mrb[0].mxu0
  %v746 = vadd.f32 %v167, %v745
  %v747 = vpop.f32.mrb[0].mxu0
  %748 = vmatprep.mubr.f32.mxu0 0.0
  %749 = vmatmul.mubr.f32.gmra.mrb[0].mxu0 %v132
  %v750 = vpop.f32.mrb[0].mxu0
  %v751 = vadd.f32 %v167, %v750
  %v752 = vpop.f32.mrb[0].mxu0
  %753 = vmatprep.mubr.f32.mxu0 0.0
  %754 = vmatmul.mubr.f32.gmra.mrb[0].mxu0 %v133
  %v755 = vpop.f32.mrb[0].mxu0
  %v756 = vadd.f32 %v167, %v755
  %v757 = vpop.f32.mrb[0].mxu0
  %758 = vmatprep.mubr.f32.mxu0 0.0
  %759 = vmatmul.mubr.f32.gmra.mrb[0].mxu0 %v134
  %v760 = vpop.f32.mrb[0].mxu0
  %v761 = vadd.f32 %v167, %v760
  %v762 = vpop.f32.mrb[0].mxu0
  %763 = vmatprep.mubr.f32.mxu0 0.0
  %764 = vmatmul.mubr.f32.gmra.mrb[0].mxu0 %v135
  %v765 = vpop.f32.mrb[0].mxu0
  %v766 = vadd.f32 %v167, %v765
  %v767 = vpop.f32.mrb[0].mxu0
  %768 = vmatprep.mubr.f32.mxu0 0.0
  %769 = vmatmul.mubr.f32.gmra.mrb[0].mxu0 %v136
  %v770 = vpop.f32.mrb[0].mxu0
  %v771 = vadd.f32 %v167, %v770
  %v772 = vpop.f32.mrb[0].mxu0
  %773 = vmatprep.mubr.f32.mxu0 0.0
  %774 = vmatmul.mubr.f32.gmra.mrb[0].mxu0 %v137
  %v775 = vpop.f32.mrb[0].mxu0
  %v776 = vadd.f32 %v167, %v775
  %v777 = vpop.f32.mrb[0].mxu0
  %778 = vmatprep.mubr.f32.mxu0 0.0
  %779 = vmatmul.mubr.f32.gmra.mrb[0].mxu0 %v138
  %v780 = vpop.f32.mrb[0].mxu0
  %v781 = vadd.f32 %v167, %v780
  %v782 = vpop.f32.mrb[0].mxu0
  %783 = vmatprep.mubr.f32.mxu0 0.0
  %784 = vmatmul.mubr.f32.gmra.mrb[0].mxu0 %v139
  %v785 = vpop.f32.mrb[0].mxu0
  %v786 = vadd.f32 %v167, %v785
  %v787 = vpop.f32.mrb[0].mxu0
  %788 = vmatprep.mubr.f32.mxu0 0.0
  %789 = vmatmul.mubr.f32.gmra.mrb[0].mxu0 %v140
  %v790 = vpop.f32.mrb[0].mxu0
  %v791 = vadd.f32 %v167, %v790
  %v792 = vpop.f32.mrb[0].mxu0
  %793 = vmatprep.mubr.f32.mxu0 0.0
  %794 = vmatmul.mubr.f32.gmra.mrb[0].mxu0 %v141
  %v795 = vpop.f32.mrb[0].mxu0
  %v796 = vadd.f32 %v167, %v795
  %v797 = vpop.f32.mrb[0].mxu0
  %798 = vmatprep.mubr.f32.mxu0 0.0
  %799 = vmatmul.mubr.f32.gmra.mrb[0].mxu0 %v142
  %v800 = vpop.f32.mrb[0].mxu0
  %v801 = vadd.f32 %v167, %v800
  %v802 = vpop.f32.mrb[0].mxu0
  %803 = vmatprep.mubr.f32.mxu0 0.0
  %804 = vmatmul.mubr.f32.gmra.mrb[0].mxu0 %v143
  %v805 = vpop.f32.mrb[0].mxu0
  %v806 = vadd.f32 %v167, %v805
  %v807 = vpop.f32.mrb[0].mxu0
  %808 = vmatprep.mubr.f32.mxu0 0.0
  %809 = vmatmul.mubr.f32.gmra.mrb[0].mxu0 %v144
  %v810 = vpop.f32.mrb[0].mxu0
  %v811 = vadd.f32 %v167, %v810
  %v812 = vpop.f32.mrb[0].mxu0
  %813 = vmatprep.mubr.f32.mxu0 0.0
  %814 = vmatmul.mubr.f32.gmra.mrb[0].mxu0 %v145
  %v815 = vpop.f32.mrb[0].mxu0
  %v816 = vadd.f32 %v167, %v815
  %v817 = vpop.f32.mrb[0].mxu0
  %818 = vmatprep.mubr.f32.mxu0 0.0
  %819 = vmatmul.mubr.f32.gmra.mrb[0].mxu0 %v146
  %v820 = vpop.f32.mrb[0].mxu0
  %v821 = vadd.f32 %v167, %v820
  %v822 = vpop.f32.mrb[0].mxu0
  %823 = vdwg.mxu0
  %v824 = vld [vmem:[%s1] sm:$0xff]
  %v825 = vld [vmem:[%s1 + $0x8] sm:$0xff]
  %v826 = vld [vmem:[%s1 + $0x10] sm:$0xff]
  %v827 = vld [vmem:[%s1 + $0x18] sm:$0xff]
  %v828 = vld [vmem:[%s1 + $0x20] sm:$0xff]
  %v829 = vld [vmem:[%s1 + $0x28] sm:$0xff]
  %v830 = vld [vmem:[%s1 + $0x30] sm:$0xff]
  %v831 = vld [vmem:[%s1 + $0x38] sm:$0xff]
  %v832 = vld [vmem:[%s1 + $0x40] sm:$0xff]
  %v833 = vld [vmem:[%s1 + $0x48] sm:$0xff]
  %v834 = vld [vmem:[%s1 + $0x50] sm:$0xff]
  %v835 = vld [vmem:[%s1 + $0x58] sm:$0xff]
  %v836 = vld [vmem:[%s1 + $0x60] sm:$0xff]
  %v837 = vld [vmem:[%s1 + $0x68] sm:$0xff]
  %v838 = vld [vmem:[%s1 + $0x70] sm:$0xff]
  %v839 = vld [vmem:[%s1 + $0x78] sm:$0xff]
  %v840 = vld [vmem:[%s1 + $0x80] sm:$0xff]
  %v841 = vld [vmem:[%s1 + $0x88] sm:$0xff]
  %v842 = vld [vmem:[%s1 + $0x90] sm:$0xff]
  %v843 = vld [vmem:[%s1 + $0x98] sm:$0xff]
  %v844 = vld [vmem:[%s1 + $0xa0] sm:$0xff]
  %v845 = vld [vmem:[%s1 + $0xa8] sm:$0xff]
  %v846 = vld [vmem:[%s1 + $0xb0] sm:$0xff]
  %v847 = vld [vmem:[%s1 + $0xb8] sm:$0xff]
  %v848 = vld [vmem:[%s1 + $0xc0] sm:$0xff]
  %v849 = vld [vmem:[%s1 + $0xc8] sm:$0xff]
  %v850 = vld [vmem:[%s1 + $0xd0] sm:$0xff]
  %v851 = vld [vmem:[%s1 + $0xd8] sm:$0xff]
  %v852 = vld [vmem:[%s1 + $0xe0] sm:$0xff]
  %v853 = vld [vmem:[%s1 + $0xe8] sm:$0xff]
  %v854 = vld [vmem:[%s1 + $0xf0] sm:$0xff]
  %v855 = vld [vmem:[%s1 + $0xf8] sm:$0xff]
  %v856 = vld [vmem:[%s1 + $0x100] sm:$0xff]
  %v857 = vld [vmem:[%s1 + $0x108] sm:$0xff]
  %v858 = vld [vmem:[%s1 + $0x110] sm:$0xff]
  %v859 = vld [vmem:[%s1 + $0x118] sm:$0xff]
  %v860 = vld [vmem:[%s1 + $0x120] sm:$0xff]
  %v861 = vld [vmem:[%s1 + $0x128] sm:$0xff]
  %v862 = vld [vmem:[%s1 + $0x130] sm:$0xff]
  %v863 = vld [vmem:[%s1 + $0x138] sm:$0xff]
  %v864 = vld [vmem:[%s1 + $0x140] sm:$0xff]
  %v865 = vld [vmem:[%s1 + $0x148] sm:$0xff]
  %v866 = vld [vmem:[%s1 + $0x150] sm:$0xff]
  %v867 = vld [vmem:[%s1 + $0x158] sm:$0xff]
  %v868 = vld [vmem:[%s1 + $0x160] sm:$0xff]
  %v869 = vld [vmem:[%s1 + $0x168] sm:$0xff]
  %v870 = vld [vmem:[%s1 + $0x170] sm:$0xff]
  %v871 = vld [vmem:[%s1 + $0x178] sm:$0xff]
  %v872 = vld [vmem:[%s1 + $0x180] sm:$0xff]
  %v873 = vld [vmem:[%s1 + $0x188] sm:$0xff]
  %v874 = vld [vmem:[%s1 + $0x190] sm:$0xff]
  %v875 = vld [vmem:[%s1 + $0x198] sm:$0xff]
  %v876 = vld [vmem:[%s1 + $0x1a0] sm:$0xff]
  %v877 = vld [vmem:[%s1 + $0x1a8] sm:$0xff]
  %v878 = vld [vmem:[%s1 + $0x1b0] sm:$0xff]
  %v879 = vld [vmem:[%s1 + $0x1b8] sm:$0xff]
  %v880 = vld [vmem:[%s1 + $0x1c0] sm:$0xff]
  %v881 = vld [vmem:[%s1 + $0x1c8] sm:$0xff]
  %v882 = vld [vmem:[%s1 + $0x1d0] sm:$0xff]
  %v883 = vld [vmem:[%s1 + $0x1d8] sm:$0xff]
  %v884 = vld [vmem:[%s1 + $0x1e0] sm:$0xff]
  %v885 = vld [vmem:[%s1 + $0x1e8] sm:$0xff]
  %v886 = vld [vmem:[%s1 + $0x1f0] sm:$0xff]
  %v887 = vld [vmem:[%s1 + $0x1f8] sm:$0xff]
  %v888 = vld [vmem:[%s1 + $0x200] sm:$0xff]
  %v889 = vld [vmem:[%s1 + $0x208] sm:$0xff]
  %v890 = vld [vmem:[%s1 + $0x210] sm:$0xff]
  %v891 = vld [vmem:[%s1 + $0x218] sm:$0xff]
  %v892 = vld [vmem:[%s1 + $0x220] sm:$0xff]
  %v893 = vld [vmem:[%s1 + $0x228] sm:$0xff]
  %v894 = vld [vmem:[%s1 + $0x230] sm:$0xff]
  %v895 = vld [vmem:[%s1 + $0x238] sm:$0xff]
  %v896 = vld [vmem:[%s1 + $0x240] sm:$0xff]
  %v897 = vld [vmem:[%s1 + $0x248] sm:$0xff]
  %v898 = vld [vmem:[%s1 + $0x250] sm:$0xff]
  %v899 = vld [vmem:[%s1 + $0x258] sm:$0xff]
  %v900 = vld [vmem:[%s1 + $0x260] sm:$0xff]
  %v901 = vld [vmem:[%s1 + $0x268] sm:$0xff]
  %v902 = vld [vmem:[%s1 + $0x270] sm:$0xff]
  %v903 = vld [vmem:[%s1 + $0x278] sm:$0xff]
  %v904 = vld [vmem:[%s1 + $0x280] sm:$0xff]
  %v905 = vld [vmem:[%s1 + $0x288] sm:$0xff]
  %v906 = vld [vmem:[%s1 + $0x290] sm:$0xff]
  %v907 = vld [vmem:[%s1 + $0x298] sm:$0xff]
  %v908 = vld [vmem:[%s1 + $0x2a0] sm:$0xff]
  %v909 = vld [vmem:[%s1 + $0x2a8] sm:$0xff]
  %v910 = vld [vmem:[%s1 + $0x2b0] sm:$0xff]
  %v911 = vld [vmem:[%s1 + $0x2b8] sm:$0xff]
  %v912 = vld [vmem:[%s1 + $0x2c0] sm:$0xff]
  %v913 = vld [vmem:[%s1 + $0x2c8] sm:$0xff]
  %v914 = vld [vmem:[%s1 + $0x2d0] sm:$0xff]
  %v915 = vld [vmem:[%s1 + $0x2d8] sm:$0xff]
  %v916 = vld [vmem:[%s1 + $0x2e0] sm:$0xff]
  %v917 = vld [vmem:[%s1 + $0x2e8] sm:$0xff]
  %v918 = vld [vmem:[%s1 + $0x2f0] sm:$0xff]
  %v919 = vld [vmem:[%s1 + $0x2f8] sm:$0xff]
  %v920 = vld [vmem:[%s1 + $0x300] sm:$0xff]
  %v921 = vld [vmem:[%s1 + $0x308] sm:$0xff]
  %v922 = vld [vmem:[%s1 + $0x310] sm:$0xff]
  %v923 = vld [vmem:[%s1 + $0x318] sm:$0xff]
  %v924 = vld [vmem:[%s1 + $0x320] sm:$0xff]
  %v925 = vld [vmem:[%s1 + $0x328] sm:$0xff]
  %v926 = vld [vmem:[%s1 + $0x330] sm:$0xff]
  %v927 = vld [vmem:[%s1 + $0x338] sm:$0xff]
  %v928 = vld [vmem:[%s1 + $0x340] sm:$0xff]
  %v929 = vld [vmem:[%s1 + $0x348] sm:$0xff]
  %v930 = vld [vmem:[%s1 + $0x350] sm:$0xff]
  %v931 = vld [vmem:[%s1 + $0x358] sm:$0xff]
  %v932 = vld [vmem:[%s1 + $0x360] sm:$0xff]
  %v933 = vld [vmem:[%s1 + $0x368] sm:$0xff]
  %v934 = vld [vmem:[%s1 + $0x370] sm:$0xff]
  %v935 = vld [vmem:[%s1 + $0x378] sm:$0xff]
  %v936 = vld [vmem:[%s1 + $0x380] sm:$0xff]
  %v937 = vld [vmem:[%s1 + $0x388] sm:$0xff]
  %v938 = vld [vmem:[%s1 + $0x390] sm:$0xff]
  %v939 = vld [vmem:[%s1 + $0x398] sm:$0xff]
  %v940 = vld [vmem:[%s1 + $0x3a0] sm:$0xff]
  %v941 = vld [vmem:[%s1 + $0x3a8] sm:$0xff]
  %v942 = vld [vmem:[%s3] sm:$0xff]
  %v943 = vld [vmem:[%s3 + $0x8] sm:$0xff]
  %v944 = vld [vmem:[%s3 + $0x10] sm:$0xff]
  %v945 = vld [vmem:[%s3 + $0x18] sm:$0xff]
  %v946 = vld [vmem:[%s3 + $0x20] sm:$0xff]
  %v947 = vld [vmem:[%s3 + $0x28] sm:$0xff]
  %v948 = vld [vmem:[%s3 + $0x30] sm:$0xff]
  %v949 = vld [vmem:[%s3 + $0x38] sm:$0xff]
  %v950 = vld [vmem:[%s3 + $0x40] sm:$0xff]
  %v951 = vld [vmem:[%s3 + $0x48] sm:$0xff]
  %v952 = vld [vmem:[%s3 + $0x50] sm:$0xff]
  %v953 = vld [vmem:[%s3 + $0x58] sm:$0xff]
  %v954 = vld [vmem:[%s3 + $0x60] sm:$0xff]
  %v955 = vld [vmem:[%s3 + $0x68] sm:$0xff]
  %v956 = vld [vmem:[%s3 + $0x70] sm:$0xff]
  %v957 = vld [vmem:[%s3 + $0x78] sm:$0xff]
  %958 = vmatprep.subr.mxu0 0.0
  %959 = vmatpush1.msra.mxu0 %v942
  %960 = vmatprep.subr.mxu0 0.0
  %961 = vmatpush1.msra.mxu0 %v943
  %962 = vmatprep.subr.mxu0 0.0
  %963 = vmatpush1.msra.mxu0 %v944
  %964 = vmatprep.subr.mxu0 0.0
  %965 = vmatpush1.msra.mxu0 %v945
  %966 = vmatprep.subr.mxu0 0.0
  %967 = vmatpush1.msra.mxu0 %v946
  %968 = vmatprep.subr.mxu0 0.0
  %969 = vmatpush1.msra.mxu0 %v947
  %970 = vmatprep.subr.mxu0 0.0
  %971 = vmatpush1.msra.mxu0 %v948
  %972 = vmatprep.subr.mxu0 0.0
  %973 = vmatpush1.msra.mxu0 %v949
  %974 = vmatprep.subr.mxu0 0.0
  %975 = vmatpush1.msra.mxu0 %v950
  %976 = vmatprep.subr.mxu0 0.0
  %977 = vmatpush1.msra.mxu0 %v951
  %978 = vmatprep.subr.mxu0 0.0
  %979 = vmatpush1.msra.mxu0 %v952
  %980 = vmatprep.subr.mxu0 0.0
  %981 = vmatpush1.msra.mxu0 %v953
  %982 = vmatprep.subr.mxu0 0.0
  %983 = vmatpush1.msra.mxu0 %v954
  %984 = vmatprep.subr.mxu0 0.0
  %985 = vmatpush1.msra.mxu0 %v955
  %986 = vmatprep.subr.mxu0 0.0
  %987 = vmatpush1.msra.mxu0 %v956
  %988 = vmatprep.subr.mxu0 0.0
  %989 = vmatpush1.msra.mxu0 %v957
  %990 = vmatprep.subr.mxu0 0.0
  %991 = vmatpush1.msra.mxu0 0.0
  %992 = vmatprep.subr.mxu0 0.0
  %993 = vmatpush1.msra.mxu0 0.0
  %994 = vmatprep.subr.mxu0 0.0
  %995 = vmatpush1.msra.mxu0 0.0
  %996 = vmatprep.subr.mxu0 0.0
  %997 = vmatpush1.msra.mxu0 0.0
  %998 = vmatprep.subr.mxu0 0.0
  %999 = vmatpush1.msra.mxu0 0.0
  %1000 = vmatprep.subr.mxu0 0.0
  %1001 = vmatpush1.msra.mxu0 0.0
  %1002 = vmatprep.subr.mxu0 0.0
  %1003 = vmatpush1.msra.mxu0 0.0
  %1004 = vmatprep.subr.mxu0 0.0
  %1005 = vmatpush1.msra.mxu0 0.0
  %1006 = vmatprep.subr.mxu0 0.0
  %1007 = vmatpush1.msra.mxu0 0.0
  %1008 = vmatprep.subr.mxu0 0.0
  %1009 = vmatpush1.msra.mxu0 0.0
  %1010 = vmatprep.subr.mxu0 0.0
  %1011 = vmatpush1.msra.mxu0 0.0
  %1012 = vmatprep.subr.mxu0 0.0
  %1013 = vmatpush1.msra.mxu0 0.0
  %1014 = vmatprep.subr.mxu0 0.0
  %1015 = vmatpush1.msra.mxu0 0.0
  %1016 = vmatprep.subr.mxu0 0.0
  %1017 = vmatpush1.msra.mxu0 0.0
  %1018 = vmatprep.subr.mxu0 0.0
  %1019 = vmatpush1.msra.mxu0 0.0
  %1020 = vmatprep.subr.mxu0 0.0
  %1021 = vmatpush1.msra.mxu0 0.0
  %1022 = vmatprep.mubr.f32.mxu0 0.0
  %1023 = vmatmul.mubr.f32.gmra.mrb[0].mxu0 %v824
  %v1024 = vpop.f32.mrb[0].mxu0
  %v1025 = vadd.f32 %v167, %v1024
  %v1026 = vpop.f32.mrb[0].mxu0
  %1027 = vmatprep.mubr.f32.mxu0 0.0
  %1028 = vmatmul.mubr.f32.gmra.mrb[0].mxu0 %v825
  %v1029 = vpop.f32.mrb[0].mxu0
  %v1030 = vadd.f32 %v167, %v1029
  %v1031 = vpop.f32.mrb[0].mxu0
  %1032 = vmatprep.mubr.f32.mxu0 0.0
  %1033 = vmatmul.mubr.f32.gmra.mrb[0].mxu0 %v826
  %v1034 = vpop.f32.mrb[0].mxu0
  %v1035 = vadd.f32 %v167, %v1034
  %v1036 = vpop.f32.mrb[0].mxu0
  %1037 = vmatprep.mubr.f32.mxu0 0.0
  %1038 = vmatmul.mubr.f32.gmra.mrb[0].mxu0 %v827
  %v1039 = vpop.f32.mrb[0].mxu0
  %v1040 = vadd.f32 %v167, %v1039
  %v1041 = vpop.f32.mrb[0].mxu0
  %1042 = vmatprep.mubr.f32.mxu0 0.0
  %1043 = vmatmul.mubr.f32.gmra.mrb[0].mxu0 %v828
  %v1044 = vpop.f32.mrb[0].mxu0
  %v1045 = vadd.f32 %v167, %v1044
  %v1046 = vpop.f32.mrb[0].mxu0
  %1047 = vmatprep.mubr.f32.mxu0 0.0
  %1048 = vmatmul.mubr.f32.gmra.mrb[0].mxu0 %v829
  %v1049 = vpop.f32.mrb[0].mxu0
  %v1050 = vadd.f32 %v167, %v1049
  %v1051 = vpop.f32.mrb[0].mxu0
  %1052 = vmatprep.mubr.f32.mxu0 0.0
  %1053 = vmatmul.mubr.f32.gmra.mrb[0].mxu0 %v830
  %v1054 = vpop.f32.mrb[0].mxu0
  %v1055 = vadd.f32 %v167, %v1054
  %v1056 = vpop.f32.mrb[0].mxu0
  %1057 = vmatprep.mubr.f32.mxu0 0.0
  %1058 = vmatmul.mubr.f32.gmra.mrb[0].mxu0 %v831
  %v1059 = vpop.f32.mrb[0].mxu0
  %v1060 = vadd.f32 %v167, %v1059
  %v1061 = vpop.f32.mrb[0].mxu0
  %1062 = vmatprep.mubr.f32.mxu0 0.0
  %1063 = vmatmul.mubr.f32.gmra.mrb[0].mxu0 %v832
  %v1064 = vpop.f32.mrb[0].mxu0
  %v1065 = vadd.f32 %v167, %v1064
  %v1066 = vpop.f32.mrb[0].mxu0
  %1067 = vmatprep.mubr.f32.mxu0 0.0
  %1068 = vmatmul.mubr.f32.gmra.mrb[0].mxu0 %v833
  %v1069 = vpop.f32.mrb[0].mxu0
  %v1070 = vadd.f32 %v167, %v1069
  %v1071 = vpop.f32.mrb[0].mxu0
  %1072 = vmatprep.mubr.f32.mxu0 0.0
  %1073 = vmatmul.mubr.f32.gmra.mrb[0].mxu0 %v834
  %v1074 = vpop.f32.mrb[0].mxu0
  %v1075 = vadd.f32 %v167, %v1074
  %v1076 = vpop.f32.mrb[0].mxu0
  %1077 = vmatprep.mubr.f32.mxu0 0.0
  %1078 = vmatmul.mubr.f32.gmra.mrb[0].mxu0 %v835
  %v1079 = vpop.f32.mrb[0].mxu0
  %v1080 = vadd.f32 %v167, %v1079
  %v1081 = vpop.f32.mrb[0].mxu0
  %1082 = vmatprep.mubr.f32.mxu0 0.0
  %1083 = vmatmul.mubr.f32.gmra.mrb[0].mxu0 %v836
  %v1084 = vpop.f32.mrb[0].mxu0
  %v1085 = vadd.f32 %v167, %v1084
  %v1086 = vpop.f32.mrb[0].mxu0
  %1087 = vmatprep.mubr.f32.mxu0 0.0
  %1088 = vmatmul.mubr.f32.gmra.mrb[0].mxu0 %v837
  %v1089 = vpop.f32.mrb[0].mxu0
  %v1090 = vadd.f32 %v167, %v1089
  %v1091 = vpop.f32.mrb[0].mxu0
  %1092 = vmatprep.mubr.f32.mxu0 0.0
  %1093 = vmatmul.mubr.f32.gmra.mrb[0].mxu0 %v838
  %v1094 = vpop.f32.mrb[0].mxu0
  %v1095 = vadd.f32 %v167, %v1094
  %v1096 = vpop.f32.mrb[0].mxu0
  %1097 = vmatprep.mubr.f32.mxu0 0.0
  %1098 = vmatmul.mubr.f32.gmra.mrb[0].mxu0 %v839
  %v1099 = vpop.f32.mrb[0].mxu0
  %v1100 = vadd.f32 %v167, %v1099
  %v1101 = vpop.f32.mrb[0].mxu0
  %1102 = vmatprep.mubr.f32.mxu0 0.0
  %1103 = vmatmul.mubr.f32.gmra.mrb[0].mxu0 %v840
  %v1104 = vpop.f32.mrb[0].mxu0
  %v1105 = vadd.f32 %v167, %v1104
  %v1106 = vpop.f32.mrb[0].mxu0
  %1107 = vmatprep.mubr.f32.mxu0 0.0
  %1108 = vmatmul.mubr.f32.gmra.mrb[0].mxu0 %v841
  %v1109 = vpop.f32.mrb[0].mxu0
  %v1110 = vadd.f32 %v167, %v1109
  %v1111 = vpop.f32.mrb[0].mxu0
  %1112 = vmatprep.mubr.f32.mxu0 0.0
  %1113 = vmatmul.mubr.f32.gmra.mrb[0].mxu0 %v842
  %v1114 = vpop.f32.mrb[0].mxu0
  %v1115 = vadd.f32 %v167, %v1114
  %v1116 = vpop.f32.mrb[0].mxu0
  %1117 = vmatprep.mubr.f32.mxu0 0.0
  %1118 = vmatmul.mubr.f32.gmra.mrb[0].mxu0 %v843
  %v1119 = vpop.f32.mrb[0].mxu0
  %v1120 = vadd.f32 %v167, %v1119
  %v1121 = vpop.f32.mrb[0].mxu0
  %1122 = vmatprep.mubr.f32.mxu0 0.0
  %1123 = vmatmul.mubr.f32.gmra.mrb[0].mxu0 %v844
  %v1124 = vpop.f32.mrb[0].mxu0
  %v1125 = vadd.f32 %v167, %v1124
  %v1126 = vpop.f32.mrb[0].mxu0
  %1127 = vmatprep.mubr.f32.mxu0 0.0
  %1128 = vmatmul.mubr.f32.gmra.mrb[0].mxu0 %v845
  %v1129 = vpop.f32.mrb[0].mxu0
  %v1130 = vadd.f32 %v167, %v1129
  %v1131 = vpop.f32.mrb[0].mxu0
  %1132 = vmatprep.mubr.f32.mxu0 0.0
  %1133 = vmatmul.mubr.f32.gmra.mrb[0].mxu0 %v846
  %v1134 = vpop.f32.mrb[0].mxu0
  %v1135 = vadd.f32 %v167, %v1134
  %v1136 = vpop.f32.mrb[0].mxu0
  %1137 = vmatprep.mubr.f32.mxu0 0.0
  %1138 = vmatmul.mubr.f32.gmra.mrb[0].mxu0 %v847
  %v1139 = vpop.f32.mrb[0].mxu0
  %v1140 = vadd.f32 %v167, %v1139
  %v1141 = vpop.f32.mrb[0].mxu0
  %1142 = vmatprep.mubr.f32.mxu0 0.0
  %1143 = vmatmul.mubr.f32.gmra.mrb[0].mxu0 %v848
  %v1144 = vpop.f32.mrb[0].mxu0
  %v1145 = vadd.f32 %v167, %v1144
  %v1146 = vpop.f32.mrb[0].mxu0
  %1147 = vmatprep.mubr.f32.mxu0 0.0
  %1148 = vmatmul.mubr.f32.gmra.mrb[0].mxu0 %v849
  %v1149 = vpop.f32.mrb[0].mxu0
  %v1150 = vadd.f32 %v167, %v1149
  %v1151 = vpop.f32.mrb[0].mxu0
  %1152 = vmatprep.mubr.f32.mxu0 0.0
  %1153 = vmatmul.mubr.f32.gmra.mrb[0].mxu0 %v850
  %v1154 = vpop.f32.mrb[0].mxu0
  %v1155 = vadd.f32 %v167, %v1154
  %v1156 = vpop.f32.mrb[0].mxu0
  %1157 = vmatprep.mubr.f32.mxu0 0.0
  %1158 = vmatmul.mubr.f32.gmra.mrb[0].mxu0 %v851
  %v1159 = vpop.f32.mrb[0].mxu0
  %v1160 = vadd.f32 %v167, %v1159
  %v1161 = vpop.f32.mrb[0].mxu0
  %1162 = vmatprep.mubr.f32.mxu0 0.0
  %1163 = vmatmul.mubr.f32.gmra.mrb[0].mxu0 %v852
  %v1164 = vpop.f32.mrb[0].mxu0
  %v1165 = vadd.f32 %v167, %v1164
  %v1166 = vpop.f32.mrb[0].mxu0
  %1167 = vmatprep.mubr.f32.mxu0 0.0
  %1168 = vmatmul.mubr.f32.gmra.mrb[0].mxu0 %v853
  %v1169 = vpop.f32.mrb[0].mxu0
  %v1170 = vadd.f32 %v167, %v1169
  %v1171 = vpop.f32.mrb[0].mxu0
  %1172 = vmatprep.mubr.f32.mxu0 0.0
  %1173 = vmatmul.mubr.f32.gmra.mrb[0].mxu0 %v854
  %v1174 = vpop.f32.mrb[0].mxu0
  %v1175 = vadd.f32 %v167, %v1174
  %v1176 = vpop.f32.mrb[0].mxu0
  %1177 = vmatprep.mubr.f32.mxu0 0.0
  %1178 = vmatmul.mubr.f32.gmra.mrb[0].mxu0 %v855
  %v1179 = vpop.f32.mrb[0].mxu0
  %v1180 = vadd.f32 %v167, %v1179
  %v1181 = vpop.f32.mrb[0].mxu0
  %1182 = vmatprep.mubr.f32.mxu0 0.0
  %1183 = vmatmul.mubr.f32.gmra.mrb[0].mxu0 %v856
  %v1184 = vpop.f32.mrb[0].mxu0
  %v1185 = vadd.f32 %v167, %v1184
  %v1186 = vpop.f32.mrb[0].mxu0
  %1187 = vmatprep.mubr.f32.mxu0 0.0
  %1188 = vmatmul.mubr.f32.gmra.mrb[0].mxu0 %v857
  %v1189 = vpop.f32.mrb[0].mxu0
  %v1190 = vadd.f32 %v167, %v1189
  %v1191 = vpop.f32.mrb[0].mxu0
  %1192 = vmatprep.mubr.f32.mxu0 0.0
  %1193 = vmatmul.mubr.f32.gmra.mrb[0].mxu0 %v858
  %v1194 = vpop.f32.mrb[0].mxu0
  %v1195 = vadd.f32 %v167, %v1194
  %v1196 = vpop.f32.mrb[0].mxu0
  %1197 = vmatprep.mubr.f32.mxu0 0.0
  %1198 = vmatmul.mubr.f32.gmra.mrb[0].mxu0 %v859
  %v1199 = vpop.f32.mrb[0].mxu0
  %v1200 = vadd.f32 %v167, %v1199
  %v1201 = vpop.f32.mrb[0].mxu0
  %1202 = vmatprep.mubr.f32.mxu0 0.0
  %1203 = vmatmul.mubr.f32.gmra.mrb[0].mxu0 %v860
  %v1204 = vpop.f32.mrb[0].mxu0
  %v1205 = vadd.f32 %v167, %v1204
  %v1206 = vpop.f32.mrb[0].mxu0
  %1207 = vmatprep.mubr.f32.mxu0 0.0
  %1208 = vmatmul.mubr.f32.gmra.mrb[0].mxu0 %v861
  %v1209 = vpop.f32.mrb[0].mxu0
  %v1210 = vadd.f32 %v167, %v1209
  %v1211 = vpop.f32.mrb[0].mxu0
  %1212 = vmatprep.mubr.f32.mxu0 0.0
  %1213 = vmatmul.mubr.f32.gmra.mrb[0].mxu0 %v862
  %v1214 = vpop.f32.mrb[0].mxu0
  %v1215 = vadd.f32 %v167, %v1214
  %v1216 = vpop.f32.mrb[0].mxu0
  %1217 = vmatprep.mubr.f32.mxu0 0.0
  %1218 = vmatmul.mubr.f32.gmra.mrb[0].mxu0 %v863
  %v1219 = vpop.f32.mrb[0].mxu0
  %v1220 = vadd.f32 %v167, %v1219
  %v1221 = vpop.f32.mrb[0].mxu0
  %1222 = vmatprep.mubr.f32.mxu0 0.0
  %1223 = vmatmul.mubr.f32.gmra.mrb[0].mxu0 %v864
  %v1224 = vpop.f32.mrb[0].mxu0
  %v1225 = vadd.f32 %v167, %v1224
  %v1226 = vpop.f32.mrb[0].mxu0
  %1227 = vmatprep.mubr.f32.mxu0 0.0
  %1228 = vmatmul.mubr.f32.gmra.mrb[0].mxu0 %v865
  %v1229 = vpop.f32.mrb[0].mxu0
  %v1230 = vadd.f32 %v167, %v1229
  %v1231 = vpop.f32.mrb[0].mxu0
  %1232 = vmatprep.mubr.f32.mxu0 0.0
  %1233 = vmatmul.mubr.f32.gmra.mrb[0].mxu0 %v866
  %v1234 = vpop.f32.mrb[0].mxu0
  %v1235 = vadd.f32 %v167, %v1234
  %v1236 = vpop.f32.mrb[0].mxu0
  %1237 = vmatprep.mubr.f32.mxu0 0.0
  %1238 = vmatmul.mubr.f32.gmra.mrb[0].mxu0 %v867
  %v1239 = vpop.f32.mrb[0].mxu0
  %v1240 = vadd.f32 %v167, %v1239
  %v1241 = vpop.f32.mrb[0].mxu0
  %1242 = vmatprep.mubr.f32.mxu0 0.0
  %1243 = vmatmul.mubr.f32.gmra.mrb[0].mxu0 %v868
  %v1244 = vpop.f32.mrb[0].mxu0
  %v1245 = vadd.f32 %v167, %v1244
  %v1246 = vpop.f32.mrb[0].mxu0
  %1247 = vmatprep.mubr.f32.mxu0 0.0
  %1248 = vmatmul.mubr.f32.gmra.mrb[0].mxu0 %v869
  %v1249 = vpop.f32.mrb[0].mxu0
  %v1250 = vadd.f32 %v167, %v1249
  %v1251 = vpop.f32.mrb[0].mxu0
  %1252 = vmatprep.mubr.f32.mxu0 0.0
  %1253 = vmatmul.mubr.f32.gmra.mrb[0].mxu0 %v870
  %v1254 = vpop.f32.mrb[0].mxu0
  %v1255 = vadd.f32 %v167, %v1254
  %v1256 = vpop.f32.mrb[0].mxu0
  %1257 = vmatprep.mubr.f32.mxu0 0.0
  %1258 = vmatmul.mubr.f32.gmra.mrb[0].mxu0 %v871
  %v1259 = vpop.f32.mrb[0].mxu0
  %v1260 = vadd.f32 %v167, %v1259
  %v1261 = vpop.f32.mrb[0].mxu0
  %1262 = vmatprep.mubr.f32.mxu0 0.0
  %1263 = vmatmul.mubr.f32.gmra.mrb[0].mxu0 %v872
  %v1264 = vpop.f32.mrb[0].mxu0
  %v1265 = vadd.f32 %v167, %v1264
  %v1266 = vpop.f32.mrb[0].mxu0
  %1267 = vmatprep.mubr.f32.mxu0 0.0
  %1268 = vmatmul.mubr.f32.gmra.mrb[0].mxu0 %v873
  %v1269 = vpop.f32.mrb[0].mxu0
  %v1270 = vadd.f32 %v167, %v1269
  %v1271 = vpop.f32.mrb[0].mxu0
  %1272 = vmatprep.mubr.f32.mxu0 0.0
  %1273 = vmatmul.mubr.f32.gmra.mrb[0].mxu0 %v874
  %v1274 = vpop.f32.mrb[0].mxu0
  %v1275 = vadd.f32 %v167, %v1274
  %v1276 = vpop.f32.mrb[0].mxu0
  %1277 = vmatprep.mubr.f32.mxu0 0.0
  %1278 = vmatmul.mubr.f32.gmra.mrb[0].mxu0 %v875
  %v1279 = vpop.f32.mrb[0].mxu0
  %v1280 = vadd.f32 %v167, %v1279
  %v1281 = vpop.f32.mrb[0].mxu0
  %1282 = vmatprep.mubr.f32.mxu0 0.0
  %1283 = vmatmul.mubr.f32.gmra.mrb[0].mxu0 %v876
  %v1284 = vpop.f32.mrb[0].mxu0
  %v1285 = vadd.f32 %v167, %v1284
  %v1286 = vpop.f32.mrb[0].mxu0
  %1287 = vmatprep.mubr.f32.mxu0 0.0
  %1288 = vmatmul.mubr.f32.gmra.mrb[0].mxu0 %v877
  %v1289 = vpop.f32.mrb[0].mxu0
  %v1290 = vadd.f32 %v167, %v1289
  %v1291 = vpop.f32.mrb[0].mxu0
  %1292 = vmatprep.mubr.f32.mxu0 0.0
  %1293 = vmatmul.mubr.f32.gmra.mrb[0].mxu0 %v878
  %v1294 = vpop.f32.mrb[0].mxu0
  %v1295 = vadd.f32 %v167, %v1294
  %v1296 = vpop.f32.mrb[0].mxu0
  %1297 = vmatprep.mubr.f32.mxu0 0.0
  %1298 = vmatmul.mubr.f32.gmra.mrb[0].mxu0 %v879
  %v1299 = vpop.f32.mrb[0].mxu0
  %v1300 = vadd.f32 %v167, %v1299
  %v1301 = vpop.f32.mrb[0].mxu0
  %1302 = vmatprep.mubr.f32.mxu0 0.0
  %1303 = vmatmul.mubr.f32.gmra.mrb[0].mxu0 %v880
  %v1304 = vpop.f32.mrb[0].mxu0
  %v1305 = vadd.f32 %v167, %v1304
  %v1306 = vpop.f32.mrb[0].mxu0
  %1307 = vmatprep.mubr.f32.mxu0 0.0
  %1308 = vmatmul.mubr.f32.gmra.mrb[0].mxu0 %v881
  %v1309 = vpop.f32.mrb[0].mxu0
  %v1310 = vadd.f32 %v167, %v1309
  %v1311 = vpop.f32.mrb[0].mxu0
  %1312 = vmatprep.mubr.f32.mxu0 0.0
  %1313 = vmatmul.mubr.f32.gmra.mrb[0].mxu0 %v882
  %v1314 = vpop.f32.mrb[0].mxu0
  %v1315 = vadd.f32 %v167, %v1314
  %v1316 = vpop.f32.mrb[0].mxu0
  %1317 = vmatprep.mubr.f32.mxu0 0.0
  %1318 = vmatmul.mubr.f32.gmra.mrb[0].mxu0 %v883
  %v1319 = vpop.f32.mrb[0].mxu0
  %v1320 = vadd.f32 %v167, %v1319
  %v1321 = vpop.f32.mrb[0].mxu0
  %1322 = vmatprep.mubr.f32.mxu0 0.0
  %1323 = vmatmul.mubr.f32.gmra.mrb[0].mxu0 %v884
  %v1324 = vpop.f32.mrb[0].mxu0
  %v1325 = vadd.f32 %v167, %v1324
  %v1326 = vpop.f32.mrb[0].mxu0
  %1327 = vmatprep.mubr.f32.mxu0 0.0
  %1328 = vmatmul.mubr.f32.gmra.mrb[0].mxu0 %v885
  %v1329 = vpop.f32.mrb[0].mxu0
  %v1330 = vadd.f32 %v167, %v1329
  %v1331 = vpop.f32.mrb[0].mxu0
  %1332 = vmatprep.mubr.f32.mxu0 0.0
  %1333 = vmatmul.mubr.f32.gmra.mrb[0].mxu0 %v886
  %v1334 = vpop.f32.mrb[0].mxu0
  %v1335 = vadd.f32 %v167, %v1334
  %v1336 = vpop.f32.mrb[0].mxu0
  %1337 = vmatprep.mubr.f32.mxu0 0.0
  %1338 = vmatmul.mubr.f32.gmra.mrb[0].mxu0 %v887
  %v1339 = vpop.f32.mrb[0].mxu0
  %v1340 = vadd.f32 %v167, %v1339
  %v1341 = vpop.f32.mrb[0].mxu0
  %1342 = vmatprep.mubr.f32.mxu0 0.0
  %1343 = vmatmul.mubr.f32.gmra.mrb[0].mxu0 %v888
  %v1344 = vpop.f32.mrb[0].mxu0
  %v1345 = vadd.f32 %v167, %v1344
  %v1346 = vpop.f32.mrb[0].mxu0
  %1347 = vmatprep.mubr.f32.mxu0 0.0
  %1348 = vmatmul.mubr.f32.gmra.mrb[0].mxu0 %v889
  %v1349 = vpop.f32.mrb[0].mxu0
  %v1350 = vadd.f32 %v167, %v1349
  %v1351 = vpop.f32.mrb[0].mxu0
  %1352 = vmatprep.mubr.f32.mxu0 0.0
  %1353 = vmatmul.mubr.f32.gmra.mrb[0].mxu0 %v890
  %v1354 = vpop.f32.mrb[0].mxu0
  %v1355 = vadd.f32 %v167, %v1354
  %v1356 = vpop.f32.mrb[0].mxu0
  %1357 = vmatprep.mubr.f32.mxu0 0.0
  %1358 = vmatmul.mubr.f32.gmra.mrb[0].mxu0 %v891
  %v1359 = vpop.f32.mrb[0].mxu0
  %v1360 = vadd.f32 %v167, %v1359
  %v1361 = vpop.f32.mrb[0].mxu0
  %1362 = vmatprep.mubr.f32.mxu0 0.0
  %1363 = vmatmul.mubr.f32.gmra.mrb[0].mxu0 %v892
  %v1364 = vpop.f32.mrb[0].mxu0
  %v1365 = vadd.f32 %v167, %v1364
  %v1366 = vpop.f32.mrb[0].mxu0
  %1367 = vmatprep.mubr.f32.mxu0 0.0
  %1368 = vmatmul.mubr.f32.gmra.mrb[0].mxu0 %v893
  %v1369 = vpop.f32.mrb[0].mxu0
  %v1370 = vadd.f32 %v167, %v1369
  %v1371 = vpop.f32.mrb[0].mxu0
  %1372 = vmatprep.mubr.f32.mxu0 0.0
  %1373 = vmatmul.mubr.f32.gmra.mrb[0].mxu0 %v894
  %v1374 = vpop.f32.mrb[0].mxu0
  %v1375 = vadd.f32 %v167, %v1374
  %v1376 = vpop.f32.mrb[0].mxu0
  %1377 = vmatprep.mubr.f32.mxu0 0.0
  %1378 = vmatmul.mubr.f32.gmra.mrb[0].mxu0 %v895
  %v1379 = vpop.f32.mrb[0].mxu0
  %v1380 = vadd.f32 %v167, %v1379
  %v1381 = vpop.f32.mrb[0].mxu0
  %1382 = vmatprep.mubr.f32.mxu0 0.0
  %1383 = vmatmul.mubr.f32.gmra.mrb[0].mxu0 %v896
  %v1384 = vpop.f32.mrb[0].mxu0
  %v1385 = vadd.f32 %v167, %v1384
  %v1386 = vpop.f32.mrb[0].mxu0
  %1387 = vmatprep.mubr.f32.mxu0 0.0
  %1388 = vmatmul.mubr.f32.gmra.mrb[0].mxu0 %v897
  %v1389 = vpop.f32.mrb[0].mxu0
  %v1390 = vadd.f32 %v167, %v1389
  %v1391 = vpop.f32.mrb[0].mxu0
  %1392 = vmatprep.mubr.f32.mxu0 0.0
  %1393 = vmatmul.mubr.f32.gmra.mrb[0].mxu0 %v898
  %v1394 = vpop.f32.mrb[0].mxu0
  %v1395 = vadd.f32 %v167, %v1394
  %v1396 = vpop.f32.mrb[0].mxu0
  %1397 = vmatprep.mubr.f32.mxu0 0.0
  %1398 = vmatmul.mubr.f32.gmra.mrb[0].mxu0 %v899
  %v1399 = vpop.f32.mrb[0].mxu0
  %v1400 = vadd.f32 %v167, %v1399
  %v1401 = vpop.f32.mrb[0].mxu0
  %1402 = vmatprep.mubr.f32.mxu0 0.0
  %1403 = vmatmul.mubr.f32.gmra.mrb[0].mxu0 %v900
  %v1404 = vpop.f32.mrb[0].mxu0
  %v1405 = vadd.f32 %v167, %v1404
  %v1406 = vpop.f32.mrb[0].mxu0
  %1407 = vmatprep.mubr.f32.mxu0 0.0
  %1408 = vmatmul.mubr.f32.gmra.mrb[0].mxu0 %v901
  %v1409 = vpop.f32.mrb[0].mxu0
  %v1410 = vadd.f32 %v167, %v1409
  %v1411 = vpop.f32.mrb[0].mxu0
  %1412 = vmatprep.mubr.f32.mxu0 0.0
  %1413 = vmatmul.mubr.f32.gmra.mrb[0].mxu0 %v902
  %v1414 = vpop.f32.mrb[0].mxu0
  %v1415 = vadd.f32 %v167, %v1414
  %v1416 = vpop.f32.mrb[0].mxu0
  %1417 = vmatprep.mubr.f32.mxu0 0.0
  %1418 = vmatmul.mubr.f32.gmra.mrb[0].mxu0 %v903
  %v1419 = vpop.f32.mrb[0].mxu0
  %v1420 = vadd.f32 %v167, %v1419
  %v1421 = vpop.f32.mrb[0].mxu0
  %1422 = vmatprep.mubr.f32.mxu0 0.0
  %1423 = vmatmul.mubr.f32.gmra.mrb[0].mxu0 %v904
  %v1424 = vpop.f32.mrb[0].mxu0
  %v1425 = vadd.f32 %v167, %v1424
  %v1426 = vpop.f32.mrb[0].mxu0
  %1427 = vmatprep.mubr.f32.mxu0 0.0
  %1428 = vmatmul.mubr.f32.gmra.mrb[0].mxu0 %v905
  %v1429 = vpop.f32.mrb[0].mxu0
  %v1430 = vadd.f32 %v167, %v1429
  %v1431 = vpop.f32.mrb[0].mxu0
  %1432 = vmatprep.mubr.f32.mxu0 0.0
  %1433 = vmatmul.mubr.f32.gmra.mrb[0].mxu0 %v906
  %v1434 = vpop.f32.mrb[0].mxu0
  %v1435 = vadd.f32 %v167, %v1434
  %v1436 = vpop.f32.mrb[0].mxu0
  %1437 = vmatprep.mubr.f32.mxu0 0.0
  %1438 = vmatmul.mubr.f32.gmra.mrb[0].mxu0 %v907
  %v1439 = vpop.f32.mrb[0].mxu0
  %v1440 = vadd.f32 %v167, %v1439
  %v1441 = vpop.f32.mrb[0].mxu0
  %1442 = vmatprep.mubr.f32.mxu0 0.0
  %1443 = vmatmul.mubr.f32.gmra.mrb[0].mxu0 %v908
  %v1444 = vpop.f32.mrb[0].mxu0
  %v1445 = vadd.f32 %v167, %v1444
  %v1446 = vpop.f32.mrb[0].mxu0
  %1447 = vmatprep.mubr.f32.mxu0 0.0
  %1448 = vmatmul.mubr.f32.gmra.mrb[0].mxu0 %v909
  %v1449 = vpop.f32.mrb[0].mxu0
  %v1450 = vadd.f32 %v167, %v1449
  %v1451 = vpop.f32.mrb[0].mxu0
  %1452 = vmatprep.mubr.f32.mxu0 0.0
  %1453 = vmatmul.mubr.f32.gmra.mrb[0].mxu0 %v910
  %v1454 = vpop.f32.mrb[0].mxu0
  %v1455 = vadd.f32 %v167, %v1454
  %v1456 = vpop.f32.mrb[0].mxu0
  %1457 = vmatprep.mubr.f32.mxu0 0.0
  %1458 = vmatmul.mubr.f32.gmra.mrb[0].mxu0 %v911
  %v1459 = vpop.f32.mrb[0].mxu0
  %v1460 = vadd.f32 %v167, %v1459
  %v1461 = vpop.f32.mrb[0].mxu0
  %1462 = vmatprep.mubr.f32.mxu0 0.0
  %1463 = vmatmul.mubr.f32.gmra.mrb[0].mxu0 %v912
  %v1464 = vpop.f32.mrb[0].mxu0
  %v1465 = vadd.f32 %v167, %v1464
  %v1466 = vpop.f32.mrb[0].mxu0
  %1467 = vmatprep.mubr.f32.mxu0 0.0
  %1468 = vmatmul.mubr.f32.gmra.mrb[0].mxu0 %v913
  %v1469 = vpop.f32.mrb[0].mxu0
  %v1470 = vadd.f32 %v167, %v1469
  %v1471 = vpop.f32.mrb[0].mxu0
  %1472 = vmatprep.mubr.f32.mxu0 0.0
  %1473 = vmatmul.mubr.f32.gmra.mrb[0].mxu0 %v914
  %v1474 = vpop.f32.mrb[0].mxu0
  %v1475 = vadd.f32 %v167, %v1474
  %v1476 = vpop.f32.mrb[0].mxu0
  %1477 = vmatprep.mubr.f32.mxu0 0.0
  %1478 = vmatmul.mubr.f32.gmra.mrb[0].mxu0 %v915
  %v1479 = vpop.f32.mrb[0].mxu0
  %v1480 = vadd.f32 %v167, %v1479
  %v1481 = vpop.f32.mrb[0].mxu0
  %1482 = vmatprep.mubr.f32.mxu0 0.0
  %1483 = vmatmul.mubr.f32.gmra.mrb[0].mxu0 %v916
  %v1484 = vpop.f32.mrb[0].mxu0
  %v1485 = vadd.f32 %v167, %v1484
  %v1486 = vpop.f32.mrb[0].mxu0
  %1487 = vmatprep.mubr.f32.mxu0 0.0
  %1488 = vmatmul.mubr.f32.gmra.mrb[0].mxu0 %v917
  %v1489 = vpop.f32.mrb[0].mxu0
  %v1490 = vadd.f32 %v167, %v1489
  %v1491 = vpop.f32.mrb[0].mxu0
  %1492 = vmatprep.mubr.f32.mxu0 0.0
  %1493 = vmatmul.mubr.f32.gmra.mrb[0].mxu0 %v918
  %v1494 = vpop.f32.mrb[0].mxu0
  %v1495 = vadd.f32 %v167, %v1494
  %v1496 = vpop.f32.mrb[0].mxu0
  %1497 = vmatprep.mubr.f32.mxu0 0.0
  %1498 = vmatmul.mubr.f32.gmra.mrb[0].mxu0 %v919
  %v1499 = vpop.f32.mrb[0].mxu0
  %v1500 = vadd.f32 %v167, %v1499
  %v1501 = vpop.f32.mrb[0].mxu0
  %1502 = vmatprep.mubr.f32.mxu0 0.0
  %1503 = vmatmul.mubr.f32.gmra.mrb[0].mxu0 %v920
  %v1504 = vpop.f32.mrb[0].mxu0
  %v1505 = vadd.f32 %v167, %v1504
  %v1506 = vpop.f32.mrb[0].mxu0
  %1507 = vmatprep.mubr.f32.mxu0 0.0
  %1508 = vmatmul.mubr.f32.gmra.mrb[0].mxu0 %v921
  %v1509 = vpop.f32.mrb[0].mxu0
  %v1510 = vadd.f32 %v167, %v1509
  %v1511 = vpop.f32.mrb[0].mxu0
  %1512 = vmatprep.mubr.f32.mxu0 0.0
  %1513 = vmatmul.mubr.f32.gmra.mrb[0].mxu0 %v922
  %v1514 = vpop.f32.mrb[0].mxu0
  %v1515 = vadd.f32 %v167, %v1514
  %v1516 = vpop.f32.mrb[0].mxu0
  %1517 = vmatprep.mubr.f32.mxu0 0.0
  %1518 = vmatmul.mubr.f32.gmra.mrb[0].mxu0 %v923
  %v1519 = vpop.f32.mrb[0].mxu0
  %v1520 = vadd.f32 %v167, %v1519
  %v1521 = vpop.f32.mrb[0].mxu0
  %1522 = vmatprep.mubr.f32.mxu0 0.0
  %1523 = vmatmul.mubr.f32.gmra.mrb[0].mxu0 %v924
  %v1524 = vpop.f32.mrb[0].mxu0
  %v1525 = vadd.f32 %v167, %v1524
  %v1526 = vpop.f32.mrb[0].mxu0
  %1527 = vmatprep.mubr.f32.mxu0 0.0
  %1528 = vmatmul.mubr.f32.gmra.mrb[0].mxu0 %v925
  %v1529 = vpop.f32.mrb[0].mxu0
  %v1530 = vadd.f32 %v167, %v1529
  %v1531 = vpop.f32.mrb[0].mxu0
  %1532 = vmatprep.mubr.f32.mxu0 0.0
  %1533 = vmatmul.mubr.f32.gmra.mrb[0].mxu0 %v926
  %v1534 = vpop.f32.mrb[0].mxu0
  %v1535 = vadd.f32 %v167, %v1534
  %v1536 = vpop.f32.mrb[0].mxu0
  %1537 = vmatprep.mubr.f32.mxu0 0.0
  %1538 = vmatmul.mubr.f32.gmra.mrb[0].mxu0 %v927
  %v1539 = vpop.f32.mrb[0].mxu0
  %v1540 = vadd.f32 %v167, %v1539
  %v1541 = vpop.f32.mrb[0].mxu0
  %1542 = vmatprep.mubr.f32.mxu0 0.0
  %1543 = vmatmul.mubr.f32.gmra.mrb[0].mxu0 %v928
  %v1544 = vpop.f32.mrb[0].mxu0
  %v1545 = vadd.f32 %v167, %v1544
  %v1546 = vpop.f32.mrb[0].mxu0
  %1547 = vmatprep.mubr.f32.mxu0 0.0
  %1548 = vmatmul.mubr.f32.gmra.mrb[0].mxu0 %v929
  %v1549 = vpop.f32.mrb[0].mxu0
  %v1550 = vadd.f32 %v167, %v1549
  %v1551 = vpop.f32.mrb[0].mxu0
  %1552 = vmatprep.mubr.f32.mxu0 0.0
  %1553 = vmatmul.mubr.f32.gmra.mrb[0].mxu0 %v930
  %v1554 = vpop.f32.mrb[0].mxu0
  %v1555 = vadd.f32 %v167, %v1554
  %v1556 = vpop.f32.mrb[0].mxu0
  %1557 = vmatprep.mubr.f32.mxu0 0.0
  %1558 = vmatmul.mubr.f32.gmra.mrb[0].mxu0 %v931
  %v1559 = vpop.f32.mrb[0].mxu0
  %v1560 = vadd.f32 %v167, %v1559
  %v1561 = vpop.f32.mrb[0].mxu0
  %1562 = vmatprep.mubr.f32.mxu0 0.0
  %1563 = vmatmul.mubr.f32.gmra.mrb[0].mxu0 %v932
  %v1564 = vpop.f32.mrb[0].mxu0
  %v1565 = vadd.f32 %v167, %v1564
  %v1566 = vpop.f32.mrb[0].mxu0
  %1567 = vmatprep.mubr.f32.mxu0 0.0
  %1568 = vmatmul.mubr.f32.gmra.mrb[0].mxu0 %v933
  %v1569 = vpop.f32.mrb[0].mxu0
  %v1570 = vadd.f32 %v167, %v1569
  %v1571 = vpop.f32.mrb[0].mxu0
  %1572 = vmatprep.mubr.f32.mxu0 0.0
  %1573 = vmatmul.mubr.f32.gmra.mrb[0].mxu0 %v934
  %v1574 = vpop.f32.mrb[0].mxu0
  %v1575 = vadd.f32 %v167, %v1574
  %v1576 = vpop.f32.mrb[0].mxu0
  %1577 = vmatprep.mubr.f32.mxu0 0.0
  %1578 = vmatmul.mubr.f32.gmra.mrb[0].mxu0 %v935
  %v1579 = vpop.f32.mrb[0].mxu0
  %v1580 = vadd.f32 %v167, %v1579
  %v1581 = vpop.f32.mrb[0].mxu0
  %1582 = vmatprep.mubr.f32.mxu0 0.0
  %1583 = vmatmul.mubr.f32.gmra.mrb[0].mxu0 %v936
  %v1584 = vpop.f32.mrb[0].mxu0
  %v1585 = vadd.f32 %v167, %v1584
  %v1586 = vpop.f32.mrb[0].mxu0
  %1587 = vmatprep.mubr.f32.mxu0 0.0
  %1588 = vmatmul.mubr.f32.gmra.mrb[0].mxu0 %v937
  %v1589 = vpop.f32.mrb[0].mxu0
  %v1590 = vadd.f32 %v167, %v1589
  %v1591 = vpop.f32.mrb[0].mxu0
  %1592 = vmatprep.mubr.f32.mxu0 0.0
  %1593 = vmatmul.mubr.f32.gmra.mrb[0].mxu0 %v938
  %v1594 = vpop.f32.mrb[0].mxu0
  %v1595 = vadd.f32 %v167, %v1594
  %v1596 = vpop.f32.mrb[0].mxu0
  %1597 = vmatprep.mubr.f32.mxu0 0.0
  %1598 = vmatmul.mubr.f32.gmra.mrb[0].mxu0 %v939
  %v1599 = vpop.f32.mrb[0].mxu0
  %v1600 = vadd.f32 %v167, %v1599
  %v1601 = vpop.f32.mrb[0].mxu0
  %1602 = vmatprep.mubr.f32.mxu0 0.0
  %1603 = vmatmul.mubr.f32.gmra.mrb[0].mxu0 %v940
  %v1604 = vpop.f32.mrb[0].mxu0
  %v1605 = vadd.f32 %v167, %v1604
  %v1606 = vpop.f32.mrb[0].mxu0
  %1607 = vmatprep.mubr.f32.mxu0 0.0
  %1608 = vmatmul.mubr.f32.gmra.mrb[0].mxu0 %v941
  %v1609 = vpop.f32.mrb[0].mxu0
  %v1610 = vadd.f32 %v167, %v1609
  %v1611 = vpop.f32.mrb[0].mxu0
  %1612 = vdwg.mxu0
  %v1613 = vxor.u32 %v236, 2147483648
  %v1614 = vxor.u32 %v241, 2147483648
  %v1615 = vxor.u32 %v246, 2147483648
  %v1616 = vxor.u32 %v251, 2147483648
  %v1617 = vxor.u32 %v256, 2147483648
  %v1618 = vxor.u32 %v261, 2147483648
  %v1619 = vxor.u32 %v266, 2147483648
  %v1620 = vxor.u32 %v271, 2147483648
  %v1621 = vxor.u32 %v276, 2147483648
  %v1622 = vxor.u32 %v281, 2147483648
  %v1623 = vxor.u32 %v286, 2147483648
  %v1624 = vxor.u32 %v291, 2147483648
  %v1625 = vxor.u32 %v296, 2147483648
  %v1626 = vxor.u32 %v301, 2147483648
  %v1627 = vxor.u32 %v306, 2147483648
  %v1628 = vxor.u32 %v311, 2147483648
  %v1629 = vxor.u32 %v316, 2147483648
  %v1630 = vxor.u32 %v321, 2147483648
  %v1631 = vxor.u32 %v326, 2147483648
  %v1632 = vxor.u32 %v331, 2147483648
  %v1633 = vxor.u32 %v336, 2147483648
  %v1634 = vxor.u32 %v341, 2147483648
  %v1635 = vxor.u32 %v346, 2147483648
  %v1636 = vxor.u32 %v351, 2147483648
  %v1637 = vxor.u32 %v356, 2147483648
  %v1638 = vxor.u32 %v361, 2147483648
  %v1639 = vxor.u32 %v366, 2147483648
  %v1640 = vxor.u32 %v371, 2147483648
  %v1641 = vxor.u32 %v376, 2147483648
  %v1642 = vxor.u32 %v381, 2147483648
  %v1643 = vxor.u32 %v386, 2147483648
  %v1644 = vxor.u32 %v391, 2147483648
  %v1645 = vxor.u32 %v396, 2147483648
  %v1646 = vxor.u32 %v401, 2147483648
  %v1647 = vxor.u32 %v406, 2147483648
  %v1648 = vxor.u32 %v411, 2147483648
  %v1649 = vxor.u32 %v416, 2147483648
  %v1650 = vxor.u32 %v421, 2147483648
  %v1651 = vxor.u32 %v426, 2147483648
  %v1652 = vxor.u32 %v431, 2147483648
  %v1653 = vxor.u32 %v436, 2147483648
  %v1654 = vxor.u32 %v441, 2147483648
  %v1655 = vxor.u32 %v446, 2147483648
  %v1656 = vxor.u32 %v451, 2147483648
  %v1657 = vxor.u32 %v456, 2147483648
  %v1658 = vxor.u32 %v461, 2147483648
  %v1659 = vxor.u32 %v466, 2147483648
  %v1660 = vxor.u32 %v471, 2147483648
  %v1661 = vxor.u32 %v476, 2147483648
  %v1662 = vxor.u32 %v481, 2147483648
  %v1663 = vxor.u32 %v486, 2147483648
  %v1664 = vxor.u32 %v491, 2147483648
  %v1665 = vxor.u32 %v496, 2147483648
  %v1666 = vxor.u32 %v501, 2147483648
  %v1667 = vxor.u32 %v506, 2147483648
  %v1668 = vxor.u32 %v511, 2147483648
  %v1669 = vxor.u32 %v516, 2147483648
  %v1670 = vxor.u32 %v521, 2147483648
  %v1671 = vxor.u32 %v526, 2147483648
  %v1672 = vxor.u32 %v531, 2147483648
  %v1673 = vxor.u32 %v536, 2147483648
  %v1674 = vxor.u32 %v541, 2147483648
  %v1675 = vxor.u32 %v546, 2147483648
  %v1676 = vxor.u32 %v551, 2147483648
  %v1677 = vxor.u32 %v556, 2147483648
  %v1678 = vxor.u32 %v561, 2147483648
  %v1679 = vxor.u32 %v566, 2147483648
  %v1680 = vxor.u32 %v571, 2147483648
  %v1681 = vxor.u32 %v576, 2147483648
  %v1682 = vxor.u32 %v581, 2147483648
  %v1683 = vxor.u32 %v586, 2147483648
  %v1684 = vxor.u32 %v591, 2147483648
  %v1685 = vxor.u32 %v596, 2147483648
  %v1686 = vxor.u32 %v601, 2147483648
  %v1687 = vxor.u32 %v606, 2147483648
  %v1688 = vxor.u32 %v611, 2147483648
  %v1689 = vxor.u32 %v616, 2147483648
  %v1690 = vxor.u32 %v621, 2147483648
  %v1691 = vxor.u32 %v626, 2147483648
  %v1692 = vxor.u32 %v631, 2147483648
  %v1693 = vxor.u32 %v636, 2147483648
  %v1694 = vxor.u32 %v641, 2147483648
  %v1695 = vxor.u32 %v646, 2147483648
  %v1696 = vxor.u32 %v651, 2147483648
  %v1697 = vxor.u32 %v656, 2147483648
  %v1698 = vxor.u32 %v661, 2147483648
  %v1699 = vxor.u32 %v666, 2147483648
  %v1700 = vxor.u32 %v671, 2147483648
  %v1701 = vxor.u32 %v676, 2147483648
  %v1702 = vxor.u32 %v681, 2147483648
  %v1703 = vxor.u32 %v686, 2147483648
  %v1704 = vxor.u32 %v691, 2147483648
  %v1705 = vxor.u32 %v696, 2147483648
  %v1706 = vxor.u32 %v701, 2147483648
  %v1707 = vxor.u32 %v706, 2147483648
  %v1708 = vxor.u32 %v711, 2147483648
  %v1709 = vxor.u32 %v716, 2147483648
  %v1710 = vxor.u32 %v721, 2147483648
  %v1711 = vxor.u32 %v726, 2147483648
  %v1712 = vxor.u32 %v731, 2147483648
  %v1713 = vxor.u32 %v736, 2147483648
  %v1714 = vxor.u32 %v741, 2147483648
  %v1715 = vxor.u32 %v746, 2147483648
  %v1716 = vxor.u32 %v751, 2147483648
  %v1717 = vxor.u32 %v756, 2147483648
  %v1718 = vxor.u32 %v761, 2147483648
  %v1719 = vxor.u32 %v766, 2147483648
  %v1720 = vxor.u32 %v771, 2147483648
  %v1721 = vxor.u32 %v776, 2147483648
  %v1722 = vxor.u32 %v781, 2147483648
  %v1723 = vxor.u32 %v786, 2147483648
  %v1724 = vxor.u32 %v791, 2147483648
  %v1725 = vxor.u32 %v796, 2147483648
  %v1726 = vxor.u32 %v801, 2147483648
  %v1727 = vxor.u32 %v806, 2147483648
  %v1728 = vxor.u32 %v811, 2147483648
  %v1729 = vxor.u32 %v816, 2147483648
  %v1730 = vxor.u32 %v821, 2147483648
  %v1731 = vmul.f32 %v1613, 1.442695
  %v1732 = vpow.pop %v1731
  %v1733 = vmul.f32 %v1614, 1.442695
  %v1734 = vpow.pop %v1733
  %v1735 = vmul.f32 %v1615, 1.442695
  %v1736 = vpow.pop %v1735
  %v1737 = vmul.f32 %v1616, 1.442695
  %v1738 = vpow.pop %v1737
  %v1739 = vmul.f32 %v1617, 1.442695
  %v1740 = vpow.pop %v1739
  %v1741 = vmul.f32 %v1618, 1.442695
  %v1742 = vpow.pop %v1741
  %v1743 = vmul.f32 %v1619, 1.442695
  %v1744 = vpow.pop %v1743
  %v1745 = vmul.f32 %v1620, 1.442695
  %v1746 = vpow.pop %v1745
  %v1747 = vmul.f32 %v1621, 1.442695
  %v1748 = vpow.pop %v1747
  %v1749 = vmul.f32 %v1622, 1.442695
  %v1750 = vpow.pop %v1749
  %v1751 = vmul.f32 %v1623, 1.442695
  %v1752 = vpow.pop %v1751
  %v1753 = vmul.f32 %v1624, 1.442695
  %v1754 = vpow.pop %v1753
  %v1755 = vmul.f32 %v1625, 1.442695
  %v1756 = vpow.pop %v1755
  %v1757 = vmul.f32 %v1626, 1.442695
  %v1758 = vpow.pop %v1757
  %v1759 = vmul.f32 %v1627, 1.442695
  %v1760 = vpow.pop %v1759
  %v1761 = vmul.f32 %v1628, 1.442695
  %v1762 = vpow.pop %v1761
  %v1763 = vmul.f32 %v1629, 1.442695
  %v1764 = vpow.pop %v1763
  %v1765 = vmul.f32 %v1630, 1.442695
  %v1766 = vpow.pop %v1765
  %v1767 = vmul.f32 %v1631, 1.442695
  %v1768 = vpow.pop %v1767
  %v1769 = vmul.f32 %v1632, 1.442695
  %v1770 = vpow.pop %v1769
  %v1771 = vmul.f32 %v1633, 1.442695
  %v1772 = vpow.pop %v1771
  %v1773 = vmul.f32 %v1634, 1.442695
  %v1774 = vpow.pop %v1773
  %v1775 = vmul.f32 %v1635, 1.442695
  %v1776 = vpow.pop %v1775
  %v1777 = vmul.f32 %v1636, 1.442695
  %v1778 = vpow.pop %v1777
  %v1779 = vmul.f32 %v1637, 1.442695
  %v1780 = vpow.pop %v1779
  %v1781 = vmul.f32 %v1638, 1.442695
  %v1782 = vpow.pop %v1781
  %v1783 = vmul.f32 %v1639, 1.442695
  %v1784 = vpow.pop %v1783
  %v1785 = vmul.f32 %v1640, 1.442695
  %v1786 = vpow.pop %v1785
  %v1787 = vmul.f32 %v1641, 1.442695
  %v1788 = vpow.pop %v1787
  %v1789 = vmul.f32 %v1642, 1.442695
  %v1790 = vpow.pop %v1789
  %v1791 = vmul.f32 %v1643, 1.442695
  %v1792 = vpow.pop %v1791
  %v1793 = vmul.f32 %v1644, 1.442695
  %v1794 = vpow.pop %v1793
  %v1795 = vmul.f32 %v1645, 1.442695
  %v1796 = vpow.pop %v1795
  %v1797 = vmul.f32 %v1646, 1.442695
  %v1798 = vpow.pop %v1797
  %v1799 = vmul.f32 %v1647, 1.442695
  %v1800 = vpow.pop %v1799
  %v1801 = vmul.f32 %v1648, 1.442695
  %v1802 = vpow.pop %v1801
  %v1803 = vmul.f32 %v1649, 1.442695
  %v1804 = vpow.pop %v1803
  %v1805 = vmul.f32 %v1650, 1.442695
  %v1806 = vpow.pop %v1805
  %v1807 = vmul.f32 %v1651, 1.442695
  %v1808 = vpow.pop %v1807
  %v1809 = vmul.f32 %v1652, 1.442695
  %v1810 = vpow.pop %v1809
  %v1811 = vmul.f32 %v1653, 1.442695
  %v1812 = vpow.pop %v1811
  %v1813 = vmul.f32 %v1654, 1.442695
  %v1814 = vpow.pop %v1813
  %v1815 = vmul.f32 %v1655, 1.442695
  %v1816 = vpow.pop %v1815
  %v1817 = vmul.f32 %v1656, 1.442695
  %v1818 = vpow.pop %v1817
  %v1819 = vmul.f32 %v1657, 1.442695
  %v1820 = vpow.pop %v1819
  %v1821 = vmul.f32 %v1658, 1.442695
  %v1822 = vpow.pop %v1821
  %v1823 = vmul.f32 %v1659, 1.442695
  %v1824 = vpow.pop %v1823
  %v1825 = vmul.f32 %v1660, 1.442695
  %v1826 = vpow.pop %v1825
  %v1827 = vmul.f32 %v1661, 1.442695
  %v1828 = vpow.pop %v1827
  %v1829 = vmul.f32 %v1662, 1.442695
  %v1830 = vpow.pop %v1829
  %v1831 = vmul.f32 %v1663, 1.442695
  %v1832 = vpow.pop %v1831
  %v1833 = vmul.f32 %v1664, 1.442695
  %v1834 = vpow.pop %v1833
  %v1835 = vmul.f32 %v1665, 1.442695
  %v1836 = vpow.pop %v1835
  %v1837 = vmul.f32 %v1666, 1.442695
  %v1838 = vpow.pop %v1837
  %v1839 = vmul.f32 %v1667, 1.442695
  %v1840 = vpow.pop %v1839
  %v1841 = vmul.f32 %v1668, 1.442695
  %v1842 = vpow.pop %v1841
  %v1843 = vmul.f32 %v1669, 1.442695
  %v1844 = vpow.pop %v1843
  %v1845 = vmul.f32 %v1670, 1.442695
  %v1846 = vpow.pop %v1845
  %v1847 = vmul.f32 %v1671, 1.442695
  %v1848 = vpow.pop %v1847
  %v1849 = vmul.f32 %v1672, 1.442695
  %v1850 = vpow.pop %v1849
  %v1851 = vmul.f32 %v1673, 1.442695
  %v1852 = vpow.pop %v1851
  %v1853 = vmul.f32 %v1674, 1.442695
  %v1854 = vpow.pop %v1853
  %v1855 = vmul.f32 %v1675, 1.442695
  %v1856 = vpow.pop %v1855
  %v1857 = vmul.f32 %v1676, 1.442695
  %v1858 = vpow.pop %v1857
  %v1859 = vmul.f32 %v1677, 1.442695
  %v1860 = vpow.pop %v1859
  %v1861 = vmul.f32 %v1678, 1.442695
  %v1862 = vpow.pop %v1861
  %v1863 = vmul.f32 %v1679, 1.442695
  %v1864 = vpow.pop %v1863
  %v1865 = vmul.f32 %v1680, 1.442695
  %v1866 = vpow.pop %v1865
  %v1867 = vmul.f32 %v1681, 1.442695
  %v1868 = vpow.pop %v1867
  %v1869 = vmul.f32 %v1682, 1.442695
  %v1870 = vpow.pop %v1869
  %v1871 = vmul.f32 %v1683, 1.442695
  %v1872 = vpow.pop %v1871
  %v1873 = vmul.f32 %v1684, 1.442695
  %v1874 = vpow.pop %v1873
  %v1875 = vmul.f32 %v1685, 1.442695
  %v1876 = vpow.pop %v1875
  %v1877 = vmul.f32 %v1686, 1.442695
  %v1878 = vpow.pop %v1877
  %v1879 = vmul.f32 %v1687, 1.442695
  %v1880 = vpow.pop %v1879
  %v1881 = vmul.f32 %v1688, 1.442695
  %v1882 = vpow.pop %v1881
  %v1883 = vmul.f32 %v1689, 1.442695
  %v1884 = vpow.pop %v1883
  %v1885 = vmul.f32 %v1690, 1.442695
  %v1886 = vpow.pop %v1885
  %v1887 = vmul.f32 %v1691, 1.442695
  %v1888 = vpow.pop %v1887
  %v1889 = vmul.f32 %v1692, 1.442695
  %v1890 = vpow.pop %v1889
  %v1891 = vmul.f32 %v1693, 1.442695
  %v1892 = vpow.pop %v1891
  %v1893 = vmul.f32 %v1694, 1.442695
  %v1894 = vpow.pop %v1893
  %v1895 = vmul.f32 %v1695, 1.442695
  %v1896 = vpow.pop %v1895
  %v1897 = vmul.f32 %v1696, 1.442695
  %v1898 = vpow.pop %v1897
  %v1899 = vmul.f32 %v1697, 1.442695
  %v1900 = vpow.pop %v1899
  %v1901 = vmul.f32 %v1698, 1.442695
  %v1902 = vpow.pop %v1901
  %v1903 = vmul.f32 %v1699, 1.442695
  %v1904 = vpow.pop %v1903
  %v1905 = vmul.f32 %v1700, 1.442695
  %v1906 = vpow.pop %v1905
  %v1907 = vmul.f32 %v1701, 1.442695
  %v1908 = vpow.pop %v1907
  %v1909 = vmul.f32 %v1702, 1.442695
  %v1910 = vpow.pop %v1909
  %v1911 = vmul.f32 %v1703, 1.442695
  %v1912 = vpow.pop %v1911
  %v1913 = vmul.f32 %v1704, 1.442695
  %v1914 = vpow.pop %v1913
  %v1915 = vmul.f32 %v1705, 1.442695
  %v1916 = vpow.pop %v1915
  %v1917 = vmul.f32 %v1706, 1.442695
  %v1918 = vpow.pop %v1917
  %v1919 = vmul.f32 %v1707, 1.442695
  %v1920 = vpow.pop %v1919
  %v1921 = vmul.f32 %v1708, 1.442695
  %v1922 = vpow.pop %v1921
  %v1923 = vmul.f32 %v1709, 1.442695
  %v1924 = vpow.pop %v1923
  %v1925 = vmul.f32 %v1710, 1.442695
  %v1926 = vpow.pop %v1925
  %v1927 = vmul.f32 %v1711, 1.442695
  %v1928 = vpow.pop %v1927
  %v1929 = vmul.f32 %v1712, 1.442695
  %v1930 = vpow.pop %v1929
  %v1931 = vmul.f32 %v1713, 1.442695
  %v1932 = vpow.pop %v1931
  %v1933 = vmul.f32 %v1714, 1.442695
  %v1934 = vpow.pop %v1933
  %v1935 = vmul.f32 %v1715, 1.442695
  %v1936 = vpow.pop %v1935
  %v1937 = vmul.f32 %v1716, 1.442695
  %v1938 = vpow.pop %v1937
  %v1939 = vmul.f32 %v1717, 1.442695
  %v1940 = vpow.pop %v1939
  %v1941 = vmul.f32 %v1718, 1.442695
  %v1942 = vpow.pop %v1941
  %v1943 = vmul.f32 %v1719, 1.442695
  %v1944 = vpow.pop %v1943
  %v1945 = vmul.f32 %v1720, 1.442695
  %v1946 = vpow.pop %v1945
  %v1947 = vmul.f32 %v1721, 1.442695
  %v1948 = vpow.pop %v1947
  %v1949 = vmul.f32 %v1722, 1.442695
  %v1950 = vpow.pop %v1949
  %v1951 = vmul.f32 %v1723, 1.442695
  %v1952 = vpow.pop %v1951
  %v1953 = vmul.f32 %v1724, 1.442695
  %v1954 = vpow.pop %v1953
  %v1955 = vmul.f32 %v1725, 1.442695
  %v1956 = vpow.pop %v1955
  %v1957 = vmul.f32 %v1726, 1.442695
  %v1958 = vpow.pop %v1957
  %v1959 = vmul.f32 %v1727, 1.442695
  %v1960 = vpow.pop %v1959
  %v1961 = vmul.f32 %v1728, 1.442695
  %v1962 = vpow.pop %v1961
  %v1963 = vmul.f32 %v1729, 1.442695
  %v1964 = vpow.pop %v1963
  %v1965 = vmul.f32 %v1730, 1.442695
  %v1966 = vpow.pop %v1965
  %v1967 = vadd.f32 %v1732, 1.0
  %v1968 = vadd.f32 %v1734, 1.0
  %v1969 = vadd.f32 %v1736, 1.0
  %v1970 = vadd.f32 %v1738, 1.0
  %v1971 = vadd.f32 %v1740, 1.0
  %v1972 = vadd.f32 %v1742, 1.0
  %v1973 = vadd.f32 %v1744, 1.0
  %v1974 = vadd.f32 %v1746, 1.0
  %v1975 = vadd.f32 %v1748, 1.0
  %v1976 = vadd.f32 %v1750, 1.0
  %v1977 = vadd.f32 %v1752, 1.0
  %v1978 = vadd.f32 %v1754, 1.0
  %v1979 = vadd.f32 %v1756, 1.0
  %v1980 = vadd.f32 %v1758, 1.0
  %v1981 = vadd.f32 %v1760, 1.0
  %v1982 = vadd.f32 %v1762, 1.0
  %v1983 = vadd.f32 %v1764, 1.0
  %v1984 = vadd.f32 %v1766, 1.0
  %v1985 = vadd.f32 %v1768, 1.0
  %v1986 = vadd.f32 %v1770, 1.0
  %v1987 = vadd.f32 %v1772, 1.0
  %v1988 = vadd.f32 %v1774, 1.0
  %v1989 = vadd.f32 %v1776, 1.0
  %v1990 = vadd.f32 %v1778, 1.0
  %v1991 = vadd.f32 %v1780, 1.0
  %v1992 = vadd.f32 %v1782, 1.0
  %v1993 = vadd.f32 %v1784, 1.0
  %v1994 = vadd.f32 %v1786, 1.0
  %v1995 = vadd.f32 %v1788, 1.0
  %v1996 = vadd.f32 %v1790, 1.0
  %v1997 = vadd.f32 %v1792, 1.0
  %v1998 = vadd.f32 %v1794, 1.0
  %v1999 = vadd.f32 %v1796, 1.0
  %v2000 = vadd.f32 %v1798, 1.0
  %v2001 = vadd.f32 %v1800, 1.0
  %v2002 = vadd.f32 %v1802, 1.0
  %v2003 = vadd.f32 %v1804, 1.0
  %v2004 = vadd.f32 %v1806, 1.0
  %v2005 = vadd.f32 %v1808, 1.0
  %v2006 = vadd.f32 %v1810, 1.0
  %v2007 = vadd.f32 %v1812, 1.0
  %v2008 = vadd.f32 %v1814, 1.0
  %v2009 = vadd.f32 %v1816, 1.0
  %v2010 = vadd.f32 %v1818, 1.0
  %v2011 = vadd.f32 %v1820, 1.0
  %v2012 = vadd.f32 %v1822, 1.0
  %v2013 = vadd.f32 %v1824, 1.0
  %v2014 = vadd.f32 %v1826, 1.0
  %v2015 = vadd.f32 %v1828, 1.0
  %v2016 = vadd.f32 %v1830, 1.0
  %v2017 = vadd.f32 %v1832, 1.0
  %v2018 = vadd.f32 %v1834, 1.0
  %v2019 = vadd.f32 %v1836, 1.0
  %v2020 = vadd.f32 %v1838, 1.0
  %v2021 = vadd.f32 %v1840, 1.0
  %v2022 = vadd.f32 %v1842, 1.0
  %v2023 = vadd.f32 %v1844, 1.0
  %v2024 = vadd.f32 %v1846, 1.0
  %v2025 = vadd.f32 %v1848, 1.0
  %v2026 = vadd.f32 %v1850, 1.0
  %v2027 = vadd.f32 %v1852, 1.0
  %v2028 = vadd.f32 %v1854, 1.0
  %v2029 = vadd.f32 %v1856, 1.0
  %v2030 = vadd.f32 %v1858, 1.0
  %v2031 = vadd.f32 %v1860, 1.0
  %v2032 = vadd.f32 %v1862, 1.0
  %v2033 = vadd.f32 %v1864, 1.0
  %v2034 = vadd.f32 %v1866, 1.0
  %v2035 = vadd.f32 %v1868, 1.0
  %v2036 = vadd.f32 %v1870, 1.0
  %v2037 = vadd.f32 %v1872, 1.0
  %v2038 = vadd.f32 %v1874, 1.0
  %v2039 = vadd.f32 %v1876, 1.0
  %v2040 = vadd.f32 %v1878, 1.0
  %v2041 = vadd.f32 %v1880, 1.0
  %v2042 = vadd.f32 %v1882, 1.0
  %v2043 = vadd.f32 %v1884, 1.0
  %v2044 = vadd.f32 %v1886, 1.0
  %v2045 = vadd.f32 %v1888, 1.0
  %v2046 = vadd.f32 %v1890, 1.0
  %v2047 = vadd.f32 %v1892, 1.0
  %v2048 = vadd.f32 %v1894, 1.0
  %v2049 = vadd.f32 %v1896, 1.0
  %v2050 = vadd.f32 %v1898, 1.0
  %v2051 = vadd.f32 %v1900, 1.0
  %v2052 = vadd.f32 %v1902, 1.0
  %v2053 = vadd.f32 %v1904, 1.0
  %v2054 = vadd.f32 %v1906, 1.0
  %v2055 = vadd.f32 %v1908, 1.0
  %v2056 = vadd.f32 %v1910, 1.0
  %v2057 = vadd.f32 %v1912, 1.0
  %v2058 = vadd.f32 %v1914, 1.0
  %v2059 = vadd.f32 %v1916, 1.0
  %v2060 = vadd.f32 %v1918, 1.0
  %v2061 = vadd.f32 %v1920, 1.0
  %v2062 = vadd.f32 %v1922, 1.0
  %v2063 = vadd.f32 %v1924, 1.0
  %v2064 = vadd.f32 %v1926, 1.0
  %v2065 = vadd.f32 %v1928, 1.0
  %v2066 = vadd.f32 %v1930, 1.0
  %v2067 = vadd.f32 %v1932, 1.0
  %v2068 = vadd.f32 %v1934, 1.0
  %v2069 = vadd.f32 %v1936, 1.0
  %v2070 = vadd.f32 %v1938, 1.0
  %v2071 = vadd.f32 %v1940, 1.0
  %v2072 = vadd.f32 %v1942, 1.0
  %v2073 = vadd.f32 %v1944, 1.0
  %v2074 = vadd.f32 %v1946, 1.0
  %v2075 = vadd.f32 %v1948, 1.0
  %v2076 = vadd.f32 %v1950, 1.0
  %v2077 = vadd.f32 %v1952, 1.0
  %v2078 = vadd.f32 %v1954, 1.0
  %v2079 = vadd.f32 %v1956, 1.0
  %v2080 = vadd.f32 %v1958, 1.0
  %v2081 = vadd.f32 %v1960, 1.0
  %v2082 = vadd.f32 %v1962, 1.0
  %v2083 = vadd.f32 %v1964, 1.0
  %v2084 = vadd.f32 %v1966, 1.0
  %v2085 = vrcp.pop %v1967
  %v2086 = vmul.f32 1.0, %v2085
  %v2087 = vrcp.pop %v1968
  %v2088 = vmul.f32 1.0, %v2087
  %v2089 = vrcp.pop %v1969
  %v2090 = vmul.f32 1.0, %v2089
  %v2091 = vrcp.pop %v1970
  %v2092 = vmul.f32 1.0, %v2091
  %v2093 = vrcp.pop %v1971
  %v2094 = vmul.f32 1.0, %v2093
  %v2095 = vrcp.pop %v1972
  %v2096 = vmul.f32 1.0, %v2095
  %v2097 = vrcp.pop %v1973
  %v2098 = vmul.f32 1.0, %v2097
  %v2099 = vrcp.pop %v1974
  %v2100 = vmul.f32 1.0, %v2099
  %v2101 = vrcp.pop %v1975
  %v2102 = vmul.f32 1.0, %v2101
  %v2103 = vrcp.pop %v1976
  %v2104 = vmul.f32 1.0, %v2103
  %v2105 = vrcp.pop %v1977
  %v2106 = vmul.f32 1.0, %v2105
  %v2107 = vrcp.pop %v1978
  %v2108 = vmul.f32 1.0, %v2107
  %v2109 = vrcp.pop %v1979
  %v2110 = vmul.f32 1.0, %v2109
  %v2111 = vrcp.pop %v1980
  %v2112 = vmul.f32 1.0, %v2111
  %v2113 = vrcp.pop %v1981
  %v2114 = vmul.f32 1.0, %v2113
  %v2115 = vrcp.pop %v1982
  %v2116 = vmul.f32 1.0, %v2115
  %v2117 = vrcp.pop %v1983
  %v2118 = vmul.f32 1.0, %v2117
  %v2119 = vrcp.pop %v1984
  %v2120 = vmul.f32 1.0, %v2119
  %v2121 = vrcp.pop %v1985
  %v2122 = vmul.f32 1.0, %v2121
  %v2123 = vrcp.pop %v1986
  %v2124 = vmul.f32 1.0, %v2123
  %v2125 = vrcp.pop %v1987
  %v2126 = vmul.f32 1.0, %v2125
  %v2127 = vrcp.pop %v1988
  %v2128 = vmul.f32 1.0, %v2127
  %v2129 = vrcp.pop %v1989
  %v2130 = vmul.f32 1.0, %v2129
  %v2131 = vrcp.pop %v1990
  %v2132 = vmul.f32 1.0, %v2131
  %v2133 = vrcp.pop %v1991
  %v2134 = vmul.f32 1.0, %v2133
  %v2135 = vrcp.pop %v1992
  %v2136 = vmul.f32 1.0, %v2135
  %v2137 = vrcp.pop %v1993
  %v2138 = vmul.f32 1.0, %v2137
  %v2139 = vrcp.pop %v1994
  %v2140 = vmul.f32 1.0, %v2139
  %v2141 = vrcp.pop %v1995
  %v2142 = vmul.f32 1.0, %v2141
  %v2143 = vrcp.pop %v1996
  %v2144 = vmul.f32 1.0, %v2143
  %v2145 = vrcp.pop %v1997
  %v2146 = vmul.f32 1.0, %v2145
  %v2147 = vrcp.pop %v1998
  %v2148 = vmul.f32 1.0, %v2147
  %v2149 = vrcp.pop %v1999
  %v2150 = vmul.f32 1.0, %v2149
  %v2151 = vrcp.pop %v2000
  %v2152 = vmul.f32 1.0, %v2151
  %v2153 = vrcp.pop %v2001
  %v2154 = vmul.f32 1.0, %v2153
  %v2155 = vrcp.pop %v2002
  %v2156 = vmul.f32 1.0, %v2155
  %v2157 = vrcp.pop %v2003
  %v2158 = vmul.f32 1.0, %v2157
  %v2159 = vrcp.pop %v2004
  %v2160 = vmul.f32 1.0, %v2159
  %v2161 = vrcp.pop %v2005
  %v2162 = vmul.f32 1.0, %v2161
  %v2163 = vrcp.pop %v2006
  %v2164 = vmul.f32 1.0, %v2163
  %v2165 = vrcp.pop %v2007
  %v2166 = vmul.f32 1.0, %v2165
  %v2167 = vrcp.pop %v2008
  %v2168 = vmul.f32 1.0, %v2167
  %v2169 = vrcp.pop %v2009
  %v2170 = vmul.f32 1.0, %v2169
  %v2171 = vrcp.pop %v2010
  %v2172 = vmul.f32 1.0, %v2171
  %v2173 = vrcp.pop %v2011
  %v2174 = vmul.f32 1.0, %v2173
  %v2175 = vrcp.pop %v2012
  %v2176 = vmul.f32 1.0, %v2175
  %v2177 = vrcp.pop %v2013
  %v2178 = vmul.f32 1.0, %v2177
  %v2179 = vrcp.pop %v2014
  %v2180 = vmul.f32 1.0, %v2179
  %v2181 = vrcp.pop %v2015
  %v2182 = vmul.f32 1.0, %v2181
  %v2183 = vrcp.pop %v2016
  %v2184 = vmul.f32 1.0, %v2183
  %v2185 = vrcp.pop %v2017
  %v2186 = vmul.f32 1.0, %v2185
  %v2187 = vrcp.pop %v2018
  %v2188 = vmul.f32 1.0, %v2187
  %v2189 = vrcp.pop %v2019
  %v2190 = vmul.f32 1.0, %v2189
  %v2191 = vrcp.pop %v2020
  %v2192 = vmul.f32 1.0, %v2191
  %v2193 = vrcp.pop %v2021
  %v2194 = vmul.f32 1.0, %v2193
  %v2195 = vrcp.pop %v2022
  %v2196 = vmul.f32 1.0, %v2195
  %v2197 = vrcp.pop %v2023
  %v2198 = vmul.f32 1.0, %v2197
  %v2199 = vrcp.pop %v2024
  %v2200 = vmul.f32 1.0, %v2199
  %v2201 = vrcp.pop %v2025
  %v2202 = vmul.f32 1.0, %v2201
  %v2203 = vrcp.pop %v2026
  %v2204 = vmul.f32 1.0, %v2203
  %v2205 = vrcp.pop %v2027
  %v2206 = vmul.f32 1.0, %v2205
  %v2207 = vrcp.pop %v2028
  %v2208 = vmul.f32 1.0, %v2207
  %v2209 = vrcp.pop %v2029
  %v2210 = vmul.f32 1.0, %v2209
  %v2211 = vrcp.pop %v2030
  %v2212 = vmul.f32 1.0, %v2211
  %v2213 = vrcp.pop %v2031
  %v2214 = vmul.f32 1.0, %v2213
  %v2215 = vrcp.pop %v2032
  %v2216 = vmul.f32 1.0, %v2215
  %v2217 = vrcp.pop %v2033
  %v2218 = vmul.f32 1.0, %v2217
  %v2219 = vrcp.pop %v2034
  %v2220 = vmul.f32 1.0, %v2219
  %v2221 = vrcp.pop %v2035
  %v2222 = vmul.f32 1.0, %v2221
  %v2223 = vrcp.pop %v2036
  %v2224 = vmul.f32 1.0, %v2223
  %v2225 = vrcp.pop %v2037
  %v2226 = vmul.f32 1.0, %v2225
  %v2227 = vrcp.pop %v2038
  %v2228 = vmul.f32 1.0, %v2227
  %v2229 = vrcp.pop %v2039
  %v2230 = vmul.f32 1.0, %v2229
  %v2231 = vrcp.pop %v2040
  %v2232 = vmul.f32 1.0, %v2231
  %v2233 = vrcp.pop %v2041
  %v2234 = vmul.f32 1.0, %v2233
  %v2235 = vrcp.pop %v2042
  %v2236 = vmul.f32 1.0, %v2235
  %v2237 = vrcp.pop %v2043
  %v2238 = vmul.f32 1.0, %v2237
  %v2239 = vrcp.pop %v2044
  %v2240 = vmul.f32 1.0, %v2239
  %v2241 = vrcp.pop %v2045
  %v2242 = vmul.f32 1.0, %v2241
  %v2243 = vrcp.pop %v2046
  %v2244 = vmul.f32 1.0, %v2243
  %v2245 = vrcp.pop %v2047
  %v2246 = vmul.f32 1.0, %v2245
  %v2247 = vrcp.pop %v2048
  %v2248 = vmul.f32 1.0, %v2247
  %v2249 = vrcp.pop %v2049
  %v2250 = vmul.f32 1.0, %v2249
  %v2251 = vrcp.pop %v2050
  %v2252 = vmul.f32 1.0, %v2251
  %v2253 = vrcp.pop %v2051
  %v2254 = vmul.f32 1.0, %v2253
  %v2255 = vrcp.pop %v2052
  %v2256 = vmul.f32 1.0, %v2255
  %v2257 = vrcp.pop %v2053
  %v2258 = vmul.f32 1.0, %v2257
  %v2259 = vrcp.pop %v2054
  %v2260 = vmul.f32 1.0, %v2259
  %v2261 = vrcp.pop %v2055
  %v2262 = vmul.f32 1.0, %v2261
  %v2263 = vrcp.pop %v2056
  %v2264 = vmul.f32 1.0, %v2263
  %v2265 = vrcp.pop %v2057
  %v2266 = vmul.f32 1.0, %v2265
  %v2267 = vrcp.pop %v2058
  %v2268 = vmul.f32 1.0, %v2267
  %v2269 = vrcp.pop %v2059
  %v2270 = vmul.f32 1.0, %v2269
  %v2271 = vrcp.pop %v2060
  %v2272 = vmul.f32 1.0, %v2271
  %v2273 = vrcp.pop %v2061
  %v2274 = vmul.f32 1.0, %v2273
  %v2275 = vrcp.pop %v2062
  %v2276 = vmul.f32 1.0, %v2275
  %v2277 = vrcp.pop %v2063
  %v2278 = vmul.f32 1.0, %v2277
  %v2279 = vrcp.pop %v2064
  %v2280 = vmul.f32 1.0, %v2279
  %v2281 = vrcp.pop %v2065
  %v2282 = vmul.f32 1.0, %v2281
  %v2283 = vrcp.pop %v2066
  %v2284 = vmul.f32 1.0, %v2283
  %v2285 = vrcp.pop %v2067
  %v2286 = vmul.f32 1.0, %v2285
  %v2287 = vrcp.pop %v2068
  %v2288 = vmul.f32 1.0, %v2287
  %v2289 = vrcp.pop %v2069
  %v2290 = vmul.f32 1.0, %v2289
  %v2291 = vrcp.pop %v2070
  %v2292 = vmul.f32 1.0, %v2291
  %v2293 = vrcp.pop %v2071
  %v2294 = vmul.f32 1.0, %v2293
  %v2295 = vrcp.pop %v2072
  %v2296 = vmul.f32 1.0, %v2295
  %v2297 = vrcp.pop %v2073
  %v2298 = vmul.f32 1.0, %v2297
  %v2299 = vrcp.pop %v2074
  %v2300 = vmul.f32 1.0, %v2299
  %v2301 = vrcp.pop %v2075
  %v2302 = vmul.f32 1.0, %v2301
  %v2303 = vrcp.pop %v2076
  %v2304 = vmul.f32 1.0, %v2303
  %v2305 = vrcp.pop %v2077
  %v2306 = vmul.f32 1.0, %v2305
  %v2307 = vrcp.pop %v2078
  %v2308 = vmul.f32 1.0, %v2307
  %v2309 = vrcp.pop %v2079
  %v2310 = vmul.f32 1.0, %v2309
  %v2311 = vrcp.pop %v2080
  %v2312 = vmul.f32 1.0, %v2311
  %v2313 = vrcp.pop %v2081
  %v2314 = vmul.f32 1.0, %v2313
  %v2315 = vrcp.pop %v2082
  %v2316 = vmul.f32 1.0, %v2315
  %v2317 = vrcp.pop %v2083
  %v2318 = vmul.f32 1.0, %v2317
  %v2319 = vrcp.pop %v2084
  %v2320 = vmul.f32 1.0, %v2319
  %v2321 = vld [vmem:[%s5] sm:$0xff]
  %v2322 = vld [vmem:[%s5 + $0x8] sm:$0xff]
  %v2323 = vld [vmem:[%s5 + $0x10] sm:$0xff]
  %v2324 = vld [vmem:[%s5 + $0x18] sm:$0xff]
  %v2325 = vld [vmem:[%s5 + $0x20] sm:$0xff]
  %v2326 = vld [vmem:[%s5 + $0x28] sm:$0xff]
  %v2327 = vld [vmem:[%s5 + $0x30] sm:$0xff]
  %v2328 = vld [vmem:[%s5 + $0x38] sm:$0xff]
  %v2329 = vld [vmem:[%s5 + $0x40] sm:$0xff]
  %v2330 = vld [vmem:[%s5 + $0x48] sm:$0xff]
  %v2331 = vld [vmem:[%s5 + $0x50] sm:$0xff]
  %v2332 = vld [vmem:[%s5 + $0x58] sm:$0xff]
  %v2333 = vld [vmem:[%s5 + $0x60] sm:$0xff]
  %v2334 = vld [vmem:[%s5 + $0x68] sm:$0xff]
  %v2335 = vld [vmem:[%s5 + $0x70] sm:$0xff]
  %v2336 = vld [vmem:[%s5 + $0x78] sm:$0xff]
  %v2337 = vld [vmem:[%s5 + $0x80] sm:$0xff]
  %v2338 = vld [vmem:[%s5 + $0x88] sm:$0xff]
  %v2339 = vld [vmem:[%s5 + $0x90] sm:$0xff]
  %v2340 = vld [vmem:[%s5 + $0x98] sm:$0xff]
  %v2341 = vld [vmem:[%s5 + $0xa0] sm:$0xff]
  %v2342 = vld [vmem:[%s5 + $0xa8] sm:$0xff]
  %v2343 = vld [vmem:[%s5 + $0xb0] sm:$0xff]
  %v2344 = vld [vmem:[%s5 + $0xb8] sm:$0xff]
  %v2345 = vld [vmem:[%s5 + $0xc0] sm:$0xff]
  %v2346 = vld [vmem:[%s5 + $0xc8] sm:$0xff]
  %v2347 = vld [vmem:[%s5 + $0xd0] sm:$0xff]
  %v2348 = vld [vmem:[%s5 + $0xd8] sm:$0xff]
  %v2349 = vld [vmem:[%s5 + $0xe0] sm:$0xff]
  %v2350 = vld [vmem:[%s5 + $0xe8] sm:$0xff]
  %v2351 = vld [vmem:[%s5 + $0xf0] sm:$0xff]
  %v2352 = vld [vmem:[%s5 + $0xf8] sm:$0xff]
  %v2353 = vld [vmem:[%s5 + $0x100] sm:$0xff]
  %v2354 = vld [vmem:[%s5 + $0x108] sm:$0xff]
  %v2355 = vld [vmem:[%s5 + $0x110] sm:$0xff]
  %v2356 = vld [vmem:[%s5 + $0x118] sm:$0xff]
  %v2357 = vld [vmem:[%s5 + $0x120] sm:$0xff]
  %v2358 = vld [vmem:[%s5 + $0x128] sm:$0xff]
  %v2359 = vld [vmem:[%s5 + $0x130] sm:$0xff]
  %v2360 = vld [vmem:[%s5 + $0x138] sm:$0xff]
  %v2361 = vld [vmem:[%s5 + $0x140] sm:$0xff]
  %v2362 = vld [vmem:[%s5 + $0x148] sm:$0xff]
  %v2363 = vld [vmem:[%s5 + $0x150] sm:$0xff]
  %v2364 = vld [vmem:[%s5 + $0x158] sm:$0xff]
  %v2365 = vld [vmem:[%s5 + $0x160] sm:$0xff]
  %v2366 = vld [vmem:[%s5 + $0x168] sm:$0xff]
  %v2367 = vld [vmem:[%s5 + $0x170] sm:$0xff]
  %v2368 = vld [vmem:[%s5 + $0x178] sm:$0xff]
  %v2369 = vld [vmem:[%s5 + $0x180] sm:$0xff]
  %v2370 = vld [vmem:[%s5 + $0x188] sm:$0xff]
  %v2371 = vld [vmem:[%s5 + $0x190] sm:$0xff]
  %v2372 = vld [vmem:[%s5 + $0x198] sm:$0xff]
  %v2373 = vld [vmem:[%s5 + $0x1a0] sm:$0xff]
  %v2374 = vld [vmem:[%s5 + $0x1a8] sm:$0xff]
  %v2375 = vld [vmem:[%s5 + $0x1b0] sm:$0xff]
  %v2376 = vld [vmem:[%s5 + $0x1b8] sm:$0xff]
  %v2377 = vld [vmem:[%s5 + $0x1c0] sm:$0xff]
  %v2378 = vld [vmem:[%s5 + $0x1c8] sm:$0xff]
  %v2379 = vld [vmem:[%s5 + $0x1d0] sm:$0xff]
  %v2380 = vld [vmem:[%s5 + $0x1d8] sm:$0xff]
  %v2381 = vld [vmem:[%s5 + $0x1e0] sm:$0xff]
  %v2382 = vld [vmem:[%s5 + $0x1e8] sm:$0xff]
  %v2383 = vld [vmem:[%s5 + $0x1f0] sm:$0xff]
  %v2384 = vld [vmem:[%s5 + $0x1f8] sm:$0xff]
  %v2385 = vld [vmem:[%s5 + $0x200] sm:$0xff]
  %v2386 = vld [vmem:[%s5 + $0x208] sm:$0xff]
  %v2387 = vld [vmem:[%s5 + $0x210] sm:$0xff]
  %v2388 = vld [vmem:[%s5 + $0x218] sm:$0xff]
  %v2389 = vld [vmem:[%s5 + $0x220] sm:$0xff]
  %v2390 = vld [vmem:[%s5 + $0x228] sm:$0xff]
  %v2391 = vld [vmem:[%s5 + $0x230] sm:$0xff]
  %v2392 = vld [vmem:[%s5 + $0x238] sm:$0xff]
  %v2393 = vld [vmem:[%s5 + $0x240] sm:$0xff]
  %v2394 = vld [vmem:[%s5 + $0x248] sm:$0xff]
  %v2395 = vld [vmem:[%s5 + $0x250] sm:$0xff]
  %v2396 = vld [vmem:[%s5 + $0x258] sm:$0xff]
  %v2397 = vld [vmem:[%s5 + $0x260] sm:$0xff]
  %v2398 = vld [vmem:[%s5 + $0x268] sm:$0xff]
  %v2399 = vld [vmem:[%s5 + $0x270] sm:$0xff]
  %v2400 = vld [vmem:[%s5 + $0x278] sm:$0xff]
  %v2401 = vld [vmem:[%s5 + $0x280] sm:$0xff]
  %v2402 = vld [vmem:[%s5 + $0x288] sm:$0xff]
  %v2403 = vld [vmem:[%s5 + $0x290] sm:$0xff]
  %v2404 = vld [vmem:[%s5 + $0x298] sm:$0xff]
  %v2405 = vld [vmem:[%s5 + $0x2a0] sm:$0xff]
  %v2406 = vld [vmem:[%s5 + $0x2a8] sm:$0xff]
  %v2407 = vld [vmem:[%s5 + $0x2b0] sm:$0xff]
  %v2408 = vld [vmem:[%s5 + $0x2b8] sm:$0xff]
  %v2409 = vld [vmem:[%s5 + $0x2c0] sm:$0xff]
  %v2410 = vld [vmem:[%s5 + $0x2c8] sm:$0xff]
  %v2411 = vld [vmem:[%s5 + $0x2d0] sm:$0xff]
  %v2412 = vld [vmem:[%s5 + $0x2d8] sm:$0xff]
  %v2413 = vld [vmem:[%s5 + $0x2e0] sm:$0xff]
  %v2414 = vld [vmem:[%s5 + $0x2e8] sm:$0xff]
  %v2415 = vld [vmem:[%s5 + $0x2f0] sm:$0xff]
  %v2416 = vld [vmem:[%s5 + $0x2f8] sm:$0xff]
  %v2417 = vld [vmem:[%s5 + $0x300] sm:$0xff]
  %v2418 = vld [vmem:[%s5 + $0x308] sm:$0xff]
  %v2419 = vld [vmem:[%s5 + $0x310] sm:$0xff]
  %v2420 = vld [vmem:[%s5 + $0x318] sm:$0xff]
  %v2421 = vld [vmem:[%s5 + $0x320] sm:$0xff]
  %v2422 = vld [vmem:[%s5 + $0x328] sm:$0xff]
  %v2423 = vld [vmem:[%s5 + $0x330] sm:$0xff]
  %v2424 = vld [vmem:[%s5 + $0x338] sm:$0xff]
  %v2425 = vld [vmem:[%s5 + $0x340] sm:$0xff]
  %v2426 = vld [vmem:[%s5 + $0x348] sm:$0xff]
  %v2427 = vld [vmem:[%s5 + $0x350] sm:$0xff]
  %v2428 = vld [vmem:[%s5 + $0x358] sm:$0xff]
  %v2429 = vld [vmem:[%s5 + $0x360] sm:$0xff]
  %v2430 = vld [vmem:[%s5 + $0x368] sm:$0xff]
  %v2431 = vld [vmem:[%s5 + $0x370] sm:$0xff]
  %v2432 = vld [vmem:[%s5 + $0x378] sm:$0xff]
  %v2433 = vld [vmem:[%s5 + $0x380] sm:$0xff]
  %v2434 = vld [vmem:[%s5 + $0x388] sm:$0xff]
  %v2435 = vld [vmem:[%s5 + $0x390] sm:$0xff]
  %v2436 = vld [vmem:[%s5 + $0x398] sm:$0xff]
  %v2437 = vld [vmem:[%s5 + $0x3a0] sm:$0xff]
  %v2438 = vld [vmem:[%s5 + $0x3a8] sm:$0xff]
  %v2439 = vmul.f32 %v2086, %v2321
  %v2440 = vmul.f32 %v2088, %v2322
  %v2441 = vmul.f32 %v2090, %v2323
  %v2442 = vmul.f32 %v2092, %v2324
  %v2443 = vmul.f32 %v2094, %v2325
  %v2444 = vmul.f32 %v2096, %v2326
  %v2445 = vmul.f32 %v2098, %v2327
  %v2446 = vmul.f32 %v2100, %v2328
  %v2447 = vmul.f32 %v2102, %v2329
  %v2448 = vmul.f32 %v2104, %v2330
  %v2449 = vmul.f32 %v2106, %v2331
  %v2450 = vmul.f32 %v2108, %v2332
  %v2451 = vmul.f32 %v2110, %v2333
  %v2452 = vmul.f32 %v2112, %v2334
  %v2453 = vmul.f32 %v2114, %v2335
  %v2454 = vmul.f32 %v2116, %v2336
  %v2455 = vmul.f32 %v2118, %v2337
  %v2456 = vmul.f32 %v2120, %v2338
  %v2457 = vmul.f32 %v2122, %v2339
  %v2458 = vmul.f32 %v2124, %v2340
  %v2459 = vmul.f32 %v2126, %v2341
  %v2460 = vmul.f32 %v2128, %v2342
  %v2461 = vmul.f32 %v2130, %v2343
  %v2462 = vmul.f32 %v2132, %v2344
  %v2463 = vmul.f32 %v2134, %v2345
  %v2464 = vmul.f32 %v2136, %v2346
  %v2465 = vmul.f32 %v2138, %v2347
  %v2466 = vmul.f32 %v2140, %v2348
  %v2467 = vmul.f32 %v2142, %v2349
  %v2468 = vmul.f32 %v2144, %v2350
  %v2469 = vmul.f32 %v2146, %v2351
  %v2470 = vmul.f32 %v2148, %v2352
  %v2471 = vmul.f32 %v2150, %v2353
  %v2472 = vmul.f32 %v2152, %v2354
  %v2473 = vmul.f32 %v2154, %v2355
  %v2474 = vmul.f32 %v2156, %v2356
  %v2475 = vmul.f32 %v2158, %v2357
  %v2476 = vmul.f32 %v2160, %v2358
  %v2477 = vmul.f32 %v2162, %v2359
  %v2478 = vmul.f32 %v2164, %v2360
  %v2479 = vmul.f32 %v2166, %v2361
  %v2480 = vmul.f32 %v2168, %v2362
  %v2481 = vmul.f32 %v2170, %v2363
  %v2482 = vmul.f32 %v2172, %v2364
  %v2483 = vmul.f32 %v2174, %v2365
  %v2484 = vmul.f32 %v2176, %v2366
  %v2485 = vmul.f32 %v2178, %v2367
  %v2486 = vmul.f32 %v2180, %v2368
  %v2487 = vmul.f32 %v2182, %v2369
  %v2488 = vmul.f32 %v2184, %v2370
  %v2489 = vmul.f32 %v2186, %v2371
  %v2490 = vmul.f32 %v2188, %v2372
  %v2491 = vmul.f32 %v2190, %v2373
  %v2492 = vmul.f32 %v2192, %v2374
  %v2493 = vmul.f32 %v2194, %v2375
  %v2494 = vmul.f32 %v2196, %v2376
  %v2495 = vmul.f32 %v2198, %v2377
  %v2496 = vmul.f32 %v2200, %v2378
  %v2497 = vmul.f32 %v2202, %v2379
  %v2498 = vmul.f32 %v2204, %v2380
  %v2499 = vmul.f32 %v2206, %v2381
  %v2500 = vmul.f32 %v2208, %v2382
  %v2501 = vmul.f32 %v2210, %v2383
  %v2502 = vmul.f32 %v2212, %v2384
  %v2503 = vmul.f32 %v2214, %v2385
  %v2504 = vmul.f32 %v2216, %v2386
  %v2505 = vmul.f32 %v2218, %v2387
  %v2506 = vmul.f32 %v2220, %v2388
  %v2507 = vmul.f32 %v2222, %v2389
  %v2508 = vmul.f32 %v2224, %v2390
  %v2509 = vmul.f32 %v2226, %v2391
  %v2510 = vmul.f32 %v2228, %v2392
  %v2511 = vmul.f32 %v2230, %v2393
  %v2512 = vmul.f32 %v2232, %v2394
  %v2513 = vmul.f32 %v2234, %v2395
  %v2514 = vmul.f32 %v2236, %v2396
  %v2515 = vmul.f32 %v2238, %v2397
  %v2516 = vmul.f32 %v2240, %v2398
  %v2517 = vmul.f32 %v2242, %v2399
  %v2518 = vmul.f32 %v2244, %v2400
  %v2519 = vmul.f32 %v2246, %v2401
  %v2520 = vmul.f32 %v2248, %v2402
  %v2521 = vmul.f32 %v2250, %v2403
  %v2522 = vmul.f32 %v2252, %v2404
  %v2523 = vmul.f32 %v2254, %v2405
  %v2524 = vmul.f32 %v2256, %v2406
  %v2525 = vmul.f32 %v2258, %v2407
  %v2526 = vmul.f32 %v2260, %v2408
  %v2527 = vmul.f32 %v2262, %v2409
  %v2528 = vmul.f32 %v2264, %v2410
  %v2529 = vmul.f32 %v2266, %v2411
  %v2530 = vmul.f32 %v2268, %v2412
  %v2531 = vmul.f32 %v2270, %v2413
  %v2532 = vmul.f32 %v2272, %v2414
  %v2533 = vmul.f32 %v2274, %v2415
  %v2534 = vmul.f32 %v2276, %v2416
  %v2535 = vmul.f32 %v2278, %v2417
  %v2536 = vmul.f32 %v2280, %v2418
  %v2537 = vmul.f32 %v2282, %v2419
  %v2538 = vmul.f32 %v2284, %v2420
  %v2539 = vmul.f32 %v2286, %v2421
  %v2540 = vmul.f32 %v2288, %v2422
  %v2541 = vmul.f32 %v2290, %v2423
  %v2542 = vmul.f32 %v2292, %v2424
  %v2543 = vmul.f32 %v2294, %v2425
  %v2544 = vmul.f32 %v2296, %v2426
  %v2545 = vmul.f32 %v2298, %v2427
  %v2546 = vmul.f32 %v2300, %v2428
  %v2547 = vmul.f32 %v2302, %v2429
  %v2548 = vmul.f32 %v2304, %v2430
  %v2549 = vmul.f32 %v2306, %v2431
  %v2550 = vmul.f32 %v2308, %v2432
  %v2551 = vmul.f32 %v2310, %v2433
  %v2552 = vmul.f32 %v2312, %v2434
  %v2553 = vmul.f32 %v2314, %v2435
  %v2554 = vmul.f32 %v2316, %v2436
  %v2555 = vmul.f32 %v2318, %v2437
  %v2556 = vmul.f32 %v2320, %v2438
  %2557 = vst [vmem:[%s7] sm:$0xff] %v2439
  %2558 = vst [vmem:[%s7 + $0x8] sm:$0xff] %v2440
  %2559 = vst [vmem:[%s7 + $0x10] sm:$0xff] %v2441
  %2560 = vst [vmem:[%s7 + $0x18] sm:$0xff] %v2442
  %2561 = vst [vmem:[%s7 + $0x20] sm:$0xff] %v2443
  %2562 = vst [vmem:[%s7 + $0x28] sm:$0xff] %v2444
  %2563 = vst [vmem:[%s7 + $0x30] sm:$0xff] %v2445
  %2564 = vst [vmem:[%s7 + $0x38] sm:$0xff] %v2446
  %2565 = vst [vmem:[%s7 + $0x40] sm:$0xff] %v2447
  %2566 = vst [vmem:[%s7 + $0x48] sm:$0xff] %v2448
  %2567 = vst [vmem:[%s7 + $0x50] sm:$0xff] %v2449
  %2568 = vst [vmem:[%s7 + $0x58] sm:$0xff] %v2450
  %2569 = vst [vmem:[%s7 + $0x60] sm:$0xff] %v2451
  %2570 = vst [vmem:[%s7 + $0x68] sm:$0xff] %v2452
  %2571 = vst [vmem:[%s7 + $0x70] sm:$0xff] %v2453
  %2572 = vst [vmem:[%s7 + $0x78] sm:$0xff] %v2454
  %2573 = vst [vmem:[%s7 + $0x80] sm:$0xff] %v2455
  %2574 = vst [vmem:[%s7 + $0x88] sm:$0xff] %v2456
  %2575 = vst [vmem:[%s7 + $0x90] sm:$0xff] %v2457
  %2576 = vst [vmem:[%s7 + $0x98] sm:$0xff] %v2458
  %2577 = vst [vmem:[%s7 + $0xa0] sm:$0xff] %v2459
  %2578 = vst [vmem:[%s7 + $0xa8] sm:$0xff] %v2460
  %2579 = vst [vmem:[%s7 + $0xb0] sm:$0xff] %v2461
  %2580 = vst [vmem:[%s7 + $0xb8] sm:$0xff] %v2462
  %2581 = vst [vmem:[%s7 + $0xc0] sm:$0xff] %v2463
  %2582 = vst [vmem:[%s7 + $0xc8] sm:$0xff] %v2464
  %2583 = vst [vmem:[%s7 + $0xd0] sm:$0xff] %v2465
  %2584 = vst [vmem:[%s7 + $0xd8] sm:$0xff] %v2466
  %2585 = vst [vmem:[%s7 + $0xe0] sm:$0xff] %v2467
  %2586 = vst [vmem:[%s7 + $0xe8] sm:$0xff] %v2468
  %2587 = vst [vmem:[%s7 + $0xf0] sm:$0xff] %v2469
  %2588 = vst [vmem:[%s7 + $0xf8] sm:$0xff] %v2470
  %2589 = vst [vmem:[%s7 + $0x100] sm:$0xff] %v2471
  %2590 = vst [vmem:[%s7 + $0x108] sm:$0xff] %v2472
  %2591 = vst [vmem:[%s7 + $0x110] sm:$0xff] %v2473
  %2592 = vst [vmem:[%s7 + $0x118] sm:$0xff] %v2474
  %2593 = vst [vmem:[%s7 + $0x120] sm:$0xff] %v2475
  %2594 = vst [vmem:[%s7 + $0x128] sm:$0xff] %v2476
  %2595 = vst [vmem:[%s7 + $0x130] sm:$0xff] %v2477
  %2596 = vst [vmem:[%s7 + $0x138] sm:$0xff] %v2478
  %2597 = vst [vmem:[%s7 + $0x140] sm:$0xff] %v2479
  %2598 = vst [vmem:[%s7 + $0x148] sm:$0xff] %v2480
  %2599 = vst [vmem:[%s7 + $0x150] sm:$0xff] %v2481
  %2600 = vst [vmem:[%s7 + $0x158] sm:$0xff] %v2482
  %2601 = vst [vmem:[%s7 + $0x160] sm:$0xff] %v2483
  %2602 = vst [vmem:[%s7 + $0x168] sm:$0xff] %v2484
  %2603 = vst [vmem:[%s7 + $0x170] sm:$0xff] %v2485
  %2604 = vst [vmem:[%s7 + $0x178] sm:$0xff] %v2486
  %2605 = vst [vmem:[%s7 + $0x180] sm:$0xff] %v2487
  %2606 = vst [vmem:[%s7 + $0x188] sm:$0xff] %v2488
  %2607 = vst [vmem:[%s7 + $0x190] sm:$0xff] %v2489
  %2608 = vst [vmem:[%s7 + $0x198] sm:$0xff] %v2490
  %2609 = vst [vmem:[%s7 + $0x1a0] sm:$0xff] %v2491
  %2610 = vst [vmem:[%s7 + $0x1a8] sm:$0xff] %v2492
  %2611 = vst [vmem:[%s7 + $0x1b0] sm:$0xff] %v2493
  %2612 = vst [vmem:[%s7 + $0x1b8] sm:$0xff] %v2494
  %2613 = vst [vmem:[%s7 + $0x1c0] sm:$0xff] %v2495
  %2614 = vst [vmem:[%s7 + $0x1c8] sm:$0xff] %v2496
  %2615 = vst [vmem:[%s7 + $0x1d0] sm:$0xff] %v2497
  %2616 = vst [vmem:[%s7 + $0x1d8] sm:$0xff] %v2498
  %2617 = vst [vmem:[%s7 + $0x1e0] sm:$0xff] %v2499
  %2618 = vst [vmem:[%s7 + $0x1e8] sm:$0xff] %v2500
  %2619 = vst [vmem:[%s7 + $0x1f0] sm:$0xff] %v2501
  %2620 = vst [vmem:[%s7 + $0x1f8] sm:$0xff] %v2502
  %2621 = vst [vmem:[%s7 + $0x200] sm:$0xff] %v2503
  %2622 = vst [vmem:[%s7 + $0x208] sm:$0xff] %v2504
  %2623 = vst [vmem:[%s7 + $0x210] sm:$0xff] %v2505
  %2624 = vst [vmem:[%s7 + $0x218] sm:$0xff] %v2506
  %2625 = vst [vmem:[%s7 + $0x220] sm:$0xff] %v2507
  %2626 = vst [vmem:[%s7 + $0x228] sm:$0xff] %v2508
  %2627 = vst [vmem:[%s7 + $0x230] sm:$0xff] %v2509
  %2628 = vst [vmem:[%s7 + $0x238] sm:$0xff] %v2510
  %2629 = vst [vmem:[%s7 + $0x240] sm:$0xff] %v2511
  %2630 = vst [vmem:[%s7 + $0x248] sm:$0xff] %v2512
  %2631 = vst [vmem:[%s7 + $0x250] sm:$0xff] %v2513
  %2632 = vst [vmem:[%s7 + $0x258] sm:$0xff] %v2514
  %2633 = vst [vmem:[%s7 + $0x260] sm:$0xff] %v2515
  %2634 = vst [vmem:[%s7 + $0x268] sm:$0xff] %v2516
  %2635 = vst [vmem:[%s7 + $0x270] sm:$0xff] %v2517
  %2636 = vst [vmem:[%s7 + $0x278] sm:$0xff] %v2518
  %2637 = vst [vmem:[%s7 + $0x280] sm:$0xff] %v2519
  %2638 = vst [vmem:[%s7 + $0x288] sm:$0xff] %v2520
  %2639 = vst [vmem:[%s7 + $0x290] sm:$0xff] %v2521
  %2640 = vst [vmem:[%s7 + $0x298] sm:$0xff] %v2522
  %2641 = vst [vmem:[%s7 + $0x2a0] sm:$0xff] %v2523
  %2642 = vst [vmem:[%s7 + $0x2a8] sm:$0xff] %v2524
  %2643 = vst [vmem:[%s7 + $0x2b0] sm:$0xff] %v2525
  %2644 = vst [vmem:[%s7 + $0x2b8] sm:$0xff] %v2526
  %2645 = vst [vmem:[%s7 + $0x2c0] sm:$0xff] %v2527
  %2646 = vst [vmem:[%s7 + $0x2c8] sm:$0xff] %v2528
  %2647 = vst [vmem:[%s7 + $0x2d0] sm:$0xff] %v2529
  %2648 = vst [vmem:[%s7 + $0x2d8] sm:$0xff] %v2530
  %2649 = vst [vmem:[%s7 + $0x2e0] sm:$0xff] %v2531
  %2650 = vst [vmem:[%s7 + $0x2e8] sm:$0xff] %v2532
  %2651 = vst [vmem:[%s7 + $0x2f0] sm:$0xff] %v2533
  %2652 = vst [vmem:[%s7 + $0x2f8] sm:$0xff] %v2534
  %2653 = vst [vmem:[%s7 + $0x300] sm:$0xff] %v2535
  %2654 = vst [vmem:[%s7 + $0x308] sm:$0xff] %v2536
  %2655 = vst [vmem:[%s7 + $0x310] sm:$0xff] %v2537
  %2656 = vst [vmem:[%s7 + $0x318] sm:$0xff] %v2538
  %2657 = vst [vmem:[%s7 + $0x320] sm:$0xff] %v2539
  %2658 = vst [vmem:[%s7 + $0x328] sm:$0xff] %v2540
  %2659 = vst [vmem:[%s7 + $0x330] sm:$0xff] %v2541
  %2660 = vst [vmem:[%s7 + $0x338] sm:$0xff] %v2542
  %2661 = vst [vmem:[%s7 + $0x340] sm:$0xff] %v2543
  %2662 = vst [vmem:[%s7 + $0x348] sm:$0xff] %v2544
  %2663 = vst [vmem:[%s7 + $0x350] sm:$0xff] %v2545
  %2664 = vst [vmem:[%s7 + $0x358] sm:$0xff] %v2546
  %2665 = vst [vmem:[%s7 + $0x360] sm:$0xff] %v2547
  %2666 = vst [vmem:[%s7 + $0x368] sm:$0xff] %v2548
  %2667 = vst [vmem:[%s7 + $0x370] sm:$0xff] %v2549
  %2668 = vst [vmem:[%s7 + $0x378] sm:$0xff] %v2550
  %2669 = vst [vmem:[%s7 + $0x380] sm:$0xff] %v2551
  %2670 = vst [vmem:[%s7 + $0x388] sm:$0xff] %v2552
  %2671 = vst [vmem:[%s7 + $0x390] sm:$0xff] %v2553
  %2672 = vst [vmem:[%s7 + $0x398] sm:$0xff] %v2554
  %2673 = vst [vmem:[%s7 + $0x3a0] sm:$0xff] %v2555
  %2674 = vst [vmem:[%s7 + $0x3a8] sm:$0xff] %v2556
  %v2675 = vxor.u32 %v1025, 2147483648
  %v2676 = vxor.u32 %v1030, 2147483648
  %v2677 = vxor.u32 %v1035, 2147483648
  %v2678 = vxor.u32 %v1040, 2147483648
  %v2679 = vxor.u32 %v1045, 2147483648
  %v2680 = vxor.u32 %v1050, 2147483648
  %v2681 = vxor.u32 %v1055, 2147483648
  %v2682 = vxor.u32 %v1060, 2147483648
  %v2683 = vxor.u32 %v1065, 2147483648
  %v2684 = vxor.u32 %v1070, 2147483648
  %v2685 = vxor.u32 %v1075, 2147483648
  %v2686 = vxor.u32 %v1080, 2147483648
  %v2687 = vxor.u32 %v1085, 2147483648
  %v2688 = vxor.u32 %v1090, 2147483648
  %v2689 = vxor.u32 %v1095, 2147483648
  %v2690 = vxor.u32 %v1100, 2147483648
  %v2691 = vxor.u32 %v1105, 2147483648
  %v2692 = vxor.u32 %v1110, 2147483648
  %v2693 = vxor.u32 %v1115, 2147483648
  %v2694 = vxor.u32 %v1120, 2147483648
  %v2695 = vxor.u32 %v1125, 2147483648
  %v2696 = vxor.u32 %v1130, 2147483648
  %v2697 = vxor.u32 %v1135, 2147483648
  %v2698 = vxor.u32 %v1140, 2147483648
  %v2699 = vxor.u32 %v1145, 2147483648
  %v2700 = vxor.u32 %v1150, 2147483648
  %v2701 = vxor.u32 %v1155, 2147483648
  %v2702 = vxor.u32 %v1160, 2147483648
  %v2703 = vxor.u32 %v1165, 2147483648
  %v2704 = vxor.u32 %v1170, 2147483648
  %v2705 = vxor.u32 %v1175, 2147483648
  %v2706 = vxor.u32 %v1180, 2147483648
  %v2707 = vxor.u32 %v1185, 2147483648
  %v2708 = vxor.u32 %v1190, 2147483648
  %v2709 = vxor.u32 %v1195, 2147483648
  %v2710 = vxor.u32 %v1200, 2147483648
  %v2711 = vxor.u32 %v1205, 2147483648
  %v2712 = vxor.u32 %v1210, 2147483648
  %v2713 = vxor.u32 %v1215, 2147483648
  %v2714 = vxor.u32 %v1220, 2147483648
  %v2715 = vxor.u32 %v1225, 2147483648
  %v2716 = vxor.u32 %v1230, 2147483648
  %v2717 = vxor.u32 %v1235, 2147483648
  %v2718 = vxor.u32 %v1240, 2147483648
  %v2719 = vxor.u32 %v1245, 2147483648
  %v2720 = vxor.u32 %v1250, 2147483648
  %v2721 = vxor.u32 %v1255, 2147483648
  %v2722 = vxor.u32 %v1260, 2147483648
  %v2723 = vxor.u32 %v1265, 2147483648
  %v2724 = vxor.u32 %v1270, 2147483648
  %v2725 = vxor.u32 %v1275, 2147483648
  %v2726 = vxor.u32 %v1280, 2147483648
  %v2727 = vxor.u32 %v1285, 2147483648
  %v2728 = vxor.u32 %v1290, 2147483648
  %v2729 = vxor.u32 %v1295, 2147483648
  %v2730 = vxor.u32 %v1300, 2147483648
  %v2731 = vxor.u32 %v1305, 2147483648
  %v2732 = vxor.u32 %v1310, 2147483648
  %v2733 = vxor.u32 %v1315, 2147483648
  %v2734 = vxor.u32 %v1320, 2147483648
  %v2735 = vxor.u32 %v1325, 2147483648
  %v2736 = vxor.u32 %v1330, 2147483648
  %v2737 = vxor.u32 %v1335, 2147483648
  %v2738 = vxor.u32 %v1340, 2147483648
  %v2739 = vxor.u32 %v1345, 2147483648
  %v2740 = vxor.u32 %v1350, 2147483648
  %v2741 = vxor.u32 %v1355, 2147483648
  %v2742 = vxor.u32 %v1360, 2147483648
  %v2743 = vxor.u32 %v1365, 2147483648
  %v2744 = vxor.u32 %v1370, 2147483648
  %v2745 = vxor.u32 %v1375, 2147483648
  %v2746 = vxor.u32 %v1380, 2147483648
  %v2747 = vxor.u32 %v1385, 2147483648
  %v2748 = vxor.u32 %v1390, 2147483648
  %v2749 = vxor.u32 %v1395, 2147483648
  %v2750 = vxor.u32 %v1400, 2147483648
  %v2751 = vxor.u32 %v1405, 2147483648
  %v2752 = vxor.u32 %v1410, 2147483648
  %v2753 = vxor.u32 %v1415, 2147483648
  %v2754 = vxor.u32 %v1420, 2147483648
  %v2755 = vxor.u32 %v1425, 2147483648
  %v2756 = vxor.u32 %v1430, 2147483648
  %v2757 = vxor.u32 %v1435, 2147483648
  %v2758 = vxor.u32 %v1440, 2147483648
  %v2759 = vxor.u32 %v1445, 2147483648
  %v2760 = vxor.u32 %v1450, 2147483648
  %v2761 = vxor.u32 %v1455, 2147483648
  %v2762 = vxor.u32 %v1460, 2147483648
  %v2763 = vxor.u32 %v1465, 2147483648
  %v2764 = vxor.u32 %v1470, 2147483648
  %v2765 = vxor.u32 %v1475, 2147483648
  %v2766 = vxor.u32 %v1480, 2147483648
  %v2767 = vxor.u32 %v1485, 2147483648
  %v2768 = vxor.u32 %v1490, 2147483648
  %v2769 = vxor.u32 %v1495, 2147483648
  %v2770 = vxor.u32 %v1500, 2147483648
  %v2771 = vxor.u32 %v1505, 2147483648
  %v2772 = vxor.u32 %v1510, 2147483648
  %v2773 = vxor.u32 %v1515, 2147483648
  %v2774 = vxor.u32 %v1520, 2147483648
  %v2775 = vxor.u32 %v1525, 2147483648
  %v2776 = vxor.u32 %v1530, 2147483648
  %v2777 = vxor.u32 %v1535, 2147483648
  %v2778 = vxor.u32 %v1540, 2147483648
  %v2779 = vxor.u32 %v1545, 2147483648
  %v2780 = vxor.u32 %v1550, 2147483648
  %v2781 = vxor.u32 %v1555, 2147483648
  %v2782 = vxor.u32 %v1560, 2147483648
  %v2783 = vxor.u32 %v1565, 2147483648
  %v2784 = vxor.u32 %v1570, 2147483648
  %v2785 = vxor.u32 %v1575, 2147483648
  %v2786 = vxor.u32 %v1580, 2147483648
  %v2787 = vxor.u32 %v1585, 2147483648
  %v2788 = vxor.u32 %v1590, 2147483648
  %v2789 = vxor.u32 %v1595, 2147483648
  %v2790 = vxor.u32 %v1600, 2147483648
  %v2791 = vxor.u32 %v1605, 2147483648
  %v2792 = vxor.u32 %v1610, 2147483648
  %v2793 = vmul.f32 %v2675, 1.442695
  %v2794 = vpow.pop %v2793
  %v2795 = vmul.f32 %v2676, 1.442695
  %v2796 = vpow.pop %v2795
  %v2797 = vmul.f32 %v2677, 1.442695
  %v2798 = vpow.pop %v2797
  %v2799 = vmul.f32 %v2678, 1.442695
  %v2800 = vpow.pop %v2799
  %v2801 = vmul.f32 %v2679, 1.442695
  %v2802 = vpow.pop %v2801
  %v2803 = vmul.f32 %v2680, 1.442695
  %v2804 = vpow.pop %v2803
  %v2805 = vmul.f32 %v2681, 1.442695
  %v2806 = vpow.pop %v2805
  %v2807 = vmul.f32 %v2682, 1.442695
  %v2808 = vpow.pop %v2807
  %v2809 = vmul.f32 %v2683, 1.442695
  %v2810 = vpow.pop %v2809
  %v2811 = vmul.f32 %v2684, 1.442695
  %v2812 = vpow.pop %v2811
  %v2813 = vmul.f32 %v2685, 1.442695
  %v2814 = vpow.pop %v2813
  %v2815 = vmul.f32 %v2686, 1.442695
  %v2816 = vpow.pop %v2815
  %v2817 = vmul.f32 %v2687, 1.442695
  %v2818 = vpow.pop %v2817
  %v2819 = vmul.f32 %v2688, 1.442695
  %v2820 = vpow.pop %v2819
  %v2821 = vmul.f32 %v2689, 1.442695
  %v2822 = vpow.pop %v2821
  %v2823 = vmul.f32 %v2690, 1.442695
  %v2824 = vpow.pop %v2823
  %v2825 = vmul.f32 %v2691, 1.442695
  %v2826 = vpow.pop %v2825
  %v2827 = vmul.f32 %v2692, 1.442695
  %v2828 = vpow.pop %v2827
  %v2829 = vmul.f32 %v2693, 1.442695
  %v2830 = vpow.pop %v2829
  %v2831 = vmul.f32 %v2694, 1.442695
  %v2832 = vpow.pop %v2831
  %v2833 = vmul.f32 %v2695, 1.442695
  %v2834 = vpow.pop %v2833
  %v2835 = vmul.f32 %v2696, 1.442695
  %v2836 = vpow.pop %v2835
  %v2837 = vmul.f32 %v2697, 1.442695
  %v2838 = vpow.pop %v2837
  %v2839 = vmul.f32 %v2698, 1.442695
  %v2840 = vpow.pop %v2839
  %v2841 = vmul.f32 %v2699, 1.442695
  %v2842 = vpow.pop %v2841
  %v2843 = vmul.f32 %v2700, 1.442695
  %v2844 = vpow.pop %v2843
  %v2845 = vmul.f32 %v2701, 1.442695
  %v2846 = vpow.pop %v2845
  %v2847 = vmul.f32 %v2702, 1.442695
  %v2848 = vpow.pop %v2847
  %v2849 = vmul.f32 %v2703, 1.442695
  %v2850 = vpow.pop %v2849
  %v2851 = vmul.f32 %v2704, 1.442695
  %v2852 = vpow.pop %v2851
  %v2853 = vmul.f32 %v2705, 1.442695
  %v2854 = vpow.pop %v2853
  %v2855 = vmul.f32 %v2706, 1.442695
  %v2856 = vpow.pop %v2855
  %v2857 = vmul.f32 %v2707, 1.442695
  %v2858 = vpow.pop %v2857
  %v2859 = vmul.f32 %v2708, 1.442695
  %v2860 = vpow.pop %v2859
  %v2861 = vmul.f32 %v2709, 1.442695
  %v2862 = vpow.pop %v2861
  %v2863 = vmul.f32 %v2710, 1.442695
  %v2864 = vpow.pop %v2863
  %v2865 = vmul.f32 %v2711, 1.442695
  %v2866 = vpow.pop %v2865
  %v2867 = vmul.f32 %v2712, 1.442695
  %v2868 = vpow.pop %v2867
  %v2869 = vmul.f32 %v2713, 1.442695
  %v2870 = vpow.pop %v2869
  %v2871 = vmul.f32 %v2714, 1.442695
  %v2872 = vpow.pop %v2871
  %v2873 = vmul.f32 %v2715, 1.442695
  %v2874 = vpow.pop %v2873
  %v2875 = vmul.f32 %v2716, 1.442695
  %v2876 = vpow.pop %v2875
  %v2877 = vmul.f32 %v2717, 1.442695
  %v2878 = vpow.pop %v2877
  %v2879 = vmul.f32 %v2718, 1.442695
  %v2880 = vpow.pop %v2879
  %v2881 = vmul.f32 %v2719, 1.442695
  %v2882 = vpow.pop %v2881
  %v2883 = vmul.f32 %v2720, 1.442695
  %v2884 = vpow.pop %v2883
  %v2885 = vmul.f32 %v2721, 1.442695
  %v2886 = vpow.pop %v2885
  %v2887 = vmul.f32 %v2722, 1.442695
  %v2888 = vpow.pop %v2887
  %v2889 = vmul.f32 %v2723, 1.442695
  %v2890 = vpow.pop %v2889
  %v2891 = vmul.f32 %v2724, 1.442695
  %v2892 = vpow.pop %v2891
  %v2893 = vmul.f32 %v2725, 1.442695
  %v2894 = vpow.pop %v2893
  %v2895 = vmul.f32 %v2726, 1.442695
  %v2896 = vpow.pop %v2895
  %v2897 = vmul.f32 %v2727, 1.442695
  %v2898 = vpow.pop %v2897
  %v2899 = vmul.f32 %v2728, 1.442695
  %v2900 = vpow.pop %v2899
  %v2901 = vmul.f32 %v2729, 1.442695
  %v2902 = vpow.pop %v2901
  %v2903 = vmul.f32 %v2730, 1.442695
  %v2904 = vpow.pop %v2903
  %v2905 = vmul.f32 %v2731, 1.442695
  %v2906 = vpow.pop %v2905
  %v2907 = vmul.f32 %v2732, 1.442695
  %v2908 = vpow.pop %v2907
  %v2909 = vmul.f32 %v2733, 1.442695
  %v2910 = vpow.pop %v2909
  %v2911 = vmul.f32 %v2734, 1.442695
  %v2912 = vpow.pop %v2911
  %v2913 = vmul.f32 %v2735, 1.442695
  %v2914 = vpow.pop %v2913
  %v2915 = vmul.f32 %v2736, 1.442695
  %v2916 = vpow.pop %v2915
  %v2917 = vmul.f32 %v2737, 1.442695
  %v2918 = vpow.pop %v2917
  %v2919 = vmul.f32 %v2738, 1.442695
  %v2920 = vpow.pop %v2919
  %v2921 = vmul.f32 %v2739, 1.442695
  %v2922 = vpow.pop %v2921
  %v2923 = vmul.f32 %v2740, 1.442695
  %v2924 = vpow.pop %v2923
  %v2925 = vmul.f32 %v2741, 1.442695
  %v2926 = vpow.pop %v2925
  %v2927 = vmul.f32 %v2742, 1.442695
  %v2928 = vpow.pop %v2927
  %v2929 = vmul.f32 %v2743, 1.442695
  %v2930 = vpow.pop %v2929
  %v2931 = vmul.f32 %v2744, 1.442695
  %v2932 = vpow.pop %v2931
  %v2933 = vmul.f32 %v2745, 1.442695
  %v2934 = vpow.pop %v2933
  %v2935 = vmul.f32 %v2746, 1.442695
  %v2936 = vpow.pop %v2935
  %v2937 = vmul.f32 %v2747, 1.442695
  %v2938 = vpow.pop %v2937
  %v2939 = vmul.f32 %v2748, 1.442695
  %v2940 = vpow.pop %v2939
  %v2941 = vmul.f32 %v2749, 1.442695
  %v2942 = vpow.pop %v2941
  %v2943 = vmul.f32 %v2750, 1.442695
  %v2944 = vpow.pop %v2943
  %v2945 = vmul.f32 %v2751, 1.442695
  %v2946 = vpow.pop %v2945
  %v2947 = vmul.f32 %v2752, 1.442695
  %v2948 = vpow.pop %v2947
  %v2949 = vmul.f32 %v2753, 1.442695
  %v2950 = vpow.pop %v2949
  %v2951 = vmul.f32 %v2754, 1.442695
  %v2952 = vpow.pop %v2951
  %v2953 = vmul.f32 %v2755, 1.442695
  %v2954 = vpow.pop %v2953
  %v2955 = vmul.f32 %v2756, 1.442695
  %v2956 = vpow.pop %v2955
  %v2957 = vmul.f32 %v2757, 1.442695
  %v2958 = vpow.pop %v2957
  %v2959 = vmul.f32 %v2758, 1.442695
  %v2960 = vpow.pop %v2959
  %v2961 = vmul.f32 %v2759, 1.442695
  %v2962 = vpow.pop %v2961
  %v2963 = vmul.f32 %v2760, 1.442695
  %v2964 = vpow.pop %v2963
  %v2965 = vmul.f32 %v2761, 1.442695
  %v2966 = vpow.pop %v2965
  %v2967 = vmul.f32 %v2762, 1.442695
  %v2968 = vpow.pop %v2967
  %v2969 = vmul.f32 %v2763, 1.442695
  %v2970 = vpow.pop %v2969
  %v2971 = vmul.f32 %v2764, 1.442695
  %v2972 = vpow.pop %v2971
  %v2973 = vmul.f32 %v2765, 1.442695
  %v2974 = vpow.pop %v2973
  %v2975 = vmul.f32 %v2766, 1.442695
  %v2976 = vpow.pop %v2975
  %v2977 = vmul.f32 %v2767, 1.442695
  %v2978 = vpow.pop %v2977
  %v2979 = vmul.f32 %v2768, 1.442695
  %v2980 = vpow.pop %v2979
  %v2981 = vmul.f32 %v2769, 1.442695
  %v2982 = vpow.pop %v2981
  %v2983 = vmul.f32 %v2770, 1.442695
  %v2984 = vpow.pop %v2983
  %v2985 = vmul.f32 %v2771, 1.442695
  %v2986 = vpow.pop %v2985
  %v2987 = vmul.f32 %v2772, 1.442695
  %v2988 = vpow.pop %v2987
  %v2989 = vmul.f32 %v2773, 1.442695
  %v2990 = vpow.pop %v2989
  %v2991 = vmul.f32 %v2774, 1.442695
  %v2992 = vpow.pop %v2991
  %v2993 = vmul.f32 %v2775, 1.442695
  %v2994 = vpow.pop %v2993
  %v2995 = vmul.f32 %v2776, 1.442695
  %v2996 = vpow.pop %v2995
  %v2997 = vmul.f32 %v2777, 1.442695
  %v2998 = vpow.pop %v2997
  %v2999 = vmul.f32 %v2778, 1.442695
  %v3000 = vpow.pop %v2999
  %v3001 = vmul.f32 %v2779, 1.442695
  %v3002 = vpow.pop %v3001
  %v3003 = vmul.f32 %v2780, 1.442695
  %v3004 = vpow.pop %v3003
  %v3005 = vmul.f32 %v2781, 1.442695
  %v3006 = vpow.pop %v3005
  %v3007 = vmul.f32 %v2782, 1.442695
  %v3008 = vpow.pop %v3007
  %v3009 = vmul.f32 %v2783, 1.442695
  %v3010 = vpow.pop %v3009
  %v3011 = vmul.f32 %v2784, 1.442695
  %v3012 = vpow.pop %v3011
  %v3013 = vmul.f32 %v2785, 1.442695
  %v3014 = vpow.pop %v3013
  %v3015 = vmul.f32 %v2786, 1.442695
  %v3016 = vpow.pop %v3015
  %v3017 = vmul.f32 %v2787, 1.442695
  %v3018 = vpow.pop %v3017
  %v3019 = vmul.f32 %v2788, 1.442695
  %v3020 = vpow.pop %v3019
  %v3021 = vmul.f32 %v2789, 1.442695
  %v3022 = vpow.pop %v3021
  %v3023 = vmul.f32 %v2790, 1.442695
  %v3024 = vpow.pop %v3023
  %v3025 = vmul.f32 %v2791, 1.442695
  %v3026 = vpow.pop %v3025
  %v3027 = vmul.f32 %v2792, 1.442695
  %v3028 = vpow.pop %v3027
  %v3029 = vadd.f32 %v2794, 1.0
  %v3030 = vadd.f32 %v2796, 1.0
  %v3031 = vadd.f32 %v2798, 1.0
  %v3032 = vadd.f32 %v2800, 1.0
  %v3033 = vadd.f32 %v2802, 1.0
  %v3034 = vadd.f32 %v2804, 1.0
  %v3035 = vadd.f32 %v2806, 1.0
  %v3036 = vadd.f32 %v2808, 1.0
  %v3037 = vadd.f32 %v2810, 1.0
  %v3038 = vadd.f32 %v2812, 1.0
  %v3039 = vadd.f32 %v2814, 1.0
  %v3040 = vadd.f32 %v2816, 1.0
  %v3041 = vadd.f32 %v2818, 1.0
  %v3042 = vadd.f32 %v2820, 1.0
  %v3043 = vadd.f32 %v2822, 1.0
  %v3044 = vadd.f32 %v2824, 1.0
  %v3045 = vadd.f32 %v2826, 1.0
  %v3046 = vadd.f32 %v2828, 1.0
  %v3047 = vadd.f32 %v2830, 1.0
  %v3048 = vadd.f32 %v2832, 1.0
  %v3049 = vadd.f32 %v2834, 1.0
  %v3050 = vadd.f32 %v2836, 1.0
  %v3051 = vadd.f32 %v2838, 1.0
  %v3052 = vadd.f32 %v2840, 1.0
  %v3053 = vadd.f32 %v2842, 1.0
  %v3054 = vadd.f32 %v2844, 1.0
  %v3055 = vadd.f32 %v2846, 1.0
  %v3056 = vadd.f32 %v2848, 1.0
  %v3057 = vadd.f32 %v2850, 1.0
  %v3058 = vadd.f32 %v2852, 1.0
  %v3059 = vadd.f32 %v2854, 1.0
  %v3060 = vadd.f32 %v2856, 1.0
  %v3061 = vadd.f32 %v2858, 1.0
  %v3062 = vadd.f32 %v2860, 1.0
  %v3063 = vadd.f32 %v2862, 1.0
  %v3064 = vadd.f32 %v2864, 1.0
  %v3065 = vadd.f32 %v2866, 1.0
  %v3066 = vadd.f32 %v2868, 1.0
  %v3067 = vadd.f32 %v2870, 1.0
  %v3068 = vadd.f32 %v2872, 1.0
  %v3069 = vadd.f32 %v2874, 1.0
  %v3070 = vadd.f32 %v2876, 1.0
  %v3071 = vadd.f32 %v2878, 1.0
  %v3072 = vadd.f32 %v2880, 1.0
  %v3073 = vadd.f32 %v2882, 1.0
  %v3074 = vadd.f32 %v2884, 1.0
  %v3075 = vadd.f32 %v2886, 1.0
  %v3076 = vadd.f32 %v2888, 1.0
  %v3077 = vadd.f32 %v2890, 1.0
  %v3078 = vadd.f32 %v2892, 1.0
  %v3079 = vadd.f32 %v2894, 1.0
  %v3080 = vadd.f32 %v2896, 1.0
  %v3081 = vadd.f32 %v2898, 1.0
  %v3082 = vadd.f32 %v2900, 1.0
  %v3083 = vadd.f32 %v2902, 1.0
  %v3084 = vadd.f32 %v2904, 1.0
  %v3085 = vadd.f32 %v2906, 1.0
  %v3086 = vadd.f32 %v2908, 1.0
  %v3087 = vadd.f32 %v2910, 1.0
  %v3088 = vadd.f32 %v2912, 1.0
  %v3089 = vadd.f32 %v2914, 1.0
  %v3090 = vadd.f32 %v2916, 1.0
  %v3091 = vadd.f32 %v2918, 1.0
  %v3092 = vadd.f32 %v2920, 1.0
  %v3093 = vadd.f32 %v2922, 1.0
  %v3094 = vadd.f32 %v2924, 1.0
  %v3095 = vadd.f32 %v2926, 1.0
  %v3096 = vadd.f32 %v2928, 1.0
  %v3097 = vadd.f32 %v2930, 1.0
  %v3098 = vadd.f32 %v2932, 1.0
  %v3099 = vadd.f32 %v2934, 1.0
  %v3100 = vadd.f32 %v2936, 1.0
  %v3101 = vadd.f32 %v2938, 1.0
  %v3102 = vadd.f32 %v2940, 1.0
  %v3103 = vadd.f32 %v2942, 1.0
  %v3104 = vadd.f32 %v2944, 1.0
  %v3105 = vadd.f32 %v2946, 1.0
  %v3106 = vadd.f32 %v2948, 1.0
  %v3107 = vadd.f32 %v2950, 1.0
  %v3108 = vadd.f32 %v2952, 1.0
  %v3109 = vadd.f32 %v2954, 1.0
  %v3110 = vadd.f32 %v2956, 1.0
  %v3111 = vadd.f32 %v2958, 1.0
  %v3112 = vadd.f32 %v2960, 1.0
  %v3113 = vadd.f32 %v2962, 1.0
  %v3114 = vadd.f32 %v2964, 1.0
  %v3115 = vadd.f32 %v2966, 1.0
  %v3116 = vadd.f32 %v2968, 1.0
  %v3117 = vadd.f32 %v2970, 1.0
  %v3118 = vadd.f32 %v2972, 1.0
  %v3119 = vadd.f32 %v2974, 1.0
  %v3120 = vadd.f32 %v2976, 1.0
  %v3121 = vadd.f32 %v2978, 1.0
  %v3122 = vadd.f32 %v2980, 1.0
  %v3123 = vadd.f32 %v2982, 1.0
  %v3124 = vadd.f32 %v2984, 1.0
  %v3125 = vadd.f32 %v2986, 1.0
  %v3126 = vadd.f32 %v2988, 1.0
  %v3127 = vadd.f32 %v2990, 1.0
  %v3128 = vadd.f32 %v2992, 1.0
  %v3129 = vadd.f32 %v2994, 1.0
  %v3130 = vadd.f32 %v2996, 1.0
  %v3131 = vadd.f32 %v2998, 1.0
  %v3132 = vadd.f32 %v3000, 1.0
  %v3133 = vadd.f32 %v3002, 1.0
  %v3134 = vadd.f32 %v3004, 1.0
  %v3135 = vadd.f32 %v3006, 1.0
  %v3136 = vadd.f32 %v3008, 1.0
  %v3137 = vadd.f32 %v3010, 1.0
  %v3138 = vadd.f32 %v3012, 1.0
  %v3139 = vadd.f32 %v3014, 1.0
  %v3140 = vadd.f32 %v3016, 1.0
  %v3141 = vadd.f32 %v3018, 1.0
  %v3142 = vadd.f32 %v3020, 1.0
  %v3143 = vadd.f32 %v3022, 1.0
  %v3144 = vadd.f32 %v3024, 1.0
  %v3145 = vadd.f32 %v3026, 1.0
  %v3146 = vadd.f32 %v3028, 1.0
  %v3147 = vrcp.pop %v3029
  %v3148 = vmul.f32 1.0, %v3147
  %v3149 = vrcp.pop %v3030
  %v3150 = vmul.f32 1.0, %v3149
  %v3151 = vrcp.pop %v3031
  %v3152 = vmul.f32 1.0, %v3151
  %v3153 = vrcp.pop %v3032
  %v3154 = vmul.f32 1.0, %v3153
  %v3155 = vrcp.pop %v3033
  %v3156 = vmul.f32 1.0, %v3155
  %v3157 = vrcp.pop %v3034
  %v3158 = vmul.f32 1.0, %v3157
  %v3159 = vrcp.pop %v3035
  %v3160 = vmul.f32 1.0, %v3159
  %v3161 = vrcp.pop %v3036
  %v3162 = vmul.f32 1.0, %v3161
  %v3163 = vrcp.pop %v3037
  %v3164 = vmul.f32 1.0, %v3163
  %v3165 = vrcp.pop %v3038
  %v3166 = vmul.f32 1.0, %v3165
  %v3167 = vrcp.pop %v3039
  %v3168 = vmul.f32 1.0, %v3167
  %v3169 = vrcp.pop %v3040
  %v3170 = vmul.f32 1.0, %v3169
  %v3171 = vrcp.pop %v3041
  %v3172 = vmul.f32 1.0, %v3171
  %v3173 = vrcp.pop %v3042
  %v3174 = vmul.f32 1.0, %v3173
  %v3175 = vrcp.pop %v3043
  %v3176 = vmul.f32 1.0, %v3175
  %v3177 = vrcp.pop %v3044
  %v3178 = vmul.f32 1.0, %v3177
  %v3179 = vrcp.pop %v3045
  %v3180 = vmul.f32 1.0, %v3179
  %v3181 = vrcp.pop %v3046
  %v3182 = vmul.f32 1.0, %v3181
  %v3183 = vrcp.pop %v3047
  %v3184 = vmul.f32 1.0, %v3183
  %v3185 = vrcp.pop %v3048
  %v3186 = vmul.f32 1.0, %v3185
  %v3187 = vrcp.pop %v3049
  %v3188 = vmul.f32 1.0, %v3187
  %v3189 = vrcp.pop %v3050
  %v3190 = vmul.f32 1.0, %v3189
  %v3191 = vrcp.pop %v3051
  %v3192 = vmul.f32 1.0, %v3191
  %v3193 = vrcp.pop %v3052
  %v3194 = vmul.f32 1.0, %v3193
  %v3195 = vrcp.pop %v3053
  %v3196 = vmul.f32 1.0, %v3195
  %v3197 = vrcp.pop %v3054
  %v3198 = vmul.f32 1.0, %v3197
  %v3199 = vrcp.pop %v3055
  %v3200 = vmul.f32 1.0, %v3199
  %v3201 = vrcp.pop %v3056
  %v3202 = vmul.f32 1.0, %v3201
  %v3203 = vrcp.pop %v3057
  %v3204 = vmul.f32 1.0, %v3203
  %v3205 = vrcp.pop %v3058
  %v3206 = vmul.f32 1.0, %v3205
  %v3207 = vrcp.pop %v3059
  %v3208 = vmul.f32 1.0, %v3207
  %v3209 = vrcp.pop %v3060
  %v3210 = vmul.f32 1.0, %v3209
  %v3211 = vrcp.pop %v3061
  %v3212 = vmul.f32 1.0, %v3211
  %v3213 = vrcp.pop %v3062
  %v3214 = vmul.f32 1.0, %v3213
  %v3215 = vrcp.pop %v3063
  %v3216 = vmul.f32 1.0, %v3215
  %v3217 = vrcp.pop %v3064
  %v3218 = vmul.f32 1.0, %v3217
  %v3219 = vrcp.pop %v3065
  %v3220 = vmul.f32 1.0, %v3219
  %v3221 = vrcp.pop %v3066
  %v3222 = vmul.f32 1.0, %v3221
  %v3223 = vrcp.pop %v3067
  %v3224 = vmul.f32 1.0, %v3223
  %v3225 = vrcp.pop %v3068
  %v3226 = vmul.f32 1.0, %v3225
  %v3227 = vrcp.pop %v3069
  %v3228 = vmul.f32 1.0, %v3227
  %v3229 = vrcp.pop %v3070
  %v3230 = vmul.f32 1.0, %v3229
  %v3231 = vrcp.pop %v3071
  %v3232 = vmul.f32 1.0, %v3231
  %v3233 = vrcp.pop %v3072
  %v3234 = vmul.f32 1.0, %v3233
  %v3235 = vrcp.pop %v3073
  %v3236 = vmul.f32 1.0, %v3235
  %v3237 = vrcp.pop %v3074
  %v3238 = vmul.f32 1.0, %v3237
  %v3239 = vrcp.pop %v3075
  %v3240 = vmul.f32 1.0, %v3239
  %v3241 = vrcp.pop %v3076
  %v3242 = vmul.f32 1.0, %v3241
  %v3243 = vrcp.pop %v3077
  %v3244 = vmul.f32 1.0, %v3243
  %v3245 = vrcp.pop %v3078
  %v3246 = vmul.f32 1.0, %v3245
  %v3247 = vrcp.pop %v3079
  %v3248 = vmul.f32 1.0, %v3247
  %v3249 = vrcp.pop %v3080
  %v3250 = vmul.f32 1.0, %v3249
  %v3251 = vrcp.pop %v3081
  %v3252 = vmul.f32 1.0, %v3251
  %v3253 = vrcp.pop %v3082
  %v3254 = vmul.f32 1.0, %v3253
  %v3255 = vrcp.pop %v3083
  %v3256 = vmul.f32 1.0, %v3255
  %v3257 = vrcp.pop %v3084
  %v3258 = vmul.f32 1.0, %v3257
  %v3259 = vrcp.pop %v3085
  %v3260 = vmul.f32 1.0, %v3259
  %v3261 = vrcp.pop %v3086
  %v3262 = vmul.f32 1.0, %v3261
  %v3263 = vrcp.pop %v3087
  %v3264 = vmul.f32 1.0, %v3263
  %v3265 = vrcp.pop %v3088
  %v3266 = vmul.f32 1.0, %v3265
  %v3267 = vrcp.pop %v3089
  %v3268 = vmul.f32 1.0, %v3267
  %v3269 = vrcp.pop %v3090
  %v3270 = vmul.f32 1.0, %v3269
  %v3271 = vrcp.pop %v3091
  %v3272 = vmul.f32 1.0, %v3271
  %v3273 = vrcp.pop %v3092
  %v3274 = vmul.f32 1.0, %v3273
  %v3275 = vrcp.pop %v3093
  %v3276 = vmul.f32 1.0, %v3275
  %v3277 = vrcp.pop %v3094
  %v3278 = vmul.f32 1.0, %v3277
  %v3279 = vrcp.pop %v3095
  %v3280 = vmul.f32 1.0, %v3279
  %v3281 = vrcp.pop %v3096
  %v3282 = vmul.f32 1.0, %v3281
  %v3283 = vrcp.pop %v3097
  %v3284 = vmul.f32 1.0, %v3283
  %v3285 = vrcp.pop %v3098
  %v3286 = vmul.f32 1.0, %v3285
  %v3287 = vrcp.pop %v3099
  %v3288 = vmul.f32 1.0, %v3287
  %v3289 = vrcp.pop %v3100
  %v3290 = vmul.f32 1.0, %v3289
  %v3291 = vrcp.pop %v3101
  %v3292 = vmul.f32 1.0, %v3291
  %v3293 = vrcp.pop %v3102
  %v3294 = vmul.f32 1.0, %v3293
  %v3295 = vrcp.pop %v3103
  %v3296 = vmul.f32 1.0, %v3295
  %v3297 = vrcp.pop %v3104
  %v3298 = vmul.f32 1.0, %v3297
  %v3299 = vrcp.pop %v3105
  %v3300 = vmul.f32 1.0, %v3299
  %v3301 = vrcp.pop %v3106
  %v3302 = vmul.f32 1.0, %v3301
  %v3303 = vrcp.pop %v3107
  %v3304 = vmul.f32 1.0, %v3303
  %v3305 = vrcp.pop %v3108
  %v3306 = vmul.f32 1.0, %v3305
  %v3307 = vrcp.pop %v3109
  %v3308 = vmul.f32 1.0, %v3307
  %v3309 = vrcp.pop %v3110
  %v3310 = vmul.f32 1.0, %v3309
  %v3311 = vrcp.pop %v3111
  %v3312 = vmul.f32 1.0, %v3311
  %v3313 = vrcp.pop %v3112
  %v3314 = vmul.f32 1.0, %v3313
  %v3315 = vrcp.pop %v3113
  %v3316 = vmul.f32 1.0, %v3315
  %v3317 = vrcp.pop %v3114
  %v3318 = vmul.f32 1.0, %v3317
  %v3319 = vrcp.pop %v3115
  %v3320 = vmul.f32 1.0, %v3319
  %v3321 = vrcp.pop %v3116
  %v3322 = vmul.f32 1.0, %v3321
  %v3323 = vrcp.pop %v3117
  %v3324 = vmul.f32 1.0, %v3323
  %v3325 = vrcp.pop %v3118
  %v3326 = vmul.f32 1.0, %v3325
  %v3327 = vrcp.pop %v3119
  %v3328 = vmul.f32 1.0, %v3327
  %v3329 = vrcp.pop %v3120
  %v3330 = vmul.f32 1.0, %v3329
  %v3331 = vrcp.pop %v3121
  %v3332 = vmul.f32 1.0, %v3331
  %v3333 = vrcp.pop %v3122
  %v3334 = vmul.f32 1.0, %v3333
  %v3335 = vrcp.pop %v3123
  %v3336 = vmul.f32 1.0, %v3335
  %v3337 = vrcp.pop %v3124
  %v3338 = vmul.f32 1.0, %v3337
  %v3339 = vrcp.pop %v3125
  %v3340 = vmul.f32 1.0, %v3339
  %v3341 = vrcp.pop %v3126
  %v3342 = vmul.f32 1.0, %v3341
  %v3343 = vrcp.pop %v3127
  %v3344 = vmul.f32 1.0, %v3343
  %v3345 = vrcp.pop %v3128
  %v3346 = vmul.f32 1.0, %v3345
  %v3347 = vrcp.pop %v3129
  %v3348 = vmul.f32 1.0, %v3347
  %v3349 = vrcp.pop %v3130
  %v3350 = vmul.f32 1.0, %v3349
  %v3351 = vrcp.pop %v3131
  %v3352 = vmul.f32 1.0, %v3351
  %v3353 = vrcp.pop %v3132
  %v3354 = vmul.f32 1.0, %v3353
  %v3355 = vrcp.pop %v3133
  %v3356 = vmul.f32 1.0, %v3355
  %v3357 = vrcp.pop %v3134
  %v3358 = vmul.f32 1.0, %v3357
  %v3359 = vrcp.pop %v3135
  %v3360 = vmul.f32 1.0, %v3359
  %v3361 = vrcp.pop %v3136
  %v3362 = vmul.f32 1.0, %v3361
  %v3363 = vrcp.pop %v3137
  %v3364 = vmul.f32 1.0, %v3363
  %v3365 = vrcp.pop %v3138
  %v3366 = vmul.f32 1.0, %v3365
  %v3367 = vrcp.pop %v3139
  %v3368 = vmul.f32 1.0, %v3367
  %v3369 = vrcp.pop %v3140
  %v3370 = vmul.f32 1.0, %v3369
  %v3371 = vrcp.pop %v3141
  %v3372 = vmul.f32 1.0, %v3371
  %v3373 = vrcp.pop %v3142
  %v3374 = vmul.f32 1.0, %v3373
  %v3375 = vrcp.pop %v3143
  %v3376 = vmul.f32 1.0, %v3375
  %v3377 = vrcp.pop %v3144
  %v3378 = vmul.f32 1.0, %v3377
  %v3379 = vrcp.pop %v3145
  %v3380 = vmul.f32 1.0, %v3379
  %v3381 = vrcp.pop %v3146
  %v3382 = vmul.f32 1.0, %v3381
  %v3383 = vld [vmem:[%s6] sm:$0xff]
  %v3384 = vld [vmem:[%s6 + $0x8] sm:$0xff]
  %v3385 = vld [vmem:[%s6 + $0x10] sm:$0xff]
  %v3386 = vld [vmem:[%s6 + $0x18] sm:$0xff]
  %v3387 = vld [vmem:[%s6 + $0x20] sm:$0xff]
  %v3388 = vld [vmem:[%s6 + $0x28] sm:$0xff]
  %v3389 = vld [vmem:[%s6 + $0x30] sm:$0xff]
  %v3390 = vld [vmem:[%s6 + $0x38] sm:$0xff]
  %v3391 = vld [vmem:[%s6 + $0x40] sm:$0xff]
  %v3392 = vld [vmem:[%s6 + $0x48] sm:$0xff]
  %v3393 = vld [vmem:[%s6 + $0x50] sm:$0xff]
  %v3394 = vld [vmem:[%s6 + $0x58] sm:$0xff]
  %v3395 = vld [vmem:[%s6 + $0x60] sm:$0xff]
  %v3396 = vld [vmem:[%s6 + $0x68] sm:$0xff]
  %v3397 = vld [vmem:[%s6 + $0x70] sm:$0xff]
  %v3398 = vld [vmem:[%s6 + $0x78] sm:$0xff]
  %v3399 = vld [vmem:[%s6 + $0x80] sm:$0xff]
  %v3400 = vld [vmem:[%s6 + $0x88] sm:$0xff]
  %v3401 = vld [vmem:[%s6 + $0x90] sm:$0xff]
  %v3402 = vld [vmem:[%s6 + $0x98] sm:$0xff]
  %v3403 = vld [vmem:[%s6 + $0xa0] sm:$0xff]
  %v3404 = vld [vmem:[%s6 + $0xa8] sm:$0xff]
  %v3405 = vld [vmem:[%s6 + $0xb0] sm:$0xff]
  %v3406 = vld [vmem:[%s6 + $0xb8] sm:$0xff]
  %v3407 = vld [vmem:[%s6 + $0xc0] sm:$0xff]
  %v3408 = vld [vmem:[%s6 + $0xc8] sm:$0xff]
  %v3409 = vld [vmem:[%s6 + $0xd0] sm:$0xff]
  %v3410 = vld [vmem:[%s6 + $0xd8] sm:$0xff]
  %v3411 = vld [vmem:[%s6 + $0xe0] sm:$0xff]
  %v3412 = vld [vmem:[%s6 + $0xe8] sm:$0xff]
  %v3413 = vld [vmem:[%s6 + $0xf0] sm:$0xff]
  %v3414 = vld [vmem:[%s6 + $0xf8] sm:$0xff]
  %v3415 = vld [vmem:[%s6 + $0x100] sm:$0xff]
  %v3416 = vld [vmem:[%s6 + $0x108] sm:$0xff]
  %v3417 = vld [vmem:[%s6 + $0x110] sm:$0xff]
  %v3418 = vld [vmem:[%s6 + $0x118] sm:$0xff]
  %v3419 = vld [vmem:[%s6 + $0x120] sm:$0xff]
  %v3420 = vld [vmem:[%s6 + $0x128] sm:$0xff]
  %v3421 = vld [vmem:[%s6 + $0x130] sm:$0xff]
  %v3422 = vld [vmem:[%s6 + $0x138] sm:$0xff]
  %v3423 = vld [vmem:[%s6 + $0x140] sm:$0xff]
  %v3424 = vld [vmem:[%s6 + $0x148] sm:$0xff]
  %v3425 = vld [vmem:[%s6 + $0x150] sm:$0xff]
  %v3426 = vld [vmem:[%s6 + $0x158] sm:$0xff]
  %v3427 = vld [vmem:[%s6 + $0x160] sm:$0xff]
  %v3428 = vld [vmem:[%s6 + $0x168] sm:$0xff]
  %v3429 = vld [vmem:[%s6 + $0x170] sm:$0xff]
  %v3430 = vld [vmem:[%s6 + $0x178] sm:$0xff]
  %v3431 = vld [vmem:[%s6 + $0x180] sm:$0xff]
  %v3432 = vld [vmem:[%s6 + $0x188] sm:$0xff]
  %v3433 = vld [vmem:[%s6 + $0x190] sm:$0xff]
  %v3434 = vld [vmem:[%s6 + $0x198] sm:$0xff]
  %v3435 = vld [vmem:[%s6 + $0x1a0] sm:$0xff]
  %v3436 = vld [vmem:[%s6 + $0x1a8] sm:$0xff]
  %v3437 = vld [vmem:[%s6 + $0x1b0] sm:$0xff]
  %v3438 = vld [vmem:[%s6 + $0x1b8] sm:$0xff]
  %v3439 = vld [vmem:[%s6 + $0x1c0] sm:$0xff]
  %v3440 = vld [vmem:[%s6 + $0x1c8] sm:$0xff]
  %v3441 = vld [vmem:[%s6 + $0x1d0] sm:$0xff]
  %v3442 = vld [vmem:[%s6 + $0x1d8] sm:$0xff]
  %v3443 = vld [vmem:[%s6 + $0x1e0] sm:$0xff]
  %v3444 = vld [vmem:[%s6 + $0x1e8] sm:$0xff]
  %v3445 = vld [vmem:[%s6 + $0x1f0] sm:$0xff]
  %v3446 = vld [vmem:[%s6 + $0x1f8] sm:$0xff]
  %v3447 = vld [vmem:[%s6 + $0x200] sm:$0xff]
  %v3448 = vld [vmem:[%s6 + $0x208] sm:$0xff]
  %v3449 = vld [vmem:[%s6 + $0x210] sm:$0xff]
  %v3450 = vld [vmem:[%s6 + $0x218] sm:$0xff]
  %v3451 = vld [vmem:[%s6 + $0x220] sm:$0xff]
  %v3452 = vld [vmem:[%s6 + $0x228] sm:$0xff]
  %v3453 = vld [vmem:[%s6 + $0x230] sm:$0xff]
  %v3454 = vld [vmem:[%s6 + $0x238] sm:$0xff]
  %v3455 = vld [vmem:[%s6 + $0x240] sm:$0xff]
  %v3456 = vld [vmem:[%s6 + $0x248] sm:$0xff]
  %v3457 = vld [vmem:[%s6 + $0x250] sm:$0xff]
  %v3458 = vld [vmem:[%s6 + $0x258] sm:$0xff]
  %v3459 = vld [vmem:[%s6 + $0x260] sm:$0xff]
  %v3460 = vld [vmem:[%s6 + $0x268] sm:$0xff]
  %v3461 = vld [vmem:[%s6 + $0x270] sm:$0xff]
  %v3462 = vld [vmem:[%s6 + $0x278] sm:$0xff]
  %v3463 = vld [vmem:[%s6 + $0x280] sm:$0xff]
  %v3464 = vld [vmem:[%s6 + $0x288] sm:$0xff]
  %v3465 = vld [vmem:[%s6 + $0x290] sm:$0xff]
  %v3466 = vld [vmem:[%s6 + $0x298] sm:$0xff]
  %v3467 = vld [vmem:[%s6 + $0x2a0] sm:$0xff]
  %v3468 = vld [vmem:[%s6 + $0x2a8] sm:$0xff]
  %v3469 = vld [vmem:[%s6 + $0x2b0] sm:$0xff]
  %v3470 = vld [vmem:[%s6 + $0x2b8] sm:$0xff]
  %v3471 = vld [vmem:[%s6 + $0x2c0] sm:$0xff]
  %v3472 = vld [vmem:[%s6 + $0x2c8] sm:$0xff]
  %v3473 = vld [vmem:[%s6 + $0x2d0] sm:$0xff]
  %v3474 = vld [vmem:[%s6 + $0x2d8] sm:$0xff]
  %v3475 = vld [vmem:[%s6 + $0x2e0] sm:$0xff]
  %v3476 = vld [vmem:[%s6 + $0x2e8] sm:$0xff]
  %v3477 = vld [vmem:[%s6 + $0x2f0] sm:$0xff]
  %v3478 = vld [vmem:[%s6 + $0x2f8] sm:$0xff]
  %v3479 = vld [vmem:[%s6 + $0x300] sm:$0xff]
  %v3480 = vld [vmem:[%s6 + $0x308] sm:$0xff]
  %v3481 = vld [vmem:[%s6 + $0x310] sm:$0xff]
  %v3482 = vld [vmem:[%s6 + $0x318] sm:$0xff]
  %v3483 = vld [vmem:[%s6 + $0x320] sm:$0xff]
  %v3484 = vld [vmem:[%s6 + $0x328] sm:$0xff]
  %v3485 = vld [vmem:[%s6 + $0x330] sm:$0xff]
  %v3486 = vld [vmem:[%s6 + $0x338] sm:$0xff]
  %v3487 = vld [vmem:[%s6 + $0x340] sm:$0xff]
  %v3488 = vld [vmem:[%s6 + $0x348] sm:$0xff]
  %v3489 = vld [vmem:[%s6 + $0x350] sm:$0xff]
  %v3490 = vld [vmem:[%s6 + $0x358] sm:$0xff]
  %v3491 = vld [vmem:[%s6 + $0x360] sm:$0xff]
  %v3492 = vld [vmem:[%s6 + $0x368] sm:$0xff]
  %v3493 = vld [vmem:[%s6 + $0x370] sm:$0xff]
  %v3494 = vld [vmem:[%s6 + $0x378] sm:$0xff]
  %v3495 = vld [vmem:[%s6 + $0x380] sm:$0xff]
  %v3496 = vld [vmem:[%s6 + $0x388] sm:$0xff]
  %v3497 = vld [vmem:[%s6 + $0x390] sm:$0xff]
  %v3498 = vld [vmem:[%s6 + $0x398] sm:$0xff]
  %v3499 = vld [vmem:[%s6 + $0x3a0] sm:$0xff]
  %v3500 = vld [vmem:[%s6 + $0x3a8] sm:$0xff]
  %v3501 = vmul.f32 %v3148, %v3383
  %v3502 = vmul.f32 %v3150, %v3384
  %v3503 = vmul.f32 %v3152, %v3385
  %v3504 = vmul.f32 %v3154, %v3386
  %v3505 = vmul.f32 %v3156, %v3387
  %v3506 = vmul.f32 %v3158, %v3388
  %v3507 = vmul.f32 %v3160, %v3389
  %v3508 = vmul.f32 %v3162, %v3390
  %v3509 = vmul.f32 %v3164, %v3391
  %v3510 = vmul.f32 %v3166, %v3392
  %v3511 = vmul.f32 %v3168, %v3393
  %v3512 = vmul.f32 %v3170, %v3394
  %v3513 = vmul.f32 %v3172, %v3395
  %v3514 = vmul.f32 %v3174, %v3396
  %v3515 = vmul.f32 %v3176, %v3397
  %v3516 = vmul.f32 %v3178, %v3398
  %v3517 = vmul.f32 %v3180, %v3399
  %v3518 = vmul.f32 %v3182, %v3400
  %v3519 = vmul.f32 %v3184, %v3401
  %v3520 = vmul.f32 %v3186, %v3402
  %v3521 = vmul.f32 %v3188, %v3403
  %v3522 = vmul.f32 %v3190, %v3404
  %v3523 = vmul.f32 %v3192, %v3405
  %v3524 = vmul.f32 %v3194, %v3406
  %v3525 = vmul.f32 %v3196, %v3407
  %v3526 = vmul.f32 %v3198, %v3408
  %v3527 = vmul.f32 %v3200, %v3409
  %v3528 = vmul.f32 %v3202, %v3410
  %v3529 = vmul.f32 %v3204, %v3411
  %v3530 = vmul.f32 %v3206, %v3412
  %v3531 = vmul.f32 %v3208, %v3413
  %v3532 = vmul.f32 %v3210, %v3414
  %v3533 = vmul.f32 %v3212, %v3415
  %v3534 = vmul.f32 %v3214, %v3416
  %v3535 = vmul.f32 %v3216, %v3417
  %v3536 = vmul.f32 %v3218, %v3418
  %v3537 = vmul.f32 %v3220, %v3419
  %v3538 = vmul.f32 %v3222, %v3420
  %v3539 = vmul.f32 %v3224, %v3421
  %v3540 = vmul.f32 %v3226, %v3422
  %v3541 = vmul.f32 %v3228, %v3423
  %v3542 = vmul.f32 %v3230, %v3424
  %v3543 = vmul.f32 %v3232, %v3425
  %v3544 = vmul.f32 %v3234, %v3426
  %v3545 = vmul.f32 %v3236, %v3427
  %v3546 = vmul.f32 %v3238, %v3428
  %v3547 = vmul.f32 %v3240, %v3429
  %v3548 = vmul.f32 %v3242, %v3430
  %v3549 = vmul.f32 %v3244, %v3431
  %v3550 = vmul.f32 %v3246, %v3432
  %v3551 = vmul.f32 %v3248, %v3433
  %v3552 = vmul.f32 %v3250, %v3434
  %v3553 = vmul.f32 %v3252, %v3435
  %v3554 = vmul.f32 %v3254, %v3436
  %v3555 = vmul.f32 %v3256, %v3437
  %v3556 = vmul.f32 %v3258, %v3438
  %v3557 = vmul.f32 %v3260, %v3439
  %v3558 = vmul.f32 %v3262, %v3440
  %v3559 = vmul.f32 %v3264, %v3441
  %v3560 = vmul.f32 %v3266, %v3442
  %v3561 = vmul.f32 %v3268, %v3443
  %v3562 = vmul.f32 %v3270, %v3444
  %v3563 = vmul.f32 %v3272, %v3445
  %v3564 = vmul.f32 %v3274, %v3446
  %v3565 = vmul.f32 %v3276, %v3447
  %v3566 = vmul.f32 %v3278, %v3448
  %v3567 = vmul.f32 %v3280, %v3449
  %v3568 = vmul.f32 %v3282, %v3450
  %v3569 = vmul.f32 %v3284, %v3451
  %v3570 = vmul.f32 %v3286, %v3452
  %v3571 = vmul.f32 %v3288, %v3453
  %v3572 = vmul.f32 %v3290, %v3454
  %v3573 = vmul.f32 %v3292, %v3455
  %v3574 = vmul.f32 %v3294, %v3456
  %v3575 = vmul.f32 %v3296, %v3457
  %v3576 = vmul.f32 %v3298, %v3458
  %v3577 = vmul.f32 %v3300, %v3459
  %v3578 = vmul.f32 %v3302, %v3460
  %v3579 = vmul.f32 %v3304, %v3461
  %v3580 = vmul.f32 %v3306, %v3462
  %v3581 = vmul.f32 %v3308, %v3463
  %v3582 = vmul.f32 %v3310, %v3464
  %v3583 = vmul.f32 %v3312, %v3465
  %v3584 = vmul.f32 %v3314, %v3466
  %v3585 = vmul.f32 %v3316, %v3467
  %v3586 = vmul.f32 %v3318, %v3468
  %v3587 = vmul.f32 %v3320, %v3469
  %v3588 = vmul.f32 %v3322, %v3470
  %v3589 = vmul.f32 %v3324, %v3471
  %v3590 = vmul.f32 %v3326, %v3472
  %v3591 = vmul.f32 %v3328, %v3473
  %v3592 = vmul.f32 %v3330, %v3474
  %v3593 = vmul.f32 %v3332, %v3475
  %v3594 = vmul.f32 %v3334, %v3476
  %v3595 = vmul.f32 %v3336, %v3477
  %v3596 = vmul.f32 %v3338, %v3478
  %v3597 = vmul.f32 %v3340, %v3479
  %v3598 = vmul.f32 %v3342, %v3480
  %v3599 = vmul.f32 %v3344, %v3481
  %v3600 = vmul.f32 %v3346, %v3482
  %v3601 = vmul.f32 %v3348, %v3483
  %v3602 = vmul.f32 %v3350, %v3484
  %v3603 = vmul.f32 %v3352, %v3485
  %v3604 = vmul.f32 %v3354, %v3486
  %v3605 = vmul.f32 %v3356, %v3487
  %v3606 = vmul.f32 %v3358, %v3488
  %v3607 = vmul.f32 %v3360, %v3489
  %v3608 = vmul.f32 %v3362, %v3490
  %v3609 = vmul.f32 %v3364, %v3491
  %v3610 = vmul.f32 %v3366, %v3492
  %v3611 = vmul.f32 %v3368, %v3493
  %v3612 = vmul.f32 %v3370, %v3494
  %v3613 = vmul.f32 %v3372, %v3495
  %v3614 = vmul.f32 %v3374, %v3496
  %v3615 = vmul.f32 %v3376, %v3497
  %v3616 = vmul.f32 %v3378, %v3498
  %v3617 = vmul.f32 %v3380, %v3499
  %v3618 = vmul.f32 %v3382, %v3500
  %3619 = vst [vmem:[%s8] sm:$0xff] %v3501
  %3620 = vst [vmem:[%s8 + $0x8] sm:$0xff] %v3502
  %3621 = vst [vmem:[%s8 + $0x10] sm:$0xff] %v3503
  %3622 = vst [vmem:[%s8 + $0x18] sm:$0xff] %v3504
  %3623 = vst [vmem:[%s8 + $0x20] sm:$0xff] %v3505
  %3624 = vst [vmem:[%s8 + $0x28] sm:$0xff] %v3506
  %3625 = vst [vmem:[%s8 + $0x30] sm:$0xff] %v3507
  %3626 = vst [vmem:[%s8 + $0x38] sm:$0xff] %v3508
  %3627 = vst [vmem:[%s8 + $0x40] sm:$0xff] %v3509
  %3628 = vst [vmem:[%s8 + $0x48] sm:$0xff] %v3510
  %3629 = vst [vmem:[%s8 + $0x50] sm:$0xff] %v3511
  %3630 = vst [vmem:[%s8 + $0x58] sm:$0xff] %v3512
  %3631 = vst [vmem:[%s8 + $0x60] sm:$0xff] %v3513
  %3632 = vst [vmem:[%s8 + $0x68] sm:$0xff] %v3514
  %3633 = vst [vmem:[%s8 + $0x70] sm:$0xff] %v3515
  %3634 = vst [vmem:[%s8 + $0x78] sm:$0xff] %v3516
  %3635 = vst [vmem:[%s8 + $0x80] sm:$0xff] %v3517
  %3636 = vst [vmem:[%s8 + $0x88] sm:$0xff] %v3518
  %3637 = vst [vmem:[%s8 + $0x90] sm:$0xff] %v3519
  %3638 = vst [vmem:[%s8 + $0x98] sm:$0xff] %v3520
  %3639 = vst [vmem:[%s8 + $0xa0] sm:$0xff] %v3521
  %3640 = vst [vmem:[%s8 + $0xa8] sm:$0xff] %v3522
  %3641 = vst [vmem:[%s8 + $0xb0] sm:$0xff] %v3523
  %3642 = vst [vmem:[%s8 + $0xb8] sm:$0xff] %v3524
  %3643 = vst [vmem:[%s8 + $0xc0] sm:$0xff] %v3525
  %3644 = vst [vmem:[%s8 + $0xc8] sm:$0xff] %v3526
  %3645 = vst [vmem:[%s8 + $0xd0] sm:$0xff] %v3527
  %3646 = vst [vmem:[%s8 + $0xd8] sm:$0xff] %v3528
  %3647 = vst [vmem:[%s8 + $0xe0] sm:$0xff] %v3529
  %3648 = vst [vmem:[%s8 + $0xe8] sm:$0xff] %v3530
  %3649 = vst [vmem:[%s8 + $0xf0] sm:$0xff] %v3531
  %3650 = vst [vmem:[%s8 + $0xf8] sm:$0xff] %v3532
  %3651 = vst [vmem:[%s8 + $0x100] sm:$0xff] %v3533
  %3652 = vst [vmem:[%s8 + $0x108] sm:$0xff] %v3534
  %3653 = vst [vmem:[%s8 + $0x110] sm:$0xff] %v3535
  %3654 = vst [vmem:[%s8 + $0x118] sm:$0xff] %v3536
  %3655 = vst [vmem:[%s8 + $0x120] sm:$0xff] %v3537
  %3656 = vst [vmem:[%s8 + $0x128] sm:$0xff] %v3538
  %3657 = vst [vmem:[%s8 + $0x130] sm:$0xff] %v3539
  %3658 = vst [vmem:[%s8 + $0x138] sm:$0xff] %v3540
  %3659 = vst [vmem:[%s8 + $0x140] sm:$0xff] %v3541
  %3660 = vst [vmem:[%s8 + $0x148] sm:$0xff] %v3542
  %3661 = vst [vmem:[%s8 + $0x150] sm:$0xff] %v3543
  %3662 = vst [vmem:[%s8 + $0x158] sm:$0xff] %v3544
  %3663 = vst [vmem:[%s8 + $0x160] sm:$0xff] %v3545
  %3664 = vst [vmem:[%s8 + $0x168] sm:$0xff] %v3546
  %3665 = vst [vmem:[%s8 + $0x170] sm:$0xff] %v3547
  %3666 = vst [vmem:[%s8 + $0x178] sm:$0xff] %v3548
  %3667 = vst [vmem:[%s8 + $0x180] sm:$0xff] %v3549
  %3668 = vst [vmem:[%s8 + $0x188] sm:$0xff] %v3550
  %3669 = vst [vmem:[%s8 + $0x190] sm:$0xff] %v3551
  %3670 = vst [vmem:[%s8 + $0x198] sm:$0xff] %v3552
  %3671 = vst [vmem:[%s8 + $0x1a0] sm:$0xff] %v3553
  %3672 = vst [vmem:[%s8 + $0x1a8] sm:$0xff] %v3554
  %3673 = vst [vmem:[%s8 + $0x1b0] sm:$0xff] %v3555
  %3674 = vst [vmem:[%s8 + $0x1b8] sm:$0xff] %v3556
  %3675 = vst [vmem:[%s8 + $0x1c0] sm:$0xff] %v3557
  %3676 = vst [vmem:[%s8 + $0x1c8] sm:$0xff] %v3558
  %3677 = vst [vmem:[%s8 + $0x1d0] sm:$0xff] %v3559
  %3678 = vst [vmem:[%s8 + $0x1d8] sm:$0xff] %v3560
  %3679 = vst [vmem:[%s8 + $0x1e0] sm:$0xff] %v3561
  %3680 = vst [vmem:[%s8 + $0x1e8] sm:$0xff] %v3562
  %3681 = vst [vmem:[%s8 + $0x1f0] sm:$0xff] %v3563
  %3682 = vst [vmem:[%s8 + $0x1f8] sm:$0xff] %v3564
  %3683 = vst [vmem:[%s8 + $0x200] sm:$0xff] %v3565
  %3684 = vst [vmem:[%s8 + $0x208] sm:$0xff] %v3566
  %3685 = vst [vmem:[%s8 + $0x210] sm:$0xff] %v3567
  %3686 = vst [vmem:[%s8 + $0x218] sm:$0xff] %v3568
  %3687 = vst [vmem:[%s8 + $0x220] sm:$0xff] %v3569
  %3688 = vst [vmem:[%s8 + $0x228] sm:$0xff] %v3570
  %3689 = vst [vmem:[%s8 + $0x230] sm:$0xff] %v3571
  %3690 = vst [vmem:[%s8 + $0x238] sm:$0xff] %v3572
  %3691 = vst [vmem:[%s8 + $0x240] sm:$0xff] %v3573
  %3692 = vst [vmem:[%s8 + $0x248] sm:$0xff] %v3574
  %3693 = vst [vmem:[%s8 + $0x250] sm:$0xff] %v3575
  %3694 = vst [vmem:[%s8 + $0x258] sm:$0xff] %v3576
  %3695 = vst [vmem:[%s8 + $0x260] sm:$0xff] %v3577
  %3696 = vst [vmem:[%s8 + $0x268] sm:$0xff] %v3578
  %3697 = vst [vmem:[%s8 + $0x270] sm:$0xff] %v3579
  %3698 = vst [vmem:[%s8 + $0x278] sm:$0xff] %v3580
  %3699 = vst [vmem:[%s8 + $0x280] sm:$0xff] %v3581
  %3700 = vst [vmem:[%s8 + $0x288] sm:$0xff] %v3582
  %3701 = vst [vmem:[%s8 + $0x290] sm:$0xff] %v3583
  %3702 = vst [vmem:[%s8 + $0x298] sm:$0xff] %v3584
  %3703 = vst [vmem:[%s8 + $0x2a0] sm:$0xff] %v3585
  %3704 = vst [vmem:[%s8 + $0x2a8] sm:$0xff] %v3586
  %3705 = vst [vmem:[%s8 + $0x2b0] sm:$0xff] %v3587
  %3706 = vst [vmem:[%s8 + $0x2b8] sm:$0xff] %v3588
  %3707 = vst [vmem:[%s8 + $0x2c0] sm:$0xff] %v3589
  %3708 = vst [vmem:[%s8 + $0x2c8] sm:$0xff] %v3590
  %3709 = vst [vmem:[%s8 + $0x2d0] sm:$0xff] %v3591
  %3710 = vst [vmem:[%s8 + $0x2d8] sm:$0xff] %v3592
  %3711 = vst [vmem:[%s8 + $0x2e0] sm:$0xff] %v3593
  %3712 = vst [vmem:[%s8 + $0x2e8] sm:$0xff] %v3594
  %3713 = vst [vmem:[%s8 + $0x2f0] sm:$0xff] %v3595
  %3714 = vst [vmem:[%s8 + $0x2f8] sm:$0xff] %v3596
  %3715 = vst [vmem:[%s8 + $0x300] sm:$0xff] %v3597
  %3716 = vst [vmem:[%s8 + $0x308] sm:$0xff] %v3598
  %3717 = vst [vmem:[%s8 + $0x310] sm:$0xff] %v3599
  %3718 = vst [vmem:[%s8 + $0x318] sm:$0xff] %v3600
  %3719 = vst [vmem:[%s8 + $0x320] sm:$0xff] %v3601
  %3720 = vst [vmem:[%s8 + $0x328] sm:$0xff] %v3602
  %3721 = vst [vmem:[%s8 + $0x330] sm:$0xff] %v3603
  %3722 = vst [vmem:[%s8 + $0x338] sm:$0xff] %v3604
  %3723 = vst [vmem:[%s8 + $0x340] sm:$0xff] %v3605
  %3724 = vst [vmem:[%s8 + $0x348] sm:$0xff] %v3606
  %3725 = vst [vmem:[%s8 + $0x350] sm:$0xff] %v3607
  %3726 = vst [vmem:[%s8 + $0x358] sm:$0xff] %v3608
  %3727 = vst [vmem:[%s8 + $0x360] sm:$0xff] %v3609
  %3728 = vst [vmem:[%s8 + $0x368] sm:$0xff] %v3610
  %3729 = vst [vmem:[%s8 + $0x370] sm:$0xff] %v3611
  %3730 = vst [vmem:[%s8 + $0x378] sm:$0xff] %v3612
  %3731 = vst [vmem:[%s8 + $0x380] sm:$0xff] %v3613
  %3732 = vst [vmem:[%s8 + $0x388] sm:$0xff] %v3614
  %3733 = vst [vmem:[%s8 + $0x390] sm:$0xff] %v3615
  %3734 = vst [vmem:[%s8 + $0x398] sm:$0xff] %v3616
  %3735 = vst [vmem:[%s8 + $0x3a0] sm:$0xff] %v3617
  %3736 = vst [vmem:[%s8 + $0x3a8] sm:$0xff] %v3618
  // Predicated region
  $region30: #{bucket_forward.9} parent=0 // pred_check
    _
  $region31: #{bucket_forward.9} parent=0 // pred_check_branch
    %3738 = sbr.rel (0) target = $region33
  $region32: #{bucket_forward.9} parent=0 // pred_region
    _
  $region33: #{bucket_forward.9} parent=0 // pred_fallthru
    _
  // Predicated region
  $region34: #{bucket_forward.9} parent=0 // pred_check
    _
  $region35: #{bucket_forward.9} parent=0 // pred_check_branch
    %3740 = sbr.rel (0) target = $region37
  $region36: #{bucket_forward.9} parent=0 // pred_region
    _
  $region37: #{bucket_forward.9} parent=0 // pred_fallthru
    _
  // Predicated region
  $region38: #{bucket_forward.9} parent=0 // pred_check
    _
  $region39: #{bucket_forward.9} parent=0 // pred_check_branch
    %3742 = sbr.rel (0) target = $region41
  $region40: #{bucket_forward.9} parent=0 // pred_region
    _
  $region41: #{bucket_forward.9} parent=0 // pred_fallthru
    _
  // Predicated region
  $region42: #{bucket_forward.9} parent=0 // pred_check
    _
  $region43: #{bucket_forward.9} parent=0 // pred_check_branch
    %3744 = sbr.rel (0) target = $region45
  $region44: #{bucket_forward.9} parent=0 // pred_region
    _
  $region45: #{bucket_forward.9} parent=0 // pred_fallthru
    _

</llo_original>
